<compile_context>
chip_gen: v5e
topology: v5e:2x2
jax: 0.10.0
libtpu: 0.0.40
codegen_flags: <defaults>
</compile_context>

<pallas_src>
import functools

import jax
import jax.numpy as jnp
from jax import lax
from jax.experimental import pallas as pl
from jax.experimental.pallas import tpu as pltpu


# ------------------------------- kernel --------------------------------------


def _inception_kernel(x_ref, w1_ref, b1_ref, wp_ref, gnp_ref, p_ref, s_ref,
                      o_ref, col_ref, acc_ref, *, kmax, eps, slope, H, W):
    """Fused: 1x1 conv -> width-im2col scratch -> merged grouped conv (all branches)
    -> merged GroupNorm + LeakyReLU -> branch sum.

      x    : (1, H*W, C_in)             bf16
      w1   : (C_in, C_hid)              bf16
      b1   : (1, C_hid)                 f32
      wp   : (KMAX, KMAX*C_hid, NBC)    bf16   all branches zero-embedded + concatenated
      gnp  : (3, NBC)                   f32    rows = [conv bias, gamma, beta]
      P    : (NBC, NBC)                 f32    M @ M.T / (H*W*Cg)  (group broadcast)
      S    : (NBC, C_out)               f32    stacked identity (branch sum)
      out  : (1, H*W, C_out)            f32
      col  : (H+2*PAD, W, KMAX*C_hid)   bf16   col[r,u,j*C_hid+c] = hid_pad[r, u+j, c]
      acc  : (H*W, NBC)                 f32    conv accumulator
    """
    C_hid = w1_ref.shape[-1]
    KMAX = kmax
    PAD = KMAX // 2

    # ---- 1x1 conv: per-pixel matmul over channels (bf16 operands, f32 acc) ----
    h1 = jnp.dot(x_ref[0], w1_ref[...], preferred_element_type=jnp.float32)
    h1 = (h1 + b1_ref[...]).reshape(H, W, C_hid).astype(jnp.bfloat16)

    # ---- build width-im2col scratch (no width halo; clipped per-band stores) ----
    # Zero-fill every step on purpose: scratch is per-core under megacore partitioning,
    # so a pl.when(program_id==0) guard would leave stale halo data on the second core.
    col_ref[...] = jnp.zeros_like(col_ref)
    for j in range(KMAX):
        u0 = max(0, PAD - j)                 # first output column this band reaches
        u1 = min(W, W + PAD - j)             # one past the last
        v0 = max(0, j - PAD)                 # matching source column in h1
        if u1 > u0:
            col_ref[PAD:PAD + H, u0:u1, j * C_hid:(j + 1) * C_hid] = \
                h1[:, v0:v0 + (u1 - u0), :]

    # ---- merged grouped conv: one (H*W, KMAX*C_hid)@(KMAX*C_hid, NBC) dot per dy ----
    acc_ref[...] = jnp.zeros_like(acc_ref)
    for dy in range(KMAX):
        patch = col_ref[dy:dy + H].reshape(H * W, KMAX * C_hid)   # outer-dim slice only
        acc_ref[...] += jnp.dot(patch, wp_ref[dy],
                                preferred_element_type=jnp.float32)

    acc = acc_ref[...] + gnp_ref[0:1, :]                          # + conv bias (1, NBC)

    # ---- GroupNorm for all branches at once (two-pass, centered variance) ----
    # P broadcasts a per-channel row to its per-(branch,group) mean in one dot.
    s_c = jnp.sum(acc, axis=0, keepdims=True)                     # (1, NBC)
    mean_c = jnp.dot(s_c, p_ref[...], preferred_element_type=jnp.float32)
    cen = acc - mean_c
    q_c = jnp.sum(cen * cen, axis=0, keepdims=True)
    var_c = jnp.dot(q_c, p_ref[...], preferred_element_type=jnp.float32)
    scale = lax.rsqrt(var_c + eps) * gnp_ref[1:2, :]              # * gamma
    y = cen * scale + gnp_ref[2:3, :]                             # + beta
    y = jnp.where(y >= 0, y, slope * y)                           # LeakyReLU(0.2)

    # ---- sum the NB branches with one MXU dot against the stacked identity ----
    o_ref[0] = jnp.dot(y, s_ref[...], preferred_element_type=jnp.float32)


# ------------------------------- wrapper --------------------------------------


def inception_forward(x_nchw, params):
    """NCHW in / NCHW out. params = (w1, b1, merged_weight, gnp, P, S)."""
    w1, b1, wp, gnp, P, S = params
    N, C_in, H, W = x_nchw.shape
    C_hid = w1.shape[1]
    KMAX, KC, NBC = wp.shape
    C_out = S.shape[-1]
    PAD = KMAX // 2

    # NCHW -> (N, H*W, C) with bf16 activations / weights for the MXU.
    x = jnp.transpose(x_nchw, (0, 2, 3, 1)).reshape(N, H * W, C_in)
    x = x.astype(jnp.bfloat16)
    w1b = w1.astype(jnp.bfloat16)
    wpb = wp.astype(jnp.bfloat16)
    b1r = b1.reshape(1, C_hid).astype(jnp.float32)

    kern = functools.partial(_inception_kernel, kmax=KMAX, eps=1e-5, slope=0.2,
                             H=H, W=W)

    flops = N * (2 * H * W * C_in * C_hid            # 1x1 conv
                 + 2 * H * W * KMAX * KC * NBC       # merged grouped conv
                 + 2 * H * W * NBC * C_out)          # branch-sum dot
    bytes_accessed = (x.size * 2 + w1b.size * 2 + wpb.size * 2
                      + (b1r.size + gnp.size + P.size + S.size) * 4
                      + N * H * W * C_out * 4)

    out = pl.pallas_call(
        kern,
        out_shape=jax.ShapeDtypeStruct((N, H * W, C_out), jnp.float32),
        grid=(N,),
        in_specs=[
            pl.BlockSpec((1, H * W, C_in), lambda n: (n, 0, 0)),
            pl.BlockSpec((C_in, C_hid), lambda n: (0, 0)),
            pl.BlockSpec((1, C_hid), lambda n: (0, 0)),
            pl.BlockSpec((KMAX, KC, NBC), lambda n: (0, 0, 0)),
            pl.BlockSpec(gnp.shape, lambda n: (0, 0)),
            pl.BlockSpec(P.shape, lambda n: (0, 0)),
            pl.BlockSpec(S.shape, lambda n: (0, 0)),
        ],
        out_specs=pl.BlockSpec((1, H * W, C_out), lambda n: (n, 0, 0)),
        scratch_shapes=[
            pltpu.VMEM((H + 2 * PAD, W, KMAX * C_hid), jnp.bfloat16),   # im2col
            pltpu.VMEM((H * W, NBC), jnp.float32),                      # conv acc
        ],
        compiler_params=pltpu.CompilerParams(
            dimension_semantics=("parallel",)),
        cost_estimate=pl.CostEstimate(flops=flops, transcendentals=N * NBC,
                                      bytes_accessed=bytes_accessed),
    )(x, w1b, b1r, wpb, gnp, P, S)

    return jnp.transpose(out.reshape(N, H, W, C_out), (0, 3, 1, 2))


# ------------------------------- parameters -----------------------------------


def init_params(key, C_in, C_hid, C_out, incep_ker, groups, H, W):
    """Synthetic params.  All branches' grouped-conv weights are zero-embedded into the
    max (KMAX x KMAX) window and concatenated along the output dim, giving one dense
    (KMAX, KMAX*C_hid, NB*C_out) weight whose lane index is dx*C_hid + input_channel."""
    if C_hid % groups != 0:          # GroupConv2d fallback
        groups = 1
    Cin_g = C_hid // groups
    Cout_g = C_out // groups
    Cg = C_out // groups             # GroupNorm channels per group
    NB = len(incep_ker)
    KMAX = max(incep_ker)
    PAD = KMAX // 2

    keys = jax.random.split(key, 2 + 4 * NB)
    w1 = 0.2 * jax.random.normal(keys[0], (C_in, C_hid), jnp.float32)
    b1 = 0.1 * jax.random.normal(keys[1], (C_hid,), jnp.float32)

    Wm = jnp.zeros((KMAX, KMAX, C_hid, NB * C_out), jnp.float32)
    bias_all, gamma_all, beta_all, branches = [], [], [], []
    ki = 2
    for bi, k in enumerate(incep_ker):
        wg = 0.2 * jax.random.normal(keys[ki], (C_out, Cin_g, k, k), jnp.float32)
        bb = 0.1 * jax.random.normal(keys[ki + 1], (C_out,), jnp.float32)
        gg = 1.0 + 0.1 * jax.random.normal(keys[ki + 2], (C_out,), jnp.float32)
        be = 0.1 * jax.random.normal(keys[ki + 3], (C_out,), jnp.float32)
        ki += 4

        off = PAD - k // 2           # branch offset inside the max window
        for g in range(groups):
            blk = jnp.transpose(wg[g * Cout_g:(g + 1) * Cout_g], (2, 3, 1, 0))
            Wm = Wm.at[off:off + k, off:off + k,
                       g * Cin_g:(g + 1) * Cin_g,
                       bi * C_out + g * Cout_g:bi * C_out + (g + 1) * Cout_g].set(blk)
        bias_all.append(bb); gamma_all.append(gg); beta_all.append(be)
        branches.append((wg, bb, gg, be))

    Wm = Wm.reshape(KMAX, KMAX * C_hid, NB * C_out)
    gnp = jnp.stack([jnp.concatenate(bias_all),
                     jnp.concatenate(gamma_all),
                     jnp.concatenate(beta_all)], axis=0)          # (3, NB*C_out)

    # GroupNorm broadcast matrix P = M @ M.T / cnt and branch-sum matrix S.
    NBC = NB * C_out
    midx = jnp.arange(NBC)
    same_group = (midx[:, None] // Cg) == (midx[None, :] // Cg)
    P = same_group.astype(jnp.float32) / float(H * W * Cg)
    S = (midx[:, None] % C_out == jnp.arange(C_out)[None, :]).astype(jnp.float32)

    kernel_params = (w1, b1, Wm, gnp, P, S)
    ref_params = dict(w1=w1, b1=b1, branches=branches, groups=groups)
    return kernel_params, ref_params, groups


# ------------------------------- reference ------------------------------------


def inception_reference(x_nchw, ref_params):
    """Pure-JAX reference with the same bf16 operand rounding as the kernel."""
    w1, b1 = ref_params["w1"], ref_params["b1"]
    branches, groups = ref_params["branches"], ref_params["groups"]
    f32, bf16 = jnp.float32, jnp.bfloat16

    xr = x_nchw.astype(bf16).astype(f32)
    w1r = w1.astype(bf16).astype(f32)
    hid = jnp.einsum("nchw,cd->ndhw", xr, w1r) + b1[None, :, None, None]
    hid = hid.astype(bf16).astype(f32)

    y = 0.0
    for (wg, bb, gg, be) in branches:
        k = wg.shape[-1]
        wgr = wg.astype(bf16).astype(f32)
        conv = lax.conv_general_dilated(
            hid, wgr, window_strides=(1, 1),
            padding=[(k // 2, k // 2), (k // 2, k // 2)],
            dimension_numbers=("NCHW", "OIHW", "NCHW"),
            feature_group_count=groups)
        conv = conv + bb[None, :, None, None]
        N, C, H, W = conv.shape
        cgrp = conv.reshape(N, groups, C // groups, H, W)
        mean = cgrp.mean(axis=(2, 3, 4), keepdims=True)
        var = ((cgrp - mean) ** 2).mean(axis=(2, 3, 4), keepdims=True)
        gn = ((cgrp - mean) / jnp.sqrt(var + 1e-5)).reshape(N, C, H, W)
        gn = gn * gg[None, :, None, None] + be[None, :, None, None]
        y = y + jnp.where(gn >= 0, gn, 0.2 * gn)
    return y


# --------------------------------- main ----------------------------------------


if __name__ == "__main__":
    key = jax.random.PRNGKey(0)
    kp, kx = jax.random.split(key)

    C_in, C_hid, C_out = 4, 16, 16
    incep_ker = [3, 5, 7, 11]
    groups = 8
    N, H, W = 2, 16, 16

    params, ref_params, groups = init_params(kp, C_in, C_hid, C_out,
                                             incep_ker, groups, H, W)
    x = jax.random.normal(kx, (N, C_in, H, W), jnp.float32)   # NCHW like PyTorch

    fwd = jax.jit(inception_forward)
    y = jax.block_until_ready(fwd(x, params))

    assert y.shape == (N, C_out, H, W)
    assert bool(jnp.all(jnp.isfinite(y)))

    y_ref = inception_reference(x, ref_params)
    err = float(jnp.max(jnp.abs(y - y_ref)))
    assert err < 5e-2, f"max abs err vs reference: {err}"
    print("KERNEL_OK")
</pallas_src>

<mosaic_0001>
module attributes {stable_mosaic.version = 11 : i64} {
  func.func @_inception_kernel(%arg0: i32, %arg1: memref<1x256x4xbf16, #tpu.memory_space<vmem>>, %arg2: memref<4x16xbf16, #tpu.memory_space<vmem>>, %arg3: memref<1x16xf32, #tpu.memory_space<vmem>>, %arg4: memref<11x176x64xbf16, #tpu.memory_space<vmem>>, %arg5: memref<3x64xf32, #tpu.memory_space<vmem>>, %arg6: memref<64x64xf32, #tpu.memory_space<vmem>>, %arg7: memref<64x16xf32, #tpu.memory_space<vmem>>, %arg8: memref<1x256x16xf32, #tpu.memory_space<vmem>>, %arg9: memref<26x16x176xbf16, #tpu.memory_space<vmem>>, %arg10: memref<256x64xf32, #tpu.memory_space<vmem>>) attributes {dimension_semantics = [#tpu.dimension_semantics<parallel>], iteration_bounds = array<i64: 2>, scalar_prefetch = 0 : i64, scratch_operands = 2 : i64, tpu.core_type = #tpu.core_type<tc>, window_params = [{transform_indices = @transform_0, window_bounds = array<i64: 1, 256, 4>}, {pipeline_mode = #tpu.pipeline_mode<synchronous>, transform_indices = @transform_1, window_bounds = array<i64: 4, 16>}, {pipeline_mode = #tpu.pipeline_mode<synchronous>, transform_indices = @transform_2, window_bounds = array<i64: 1, 16>}, {pipeline_mode = #tpu.pipeline_mode<synchronous>, transform_indices = @transform_3, window_bounds = array<i64: 11, 176, 64>}, {pipeline_mode = #tpu.pipeline_mode<synchronous>, transform_indices = @transform_4, window_bounds = array<i64: 3, 64>}, {pipeline_mode = #tpu.pipeline_mode<synchronous>, transform_indices = @transform_5, window_bounds = array<i64: 64, 64>}, {pipeline_mode = #tpu.pipeline_mode<synchronous>, transform_indices = @transform_6, window_bounds = array<i64: 64, 16>}, {transform_indices = @transform_7, window_bounds = array<i64: 1, 256, 16>}]} {
    %c0 = arith.constant 0 : index
    %c0_0 = arith.constant 0 : index
    %c0_1 = arith.constant 0 : index
    %0 = vector.load %arg1[%c0, %c0_0, %c0_1] : memref<1x256x4xbf16, #tpu.memory_space<vmem>>, vector<1x256x4xbf16>
    %1 = vector.shape_cast %0 : vector<1x256x4xbf16> to vector<256x4xbf16>
    %c0_2 = arith.constant 0 : index
    %c0_3 = arith.constant 0 : index
    %2 = vector.load %arg2[%c0_2, %c0_3] : memref<4x16xbf16, #tpu.memory_space<vmem>>, vector<4x16xbf16>
    %cst = arith.constant dense<0.000000e+00> : vector<256x16xf32>
    %3 = tpu.matmul %1, %2, %cst {dimension_numbers = #tpu.dot_dimension_numbers<[1], [0], [0], [1], [0, 0, 1, 1], [], []>} : vector<256x4xbf16>, vector<4x16xbf16>, vector<256x16xf32> -> vector<256x16xf32>
    %c0_4 = arith.constant 0 : index
    %c0_5 = arith.constant 0 : index
    %4 = vector.load %arg3[%c0_4, %c0_5] : memref<1x16xf32, #tpu.memory_space<vmem>>, vector<1x16xf32>
    %5 = vector.broadcast %4 : vector<1x16xf32> to vector<256x16xf32>
    %6 = arith.addf %3, %5 : vector<256x16xf32>
    %7 = vector.shape_cast %6 : vector<256x16xf32> to vector<16x16x16xf32>
    %8 = arith.truncf %7 : vector<16x16x16xf32> to vector<16x16x16xbf16>
    %cst_6 = arith.constant 0.000000e+00 : bf16
    %9 = vector.broadcast %cst_6 : bf16 to vector<26x16x176xbf16>
    %c0_7 = arith.constant 0 : index
    %c0_8 = arith.constant 0 : index
    %c0_9 = arith.constant 0 : index
    %10 = vector.load %arg9[%c0_7, %c0_8, %c0_9] : memref<26x16x176xbf16, #tpu.memory_space<vmem>>, vector<26x16x176xbf16>
    tpu.vector_store %arg9[%c0_7, %c0_8, %c0_9], %9 {strides = array<i32>} : memref<26x16x176xbf16, #tpu.memory_space<vmem>>, vector<26x16x176xbf16>,
    %11 = vector.extract_strided_slice %8 {offsets = [0, 0, 0], sizes = [16, 11, 16], strides = [1, 1, 1]} : vector<16x16x16xbf16> to vector<16x11x16xbf16>
    %c5 = arith.constant 5 : index
    %c5_10 = arith.constant 5 : index
    %c0_11 = arith.constant 0 : index
    %12 = vector.load %arg9[%c5, %c5_10, %c0_11] : memref<26x16x176xbf16, #tpu.memory_space<vmem>>, vector<16x11x16xbf16>
    tpu.vector_store %arg9[%c5, %c5_10, %c0_11], %11 {strides = array<i32>} : memref<26x16x176xbf16, #tpu.memory_space<vmem>>, vector<16x11x16xbf16>,
    %13 = vector.extract_strided_slice %8 {offsets = [0, 0, 0], sizes = [16, 12, 16], strides = [1, 1, 1]} : vector<16x16x16xbf16> to vector<16x12x16xbf16>
    %c5_12 = arith.constant 5 : index
    %c4 = arith.constant 4 : index
    %c16 = arith.constant 16 : index
    %14 = vector.load %arg9[%c5_12, %c4, %c16] : memref<26x16x176xbf16, #tpu.memory_space<vmem>>, vector<16x12x16xbf16>
    tpu.vector_store %arg9[%c5_12, %c4, %c16], %13 {strides = array<i32>} : memref<26x16x176xbf16, #tpu.memory_space<vmem>>, vector<16x12x16xbf16>,
    %15 = vector.extract_strided_slice %8 {offsets = [0, 0, 0], sizes = [16, 13, 16], strides = [1, 1, 1]} : vector<16x16x16xbf16> to vector<16x13x16xbf16>
    %c5_13 = arith.constant 5 : index
    %c3 = arith.constant 3 : index
    %c32 = arith.constant 32 : index
    %16 = vector.load %arg9[%c5_13, %c3, %c32] : memref<26x16x176xbf16, #tpu.memory_space<vmem>>, vector<16x13x16xbf16>
    tpu.vector_store %arg9[%c5_13, %c3, %c32], %15 {strides = array<i32>} : memref<26x16x176xbf16, #tpu.memory_space<vmem>>, vector<16x13x16xbf16>,
    %17 = vector.extract_strided_slice %8 {offsets = [0, 0, 0], sizes = [16, 14, 16], strides = [1, 1, 1]} : vector<16x16x16xbf16> to vector<16x14x16xbf16>
    %c5_14 = arith.constant 5 : index
    %c2 = arith.constant 2 : index
    %c48 = arith.constant 48 : index
    %18 = vector.load %arg9[%c5_14, %c2, %c48] : memref<26x16x176xbf16, #tpu.memory_space<vmem>>, vector<16x14x16xbf16>
    tpu.vector_store %arg9[%c5_14, %c2, %c48], %17 {strides = array<i32>} : memref<26x16x176xbf16, #tpu.memory_space<vmem>>, vector<16x14x16xbf16>,
    %19 = vector.extract_strided_slice %8 {offsets = [0, 0, 0], sizes = [16, 15, 16], strides = [1, 1, 1]} : vector<16x16x16xbf16> to vector<16x15x16xbf16>
    %c5_15 = arith.constant 5 : index
    %c1 = arith.constant 1 : index
    %c64 = arith.constant 64 : index
    %20 = vector.load %arg9[%c5_15, %c1, %c64] : memref<26x16x176xbf16, #tpu.memory_space<vmem>>, vector<16x15x16xbf16>
    tpu.vector_store %arg9[%c5_15, %c1, %c64], %19 {strides = array<i32>} : memref<26x16x176xbf16, #tpu.memory_space<vmem>>, vector<16x15x16xbf16>,
    %c5_16 = arith.constant 5 : index
    %c0_17 = arith.constant 0 : index
    %c80 = arith.constant 80 : index
    %21 = vector.load %arg9[%c5_16, %c0_17, %c80] : memref<26x16x176xbf16, #tpu.memory_space<vmem>>, vector<16x16x16xbf16>
    tpu.vector_store %arg9[%c5_16, %c0_17, %c80], %8 {strides = array<i32>} : memref<26x16x176xbf16, #tpu.memory_space<vmem>>, vector<16x16x16xbf16>,
    %22 = vector.extract_strided_slice %8 {offsets = [0, 1, 0], sizes = [16, 15, 16], strides = [1, 1, 1]} : vector<16x16x16xbf16> to vector<16x15x16xbf16>
    %c5_18 = arith.constant 5 : index
    %c0_19 = arith.constant 0 : index
    %c96 = arith.constant 96 : index
    %23 = vector.load %arg9[%c5_18, %c0_19, %c96] : memref<26x16x176xbf16, #tpu.memory_space<vmem>>, vector<16x15x16xbf16>
    tpu.vector_store %arg9[%c5_18, %c0_19, %c96], %22 {strides = array<i32>} : memref<26x16x176xbf16, #tpu.memory_space<vmem>>, vector<16x15x16xbf16>,
    %24 = vector.extract_strided_slice %8 {offsets = [0, 2, 0], sizes = [16, 14, 16], strides = [1, 1, 1]} : vector<16x16x16xbf16> to vector<16x14x16xbf16>
    %c5_20 = arith.constant 5 : index
    %c0_21 = arith.constant 0 : index
    %c112 = arith.constant 112 : index
    %25 = vector.load %arg9[%c5_20, %c0_21, %c112] : memref<26x16x176xbf16, #tpu.memory_space<vmem>>, vector<16x14x16xbf16>
    tpu.vector_store %arg9[%c5_20, %c0_21, %c112], %24 {strides = array<i32>} : memref<26x16x176xbf16, #tpu.memory_space<vmem>>, vector<16x14x16xbf16>,
    %26 = vector.extract_strided_slice %8 {offsets = [0, 3, 0], sizes = [16, 13, 16], strides = [1, 1, 1]} : vector<16x16x16xbf16> to vector<16x13x16xbf16>
    %c5_22 = arith.constant 5 : index
    %c0_23 = arith.constant 0 : index
    %c128 = arith.constant 128 : index
    %27 = vector.load %arg9[%c5_22, %c0_23, %c128] : memref<26x16x176xbf16, #tpu.memory_space<vmem>>, vector<16x13x16xbf16>
    tpu.vector_store %arg9[%c5_22, %c0_23, %c128], %26 {strides = array<i32>} : memref<26x16x176xbf16, #tpu.memory_space<vmem>>, vector<16x13x16xbf16>,
    %28 = vector.extract_strided_slice %8 {offsets = [0, 4, 0], sizes = [16, 12, 16], strides = [1, 1, 1]} : vector<16x16x16xbf16> to vector<16x12x16xbf16>
    %c5_24 = arith.constant 5 : index
    %c0_25 = arith.constant 0 : index
    %c144 = arith.constant 144 : index
    %29 = vector.load %arg9[%c5_24, %c0_25, %c144] : memref<26x16x176xbf16, #tpu.memory_space<vmem>>, vector<16x12x16xbf16>
    tpu.vector_store %arg9[%c5_24, %c0_25, %c144], %28 {strides = array<i32>} : memref<26x16x176xbf16, #tpu.memory_space<vmem>>, vector<16x12x16xbf16>,
    %30 = vector.extract_strided_slice %8 {offsets = [0, 5, 0], sizes = [16, 11, 16], strides = [1, 1, 1]} : vector<16x16x16xbf16> to vector<16x11x16xbf16>
    %c5_26 = arith.constant 5 : index
    %c0_27 = arith.constant 0 : index
    %c160 = arith.constant 160 : index
    %31 = vector.load %arg9[%c5_26, %c0_27, %c160] : memref<26x16x176xbf16, #tpu.memory_space<vmem>>, vector<16x11x16xbf16>
    tpu.vector_store %arg9[%c5_26, %c0_27, %c160], %30 {strides = array<i32>} : memref<26x16x176xbf16, #tpu.memory_space<vmem>>, vector<16x11x16xbf16>,
    %cst_28 = arith.constant 0.000000e+00 : f32
    %32 = vector.broadcast %cst_28 : f32 to vector<256x64xf32>
    %c0_29 = arith.constant 0 : index
    %c0_30 = arith.constant 0 : index
    %33 = vector.load %arg10[%c0_29, %c0_30] : memref<256x64xf32, #tpu.memory_space<vmem>>, vector<256x64xf32>
    tpu.vector_store %arg10[%c0_29, %c0_30], %32 {strides = array<i32>} : memref<256x64xf32, #tpu.memory_space<vmem>>, vector<256x64xf32>,
    %c0_31 = arith.constant 0 : index
    %c0_32 = arith.constant 0 : index
    %c0_33 = arith.constant 0 : index
    %34 = vector.load %arg9[%c0_31, %c0_32, %c0_33] : memref<26x16x176xbf16, #tpu.memory_space<vmem>>, vector<16x16x176xbf16>
    %35 = vector.shape_cast %34 : vector<16x16x176xbf16> to vector<256x176xbf16>
    %c0_34 = arith.constant 0 : index
    %c0_35 = arith.constant 0 : index
    %36 = vector.load %arg10[%c0_34, %c0_35] : memref<256x64xf32, #tpu.memory_space<vmem>>, vector<256x64xf32>
    %c0_36 = arith.constant 0 : index
    %c0_37 = arith.constant 0 : index
    %c0_38 = arith.constant 0 : index
    %37 = vector.load %arg4[%c0_36, %c0_37, %c0_38] : memref<11x176x64xbf16, #tpu.memory_space<vmem>>, vector<1x176x64xbf16>
    %38 = vector.shape_cast %37 : vector<1x176x64xbf16> to vector<176x64xbf16>
    %cst_39 = arith.constant dense<0.000000e+00> : vector<256x64xf32>
    %39 = tpu.matmul %35, %38, %cst_39 {dimension_numbers = #tpu.dot_dimension_numbers<[1], [0], [0], [1], [0, 0, 1, 1], [], []>} : vector<256x176xbf16>, vector<176x64xbf16>, vector<256x64xf32> -> vector<256x64xf32>
    %40 = arith.addf %36, %39 : vector<256x64xf32>
    %c0_40 = arith.constant 0 : index
    %c0_41 = arith.constant 0 : index
    %41 = vector.load %arg10[%c0_40, %c0_41] : memref<256x64xf32, #tpu.memory_space<vmem>>, vector<256x64xf32>
    tpu.vector_store %arg10[%c0_40, %c0_41], %40 {strides = array<i32>} : memref<256x64xf32, #tpu.memory_space<vmem>>, vector<256x64xf32>,
    %c1_42 = arith.constant 1 : index
    %c0_43 = arith.constant 0 : index
    %c0_44 = arith.constant 0 : index
    %42 = vector.load %arg9[%c1_42, %c0_43, %c0_44] : memref<26x16x176xbf16, #tpu.memory_space<vmem>>, vector<16x16x176xbf16>
    %43 = vector.shape_cast %42 : vector<16x16x176xbf16> to vector<256x176xbf16>
    %c0_45 = arith.constant 0 : index
    %c0_46 = arith.constant 0 : index
    %44 = vector.load %arg10[%c0_45, %c0_46] : memref<256x64xf32, #tpu.memory_space<vmem>>, vector<256x64xf32>
    %c1_47 = arith.constant 1 : index
    %c0_48 = arith.constant 0 : index
    %c0_49 = arith.constant 0 : index
    %45 = vector.load %arg4[%c1_47, %c0_48, %c0_49] : memref<11x176x64xbf16, #tpu.memory_space<vmem>>, vector<1x176x64xbf16>
    %46 = vector.shape_cast %45 : vector<1x176x64xbf16> to vector<176x64xbf16>
    %cst_50 = arith.constant dense<0.000000e+00> : vector<256x64xf32>
    %47 = tpu.matmul %43, %46, %cst_50 {dimension_numbers = #tpu.dot_dimension_numbers<[1], [0], [0], [1], [0, 0, 1, 1], [], []>} : vector<256x176xbf16>, vector<176x64xbf16>, vector<256x64xf32> -> vector<256x64xf32>
    %48 = arith.addf %44, %47 : vector<256x64xf32>
    %c0_51 = arith.constant 0 : index
    %c0_52 = arith.constant 0 : index
    %49 = vector.load %arg10[%c0_51, %c0_52] : memref<256x64xf32, #tpu.memory_space<vmem>>, vector<256x64xf32>
    tpu.vector_store %arg10[%c0_51, %c0_52], %48 {strides = array<i32>} : memref<256x64xf32, #tpu.memory_space<vmem>>, vector<256x64xf32>,
    %c2_53 = arith.constant 2 : index
    %c0_54 = arith.constant 0 : index
    %c0_55 = arith.constant 0 : index
    %50 = vector.load %arg9[%c2_53, %c0_54, %c0_55] : memref<26x16x176xbf16, #tpu.memory_space<vmem>>, vector<16x16x176xbf16>
    %51 = vector.shape_cast %50 : vector<16x16x176xbf16> to vector<256x176xbf16>
    %c0_56 = arith.constant 0 : index
    %c0_57 = arith.constant 0 : index
    %52 = vector.load %arg10[%c0_56, %c0_57] : memref<256x64xf32, #tpu.memory_space<vmem>>, vector<256x64xf32>
    %c2_58 = arith.constant 2 : index
    %c0_59 = arith.constant 0 : index
    %c0_60 = arith.constant 0 : index
    %53 = vector.load %arg4[%c2_58, %c0_59, %c0_60] : memref<11x176x64xbf16, #tpu.memory_space<vmem>>, vector<1x176x64xbf16>
    %54 = vector.shape_cast %53 : vector<1x176x64xbf16> to vector<176x64xbf16>
    %cst_61 = arith.constant dense<0.000000e+00> : vector<256x64xf32>
    %55 = tpu.matmul %51, %54, %cst_61 {dimension_numbers = #tpu.dot_dimension_numbers<[1], [0], [0], [1], [0, 0, 1, 1], [], []>} : vector<256x176xbf16>, vector<176x64xbf16>, vector<256x64xf32> -> vector<256x64xf32>
    %56 = arith.addf %52, %55 : vector<256x64xf32>
    %c0_62 = arith.constant 0 : index
    %c0_63 = arith.constant 0 : index
    %57 = vector.load %arg10[%c0_62, %c0_63] : memref<256x64xf32, #tpu.memory_space<vmem>>, vector<256x64xf32>
    tpu.vector_store %arg10[%c0_62, %c0_63], %56 {strides = array<i32>} : memref<256x64xf32, #tpu.memory_space<vmem>>, vector<256x64xf32>,
    %c3_64 = arith.constant 3 : index
    %c0_65 = arith.constant 0 : index
    %c0_66 = arith.constant 0 : index
    %58 = vector.load %arg9[%c3_64, %c0_65, %c0_66] : memref<26x16x176xbf16, #tpu.memory_space<vmem>>, vector<16x16x176xbf16>
    %59 = vector.shape_cast %58 : vector<16x16x176xbf16> to vector<256x176xbf16>
    %c0_67 = arith.constant 0 : index
    %c0_68 = arith.constant 0 : index
    %60 = vector.load %arg10[%c0_67, %c0_68] : memref<256x64xf32, #tpu.memory_space<vmem>>, vector<256x64xf32>
    %c3_69 = arith.constant 3 : index
    %c0_70 = arith.constant 0 : index
    %c0_71 = arith.constant 0 : index
    %61 = vector.load %arg4[%c3_69, %c0_70, %c0_71] : memref<11x176x64xbf16, #tpu.memory_space<vmem>>, vector<1x176x64xbf16>
    %62 = vector.shape_cast %61 : vector<1x176x64xbf16> to vector<176x64xbf16>
    %cst_72 = arith.constant dense<0.000000e+00> : vector<256x64xf32>
    %63 = tpu.matmul %59, %62, %cst_72 {dimension_numbers = #tpu.dot_dimension_numbers<[1], [0], [0], [1], [0, 0, 1, 1], [], []>} : vector<256x176xbf16>, vector<176x64xbf16>, vector<256x64xf32> -> vector<256x64xf32>
    %64 = arith.addf %60, %63 : vector<256x64xf32>
    %c0_73 = arith.constant 0 : index
    %c0_74 = arith.constant 0 : index
    %65 = vector.load %arg10[%c0_73, %c0_74] : memref<256x64xf32, #tpu.memory_space<vmem>>, vector<256x64xf32>
    tpu.vector_store %arg10[%c0_73, %c0_74], %64 {strides = array<i32>} : memref<256x64xf32, #tpu.memory_space<vmem>>, vector<256x64xf32>,
    %c4_75 = arith.constant 4 : index
    %c0_76 = arith.constant 0 : index
    %c0_77 = arith.constant 0 : index
    %66 = vector.load %arg9[%c4_75, %c0_76, %c0_77] : memref<26x16x176xbf16, #tpu.memory_space<vmem>>, vector<16x16x176xbf16>
    %67 = vector.shape_cast %66 : vector<16x16x176xbf16> to vector<256x176xbf16>
    %c0_78 = arith.constant 0 : index
    %c0_79 = arith.constant 0 : index
    %68 = vector.load %arg10[%c0_78, %c0_79] : memref<256x64xf32, #tpu.memory_space<vmem>>, vector<256x64xf32>
    %c4_80 = arith.constant 4 : index
    %c0_81 = arith.constant 0 : index
    %c0_82 = arith.constant 0 : index
    %69 = vector.load %arg4[%c4_80, %c0_81, %c0_82] : memref<11x176x64xbf16, #tpu.memory_space<vmem>>, vector<1x176x64xbf16>
    %70 = vector.shape_cast %69 : vector<1x176x64xbf16> to vector<176x64xbf16>
    %cst_83 = arith.constant dense<0.000000e+00> : vector<256x64xf32>
    %71 = tpu.matmul %67, %70, %cst_83 {dimension_numbers = #tpu.dot_dimension_numbers<[1], [0], [0], [1], [0, 0, 1, 1], [], []>} : vector<256x176xbf16>, vector<176x64xbf16>, vector<256x64xf32> -> vector<256x64xf32>
    %72 = arith.addf %68, %71 : vector<256x64xf32>
    %c0_84 = arith.constant 0 : index
    %c0_85 = arith.constant 0 : index
    %73 = vector.load %arg10[%c0_84, %c0_85] : memref<256x64xf32, #tpu.memory_space<vmem>>, vector<256x64xf32>
    tpu.vector_store %arg10[%c0_84, %c0_85], %72 {strides = array<i32>} : memref<256x64xf32, #tpu.memory_space<vmem>>, vector<256x64xf32>,
    %c5_86 = arith.constant 5 : index
    %c0_87 = arith.constant 0 : index
    %c0_88 = arith.constant 0 : index
    %74 = vector.load %arg9[%c5_86, %c0_87, %c0_88] : memref<26x16x176xbf16, #tpu.memory_space<vmem>>, vector<16x16x176xbf16>
    %75 = vector.shape_cast %74 : vector<16x16x176xbf16> to vector<256x176xbf16>
    %c0_89 = arith.constant 0 : index
    %c0_90 = arith.constant 0 : index
    %76 = vector.load %arg10[%c0_89, %c0_90] : memref<256x64xf32, #tpu.memory_space<vmem>>, vector<256x64xf32>
    %c5_91 = arith.constant 5 : index
    %c0_92 = arith.constant 0 : index
    %c0_93 = arith.constant 0 : index
    %77 = vector.load %arg4[%c5_91, %c0_92, %c0_93] : memref<11x176x64xbf16, #tpu.memory_space<vmem>>, vector<1x176x64xbf16>
    %78 = vector.shape_cast %77 : vector<1x176x64xbf16> to vector<176x64xbf16>
    %cst_94 = arith.constant dense<0.000000e+00> : vector<256x64xf32>
    %79 = tpu.matmul %75, %78, %cst_94 {dimension_numbers = #tpu.dot_dimension_numbers<[1], [0], [0], [1], [0, 0, 1, 1], [], []>} : vector<256x176xbf16>, vector<176x64xbf16>, vector<256x64xf32> -> vector<256x64xf32>
    %80 = arith.addf %76, %79 : vector<256x64xf32>
    %c0_95 = arith.constant 0 : index
    %c0_96 = arith.constant 0 : index
    %81 = vector.load %arg10[%c0_95, %c0_96] : memref<256x64xf32, #tpu.memory_space<vmem>>, vector<256x64xf32>
    tpu.vector_store %arg10[%c0_95, %c0_96], %80 {strides = array<i32>} : memref<256x64xf32, #tpu.memory_space<vmem>>, vector<256x64xf32>,
    %c6 = arith.constant 6 : index
    %c0_97 = arith.constant 0 : index
    %c0_98 = arith.constant 0 : index
    %82 = vector.load %arg9[%c6, %c0_97, %c0_98] : memref<26x16x176xbf16, #tpu.memory_space<vmem>>, vector<16x16x176xbf16>
    %83 = vector.shape_cast %82 : vector<16x16x176xbf16> to vector<256x176xbf16>
    %c0_99 = arith.constant 0 : index
    %c0_100 = arith.constant 0 : index
    %84 = vector.load %arg10[%c0_99, %c0_100] : memref<256x64xf32, #tpu.memory_space<vmem>>, vector<256x64xf32>
    %c6_101 = arith.constant 6 : index
    %c0_102 = arith.constant 0 : index
    %c0_103 = arith.constant 0 : index
    %85 = vector.load %arg4[%c6_101, %c0_102, %c0_103] : memref<11x176x64xbf16, #tpu.memory_space<vmem>>, vector<1x176x64xbf16>
    %86 = vector.shape_cast %85 : vector<1x176x64xbf16> to vector<176x64xbf16>
    %cst_104 = arith.constant dense<0.000000e+00> : vector<256x64xf32>
    %87 = tpu.matmul %83, %86, %cst_104 {dimension_numbers = #tpu.dot_dimension_numbers<[1], [0], [0], [1], [0, 0, 1, 1], [], []>} : vector<256x176xbf16>, vector<176x64xbf16>, vector<256x64xf32> -> vector<256x64xf32>
    %88 = arith.addf %84, %87 : vector<256x64xf32>
    %c0_105 = arith.constant 0 : index
    %c0_106 = arith.constant 0 : index
    %89 = vector.load %arg10[%c0_105, %c0_106] : memref<256x64xf32, #tpu.memory_space<vmem>>, vector<256x64xf32>
    tpu.vector_store %arg10[%c0_105, %c0_106], %88 {strides = array<i32>} : memref<256x64xf32, #tpu.memory_space<vmem>>, vector<256x64xf32>,
    %c7 = arith.constant 7 : index
    %c0_107 = arith.constant 0 : index
    %c0_108 = arith.constant 0 : index
    %90 = vector.load %arg9[%c7, %c0_107, %c0_108] : memref<26x16x176xbf16, #tpu.memory_space<vmem>>, vector<16x16x176xbf16>
    %91 = vector.shape_cast %90 : vector<16x16x176xbf16> to vector<256x176xbf16>
    %c0_109 = arith.constant 0 : index
    %c0_110 = arith.constant 0 : index
    %92 = vector.load %arg10[%c0_109, %c0_110] : memref<256x64xf32, #tpu.memory_space<vmem>>, vector<256x64xf32>
    %c7_111 = arith.constant 7 : index
    %c0_112 = arith.constant 0 : index
    %c0_113 = arith.constant 0 : index
    %93 = vector.load %arg4[%c7_111, %c0_112, %c0_113] : memref<11x176x64xbf16, #tpu.memory_space<vmem>>, vector<1x176x64xbf16>
    %94 = vector.shape_cast %93 : vector<1x176x64xbf16> to vector<176x64xbf16>
    %cst_114 = arith.constant dense<0.000000e+00> : vector<256x64xf32>
    %95 = tpu.matmul %91, %94, %cst_114 {dimension_numbers = #tpu.dot_dimension_numbers<[1], [0], [0], [1], [0, 0, 1, 1], [], []>} : vector<256x176xbf16>, vector<176x64xbf16>, vector<256x64xf32> -> vector<256x64xf32>
    %96 = arith.addf %92, %95 : vector<256x64xf32>
    %c0_115 = arith.constant 0 : index
    %c0_116 = arith.constant 0 : index
    %97 = vector.load %arg10[%c0_115, %c0_116] : memref<256x64xf32, #tpu.memory_space<vmem>>, vector<256x64xf32>
    tpu.vector_store %arg10[%c0_115, %c0_116], %96 {strides = array<i32>} : memref<256x64xf32, #tpu.memory_space<vmem>>, vector<256x64xf32>,
    %c8 = arith.constant 8 : index
    %c0_117 = arith.constant 0 : index
    %c0_118 = arith.constant 0 : index
    %98 = vector.load %arg9[%c8, %c0_117, %c0_118] : memref<26x16x176xbf16, #tpu.memory_space<vmem>>, vector<16x16x176xbf16>
    %99 = vector.shape_cast %98 : vector<16x16x176xbf16> to vector<256x176xbf16>
    %c0_119 = arith.constant 0 : index
    %c0_120 = arith.constant 0 : index
    %100 = vector.load %arg10[%c0_119, %c0_120] : memref<256x64xf32, #tpu.memory_space<vmem>>, vector<256x64xf32>
    %c8_121 = arith.constant 8 : index
    %c0_122 = arith.constant 0 : index
    %c0_123 = arith.constant 0 : index
    %101 = vector.load %arg4[%c8_121, %c0_122, %c0_123] : memref<11x176x64xbf16, #tpu.memory_space<vmem>>, vector<1x176x64xbf16>
    %102 = vector.shape_cast %101 : vector<1x176x64xbf16> to vector<176x64xbf16>
    %cst_124 = arith.constant dense<0.000000e+00> : vector<256x64xf32>
    %103 = tpu.matmul %99, %102, %cst_124 {dimension_numbers = #tpu.dot_dimension_numbers<[1], [0], [0], [1], [0, 0, 1, 1], [], []>} : vector<256x176xbf16>, vector<176x64xbf16>, vector<256x64xf32> -> vector<256x64xf32>
    %104 = arith.addf %100, %103 : vector<256x64xf32>
    %c0_125 = arith.constant 0 : index
    %c0_126 = arith.constant 0 : index
    %105 = vector.load %arg10[%c0_125, %c0_126] : memref<256x64xf32, #tpu.memory_space<vmem>>, vector<256x64xf32>
    tpu.vector_store %arg10[%c0_125, %c0_126], %104 {strides = array<i32>} : memref<256x64xf32, #tpu.memory_space<vmem>>, vector<256x64xf32>,
    %c9 = arith.constant 9 : index
    %c0_127 = arith.constant 0 : index
    %c0_128 = arith.constant 0 : index
    %106 = vector.load %arg9[%c9, %c0_127, %c0_128] : memref<26x16x176xbf16, #tpu.memory_space<vmem>>, vector<16x16x176xbf16>
    %107 = vector.shape_cast %106 : vector<16x16x176xbf16> to vector<256x176xbf16>
    %c0_129 = arith.constant 0 : index
    %c0_130 = arith.constant 0 : index
    %108 = vector.load %arg10[%c0_129, %c0_130] : memref<256x64xf32, #tpu.memory_space<vmem>>, vector<256x64xf32>
    %c9_131 = arith.constant 9 : index
    %c0_132 = arith.constant 0 : index
    %c0_133 = arith.constant 0 : index
    %109 = vector.load %arg4[%c9_131, %c0_132, %c0_133] : memref<11x176x64xbf16, #tpu.memory_space<vmem>>, vector<1x176x64xbf16>
    %110 = vector.shape_cast %109 : vector<1x176x64xbf16> to vector<176x64xbf16>
    %cst_134 = arith.constant dense<0.000000e+00> : vector<256x64xf32>
    %111 = tpu.matmul %107, %110, %cst_134 {dimension_numbers = #tpu.dot_dimension_numbers<[1], [0], [0], [1], [0, 0, 1, 1], [], []>} : vector<256x176xbf16>, vector<176x64xbf16>, vector<256x64xf32> -> vector<256x64xf32>
    %112 = arith.addf %108, %111 : vector<256x64xf32>
    %c0_135 = arith.constant 0 : index
    %c0_136 = arith.constant 0 : index
    %113 = vector.load %arg10[%c0_135, %c0_136] : memref<256x64xf32, #tpu.memory_space<vmem>>, vector<256x64xf32>
    tpu.vector_store %arg10[%c0_135, %c0_136], %112 {strides = array<i32>} : memref<256x64xf32, #tpu.memory_space<vmem>>, vector<256x64xf32>,
    %c10 = arith.constant 10 : index
    %c0_137 = arith.constant 0 : index
    %c0_138 = arith.constant 0 : index
    %114 = vector.load %arg9[%c10, %c0_137, %c0_138] : memref<26x16x176xbf16, #tpu.memory_space<vmem>>, vector<16x16x176xbf16>
    %115 = vector.shape_cast %114 : vector<16x16x176xbf16> to vector<256x176xbf16>
    %c0_139 = arith.constant 0 : index
    %c0_140 = arith.constant 0 : index
    %116 = vector.load %arg10[%c0_139, %c0_140] : memref<256x64xf32, #tpu.memory_space<vmem>>, vector<256x64xf32>
    %c10_141 = arith.constant 10 : index
    %c0_142 = arith.constant 0 : index
    %c0_143 = arith.constant 0 : index
    %117 = vector.load %arg4[%c10_141, %c0_142, %c0_143] : memref<11x176x64xbf16, #tpu.memory_space<vmem>>, vector<1x176x64xbf16>
    %118 = vector.shape_cast %117 : vector<1x176x64xbf16> to vector<176x64xbf16>
    %cst_144 = arith.constant dense<0.000000e+00> : vector<256x64xf32>
    %119 = tpu.matmul %115, %118, %cst_144 {dimension_numbers = #tpu.dot_dimension_numbers<[1], [0], [0], [1], [0, 0, 1, 1], [], []>} : vector<256x176xbf16>, vector<176x64xbf16>, vector<256x64xf32> -> vector<256x64xf32>
    %120 = arith.addf %116, %119 : vector<256x64xf32>
    %c0_145 = arith.constant 0 : index
    %c0_146 = arith.constant 0 : index
    %121 = vector.load %arg10[%c0_145, %c0_146] : memref<256x64xf32, #tpu.memory_space<vmem>>, vector<256x64xf32>
    tpu.vector_store %arg10[%c0_145, %c0_146], %120 {strides = array<i32>} : memref<256x64xf32, #tpu.memory_space<vmem>>, vector<256x64xf32>,
    %c0_147 = arith.constant 0 : index
    %c0_148 = arith.constant 0 : index
    %122 = vector.load %arg10[%c0_147, %c0_148] : memref<256x64xf32, #tpu.memory_space<vmem>>, vector<256x64xf32>
    %c0_149 = arith.constant 0 : index
    %c0_150 = arith.constant 0 : index
    %123 = vector.load %arg5[%c0_149, %c0_150] : memref<3x64xf32, #tpu.memory_space<vmem>>, vector<1x64xf32>
    %124 = vector.broadcast %123 : vector<1x64xf32> to vector<256x64xf32>
    %125 = arith.addf %122, %124 : vector<256x64xf32>
    %cst_151 = arith.constant dense<0.000000e+00> : vector<64xf32>
    %126 = vector.multi_reduction <add>, %125, %cst_151 [0] : vector<256x64xf32> to vector<64xf32>
    %127 = vector.shape_cast %126 : vector<64xf32> to vector<1x64xf32>
    %c0_152 = arith.constant 0 : index
    %c0_153 = arith.constant 0 : index
    %128 = vector.load %arg6[%c0_152, %c0_153] : memref<64x64xf32, #tpu.memory_space<vmem>>, vector<64x64xf32>
    %cst_154 = arith.constant dense<0.000000e+00> : vector<1x64xf32>
    %129 = tpu.matmul %127, %128, %cst_154 {dimension_numbers = #tpu.dot_dimension_numbers<[1], [0], [0], [1], [0, 0, 1, 1], [], []>} : vector<1x64xf32>, vector<64x64xf32>, vector<1x64xf32> -> vector<1x64xf32>
    %130 = vector.broadcast %129 : vector<1x64xf32> to vector<256x64xf32>
    %131 = arith.subf %125, %130 : vector<256x64xf32>
    %132 = arith.mulf %131, %131 : vector<256x64xf32>
    %cst_155 = arith.constant dense<0.000000e+00> : vector<64xf32>
    %133 = vector.multi_reduction <add>, %132, %cst_155 [0] : vector<256x64xf32> to vector<64xf32>
    %134 = vector.shape_cast %133 : vector<64xf32> to vector<1x64xf32>
    %c0_156 = arith.constant 0 : index
    %c0_157 = arith.constant 0 : index
    %135 = vector.load %arg6[%c0_156, %c0_157] : memref<64x64xf32, #tpu.memory_space<vmem>>, vector<64x64xf32>
    %cst_158 = arith.constant dense<0.000000e+00> : vector<1x64xf32>
    %136 = tpu.matmul %134, %135, %cst_158 {dimension_numbers = #tpu.dot_dimension_numbers<[1], [0], [0], [1], [0, 0, 1, 1], [], []>} : vector<1x64xf32>, vector<64x64xf32>, vector<1x64xf32> -> vector<1x64xf32>
    %cst_159 = arith.constant 9.99999974E-6 : f32
    %137 = vector.broadcast %cst_159 : f32 to vector<1x64xf32>
    %138 = arith.addf %136, %137 : vector<1x64xf32>
    %139 = math.rsqrt %138 : vector<1x64xf32>
    %c1_160 = arith.constant 1 : index
    %c0_161 = arith.constant 0 : index
    %140 = vector.load %arg5[%c1_160, %c0_161] : memref<3x64xf32, #tpu.memory_space<vmem>>, vector<1x64xf32>
    %141 = arith.mulf %139, %140 : vector<1x64xf32>
    %142 = vector.broadcast %141 : vector<1x64xf32> to vector<256x64xf32>
    %143 = arith.mulf %131, %142 : vector<256x64xf32>
    %c2_162 = arith.constant 2 : index
    %c0_163 = arith.constant 0 : index
    %144 = vector.load %arg5[%c2_162, %c0_163] : memref<3x64xf32, #tpu.memory_space<vmem>>, vector<1x64xf32>
    %145 = vector.broadcast %144 : vector<1x64xf32> to vector<256x64xf32>
    %146 = arith.addf %143, %145 : vector<256x64xf32>
    %cst_164 = arith.constant 0.000000e+00 : f32
    %147 = vector.broadcast %cst_164 : f32 to vector<256x64xf32>
    %148 = arith.cmpf oge, %146, %147 : vector<256x64xf32>
    %cst_165 = arith.constant 2.000000e-01 : f32
    %149 = vector.broadcast %cst_165 : f32 to vector<256x64xf32>
    %150 = arith.mulf %149, %146 : vector<256x64xf32>
    %151 = arith.select %148, %146, %150 : vector<256x64xi1>, vector<256x64xf32>
    %c0_166 = arith.constant 0 : index
    %c0_167 = arith.constant 0 : index
    %152 = vector.load %arg7[%c0_166, %c0_167] : memref<64x16xf32, #tpu.memory_space<vmem>>, vector<64x16xf32>
    %cst_168 = arith.constant dense<0.000000e+00> : vector<256x16xf32>
    %153 = tpu.matmul %151, %152, %cst_168 {dimension_numbers = #tpu.dot_dimension_numbers<[1], [0], [0], [1], [0, 0, 1, 1], [], []>} : vector<256x64xf32>, vector<64x16xf32>, vector<256x16xf32> -> vector<256x16xf32>
    %c0_169 = arith.constant 0 : index
    %c0_170 = arith.constant 0 : index
    %c0_171 = arith.constant 0 : index
    %154 = vector.load %arg8[%c0_169, %c0_170, %c0_171] : memref<1x256x16xf32, #tpu.memory_space<vmem>>, vector<1x256x16xf32>
    %155 = vector.shape_cast %154 : vector<1x256x16xf32> to vector<256x16xf32>
    %156 = vector.shape_cast %153 : vector<256x16xf32> to vector<1x256x16xf32>
    tpu.vector_store %arg8[%c0_169, %c0_170, %c0_171], %156 {strides = array<i32>} : memref<1x256x16xf32, #tpu.memory_space<vmem>>, vector<1x256x16xf32>,
    return
  }
  func.func @transform_0(%arg0: i32) -> (i32, i32, i32) {
    %c0_i32 = arith.constant 0 : i32
    %c0_i32_0 = arith.constant 0 : i32
    %c0_i32_1 = arith.constant 0 : i32
    return %arg0, %c0_i32, %c0_i32_0 : i32, i32, i32
  }
  func.func @transform_1(%arg0: i32) -> (i32, i32) {
    %c0_i32 = arith.constant 0 : i32
    %c0_i32_0 = arith.constant 0 : i32
    %c0_i32_1 = arith.constant 0 : i32
    return %c0_i32, %c0_i32_0 : i32, i32
  }
  func.func @transform_2(%arg0: i32) -> (i32, i32) {
    %c0_i32 = arith.constant 0 : i32
    %c0_i32_0 = arith.constant 0 : i32
    %c0_i32_1 = arith.constant 0 : i32
    return %c0_i32, %c0_i32_0 : i32, i32
  }
  func.func @transform_3(%arg0: i32) -> (i32, i32, i32) {
    %c0_i32 = arith.constant 0 : i32
    %c0_i32_0 = arith.constant 0 : i32
    %c0_i32_1 = arith.constant 0 : i32
    %c0_i32_2 = arith.constant 0 : i32
    return %c0_i32, %c0_i32_0, %c0_i32_1 : i32, i32, i32
  }
  func.func @transform_4(%arg0: i32) -> (i32, i32) {
    %c0_i32 = arith.constant 0 : i32
    %c0_i32_0 = arith.constant 0 : i32
    %c0_i32_1 = arith.constant 0 : i32
    return %c0_i32, %c0_i32_0 : i32, i32
  }
  func.func @transform_5(%arg0: i32) -> (i32, i32) {
    %c0_i32 = arith.constant 0 : i32
    %c0_i32_0 = arith.constant 0 : i32
    %c0_i32_1 = arith.constant 0 : i32
    return %c0_i32, %c0_i32_0 : i32, i32
  }
  func.func @transform_6(%arg0: i32) -> (i32, i32) {
    %c0_i32 = arith.constant 0 : i32
    %c0_i32_0 = arith.constant 0 : i32
    %c0_i32_1 = arith.constant 0 : i32
    return %c0_i32, %c0_i32_0 : i32, i32
  }
  func.func @transform_7(%arg0: i32) -> (i32, i32, i32) {
    %c0_i32 = arith.constant 0 : i32
    %c0_i32_0 = arith.constant 0 : i32
    %c0_i32_1 = arith.constant 0 : i32
    return %arg0, %c0_i32, %c0_i32_0 : i32, i32, i32
  }
}

</mosaic_0001>

<llo_original>
// kernel: inception_forward.1
$region0: #{inception_forward.1}
  #allocation0 [shape = 'u32[]', space=smem, size = 0x4, offset = 0x4, fixed_abs, tag = 'smem constant byte address 0x4 - core index']
  #allocation1 [shape = 'u32[72,128]{1,0:T(1,128)}', space=vmem, size = 0x9000, scoped, tag = 'internal scratch']
  #allocation2 [shape = 'bf16[26,16,176]{2,1,0:T(8,128)(2,1)}', space=vmem, size = 0x34000, scoped, tag = 'scratch operand']
  #allocation3 [shape = 'f32[256,64]{1,0:T(8,128)}', space=vmem, size = 0x20000, scoped, tag = 'scratch operand']
  %s0 = inlined_call_operand.vmem [shape: bf16[2,256,4], index: 0, kind: input, shape index: {}]
  %s1 = inlined_call_operand.vmem [shape: bf16[4,16], index: 1, kind: input, shape index: {}]
  %s2 = inlined_call_operand.vmem [shape: f32[1,16], index: 2, kind: input, shape index: {}]
  %s3 = inlined_call_operand.vmem [shape: bf16[11,176,64], index: 3, kind: input, shape index: {}]
  %s4 = inlined_call_operand.vmem [shape: f32[3,64], index: 4, kind: input, shape index: {}]
  %s5 = inlined_call_operand.vmem [shape: f32[64,64], index: 5, kind: input, shape index: {}]
  %s6 = inlined_call_operand.vmem [shape: f32[64,16], index: 6, kind: input, shape index: {}]
  %s7 = inlined_call_operand.vmem [shape: f32[2,256,16], index: 7, kind: output, shape index: {}]
  %s8 = sld [smem:[#allocation0]]
  $region61: #{inception_forward.1} parent=0
    _
  %s10 = ssub.s32 1, %s8
  %s11 = scalar_select 0, %s10, %s8
  loop: start=0, step=1, limit=4
  $region2: #{inception_forward.1} parent=0 // loop_pre_header
    _
  $region3: #{inception_forward.1} parent=0 // loop_header
    %s13 = sphi 0, %s17
    %p14 = scmp.ge.s32.totalorder %s13, 4
    %s23 = sphi 0, %s25
    %s26 = sphi 0, %s23
    %s27 = sphi 0, %s26
    %s43 = sphi 0, %s27
    %s47 = sphi 0, %s47
    %s49 = sphi 0, %s47
    %s50 = sphi 0, %s49
    %s64 = sphi 0, %s50
    %s68 = sphi 0, %s68
    %s70 = sphi 0, %s68
    %s71 = sphi 0, %s70
    %s85 = sphi 0, %s71
    %s89 = sphi 0, %s89
    %s91 = sphi 0, %s89
    %s92 = sphi 0, %s91
    %s106 = sphi 0, %s92
    %s110 = sphi 0, %s110
    %s112 = sphi 0, %s110
    %s113 = sphi 0, %s112
    %s127 = sphi 0, %s113
    %s131 = sphi 0, %s131
    %s133 = sphi 0, %s131
    %s134 = sphi 0, %s133
    %s148 = sphi 0, %s134
    %s152 = sphi 0, %s152
    %s154 = sphi 0, %s152
    %s155 = sphi 0, %s154
    %s169 = sphi 0, %s155
    %s175 = sphi 0, %s177
    %s178 = sphi 0, %s175
    %s179 = sphi 0, %s178
    %s195 = sphi 0, %s179
  $region4: #{inception_forward.1} parent=0 // loop_header_branch
    %16 = sbr.rel (%p14) target = $region8
  $region5: #{inception_forward.1} parent=0 // loop_body
    %s18 = ssub.s32 %s13, 1
    %s19 = ssub.s32 %s13, 2
    %s20 = sadd.s32 %s13, 1
    %s21 = ssub.s32 %s13, %s20
    %p22 = scmp.eq.s32.totalorder %s21, 0
    %s24 = sadd.s32 %s23, 1
    %s25 = scalar_select %p22, %s23, %s24
    %p28 = pneg %p22
    %p29 = scmp.eq.s32.totalorder %s13, 1
    %p30 = por %p28, %p29
    %p31 = scmp.ne.s32.totalorder %s23, %s26
    %p32 = scmp.eq.s32.totalorder %s13, 0
    %p33 = por %p31, %p32
    %p34 = scmp.ne.s32.totalorder %s23, %s26
    %p35 = scmp.eq.s32.totalorder %s18, 1
    %p36 = por %p34, %p35
    %p37 = scmp.ne.s32.totalorder %s26, %s27
    %p38 = scmp.eq.s32.totalorder %s18, 0
    %p39 = por %p37, %p38
    %p40 = scmp.ne.s32.totalorder %s26, %s27
    %p41 = scmp.eq.s32.totalorder %s19, 1
    %p42 = por %p40, %p41
    %p44 = scmp.ne.s32.totalorder %s27, %s43
    %p45 = scmp.eq.s32.totalorder %s19, 0
    %p46 = por %p44, %p45
    %s48 = sadd.s32 %s47, 1
    %p51 = scmp.eq.s32.totalorder %s13, 1
    %p52 = scmp.ne.s32.totalorder %s47, %s49
    %p53 = scmp.eq.s32.totalorder %s13, 0
    %p54 = por %p52, %p53
    %p55 = scmp.ne.s32.totalorder %s47, %s49
    %p56 = scmp.eq.s32.totalorder %s18, 1
    %p57 = por %p55, %p56
    %p58 = scmp.ne.s32.totalorder %s49, %s50
    %p59 = scmp.eq.s32.totalorder %s18, 0
    %p60 = por %p58, %p59
    %p61 = scmp.ne.s32.totalorder %s49, %s50
    %p62 = scmp.eq.s32.totalorder %s19, 1
    %p63 = por %p61, %p62
    %p65 = scmp.ne.s32.totalorder %s50, %s64
    %p66 = scmp.eq.s32.totalorder %s19, 0
    %p67 = por %p65, %p66
    %s69 = sadd.s32 %s68, 1
    %p72 = scmp.eq.s32.totalorder %s13, 1
    %p73 = scmp.ne.s32.totalorder %s68, %s70
    %p74 = scmp.eq.s32.totalorder %s13, 0
    %p75 = por %p73, %p74
    %p76 = scmp.ne.s32.totalorder %s68, %s70
    %p77 = scmp.eq.s32.totalorder %s18, 1
    %p78 = por %p76, %p77
    %p79 = scmp.ne.s32.totalorder %s70, %s71
    %p80 = scmp.eq.s32.totalorder %s18, 0
    %p81 = por %p79, %p80
    %p82 = scmp.ne.s32.totalorder %s70, %s71
    %p83 = scmp.eq.s32.totalorder %s19, 1
    %p84 = por %p82, %p83
    %p86 = scmp.ne.s32.totalorder %s71, %s85
    %p87 = scmp.eq.s32.totalorder %s19, 0
    %p88 = por %p86, %p87
    %s90 = sadd.s32 %s89, 1
    %p93 = scmp.eq.s32.totalorder %s13, 1
    %p94 = scmp.ne.s32.totalorder %s89, %s91
    %p95 = scmp.eq.s32.totalorder %s13, 0
    %p96 = por %p94, %p95
    %p97 = scmp.ne.s32.totalorder %s89, %s91
    %p98 = scmp.eq.s32.totalorder %s18, 1
    %p99 = por %p97, %p98
    %p100 = scmp.ne.s32.totalorder %s91, %s92
    %p101 = scmp.eq.s32.totalorder %s18, 0
    %p102 = por %p100, %p101
    %p103 = scmp.ne.s32.totalorder %s91, %s92
    %p104 = scmp.eq.s32.totalorder %s19, 1
    %p105 = por %p103, %p104
    %p107 = scmp.ne.s32.totalorder %s92, %s106
    %p108 = scmp.eq.s32.totalorder %s19, 0
    %p109 = por %p107, %p108
    %s111 = sadd.s32 %s110, 1
    %p114 = scmp.eq.s32.totalorder %s13, 1
    %p115 = scmp.ne.s32.totalorder %s110, %s112
    %p116 = scmp.eq.s32.totalorder %s13, 0
    %p117 = por %p115, %p116
    %p118 = scmp.ne.s32.totalorder %s110, %s112
    %p119 = scmp.eq.s32.totalorder %s18, 1
    %p120 = por %p118, %p119
    %p121 = scmp.ne.s32.totalorder %s112, %s113
    %p122 = scmp.eq.s32.totalorder %s18, 0
    %p123 = por %p121, %p122
    %p124 = scmp.ne.s32.totalorder %s112, %s113
    %p125 = scmp.eq.s32.totalorder %s19, 1
    %p126 = por %p124, %p125
    %p128 = scmp.ne.s32.totalorder %s113, %s127
    %p129 = scmp.eq.s32.totalorder %s19, 0
    %p130 = por %p128, %p129
    %s132 = sadd.s32 %s131, 1
    %p135 = scmp.eq.s32.totalorder %s13, 1
    %p136 = scmp.ne.s32.totalorder %s131, %s133
    %p137 = scmp.eq.s32.totalorder %s13, 0
    %p138 = por %p136, %p137
    %p139 = scmp.ne.s32.totalorder %s131, %s133
    %p140 = scmp.eq.s32.totalorder %s18, 1
    %p141 = por %p139, %p140
    %p142 = scmp.ne.s32.totalorder %s133, %s134
    %p143 = scmp.eq.s32.totalorder %s18, 0
    %p144 = por %p142, %p143
    %p145 = scmp.ne.s32.totalorder %s133, %s134
    %p146 = scmp.eq.s32.totalorder %s19, 1
    %p147 = por %p145, %p146
    %p149 = scmp.ne.s32.totalorder %s134, %s148
    %p150 = scmp.eq.s32.totalorder %s19, 0
    %p151 = por %p149, %p150
    %s153 = sadd.s32 %s152, 1
    %p156 = scmp.eq.s32.totalorder %s13, 1
    %p157 = scmp.ne.s32.totalorder %s152, %s154
    %p158 = scmp.eq.s32.totalorder %s13, 0
    %p159 = por %p157, %p158
    %p160 = scmp.ne.s32.totalorder %s152, %s154
    %p161 = scmp.eq.s32.totalorder %s18, 1
    %p162 = por %p160, %p161
    %p163 = scmp.ne.s32.totalorder %s154, %s155
    %p164 = scmp.eq.s32.totalorder %s18, 0
    %p165 = por %p163, %p164
    %p166 = scmp.ne.s32.totalorder %s154, %s155
    %p167 = scmp.eq.s32.totalorder %s19, 1
    %p168 = por %p166, %p167
    %p170 = scmp.ne.s32.totalorder %s155, %s169
    %p171 = scmp.eq.s32.totalorder %s19, 0
    %p172 = por %p170, %p171
    %s173 = ssub.s32 %s13, %s20
    %p174 = scmp.eq.s32.totalorder %s173, 0
    %s176 = sadd.s32 %s175, 1
    %s177 = scalar_select %p174, %s175, %s176
    %p180 = pneg %p174
    %p181 = scmp.eq.s32.totalorder %s13, 1
    %p182 = por %p180, %p181
    %p183 = scmp.ne.s32.totalorder %s175, %s178
    %p184 = scmp.eq.s32.totalorder %s13, 0
    %p185 = por %p183, %p184
    %p186 = scmp.ne.s32.totalorder %s175, %s178
    %p187 = scmp.eq.s32.totalorder %s18, 1
    %p188 = por %p186, %p187
    %p189 = scmp.ne.s32.totalorder %s178, %s179
    %p190 = scmp.eq.s32.totalorder %s18, 0
    %p191 = por %p189, %p190
    %p192 = scmp.ne.s32.totalorder %s178, %s179
    %p193 = scmp.eq.s32.totalorder %s19, 1
    %p194 = por %p192, %p193
    %p196 = scmp.ne.s32.totalorder %s179, %s195
    %p197 = scmp.eq.s32.totalorder %s19, 0
    %p198 = por %p196, %p197
    %p199 = scmp.le.s32.totalorder 1, %s13
    %p200 = scmp.lt.s32.totalorder %s13, 3
    %p201 = pnand %p199, %p200
    %p202 = pneg %p201
    // Predicated region
    $region9: #{inception_forward.1} parent=5 // pred_check
      _
    $region10: #{inception_forward.1} parent=5 // pred_check_branch
      %204 = sbr.rel (%p201) target = $region12
    $region11: #{inception_forward.1} parent=5 // pred_region
      %s205 = ssub.s32 %s13, 1
      // Predicated region
      $region13: #{inception_forward.1} parent=11 // pred_check
        %p206 = pneg %p60
      $region14: #{inception_forward.1} parent=11 // pred_check_branch
        %208 = sbr.rel (%p206) target = $region16
      $region15: #{inception_forward.1} parent=11 // pred_region
        _
      $region16: #{inception_forward.1} parent=11 // pred_fallthru
        _
      // Predicated region
      $region17: #{inception_forward.1} parent=11 // pred_check
        %p209 = pneg %p81
      $region18: #{inception_forward.1} parent=11 // pred_check_branch
        %211 = sbr.rel (%p209) target = $region20
      $region19: #{inception_forward.1} parent=11 // pred_region
        _
      $region20: #{inception_forward.1} parent=11 // pred_fallthru
        _
      // Predicated region
      $region21: #{inception_forward.1} parent=11 // pred_check
        %p212 = pneg %p102
      $region22: #{inception_forward.1} parent=11 // pred_check_branch
        %214 = sbr.rel (%p212) target = $region24
      $region23: #{inception_forward.1} parent=11 // pred_region
        _
      $region24: #{inception_forward.1} parent=11 // pred_fallthru
        _
      // Predicated region
      $region25: #{inception_forward.1} parent=11 // pred_check
        %p215 = pneg %p123
      $region26: #{inception_forward.1} parent=11 // pred_check_branch
        %217 = sbr.rel (%p215) target = $region28
      $region27: #{inception_forward.1} parent=11 // pred_region
        _
      $region28: #{inception_forward.1} parent=11 // pred_fallthru
        _
      // Predicated region
      $region29: #{inception_forward.1} parent=11 // pred_check
        %p218 = pneg %p144
      $region30: #{inception_forward.1} parent=11 // pred_check_branch
        %220 = sbr.rel (%p218) target = $region32
      $region31: #{inception_forward.1} parent=11 // pred_region
        _
      $region32: #{inception_forward.1} parent=11 // pred_fallthru
        _
      // Predicated region
      $region33: #{inception_forward.1} parent=11 // pred_check
        %p221 = pneg %p165
      $region34: #{inception_forward.1} parent=11 // pred_check_branch
        %223 = sbr.rel (%p221) target = $region36
      $region35: #{inception_forward.1} parent=11 // pred_region
        _
      $region36: #{inception_forward.1} parent=11 // pred_fallthru
        _
    $region12: #{inception_forward.1} parent=5 // pred_fallthru
      _
    %p224 = scmp.lt.s32.totalorder %s13, 2
    // Predicated region
    $region37: #{inception_forward.1} parent=5 // pred_check
      %p225 = pneg %p224
    $region38: #{inception_forward.1} parent=5 // pred_check_branch
      %227 = sbr.rel (%p225) target = $region40
    $region39: #{inception_forward.1} parent=5 // pred_region
      // Predicated region
      $region41: #{inception_forward.1} parent=39 // pred_check
        %p228 = pneg %p33
      $region42: #{inception_forward.1} parent=39 // pred_check_branch
        %230 = sbr.rel (%p228) target = $region44
      $region43: #{inception_forward.1} parent=39 // pred_region
        %p231 = scmp.lt.s32.totalorder %s13, 1
        %s232 = scalar_select %p231, %s13, 1
        %s233 = smul.addr %s232, 32
        %s234 = smul.addr %s233, 4
        %s235 = scalar_lea.vmem %s0, %s234
      $region44: #{inception_forward.1} parent=39 // pred_fallthru
        _
    $region40: #{inception_forward.1} parent=5 // pred_fallthru
      _
    %p236 = scmp.le.s32.totalorder 1, %s13
    %p237 = scmp.lt.s32.totalorder %s13, 3
    %p238 = pnand %p236, %p237
    %p239 = pneg %p238
    // Predicated region
    $region45: #{inception_forward.1} parent=5 // pred_check
      _
    $region46: #{inception_forward.1} parent=5 // pred_check_branch
      %241 = sbr.rel (%p238) target = $region48
    $region47: #{inception_forward.1} parent=5 // pred_region
      %s242 = ssub.s32 %s13, 1
      %p243 = scmp.lt.s32.totalorder %s18, 1
      %s244 = scalar_select %p243, %s18, 1
      %s245 = smul.addr %s244, 32
      %s246 = smul.addr %s245, 4
      %s247 = scalar_lea.vmem %s0, %s246
      %p248 = pneg %p39
      %p249 = pneg %p36
      %p250 = pneg %p60
      %p251 = pneg %p57
      %p252 = pneg %p81
      %p253 = pneg %p78
      %p254 = pneg %p102
      %p255 = pneg %p99
      %p256 = pneg %p123
      %p257 = pneg %p120
      %p258 = pneg %p144
      %p259 = pneg %p141
      %p260 = pneg %p165
      %p261 = pneg %p162
      %p262 = pneg %p191
      %p263 = pneg %p188
      %p264 = scmp.lt.s32.totalorder %s18, 1
      %s265 = scalar_select %p264, %s18, 1
      %s266 = smul.addr %s265, 32
      %s267 = smul.addr %s266, 8
      %s268 = scalar_lea.vmem %s7, %s267
      %p269 = scmp.lt.s32.totalorder %s18, 1
      %s270 = scalar_select %p269, %s18, 1
      %s271 = smul.addr %s270, 32
      %s272 = smul.addr %s271, 4
      %s273 = scalar_lea.vmem %s0, %s272
      %p274 = scmp.lt.s32.totalorder %s18, 1
      %s275 = scalar_select %p274, %s18, 1
      %s276 = smul.addr %s275, 32
      %s277 = smul.addr %s276, 8
      %s278 = scalar_lea.vmem %s7, %s277
      %v280 = vld [vmem:[%s273] sm:$0xf]
      %v281 = vld [vmem:[%s273 + $0x4] sm:$0xf]
      %v282 = vld [vmem:[%s273 + $0x8] sm:$0xf]
      %v283 = vld [vmem:[%s273 + $0xc] sm:$0xf]
      %v284 = vld [vmem:[%s273 + $0x10] sm:$0xf]
      %v285 = vld [vmem:[%s273 + $0x14] sm:$0xf]
      %v286 = vld [vmem:[%s273 + $0x18] sm:$0xf]
      %v287 = vld [vmem:[%s273 + $0x1c] sm:$0xf]
      %v288 = vld [vmem:[%s273 + $0x20] sm:$0xf]
      %v289 = vld [vmem:[%s273 + $0x24] sm:$0xf]
      %v290 = vld [vmem:[%s273 + $0x28] sm:$0xf]
      %v291 = vld [vmem:[%s273 + $0x2c] sm:$0xf]
      %v292 = vld [vmem:[%s273 + $0x30] sm:$0xf]
      %v293 = vld [vmem:[%s273 + $0x34] sm:$0xf]
      %v294 = vld [vmem:[%s273 + $0x38] sm:$0xf]
      %v295 = vld [vmem:[%s273 + $0x3c] sm:$0xf]
      %v296 = vld [vmem:[%s273 + $0x40] sm:$0xf]
      %v297 = vld [vmem:[%s273 + $0x44] sm:$0xf]
      %v298 = vld [vmem:[%s273 + $0x48] sm:$0xf]
      %v299 = vld [vmem:[%s273 + $0x4c] sm:$0xf]
      %v300 = vld [vmem:[%s273 + $0x50] sm:$0xf]
      %v301 = vld [vmem:[%s273 + $0x54] sm:$0xf]
      %v302 = vld [vmem:[%s273 + $0x58] sm:$0xf]
      %v303 = vld [vmem:[%s273 + $0x5c] sm:$0xf]
      %v304 = vld [vmem:[%s273 + $0x60] sm:$0xf]
      %v305 = vld [vmem:[%s273 + $0x64] sm:$0xf]
      %v306 = vld [vmem:[%s273 + $0x68] sm:$0xf]
      %v307 = vld [vmem:[%s273 + $0x6c] sm:$0xf]
      %v308 = vld [vmem:[%s273 + $0x70] sm:$0xf]
      %v309 = vld [vmem:[%s273 + $0x74] sm:$0xf]
      %v310 = vld [vmem:[%s273 + $0x78] sm:$0xf]
      %v311 = vld [vmem:[%s273 + $0x7c] sm:$0xf]
      %v312 = vld [vmem:[%s1] sm:$0x3]
      %v313 = vld [vmem:[%s2] sm:$0x1]
      %v315 = vperm.slane %v313, 0
      %v349 = vunpack.c.l.b16 %v280
      %v350 = vunpack.c.l.b16 %v281
      %v351 = vunpack.c.l.b16 %v282
      %v352 = vunpack.c.l.b16 %v283
      %v353 = vunpack.c.l.b16 %v284
      %v354 = vunpack.c.l.b16 %v285
      %v355 = vunpack.c.l.b16 %v286
      %v356 = vunpack.c.l.b16 %v287
      %v357 = vunpack.c.l.b16 %v288
      %v358 = vunpack.c.l.b16 %v289
      %v359 = vunpack.c.l.b16 %v290
      %v360 = vunpack.c.l.b16 %v291
      %v361 = vunpack.c.l.b16 %v292
      %v362 = vunpack.c.l.b16 %v293
      %v363 = vunpack.c.l.b16 %v294
      %v364 = vunpack.c.l.b16 %v295
      %v365 = vunpack.c.l.b16 %v296
      %v366 = vunpack.c.l.b16 %v297
      %v367 = vunpack.c.l.b16 %v298
      %v368 = vunpack.c.l.b16 %v299
      %v369 = vunpack.c.l.b16 %v300
      %v370 = vunpack.c.l.b16 %v301
      %v371 = vunpack.c.l.b16 %v302
      %v372 = vunpack.c.l.b16 %v303
      %v373 = vunpack.c.l.b16 %v304
      %v374 = vunpack.c.l.b16 %v305
      %v375 = vunpack.c.l.b16 %v306
      %v376 = vunpack.c.l.b16 %v307
      %v377 = vunpack.c.l.b16 %v308
      %v378 = vunpack.c.l.b16 %v309
      %v379 = vunpack.c.l.b16 %v310
      %v380 = vunpack.c.l.b16 %v311
      %v381 = vpack.c.b16 %v350, %v349
      %v382 = vpack.c.b16 %v352, %v351
      %v383 = vpack.c.b16 %v354, %v353
      %v384 = vpack.c.b16 %v356, %v355
      %v385 = vpack.c.b16 %v358, %v357
      %v386 = vpack.c.b16 %v360, %v359
      %v387 = vpack.c.b16 %v362, %v361
      %v388 = vpack.c.b16 %v364, %v363
      %v389 = vpack.c.b16 %v366, %v365
      %v390 = vpack.c.b16 %v368, %v367
      %v391 = vpack.c.b16 %v370, %v369
      %v392 = vpack.c.b16 %v372, %v371
      %v393 = vpack.c.b16 %v374, %v373
      %v394 = vpack.c.b16 %v376, %v375
      %v395 = vpack.c.b16 %v378, %v377
      %v396 = vpack.c.b16 %v380, %v379
      %vm397 = vcmask 31744
      %v399 = vsel %vm397, %v381, 0
      %v402 = vsel %vm397, %v382, 0
      %v405 = vsel %vm397, %v383, 0
      %v408 = vsel %vm397, %v384, 0
      %v411 = vsel %vm397, %v385, 0
      %v414 = vsel %vm397, %v386, 0
      %v417 = vsel %vm397, %v387, 0
      %v420 = vsel %vm397, %v388, 0
      %v423 = vsel %vm397, %v389, 0
      %v426 = vsel %vm397, %v390, 0
      %v429 = vsel %vm397, %v391, 0
      %v432 = vsel %vm397, %v392, 0
      %v435 = vsel %vm397, %v393, 0
      %v438 = vsel %vm397, %v394, 0
      %v441 = vsel %vm397, %v395, 0
      %v444 = vsel %vm397, %v396, 0
      %vm446 = vcmask 1041408
      %v448 = vsel %vm446, %v312, 0
      %450 = vmatpush.bf16.msra.mxu0 0
      %451 = vmatpush.bf16.msra.mxu0 0
      %452 = vmatpush.bf16.msra.mxu0 0
      %453 = vmatpush.bf16.msra.mxu0 0
      %454 = vmatpush.bf16.msra.mxu0 0
      %455 = vmatpush.bf16.msra.mxu0 0
      %456 = vmatpush.bf16.msra.mxu0 0
      %457 = vmatpush.bf16.msra.mxu0 %v448
      %458 = vmatmul.bf16.gmra.mxu0 %v399
      %v459 = vpop.f32.mrf.mxu0
      %v460 = vadd.f32 %v315, %v459
      %v461 = vpop.f32.mrf.mxu0
      %v462 = vadd.f32 %v315, %v461
      %463 = vmatmul.bf16.gmra.mxu0 %v402
      %v464 = vpop.f32.mrf.mxu0
      %v465 = vadd.f32 %v315, %v464
      %v466 = vpop.f32.mrf.mxu0
      %v467 = vadd.f32 %v315, %v466
      %468 = vmatmul.bf16.gmra.mxu0 %v405
      %v469 = vpop.f32.mrf.mxu0
      %v470 = vadd.f32 %v315, %v469
      %v471 = vpop.f32.mrf.mxu0
      %v472 = vadd.f32 %v315, %v471
      %473 = vmatmul.bf16.gmra.mxu0 %v408
      %v474 = vpop.f32.mrf.mxu0
      %v475 = vadd.f32 %v315, %v474
      %v476 = vpop.f32.mrf.mxu0
      %v477 = vadd.f32 %v315, %v476
      %478 = vmatmul.bf16.gmra.mxu0 %v411
      %v479 = vpop.f32.mrf.mxu0
      %v480 = vadd.f32 %v315, %v479
      %v481 = vpop.f32.mrf.mxu0
      %v482 = vadd.f32 %v315, %v481
      %483 = vmatmul.bf16.gmra.mxu0 %v414
      %v484 = vpop.f32.mrf.mxu0
      %v485 = vadd.f32 %v315, %v484
      %v486 = vpop.f32.mrf.mxu0
      %v487 = vadd.f32 %v315, %v486
      %488 = vmatmul.bf16.gmra.mxu0 %v417
      %v489 = vpop.f32.mrf.mxu0
      %v490 = vadd.f32 %v315, %v489
      %v491 = vpop.f32.mrf.mxu0
      %v492 = vadd.f32 %v315, %v491
      %493 = vmatmul.bf16.gmra.mxu0 %v420
      %v494 = vpop.f32.mrf.mxu0
      %v495 = vadd.f32 %v315, %v494
      %v496 = vpop.f32.mrf.mxu0
      %v497 = vadd.f32 %v315, %v496
      %498 = vmatmul.bf16.gmra.mxu0 %v423
      %v499 = vpop.f32.mrf.mxu0
      %v500 = vadd.f32 %v315, %v499
      %v501 = vpop.f32.mrf.mxu0
      %v502 = vadd.f32 %v315, %v501
      %503 = vmatmul.bf16.gmra.mxu0 %v426
      %v504 = vpop.f32.mrf.mxu0
      %v505 = vadd.f32 %v315, %v504
      %v506 = vpop.f32.mrf.mxu0
      %v507 = vadd.f32 %v315, %v506
      %508 = vmatmul.bf16.gmra.mxu0 %v429
      %v509 = vpop.f32.mrf.mxu0
      %v510 = vadd.f32 %v315, %v509
      %v511 = vpop.f32.mrf.mxu0
      %v512 = vadd.f32 %v315, %v511
      %513 = vmatmul.bf16.gmra.mxu0 %v432
      %v514 = vpop.f32.mrf.mxu0
      %v515 = vadd.f32 %v315, %v514
      %v516 = vpop.f32.mrf.mxu0
      %v517 = vadd.f32 %v315, %v516
      %518 = vmatmul.bf16.gmra.mxu0 %v435
      %v519 = vpop.f32.mrf.mxu0
      %v520 = vadd.f32 %v315, %v519
      %v521 = vpop.f32.mrf.mxu0
      %v522 = vadd.f32 %v315, %v521
      %523 = vmatmul.bf16.gmra.mxu0 %v438
      %v524 = vpop.f32.mrf.mxu0
      %v525 = vadd.f32 %v315, %v524
      %v526 = vpop.f32.mrf.mxu0
      %v527 = vadd.f32 %v315, %v526
      %528 = vmatmul.bf16.gmra.mxu0 %v441
      %v529 = vpop.f32.mrf.mxu0
      %v530 = vadd.f32 %v315, %v529
      %v531 = vpop.f32.mrf.mxu0
      %v532 = vadd.f32 %v315, %v531
      %533 = vmatmul.bf16.gmra.mxu0 %v444
      %v534 = vpop.f32.mrf.mxu0
      %v535 = vadd.f32 %v315, %v534
      %v536 = vpop.f32.mrf.mxu0
      %v537 = vadd.f32 %v315, %v536
      %538 = vdwg.mxu0
      %v539 = vpack.c.bf16 %v460, %v460
      %v540 = vpack.c.bf16 %v462, %v462
      %v541 = vpack.c.bf16 %v465, %v465
      %v542 = vpack.c.bf16 %v467, %v467
      %v543 = vpack.c.bf16 %v470, %v470
      %v544 = vpack.c.bf16 %v472, %v472
      %v545 = vpack.c.bf16 %v475, %v475
      %v546 = vpack.c.bf16 %v477, %v477
      %v547 = vpack.c.bf16 %v480, %v480
      %v548 = vpack.c.bf16 %v482, %v482
      %v549 = vpack.c.bf16 %v485, %v485
      %v550 = vpack.c.bf16 %v487, %v487
      %v551 = vpack.c.bf16 %v490, %v490
      %v552 = vpack.c.bf16 %v492, %v492
      %v553 = vpack.c.bf16 %v495, %v495
      %v554 = vpack.c.bf16 %v497, %v497
      %v555 = vpack.c.bf16 %v500, %v500
      %v556 = vpack.c.bf16 %v502, %v502
      %v557 = vpack.c.bf16 %v505, %v505
      %v558 = vpack.c.bf16 %v507, %v507
      %v559 = vpack.c.bf16 %v510, %v510
      %v560 = vpack.c.bf16 %v512, %v512
      %v561 = vpack.c.bf16 %v515, %v515
      %v562 = vpack.c.bf16 %v517, %v517
      %v563 = vpack.c.bf16 %v520, %v520
      %v564 = vpack.c.bf16 %v522, %v522
      %v565 = vpack.c.bf16 %v525, %v525
      %v566 = vpack.c.bf16 %v527, %v527
      %v567 = vpack.c.bf16 %v530, %v530
      %v568 = vpack.c.bf16 %v532, %v532
      %v569 = vpack.c.bf16 %v535, %v535
      %v570 = vpack.c.bf16 %v537, %v537
      %vm571 = vcmask 1043456
      %vm572 = vcmask 392196
      %vm573 = vmor %vm572, %vm571
      %574 = vst.msk [vmem:[#allocation2] sm:$0xff] %vm573, 0
      %575 = vst.msk [vmem:[#allocation2 + $0x8] sm:$0xff] %vm573, 0
      %576 = vst.msk [vmem:[#allocation2 + $0x10] sm:$0xff] %vm573, 0
      %577 = vst.msk [vmem:[#allocation2 + $0x18] sm:$0xff] %vm573, 0
      %578 = vst.msk [vmem:[#allocation2 + $0x20] sm:$0xff] %vm573, 0
      %579 = vst.msk [vmem:[#allocation2 + $0x28] sm:$0xff] %vm573, 0
      %580 = vst.msk [vmem:[#allocation2 + $0x30] sm:$0xff] %vm573, 0
      %581 = vst.msk [vmem:[#allocation2 + $0x38] sm:$0xff] %vm573, 0
      %582 = vst.msk [vmem:[#allocation2 + $0x40] sm:$0xff] %vm573, 0
      %583 = vst.msk [vmem:[#allocation2 + $0x48] sm:$0xff] %vm573, 0
      %584 = vst.msk [vmem:[#allocation2 + $0x50] sm:$0xff] %vm573, 0
      %585 = vst.msk [vmem:[#allocation2 + $0x58] sm:$0xff] %vm573, 0
      %586 = vst.msk [vmem:[#allocation2 + $0x60] sm:$0xff] %vm573, 0
      %587 = vst.msk [vmem:[#allocation2 + $0x68] sm:$0xff] %vm573, 0
      %588 = vst.msk [vmem:[#allocation2 + $0x70] sm:$0xff] %vm573, 0
      %589 = vst.msk [vmem:[#allocation2 + $0x78] sm:$0xff] %vm573, 0
      %590 = vst.msk [vmem:[#allocation2 + $0x80] sm:$0xff] %vm573, 0
      %591 = vst.msk [vmem:[#allocation2 + $0x88] sm:$0xff] %vm573, 0
      %592 = vst.msk [vmem:[#allocation2 + $0x90] sm:$0xff] %vm573, 0
      %593 = vst.msk [vmem:[#allocation2 + $0x98] sm:$0xff] %vm573, 0
      %594 = vst.msk [vmem:[#allocation2 + $0xa0] sm:$0xff] %vm573, 0
      %595 = vst.msk [vmem:[#allocation2 + $0xa8] sm:$0xff] %vm573, 0
      %596 = vst.msk [vmem:[#allocation2 + $0xb0] sm:$0xff] %vm573, 0
      %597 = vst.msk [vmem:[#allocation2 + $0xb8] sm:$0xff] %vm573, 0
      %598 = vst.msk [vmem:[#allocation2 + $0xc0] sm:$0xff] %vm573, 0
      %599 = vst.msk [vmem:[#allocation2 + $0xc8] sm:$0xff] %vm573, 0
      %600 = vst.msk [vmem:[#allocation2 + $0xd0] sm:$0xff] %vm573, 0
      %601 = vst.msk [vmem:[#allocation2 + $0xd8] sm:$0xff] %vm573, 0
      %602 = vst.msk [vmem:[#allocation2 + $0xe0] sm:$0xff] %vm573, 0
      %603 = vst.msk [vmem:[#allocation2 + $0xe8] sm:$0xff] %vm573, 0
      %604 = vst.msk [vmem:[#allocation2 + $0xf0] sm:$0xff] %vm573, 0
      %605 = vst.msk [vmem:[#allocation2 + $0xf8] sm:$0xff] %vm573, 0
      %606 = vst.msk [vmem:[#allocation2 + $0x100] sm:$0xff] %vm573, 0
      %607 = vst.msk [vmem:[#allocation2 + $0x108] sm:$0xff] %vm573, 0
      %608 = vst.msk [vmem:[#allocation2 + $0x110] sm:$0xff] %vm573, 0
      %609 = vst.msk [vmem:[#allocation2 + $0x118] sm:$0xff] %vm573, 0
      %610 = vst.msk [vmem:[#allocation2 + $0x120] sm:$0xff] %vm573, 0
      %611 = vst.msk [vmem:[#allocation2 + $0x128] sm:$0xff] %vm573, 0
      %612 = vst.msk [vmem:[#allocation2 + $0x130] sm:$0xff] %vm573, 0
      %613 = vst.msk [vmem:[#allocation2 + $0x138] sm:$0xff] %vm573, 0
      %614 = vst.msk [vmem:[#allocation2 + $0x140] sm:$0xff] %vm573, 0
      %615 = vst.msk [vmem:[#allocation2 + $0x148] sm:$0xff] %vm573, 0
      %616 = vst.msk [vmem:[#allocation2 + $0x150] sm:$0xff] %vm573, 0
      %617 = vst.msk [vmem:[#allocation2 + $0x158] sm:$0xff] %vm573, 0
      %618 = vst.msk [vmem:[#allocation2 + $0x160] sm:$0xff] %vm573, 0
      %619 = vst.msk [vmem:[#allocation2 + $0x168] sm:$0xff] %vm573, 0
      %620 = vst.msk [vmem:[#allocation2 + $0x170] sm:$0xff] %vm573, 0
      %621 = vst.msk [vmem:[#allocation2 + $0x178] sm:$0xff] %vm573, 0
      %622 = vst.msk [vmem:[#allocation2 + $0x180] sm:$0xff] %vm573, 0
      %623 = vst.msk [vmem:[#allocation2 + $0x188] sm:$0xff] %vm573, 0
      %624 = vst.msk [vmem:[#allocation2 + $0x190] sm:$0xff] %vm573, 0
      %625 = vst.msk [vmem:[#allocation2 + $0x198] sm:$0xff] %vm573, 0
      %vm626 = vsmask.f32 2304
      %vm627 = vsmask.f32 6416
      %vm628 = vmor %vm626, %vm627
      %v630 = vshrl.u32 %v539, 16
      %v632 = vrot.slane %v630, 5
      %v633 = vshll.u32 %v539, 16
      %v635 = vrot.slane %v633, 6
      %v636 = vor.u32 %v632, %v635
      %v637 = vrot.slane %v636, 4
      %v639 = vshrl.u32 %v540, 16
      %v641 = vrot.slane %v639, 5
      %v642 = vshll.u32 %v540, 16
      %v644 = vrot.slane %v642, 6
      %v645 = vor.u32 %v641, %v644
      %v646 = vsel %vm628, %v637, %v645
      %v648 = vshrl.u32 %v541, 16
      %v650 = vrot.slane %v648, 5
      %v651 = vshll.u32 %v541, 16
      %v653 = vrot.slane %v651, 6
      %v654 = vor.u32 %v650, %v653
      %v655 = vrot.slane %v654, 4
      %v657 = vshrl.u32 %v542, 16
      %v659 = vrot.slane %v657, 5
      %v660 = vshll.u32 %v542, 16
      %v662 = vrot.slane %v660, 6
      %v663 = vor.u32 %v659, %v662
      %v664 = vsel %vm628, %v655, %v663
      %v666 = vshrl.u32 %v543, 16
      %v668 = vrot.slane %v666, 5
      %v669 = vshll.u32 %v543, 16
      %v671 = vrot.slane %v669, 6
      %v672 = vor.u32 %v668, %v671
      %v673 = vrot.slane %v672, 4
      %v675 = vshrl.u32 %v544, 16
      %v677 = vrot.slane %v675, 5
      %v678 = vshll.u32 %v544, 16
      %v680 = vrot.slane %v678, 6
      %v681 = vor.u32 %v677, %v680
      %v682 = vsel %vm628, %v673, %v681
      %v684 = vshrl.u32 %v545, 16
      %v686 = vrot.slane %v684, 5
      %v687 = vshll.u32 %v545, 16
      %v689 = vrot.slane %v687, 6
      %v690 = vor.u32 %v686, %v689
      %v691 = vrot.slane %v690, 4
      %v693 = vshrl.u32 %v546, 16
      %v695 = vrot.slane %v693, 5
      %v696 = vshll.u32 %v546, 16
      %v698 = vrot.slane %v696, 6
      %v699 = vor.u32 %v695, %v698
      %v700 = vsel %vm628, %v691, %v699
      %v702 = vshrl.u32 %v547, 16
      %v704 = vrot.slane %v702, 5
      %v705 = vshll.u32 %v547, 16
      %v707 = vrot.slane %v705, 6
      %v708 = vor.u32 %v704, %v707
      %v709 = vrot.slane %v708, 4
      %v711 = vshrl.u32 %v548, 16
      %v713 = vrot.slane %v711, 5
      %v714 = vshll.u32 %v548, 16
      %v716 = vrot.slane %v714, 6
      %v717 = vor.u32 %v713, %v716
      %v718 = vsel %vm628, %v709, %v717
      %v720 = vshrl.u32 %v549, 16
      %v722 = vrot.slane %v720, 5
      %v723 = vshll.u32 %v549, 16
      %v725 = vrot.slane %v723, 6
      %v726 = vor.u32 %v722, %v725
      %v727 = vrot.slane %v726, 4
      %v729 = vshrl.u32 %v550, 16
      %v731 = vrot.slane %v729, 5
      %v732 = vshll.u32 %v550, 16
      %v734 = vrot.slane %v732, 6
      %v735 = vor.u32 %v731, %v734
      %v736 = vsel %vm628, %v727, %v735
      %v738 = vshrl.u32 %v551, 16
      %v740 = vrot.slane %v738, 5
      %v741 = vshll.u32 %v551, 16
      %v743 = vrot.slane %v741, 6
      %v744 = vor.u32 %v740, %v743
      %v745 = vrot.slane %v744, 4
      %v747 = vshrl.u32 %v552, 16
      %v749 = vrot.slane %v747, 5
      %v750 = vshll.u32 %v552, 16
      %v752 = vrot.slane %v750, 6
      %v753 = vor.u32 %v749, %v752
      %v754 = vsel %vm628, %v745, %v753
      %v756 = vshrl.u32 %v553, 16
      %v758 = vrot.slane %v756, 5
      %v759 = vshll.u32 %v553, 16
      %v761 = vrot.slane %v759, 6
      %v762 = vor.u32 %v758, %v761
      %v763 = vrot.slane %v762, 4
      %v765 = vshrl.u32 %v554, 16
      %v767 = vrot.slane %v765, 5
      %v768 = vshll.u32 %v554, 16
      %v770 = vrot.slane %v768, 6
      %v771 = vor.u32 %v767, %v770
      %v772 = vsel %vm628, %v763, %v771
      %v774 = vshrl.u32 %v555, 16
      %v776 = vrot.slane %v774, 5
      %v777 = vshll.u32 %v555, 16
      %v779 = vrot.slane %v777, 6
      %v780 = vor.u32 %v776, %v779
      %v781 = vrot.slane %v780, 4
      %v783 = vshrl.u32 %v556, 16
      %v785 = vrot.slane %v783, 5
      %v786 = vshll.u32 %v556, 16
      %v788 = vrot.slane %v786, 6
      %v789 = vor.u32 %v785, %v788
      %v790 = vsel %vm628, %v781, %v789
      %v792 = vshrl.u32 %v557, 16
      %v794 = vrot.slane %v792, 5
      %v795 = vshll.u32 %v557, 16
      %v797 = vrot.slane %v795, 6
      %v798 = vor.u32 %v794, %v797
      %v799 = vrot.slane %v798, 4
      %v801 = vshrl.u32 %v558, 16
      %v803 = vrot.slane %v801, 5
      %v804 = vshll.u32 %v558, 16
      %v806 = vrot.slane %v804, 6
      %v807 = vor.u32 %v803, %v806
      %v808 = vsel %vm628, %v799, %v807
      %v810 = vshrl.u32 %v559, 16
      %v812 = vrot.slane %v810, 5
      %v813 = vshll.u32 %v559, 16
      %v815 = vrot.slane %v813, 6
      %v816 = vor.u32 %v812, %v815
      %v817 = vrot.slane %v816, 4
      %v819 = vshrl.u32 %v560, 16
      %v821 = vrot.slane %v819, 5
      %v822 = vshll.u32 %v560, 16
      %v824 = vrot.slane %v822, 6
      %v825 = vor.u32 %v821, %v824
      %v826 = vsel %vm628, %v817, %v825
      %v828 = vshrl.u32 %v561, 16
      %v830 = vrot.slane %v828, 5
      %v831 = vshll.u32 %v561, 16
      %v833 = vrot.slane %v831, 6
      %v834 = vor.u32 %v830, %v833
      %v835 = vrot.slane %v834, 4
      %v837 = vshrl.u32 %v562, 16
      %v839 = vrot.slane %v837, 5
      %v840 = vshll.u32 %v562, 16
      %v842 = vrot.slane %v840, 6
      %v843 = vor.u32 %v839, %v842
      %v844 = vsel %vm628, %v835, %v843
      %v846 = vshrl.u32 %v563, 16
      %v848 = vrot.slane %v846, 5
      %v849 = vshll.u32 %v563, 16
      %v851 = vrot.slane %v849, 6
      %v852 = vor.u32 %v848, %v851
      %v853 = vrot.slane %v852, 4
      %v855 = vshrl.u32 %v564, 16
      %v857 = vrot.slane %v855, 5
      %v858 = vshll.u32 %v564, 16
      %v860 = vrot.slane %v858, 6
      %v861 = vor.u32 %v857, %v860
      %v862 = vsel %vm628, %v853, %v861
      %v864 = vshrl.u32 %v565, 16
      %v866 = vrot.slane %v864, 5
      %v867 = vshll.u32 %v565, 16
      %v869 = vrot.slane %v867, 6
      %v870 = vor.u32 %v866, %v869
      %v871 = vrot.slane %v870, 4
      %v873 = vshrl.u32 %v566, 16
      %v875 = vrot.slane %v873, 5
      %v876 = vshll.u32 %v566, 16
      %v878 = vrot.slane %v876, 6
      %v879 = vor.u32 %v875, %v878
      %v880 = vsel %vm628, %v871, %v879
      %v882 = vshrl.u32 %v567, 16
      %v884 = vrot.slane %v882, 5
      %v885 = vshll.u32 %v567, 16
      %v887 = vrot.slane %v885, 6
      %v888 = vor.u32 %v884, %v887
      %v889 = vrot.slane %v888, 4
      %v891 = vshrl.u32 %v568, 16
      %v893 = vrot.slane %v891, 5
      %v894 = vshll.u32 %v568, 16
      %v896 = vrot.slane %v894, 6
      %v897 = vor.u32 %v893, %v896
      %v898 = vsel %vm628, %v889, %v897
      %v900 = vshrl.u32 %v569, 16
      %v902 = vrot.slane %v900, 5
      %v903 = vshll.u32 %v569, 16
      %v905 = vrot.slane %v903, 6
      %v906 = vor.u32 %v902, %v905
      %v907 = vrot.slane %v906, 4
      %v909 = vshrl.u32 %v570, 16
      %v911 = vrot.slane %v909, 5
      %v912 = vshll.u32 %v570, 16
      %v914 = vrot.slane %v912, 6
      %v915 = vor.u32 %v911, %v914
      %v916 = vsel %vm628, %v907, %v915
      %s949 = scalar_lea.vmem [#allocation2], 80
      %vm950 = vcmask 125954
      %vm951 = vsmask.f32 7946
      %vm952 = vmand %vm950, %vm951
      %v953 = vld [vmem:[%s949] sm:$0xc]
      %v954 = vsel %vm952, %v636, %v953
      %955 = vst [vmem:[%s949] sm:$0xc] %v954
      %vm956 = vcmask 125952
      %957 = vst.msk [vmem:[%s949 + $0x8] sm:$0xf] %vm956, %v646
      %v958 = vld [vmem:[%s949 + $0x10] sm:$0xc]
      %v959 = vsel %vm952, %v654, %v958
      %960 = vst [vmem:[%s949 + $0x10] sm:$0xc] %v959
      %961 = vst.msk [vmem:[%s949 + $0x18] sm:$0xf] %vm956, %v664
      %v962 = vld [vmem:[%s949 + $0x20] sm:$0xc]
      %v963 = vsel %vm952, %v672, %v962
      %964 = vst [vmem:[%s949 + $0x20] sm:$0xc] %v963
      %965 = vst.msk [vmem:[%s949 + $0x28] sm:$0xf] %vm956, %v682
      %v966 = vld [vmem:[%s949 + $0x30] sm:$0xc]
      %v967 = vsel %vm952, %v690, %v966
      %968 = vst [vmem:[%s949 + $0x30] sm:$0xc] %v967
      %969 = vst.msk [vmem:[%s949 + $0x38] sm:$0xf] %vm956, %v700
      %v970 = vld [vmem:[%s949 + $0x40] sm:$0xc]
      %v971 = vsel %vm952, %v708, %v970
      %972 = vst [vmem:[%s949 + $0x40] sm:$0xc] %v971
      %973 = vst.msk [vmem:[%s949 + $0x48] sm:$0xf] %vm956, %v718
      %v974 = vld [vmem:[%s949 + $0x50] sm:$0xc]
      %v975 = vsel %vm952, %v726, %v974
      %976 = vst [vmem:[%s949 + $0x50] sm:$0xc] %v975
      %977 = vst.msk [vmem:[%s949 + $0x58] sm:$0xf] %vm956, %v736
      %v978 = vld [vmem:[%s949 + $0x60] sm:$0xc]
      %v979 = vsel %vm952, %v744, %v978
      %980 = vst [vmem:[%s949 + $0x60] sm:$0xc] %v979
      %981 = vst.msk [vmem:[%s949 + $0x68] sm:$0xf] %vm956, %v754
      %v982 = vld [vmem:[%s949 + $0x70] sm:$0xc]
      %v983 = vsel %vm952, %v762, %v982
      %984 = vst [vmem:[%s949 + $0x70] sm:$0xc] %v983
      %985 = vst.msk [vmem:[%s949 + $0x78] sm:$0xf] %vm956, %v772
      %v986 = vld [vmem:[%s949 + $0x80] sm:$0xc]
      %v987 = vsel %vm952, %v780, %v986
      %988 = vst [vmem:[%s949 + $0x80] sm:$0xc] %v987
      %989 = vst.msk [vmem:[%s949 + $0x88] sm:$0xf] %vm956, %v790
      %v990 = vld [vmem:[%s949 + $0x90] sm:$0xc]
      %v991 = vsel %vm952, %v798, %v990
      %992 = vst [vmem:[%s949 + $0x90] sm:$0xc] %v991
      %993 = vst.msk [vmem:[%s949 + $0x98] sm:$0xf] %vm956, %v808
      %v994 = vld [vmem:[%s949 + $0xa0] sm:$0xc]
      %v995 = vsel %vm952, %v816, %v994
      %996 = vst [vmem:[%s949 + $0xa0] sm:$0xc] %v995
      %997 = vst.msk [vmem:[%s949 + $0xa8] sm:$0xf] %vm956, %v826
      %v998 = vld [vmem:[%s949 + $0xb0] sm:$0xc]
      %v999 = vsel %vm952, %v834, %v998
      %1000 = vst [vmem:[%s949 + $0xb0] sm:$0xc] %v999
      %1001 = vst.msk [vmem:[%s949 + $0xb8] sm:$0xf] %vm956, %v844
      %v1002 = vld [vmem:[%s949 + $0xc0] sm:$0xc]
      %v1003 = vsel %vm952, %v852, %v1002
      %1004 = vst [vmem:[%s949 + $0xc0] sm:$0xc] %v1003
      %1005 = vst.msk [vmem:[%s949 + $0xc8] sm:$0xf] %vm956, %v862
      %v1006 = vld [vmem:[%s949 + $0xd0] sm:$0xc]
      %v1007 = vsel %vm952, %v870, %v1006
      %1008 = vst [vmem:[%s949 + $0xd0] sm:$0xc] %v1007
      %1009 = vst.msk [vmem:[%s949 + $0xd8] sm:$0xf] %vm956, %v880
      %v1010 = vld [vmem:[%s949 + $0xe0] sm:$0xc]
      %v1011 = vsel %vm952, %v888, %v1010
      %1012 = vst [vmem:[%s949 + $0xe0] sm:$0xc] %v1011
      %1013 = vst.msk [vmem:[%s949 + $0xe8] sm:$0xf] %vm956, %v898
      %v1014 = vld [vmem:[%s949 + $0xf0] sm:$0xc]
      %v1015 = vsel %vm952, %v906, %v1014
      %1016 = vst [vmem:[%s949 + $0xf0] sm:$0xc] %v1015
      %1017 = vst.msk [vmem:[%s949 + $0xf8] sm:$0xf] %vm956, %v916
      %vm1050 = vcmask 1041408
      %vm1051 = vcmask 1045508
      %vm1052 = vmor %vm1050, %vm1051
      %v1053 = vrot.slane %v539, 6
      %v1054 = vrot.slane %v1053, 4
      %v1055 = vrot.slane %v540, 6
      %v1056 = vsel %vm1052, %v1054, %v1055
      %v1057 = vrot.slane %v541, 6
      %v1058 = vrot.slane %v1057, 4
      %v1059 = vrot.slane %v542, 6
      %v1060 = vsel %vm1052, %v1058, %v1059
      %v1061 = vrot.slane %v543, 6
      %v1062 = vrot.slane %v1061, 4
      %v1063 = vrot.slane %v544, 6
      %v1064 = vsel %vm1052, %v1062, %v1063
      %v1065 = vrot.slane %v545, 6
      %v1066 = vrot.slane %v1065, 4
      %v1067 = vrot.slane %v546, 6
      %v1068 = vsel %vm1052, %v1066, %v1067
      %v1069 = vrot.slane %v547, 6
      %v1070 = vrot.slane %v1069, 4
      %v1071 = vrot.slane %v548, 6
      %v1072 = vsel %vm1052, %v1070, %v1071
      %v1073 = vrot.slane %v549, 6
      %v1074 = vrot.slane %v1073, 4
      %v1075 = vrot.slane %v550, 6
      %v1076 = vsel %vm1052, %v1074, %v1075
      %v1077 = vrot.slane %v551, 6
      %v1078 = vrot.slane %v1077, 4
      %v1079 = vrot.slane %v552, 6
      %v1080 = vsel %vm1052, %v1078, %v1079
      %v1081 = vrot.slane %v553, 6
      %v1082 = vrot.slane %v1081, 4
      %v1083 = vrot.slane %v554, 6
      %v1084 = vsel %vm1052, %v1082, %v1083
      %v1085 = vrot.slane %v555, 6
      %v1086 = vrot.slane %v1085, 4
      %v1087 = vrot.slane %v556, 6
      %v1088 = vsel %vm1052, %v1086, %v1087
      %v1089 = vrot.slane %v557, 6
      %v1090 = vrot.slane %v1089, 4
      %v1091 = vrot.slane %v558, 6
      %v1092 = vsel %vm1052, %v1090, %v1091
      %v1093 = vrot.slane %v559, 6
      %v1094 = vrot.slane %v1093, 4
      %v1095 = vrot.slane %v560, 6
      %v1096 = vsel %vm1052, %v1094, %v1095
      %v1097 = vrot.slane %v561, 6
      %v1098 = vrot.slane %v1097, 4
      %v1099 = vrot.slane %v562, 6
      %v1100 = vsel %vm1052, %v1098, %v1099
      %v1101 = vrot.slane %v563, 6
      %v1102 = vrot.slane %v1101, 4
      %v1103 = vrot.slane %v564, 6
      %v1104 = vsel %vm1052, %v1102, %v1103
      %v1105 = vrot.slane %v565, 6
      %v1106 = vrot.slane %v1105, 4
      %v1107 = vrot.slane %v566, 6
      %v1108 = vsel %vm1052, %v1106, %v1107
      %v1109 = vrot.slane %v567, 6
      %v1110 = vrot.slane %v1109, 4
      %v1111 = vrot.slane %v568, 6
      %v1112 = vsel %vm1052, %v1110, %v1111
      %v1113 = vrot.slane %v569, 6
      %v1114 = vrot.slane %v1113, 4
      %v1115 = vrot.slane %v570, 6
      %v1116 = vsel %vm1052, %v1114, %v1115
      %1117 = vrot.lane.b32.xlu0 %v1053, 16
      %v1118 = vpop.permute.xlu0 %1117
      %1119 = vrot.lane.b32.xlu0 %v1056, 16
      %v1120 = vpop.permute.xlu0 %1119
      %1121 = vrot.lane.b32.xlu0 %v1057, 16
      %v1122 = vpop.permute.xlu0 %1121
      %1123 = vrot.lane.b32.xlu0 %v1060, 16
      %v1124 = vpop.permute.xlu0 %1123
      %1125 = vrot.lane.b32.xlu0 %v1061, 16
      %v1126 = vpop.permute.xlu0 %1125
      %1127 = vrot.lane.b32.xlu0 %v1064, 16
      %v1128 = vpop.permute.xlu0 %1127
      %1129 = vrot.lane.b32.xlu0 %v1065, 16
      %v1130 = vpop.permute.xlu0 %1129
      %1131 = vrot.lane.b32.xlu0 %v1068, 16
      %v1132 = vpop.permute.xlu0 %1131
      %1133 = vrot.lane.b32.xlu0 %v1069, 16
      %v1134 = vpop.permute.xlu0 %1133
      %1135 = vrot.lane.b32.xlu0 %v1072, 16
      %v1136 = vpop.permute.xlu0 %1135
      %1137 = vrot.lane.b32.xlu0 %v1073, 16
      %v1138 = vpop.permute.xlu0 %1137
      %1139 = vrot.lane.b32.xlu0 %v1076, 16
      %v1140 = vpop.permute.xlu0 %1139
      %1141 = vrot.lane.b32.xlu0 %v1077, 16
      %v1142 = vpop.permute.xlu0 %1141
      %1143 = vrot.lane.b32.xlu0 %v1080, 16
      %v1144 = vpop.permute.xlu0 %1143
      %1145 = vrot.lane.b32.xlu0 %v1081, 16
      %v1146 = vpop.permute.xlu0 %1145
      %1147 = vrot.lane.b32.xlu0 %v1084, 16
      %v1148 = vpop.permute.xlu0 %1147
      %1149 = vrot.lane.b32.xlu0 %v1085, 16
      %v1150 = vpop.permute.xlu0 %1149
      %1151 = vrot.lane.b32.xlu0 %v1088, 16
      %v1152 = vpop.permute.xlu0 %1151
      %1153 = vrot.lane.b32.xlu0 %v1089, 16
      %v1154 = vpop.permute.xlu0 %1153
      %1155 = vrot.lane.b32.xlu0 %v1092, 16
      %v1156 = vpop.permute.xlu0 %1155
      %1157 = vrot.lane.b32.xlu0 %v1093, 16
      %v1158 = vpop.permute.xlu0 %1157
      %1159 = vrot.lane.b32.xlu0 %v1096, 16
      %v1160 = vpop.permute.xlu0 %1159
      %1161 = vrot.lane.b32.xlu0 %v1097, 16
      %v1162 = vpop.permute.xlu0 %1161
      %1163 = vrot.lane.b32.xlu0 %v1100, 16
      %v1164 = vpop.permute.xlu0 %1163
      %1165 = vrot.lane.b32.xlu0 %v1101, 16
      %v1166 = vpop.permute.xlu0 %1165
      %1167 = vrot.lane.b32.xlu0 %v1104, 16
      %v1168 = vpop.permute.xlu0 %1167
      %1169 = vrot.lane.b32.xlu0 %v1105, 16
      %v1170 = vpop.permute.xlu0 %1169
      %1171 = vrot.lane.b32.xlu0 %v1108, 16
      %v1172 = vpop.permute.xlu0 %1171
      %1173 = vrot.lane.b32.xlu0 %v1109, 16
      %v1174 = vpop.permute.xlu0 %1173
      %1175 = vrot.lane.b32.xlu0 %v1112, 16
      %v1176 = vpop.permute.xlu0 %1175
      %1177 = vrot.lane.b32.xlu0 %v1113, 16
      %v1178 = vpop.permute.xlu0 %1177
      %1179 = vrot.lane.b32.xlu0 %v1116, 16
      %v1180 = vpop.permute.xlu0 %1179
      %vm1213 = vcmask 257154
      %1214 = vst.msk [vmem:[%s949] sm:$0xc] %vm1213, %v1118
      %vm1215 = vcmask 257152
      %1216 = vst.msk [vmem:[%s949 + $0x8] sm:$0xf] %vm1215, %v1120
      %1217 = vst.msk [vmem:[%s949 + $0x10] sm:$0xc] %vm1213, %v1122
      %1218 = vst.msk [vmem:[%s949 + $0x18] sm:$0xf] %vm1215, %v1124
      %1219 = vst.msk [vmem:[%s949 + $0x20] sm:$0xc] %vm1213, %v1126
      %1220 = vst.msk [vmem:[%s949 + $0x28] sm:$0xf] %vm1215, %v1128
      %1221 = vst.msk [vmem:[%s949 + $0x30] sm:$0xc] %vm1213, %v1130
      %1222 = vst.msk [vmem:[%s949 + $0x38] sm:$0xf] %vm1215, %v1132
      %1223 = vst.msk [vmem:[%s949 + $0x40] sm:$0xc] %vm1213, %v1134
      %1224 = vst.msk [vmem:[%s949 + $0x48] sm:$0xf] %vm1215, %v1136
      %1225 = vst.msk [vmem:[%s949 + $0x50] sm:$0xc] %vm1213, %v1138
      %1226 = vst.msk [vmem:[%s949 + $0x58] sm:$0xf] %vm1215, %v1140
      %1227 = vst.msk [vmem:[%s949 + $0x60] sm:$0xc] %vm1213, %v1142
      %1228 = vst.msk [vmem:[%s949 + $0x68] sm:$0xf] %vm1215, %v1144
      %1229 = vst.msk [vmem:[%s949 + $0x70] sm:$0xc] %vm1213, %v1146
      %1230 = vst.msk [vmem:[%s949 + $0x78] sm:$0xf] %vm1215, %v1148
      %1231 = vst.msk [vmem:[%s949 + $0x80] sm:$0xc] %vm1213, %v1150
      %1232 = vst.msk [vmem:[%s949 + $0x88] sm:$0xf] %vm1215, %v1152
      %1233 = vst.msk [vmem:[%s949 + $0x90] sm:$0xc] %vm1213, %v1154
      %1234 = vst.msk [vmem:[%s949 + $0x98] sm:$0xf] %vm1215, %v1156
      %1235 = vst.msk [vmem:[%s949 + $0xa0] sm:$0xc] %vm1213, %v1158
      %1236 = vst.msk [vmem:[%s949 + $0xa8] sm:$0xf] %vm1215, %v1160
      %1237 = vst.msk [vmem:[%s949 + $0xb0] sm:$0xc] %vm1213, %v1162
      %1238 = vst.msk [vmem:[%s949 + $0xb8] sm:$0xf] %vm1215, %v1164
      %1239 = vst.msk [vmem:[%s949 + $0xc0] sm:$0xc] %vm1213, %v1166
      %1240 = vst.msk [vmem:[%s949 + $0xc8] sm:$0xf] %vm1215, %v1168
      %1241 = vst.msk [vmem:[%s949 + $0xd0] sm:$0xc] %vm1213, %v1170
      %1242 = vst.msk [vmem:[%s949 + $0xd8] sm:$0xf] %vm1215, %v1172
      %1243 = vst.msk [vmem:[%s949 + $0xe0] sm:$0xc] %vm1213, %v1174
      %1244 = vst.msk [vmem:[%s949 + $0xe8] sm:$0xf] %vm1215, %v1176
      %1245 = vst.msk [vmem:[%s949 + $0xf0] sm:$0xc] %vm1213, %v1178
      %1246 = vst.msk [vmem:[%s949 + $0xf8] sm:$0xf] %vm1215, %v1180
      %vm1247 = vsmask.f32 1280
      %vm1248 = vsmask.f32 5392
      %vm1249 = vmor %vm1247, %vm1248
      %v1250 = vrot.slane %v630, 6
      %v1251 = vrot.slane %v633, 7
      %v1252 = vor.u32 %v1250, %v1251
      %v1253 = vrot.slane %v1252, 4
      %v1254 = vrot.slane %v639, 6
      %v1255 = vrot.slane %v642, 7
      %v1256 = vor.u32 %v1254, %v1255
      %v1257 = vsel %vm1249, %v1253, %v1256
      %v1258 = vrot.slane %v648, 6
      %v1259 = vrot.slane %v651, 7
      %v1260 = vor.u32 %v1258, %v1259
      %v1261 = vrot.slane %v1260, 4
      %v1262 = vrot.slane %v657, 6
      %v1263 = vrot.slane %v660, 7
      %v1264 = vor.u32 %v1262, %v1263
      %v1265 = vsel %vm1249, %v1261, %v1264
      %v1266 = vrot.slane %v666, 6
      %v1267 = vrot.slane %v669, 7
      %v1268 = vor.u32 %v1266, %v1267
      %v1269 = vrot.slane %v1268, 4
      %v1270 = vrot.slane %v675, 6
      %v1271 = vrot.slane %v678, 7
      %v1272 = vor.u32 %v1270, %v1271
      %v1273 = vsel %vm1249, %v1269, %v1272
      %v1274 = vrot.slane %v684, 6
      %v1275 = vrot.slane %v687, 7
      %v1276 = vor.u32 %v1274, %v1275
      %v1277 = vrot.slane %v1276, 4
      %v1278 = vrot.slane %v693, 6
      %v1279 = vrot.slane %v696, 7
      %v1280 = vor.u32 %v1278, %v1279
      %v1281 = vsel %vm1249, %v1277, %v1280
      %v1282 = vrot.slane %v702, 6
      %v1283 = vrot.slane %v705, 7
      %v1284 = vor.u32 %v1282, %v1283
      %v1285 = vrot.slane %v1284, 4
      %v1286 = vrot.slane %v711, 6
      %v1287 = vrot.slane %v714, 7
      %v1288 = vor.u32 %v1286, %v1287
      %v1289 = vsel %vm1249, %v1285, %v1288
      %v1290 = vrot.slane %v720, 6
      %v1291 = vrot.slane %v723, 7
      %v1292 = vor.u32 %v1290, %v1291
      %v1293 = vrot.slane %v1292, 4
      %v1294 = vrot.slane %v729, 6
      %v1295 = vrot.slane %v732, 7
      %v1296 = vor.u32 %v1294, %v1295
      %v1297 = vsel %vm1249, %v1293, %v1296
      %v1298 = vrot.slane %v738, 6
      %v1299 = vrot.slane %v741, 7
      %v1300 = vor.u32 %v1298, %v1299
      %v1301 = vrot.slane %v1300, 4
      %v1302 = vrot.slane %v747, 6
      %v1303 = vrot.slane %v750, 7
      %v1304 = vor.u32 %v1302, %v1303
      %v1305 = vsel %vm1249, %v1301, %v1304
      %v1306 = vrot.slane %v756, 6
      %v1307 = vrot.slane %v759, 7
      %v1308 = vor.u32 %v1306, %v1307
      %v1309 = vrot.slane %v1308, 4
      %v1310 = vrot.slane %v765, 6
      %v1311 = vrot.slane %v768, 7
      %v1312 = vor.u32 %v1310, %v1311
      %v1313 = vsel %vm1249, %v1309, %v1312
      %v1314 = vrot.slane %v774, 6
      %v1315 = vrot.slane %v777, 7
      %v1316 = vor.u32 %v1314, %v1315
      %v1317 = vrot.slane %v1316, 4
      %v1318 = vrot.slane %v783, 6
      %v1319 = vrot.slane %v786, 7
      %v1320 = vor.u32 %v1318, %v1319
      %v1321 = vsel %vm1249, %v1317, %v1320
      %v1322 = vrot.slane %v792, 6
      %v1323 = vrot.slane %v795, 7
      %v1324 = vor.u32 %v1322, %v1323
      %v1325 = vrot.slane %v1324, 4
      %v1326 = vrot.slane %v801, 6
      %v1327 = vrot.slane %v804, 7
      %v1328 = vor.u32 %v1326, %v1327
      %v1329 = vsel %vm1249, %v1325, %v1328
      %v1330 = vrot.slane %v810, 6
      %v1331 = vrot.slane %v813, 7
      %v1332 = vor.u32 %v1330, %v1331
      %v1333 = vrot.slane %v1332, 4
      %v1334 = vrot.slane %v819, 6
      %v1335 = vrot.slane %v822, 7
      %v1336 = vor.u32 %v1334, %v1335
      %v1337 = vsel %vm1249, %v1333, %v1336
      %v1338 = vrot.slane %v828, 6
      %v1339 = vrot.slane %v831, 7
      %v1340 = vor.u32 %v1338, %v1339
      %v1341 = vrot.slane %v1340, 4
      %v1342 = vrot.slane %v837, 6
      %v1343 = vrot.slane %v840, 7
      %v1344 = vor.u32 %v1342, %v1343
      %v1345 = vsel %vm1249, %v1341, %v1344
      %v1346 = vrot.slane %v846, 6
      %v1347 = vrot.slane %v849, 7
      %v1348 = vor.u32 %v1346, %v1347
      %v1349 = vrot.slane %v1348, 4
      %v1350 = vrot.slane %v855, 6
      %v1351 = vrot.slane %v858, 7
      %v1352 = vor.u32 %v1350, %v1351
      %v1353 = vsel %vm1249, %v1349, %v1352
      %v1354 = vrot.slane %v864, 6
      %v1355 = vrot.slane %v867, 7
      %v1356 = vor.u32 %v1354, %v1355
      %v1357 = vrot.slane %v1356, 4
      %v1358 = vrot.slane %v873, 6
      %v1359 = vrot.slane %v876, 7
      %v1360 = vor.u32 %v1358, %v1359
      %v1361 = vsel %vm1249, %v1357, %v1360
      %v1362 = vrot.slane %v882, 6
      %v1363 = vrot.slane %v885, 7
      %v1364 = vor.u32 %v1362, %v1363
      %v1365 = vrot.slane %v1364, 4
      %v1366 = vrot.slane %v891, 6
      %v1367 = vrot.slane %v894, 7
      %v1368 = vor.u32 %v1366, %v1367
      %v1369 = vsel %vm1249, %v1365, %v1368
      %v1370 = vrot.slane %v900, 6
      %v1371 = vrot.slane %v903, 7
      %v1372 = vor.u32 %v1370, %v1371
      %v1373 = vrot.slane %v1372, 4
      %v1374 = vrot.slane %v909, 6
      %v1375 = vrot.slane %v912, 7
      %v1376 = vor.u32 %v1374, %v1375
      %v1377 = vsel %vm1249, %v1373, %v1376
      %1378 = vrot.lane.b32.xlu0 %v1252, 32
      %v1379 = vpop.permute.xlu0 %1378
      %1380 = vrot.lane.b32.xlu0 %v1257, 32
      %v1381 = vpop.permute.xlu0 %1380
      %1382 = vrot.lane.b32.xlu0 %v1260, 32
      %v1383 = vpop.permute.xlu0 %1382
      %1384 = vrot.lane.b32.xlu0 %v1265, 32
      %v1385 = vpop.permute.xlu0 %1384
      %1386 = vrot.lane.b32.xlu0 %v1268, 32
      %v1387 = vpop.permute.xlu0 %1386
      %1388 = vrot.lane.b32.xlu0 %v1273, 32
      %v1389 = vpop.permute.xlu0 %1388
      %1390 = vrot.lane.b32.xlu0 %v1276, 32
      %v1391 = vpop.permute.xlu0 %1390
      %1392 = vrot.lane.b32.xlu0 %v1281, 32
      %v1393 = vpop.permute.xlu0 %1392
      %1394 = vrot.lane.b32.xlu0 %v1284, 32
      %v1395 = vpop.permute.xlu0 %1394
      %1396 = vrot.lane.b32.xlu0 %v1289, 32
      %v1397 = vpop.permute.xlu0 %1396
      %1398 = vrot.lane.b32.xlu0 %v1292, 32
      %v1399 = vpop.permute.xlu0 %1398
      %1400 = vrot.lane.b32.xlu0 %v1297, 32
      %v1401 = vpop.permute.xlu0 %1400
      %1402 = vrot.lane.b32.xlu0 %v1300, 32
      %v1403 = vpop.permute.xlu0 %1402
      %1404 = vrot.lane.b32.xlu0 %v1305, 32
      %v1405 = vpop.permute.xlu0 %1404
      %1406 = vrot.lane.b32.xlu0 %v1308, 32
      %v1407 = vpop.permute.xlu0 %1406
      %1408 = vrot.lane.b32.xlu0 %v1313, 32
      %v1409 = vpop.permute.xlu0 %1408
      %1410 = vrot.lane.b32.xlu0 %v1316, 32
      %v1411 = vpop.permute.xlu0 %1410
      %1412 = vrot.lane.b32.xlu0 %v1321, 32
      %v1413 = vpop.permute.xlu0 %1412
      %1414 = vrot.lane.b32.xlu0 %v1324, 32
      %v1415 = vpop.permute.xlu0 %1414
      %1416 = vrot.lane.b32.xlu0 %v1329, 32
      %v1417 = vpop.permute.xlu0 %1416
      %1418 = vrot.lane.b32.xlu0 %v1332, 32
      %v1419 = vpop.permute.xlu0 %1418
      %1420 = vrot.lane.b32.xlu0 %v1337, 32
      %v1421 = vpop.permute.xlu0 %1420
      %1422 = vrot.lane.b32.xlu0 %v1340, 32
      %v1423 = vpop.permute.xlu0 %1422
      %1424 = vrot.lane.b32.xlu0 %v1345, 32
      %v1425 = vpop.permute.xlu0 %1424
      %1426 = vrot.lane.b32.xlu0 %v1348, 32
      %v1427 = vpop.permute.xlu0 %1426
      %1428 = vrot.lane.b32.xlu0 %v1353, 32
      %v1429 = vpop.permute.xlu0 %1428
      %1430 = vrot.lane.b32.xlu0 %v1356, 32
      %v1431 = vpop.permute.xlu0 %1430
      %1432 = vrot.lane.b32.xlu0 %v1361, 32
      %v1433 = vpop.permute.xlu0 %1432
      %1434 = vrot.lane.b32.xlu0 %v1364, 32
      %v1435 = vpop.permute.xlu0 %1434
      %1436 = vrot.lane.b32.xlu0 %v1369, 32
      %v1437 = vpop.permute.xlu0 %1436
      %1438 = vrot.lane.b32.xlu0 %v1372, 32
      %v1439 = vpop.permute.xlu0 %1438
      %1440 = vrot.lane.b32.xlu0 %v1377, 32
      %v1441 = vpop.permute.xlu0 %1440
      %vm1474 = vcmask 388353
      %vm1475 = vsmask.f32 7942
      %vm1476 = vmand %vm1474, %vm1475
      %v1477 = vld [vmem:[%s949] sm:$0xe]
      %v1478 = vsel %vm1476, %v1379, %v1477
      %1479 = vst [vmem:[%s949] sm:$0xe] %v1478
      %vm1480 = vcmask 388352
      %1481 = vst.msk [vmem:[%s949 + $0x8] sm:$0xf] %vm1480, %v1381
      %v1482 = vld [vmem:[%s949 + $0x10] sm:$0xe]
      %v1483 = vsel %vm1476, %v1383, %v1482
      %1484 = vst [vmem:[%s949 + $0x10] sm:$0xe] %v1483
      %1485 = vst.msk [vmem:[%s949 + $0x18] sm:$0xf] %vm1480, %v1385
      %v1486 = vld [vmem:[%s949 + $0x20] sm:$0xe]
      %v1487 = vsel %vm1476, %v1387, %v1486
      %1488 = vst [vmem:[%s949 + $0x20] sm:$0xe] %v1487
      %1489 = vst.msk [vmem:[%s949 + $0x28] sm:$0xf] %vm1480, %v1389
      %v1490 = vld [vmem:[%s949 + $0x30] sm:$0xe]
      %v1491 = vsel %vm1476, %v1391, %v1490
      %1492 = vst [vmem:[%s949 + $0x30] sm:$0xe] %v1491
      %1493 = vst.msk [vmem:[%s949 + $0x38] sm:$0xf] %vm1480, %v1393
      %v1494 = vld [vmem:[%s949 + $0x40] sm:$0xe]
      %v1495 = vsel %vm1476, %v1395, %v1494
      %1496 = vst [vmem:[%s949 + $0x40] sm:$0xe] %v1495
      %1497 = vst.msk [vmem:[%s949 + $0x48] sm:$0xf] %vm1480, %v1397
      %v1498 = vld [vmem:[%s949 + $0x50] sm:$0xe]
      %v1499 = vsel %vm1476, %v1399, %v1498
      %1500 = vst [vmem:[%s949 + $0x50] sm:$0xe] %v1499
      %1501 = vst.msk [vmem:[%s949 + $0x58] sm:$0xf] %vm1480, %v1401
      %v1502 = vld [vmem:[%s949 + $0x60] sm:$0xe]
      %v1503 = vsel %vm1476, %v1403, %v1502
      %1504 = vst [vmem:[%s949 + $0x60] sm:$0xe] %v1503
      %1505 = vst.msk [vmem:[%s949 + $0x68] sm:$0xf] %vm1480, %v1405
      %v1506 = vld [vmem:[%s949 + $0x70] sm:$0xe]
      %v1507 = vsel %vm1476, %v1407, %v1506
      %1508 = vst [vmem:[%s949 + $0x70] sm:$0xe] %v1507
      %1509 = vst.msk [vmem:[%s949 + $0x78] sm:$0xf] %vm1480, %v1409
      %v1510 = vld [vmem:[%s949 + $0x80] sm:$0xe]
      %v1511 = vsel %vm1476, %v1411, %v1510
      %1512 = vst [vmem:[%s949 + $0x80] sm:$0xe] %v1511
      %1513 = vst.msk [vmem:[%s949 + $0x88] sm:$0xf] %vm1480, %v1413
      %v1514 = vld [vmem:[%s949 + $0x90] sm:$0xe]
      %v1515 = vsel %vm1476, %v1415, %v1514
      %1516 = vst [vmem:[%s949 + $0x90] sm:$0xe] %v1515
      %1517 = vst.msk [vmem:[%s949 + $0x98] sm:$0xf] %vm1480, %v1417
      %v1518 = vld [vmem:[%s949 + $0xa0] sm:$0xe]
      %v1519 = vsel %vm1476, %v1419, %v1518
      %1520 = vst [vmem:[%s949 + $0xa0] sm:$0xe] %v1519
      %1521 = vst.msk [vmem:[%s949 + $0xa8] sm:$0xf] %vm1480, %v1421
      %v1522 = vld [vmem:[%s949 + $0xb0] sm:$0xe]
      %v1523 = vsel %vm1476, %v1423, %v1522
      %1524 = vst [vmem:[%s949 + $0xb0] sm:$0xe] %v1523
      %1525 = vst.msk [vmem:[%s949 + $0xb8] sm:$0xf] %vm1480, %v1425
      %v1526 = vld [vmem:[%s949 + $0xc0] sm:$0xe]
      %v1527 = vsel %vm1476, %v1427, %v1526
      %1528 = vst [vmem:[%s949 + $0xc0] sm:$0xe] %v1527
      %1529 = vst.msk [vmem:[%s949 + $0xc8] sm:$0xf] %vm1480, %v1429
      %v1530 = vld [vmem:[%s949 + $0xd0] sm:$0xe]
      %v1531 = vsel %vm1476, %v1431, %v1530
      %1532 = vst [vmem:[%s949 + $0xd0] sm:$0xe] %v1531
      %1533 = vst.msk [vmem:[%s949 + $0xd8] sm:$0xf] %vm1480, %v1433
      %v1534 = vld [vmem:[%s949 + $0xe0] sm:$0xe]
      %v1535 = vsel %vm1476, %v1435, %v1534
      %1536 = vst [vmem:[%s949 + $0xe0] sm:$0xe] %v1535
      %1537 = vst.msk [vmem:[%s949 + $0xe8] sm:$0xf] %vm1480, %v1437
      %v1538 = vld [vmem:[%s949 + $0xf0] sm:$0xe]
      %v1539 = vsel %vm1476, %v1439, %v1538
      %1540 = vst [vmem:[%s949 + $0xf0] sm:$0xe] %v1539
      %1541 = vst.msk [vmem:[%s949 + $0xf8] sm:$0xf] %vm1480, %v1441
      %vm1542 = vcmask 1040384
      %vm1543 = vcmask 1044484
      %vm1544 = vmor %vm1542, %vm1543
      %v1545 = vrot.slane %v539, 7
      %v1546 = vrot.slane %v1545, 4
      %v1547 = vrot.slane %v540, 7
      %v1548 = vsel %vm1544, %v1546, %v1547
      %v1549 = vrot.slane %v541, 7
      %v1550 = vrot.slane %v1549, 4
      %v1551 = vrot.slane %v542, 7
      %v1552 = vsel %vm1544, %v1550, %v1551
      %v1553 = vrot.slane %v543, 7
      %v1554 = vrot.slane %v1553, 4
      %v1555 = vrot.slane %v544, 7
      %v1556 = vsel %vm1544, %v1554, %v1555
      %v1557 = vrot.slane %v545, 7
      %v1558 = vrot.slane %v1557, 4
      %v1559 = vrot.slane %v546, 7
      %v1560 = vsel %vm1544, %v1558, %v1559
      %v1561 = vrot.slane %v547, 7
      %v1562 = vrot.slane %v1561, 4
      %v1563 = vrot.slane %v548, 7
      %v1564 = vsel %vm1544, %v1562, %v1563
      %v1565 = vrot.slane %v549, 7
      %v1566 = vrot.slane %v1565, 4
      %v1567 = vrot.slane %v550, 7
      %v1568 = vsel %vm1544, %v1566, %v1567
      %v1569 = vrot.slane %v551, 7
      %v1570 = vrot.slane %v1569, 4
      %v1571 = vrot.slane %v552, 7
      %v1572 = vsel %vm1544, %v1570, %v1571
      %v1573 = vrot.slane %v553, 7
      %v1574 = vrot.slane %v1573, 4
      %v1575 = vrot.slane %v554, 7
      %v1576 = vsel %vm1544, %v1574, %v1575
      %v1577 = vrot.slane %v555, 7
      %v1578 = vrot.slane %v1577, 4
      %v1579 = vrot.slane %v556, 7
      %v1580 = vsel %vm1544, %v1578, %v1579
      %v1581 = vrot.slane %v557, 7
      %v1582 = vrot.slane %v1581, 4
      %v1583 = vrot.slane %v558, 7
      %v1584 = vsel %vm1544, %v1582, %v1583
      %v1585 = vrot.slane %v559, 7
      %v1586 = vrot.slane %v1585, 4
      %v1587 = vrot.slane %v560, 7
      %v1588 = vsel %vm1544, %v1586, %v1587
      %v1589 = vrot.slane %v561, 7
      %v1590 = vrot.slane %v1589, 4
      %v1591 = vrot.slane %v562, 7
      %v1592 = vsel %vm1544, %v1590, %v1591
      %v1593 = vrot.slane %v563, 7
      %v1594 = vrot.slane %v1593, 4
      %v1595 = vrot.slane %v564, 7
      %v1596 = vsel %vm1544, %v1594, %v1595
      %v1597 = vrot.slane %v565, 7
      %v1598 = vrot.slane %v1597, 4
      %v1599 = vrot.slane %v566, 7
      %v1600 = vsel %vm1544, %v1598, %v1599
      %v1601 = vrot.slane %v567, 7
      %v1602 = vrot.slane %v1601, 4
      %v1603 = vrot.slane %v568, 7
      %v1604 = vsel %vm1544, %v1602, %v1603
      %v1605 = vrot.slane %v569, 7
      %v1606 = vrot.slane %v1605, 4
      %v1607 = vrot.slane %v570, 7
      %v1608 = vsel %vm1544, %v1606, %v1607
      %1609 = vrot.lane.b32.xlu0 %v1545, 48
      %v1610 = vpop.permute.xlu0 %1609
      %1611 = vrot.lane.b32.xlu0 %v1548, 48
      %v1612 = vpop.permute.xlu0 %1611
      %1613 = vrot.lane.b32.xlu0 %v1549, 48
      %v1614 = vpop.permute.xlu0 %1613
      %1615 = vrot.lane.b32.xlu0 %v1552, 48
      %v1616 = vpop.permute.xlu0 %1615
      %1617 = vrot.lane.b32.xlu0 %v1553, 48
      %v1618 = vpop.permute.xlu0 %1617
      %1619 = vrot.lane.b32.xlu0 %v1556, 48
      %v1620 = vpop.permute.xlu0 %1619
      %1621 = vrot.lane.b32.xlu0 %v1557, 48
      %v1622 = vpop.permute.xlu0 %1621
      %1623 = vrot.lane.b32.xlu0 %v1560, 48
      %v1624 = vpop.permute.xlu0 %1623
      %1625 = vrot.lane.b32.xlu0 %v1561, 48
      %v1626 = vpop.permute.xlu0 %1625
      %1627 = vrot.lane.b32.xlu0 %v1564, 48
      %v1628 = vpop.permute.xlu0 %1627
      %1629 = vrot.lane.b32.xlu0 %v1565, 48
      %v1630 = vpop.permute.xlu0 %1629
      %1631 = vrot.lane.b32.xlu0 %v1568, 48
      %v1632 = vpop.permute.xlu0 %1631
      %1633 = vrot.lane.b32.xlu0 %v1569, 48
      %v1634 = vpop.permute.xlu0 %1633
      %1635 = vrot.lane.b32.xlu0 %v1572, 48
      %v1636 = vpop.permute.xlu0 %1635
      %1637 = vrot.lane.b32.xlu0 %v1573, 48
      %v1638 = vpop.permute.xlu0 %1637
      %1639 = vrot.lane.b32.xlu0 %v1576, 48
      %v1640 = vpop.permute.xlu0 %1639
      %1641 = vrot.lane.b32.xlu0 %v1577, 48
      %v1642 = vpop.permute.xlu0 %1641
      %1643 = vrot.lane.b32.xlu0 %v1580, 48
      %v1644 = vpop.permute.xlu0 %1643
      %1645 = vrot.lane.b32.xlu0 %v1581, 48
      %v1646 = vpop.permute.xlu0 %1645
      %1647 = vrot.lane.b32.xlu0 %v1584, 48
      %v1648 = vpop.permute.xlu0 %1647
      %1649 = vrot.lane.b32.xlu0 %v1585, 48
      %v1650 = vpop.permute.xlu0 %1649
      %1651 = vrot.lane.b32.xlu0 %v1588, 48
      %v1652 = vpop.permute.xlu0 %1651
      %1653 = vrot.lane.b32.xlu0 %v1589, 48
      %v1654 = vpop.permute.xlu0 %1653
      %1655 = vrot.lane.b32.xlu0 %v1592, 48
      %v1656 = vpop.permute.xlu0 %1655
      %1657 = vrot.lane.b32.xlu0 %v1593, 48
      %v1658 = vpop.permute.xlu0 %1657
      %1659 = vrot.lane.b32.xlu0 %v1596, 48
      %v1660 = vpop.permute.xlu0 %1659
      %1661 = vrot.lane.b32.xlu0 %v1597, 48
      %v1662 = vpop.permute.xlu0 %1661
      %1663 = vrot.lane.b32.xlu0 %v1600, 48
      %v1664 = vpop.permute.xlu0 %1663
      %1665 = vrot.lane.b32.xlu0 %v1601, 48
      %v1666 = vpop.permute.xlu0 %1665
      %1667 = vrot.lane.b32.xlu0 %v1604, 48
      %v1668 = vpop.permute.xlu0 %1667
      %1669 = vrot.lane.b32.xlu0 %v1605, 48
      %v1670 = vpop.permute.xlu0 %1669
      %1671 = vrot.lane.b32.xlu0 %v1608, 48
      %v1672 = vpop.permute.xlu0 %1671
      %vm1705 = vcmask 519553
      %1706 = vst.msk [vmem:[%s949] sm:$0xe] %vm1705, %v1610
      %vm1707 = vcmask 519552
      %1708 = vst.msk [vmem:[%s949 + $0x8] sm:$0xf] %vm1707, %v1612
      %1709 = vst.msk [vmem:[%s949 + $0x10] sm:$0xe] %vm1705, %v1614
      %1710 = vst.msk [vmem:[%s949 + $0x18] sm:$0xf] %vm1707, %v1616
      %1711 = vst.msk [vmem:[%s949 + $0x20] sm:$0xe] %vm1705, %v1618
      %1712 = vst.msk [vmem:[%s949 + $0x28] sm:$0xf] %vm1707, %v1620
      %1713 = vst.msk [vmem:[%s949 + $0x30] sm:$0xe] %vm1705, %v1622
      %1714 = vst.msk [vmem:[%s949 + $0x38] sm:$0xf] %vm1707, %v1624
      %1715 = vst.msk [vmem:[%s949 + $0x40] sm:$0xe] %vm1705, %v1626
      %1716 = vst.msk [vmem:[%s949 + $0x48] sm:$0xf] %vm1707, %v1628
      %1717 = vst.msk [vmem:[%s949 + $0x50] sm:$0xe] %vm1705, %v1630
      %1718 = vst.msk [vmem:[%s949 + $0x58] sm:$0xf] %vm1707, %v1632
      %1719 = vst.msk [vmem:[%s949 + $0x60] sm:$0xe] %vm1705, %v1634
      %1720 = vst.msk [vmem:[%s949 + $0x68] sm:$0xf] %vm1707, %v1636
      %1721 = vst.msk [vmem:[%s949 + $0x70] sm:$0xe] %vm1705, %v1638
      %1722 = vst.msk [vmem:[%s949 + $0x78] sm:$0xf] %vm1707, %v1640
      %1723 = vst.msk [vmem:[%s949 + $0x80] sm:$0xe] %vm1705, %v1642
      %1724 = vst.msk [vmem:[%s949 + $0x88] sm:$0xf] %vm1707, %v1644
      %1725 = vst.msk [vmem:[%s949 + $0x90] sm:$0xe] %vm1705, %v1646
      %1726 = vst.msk [vmem:[%s949 + $0x98] sm:$0xf] %vm1707, %v1648
      %1727 = vst.msk [vmem:[%s949 + $0xa0] sm:$0xe] %vm1705, %v1650
      %1728 = vst.msk [vmem:[%s949 + $0xa8] sm:$0xf] %vm1707, %v1652
      %1729 = vst.msk [vmem:[%s949 + $0xb0] sm:$0xe] %vm1705, %v1654
      %1730 = vst.msk [vmem:[%s949 + $0xb8] sm:$0xf] %vm1707, %v1656
      %1731 = vst.msk [vmem:[%s949 + $0xc0] sm:$0xe] %vm1705, %v1658
      %1732 = vst.msk [vmem:[%s949 + $0xc8] sm:$0xf] %vm1707, %v1660
      %1733 = vst.msk [vmem:[%s949 + $0xd0] sm:$0xe] %vm1705, %v1662
      %1734 = vst.msk [vmem:[%s949 + $0xd8] sm:$0xf] %vm1707, %v1664
      %1735 = vst.msk [vmem:[%s949 + $0xe0] sm:$0xe] %vm1705, %v1666
      %1736 = vst.msk [vmem:[%s949 + $0xe8] sm:$0xf] %vm1707, %v1668
      %1737 = vst.msk [vmem:[%s949 + $0xf0] sm:$0xe] %vm1705, %v1670
      %1738 = vst.msk [vmem:[%s949 + $0xf8] sm:$0xf] %vm1707, %v1672
      %vm1739 = vsmask.f32 256
      %vm1740 = vsmask.f32 4368
      %vm1741 = vmor %vm1739, %vm1740
      %v1742 = vrot.slane %v630, 7
      %v1743 = vor.u32 %v1742, %v633
      %v1744 = vrot.slane %v1742, 4
      %v1745 = vrot.slane %v639, 7
      %v1746 = vor.u32 %v1745, %v642
      %v1747 = vsel %vm1741, %v1744, %v1746
      %v1748 = vrot.slane %v648, 7
      %v1749 = vor.u32 %v1748, %v651
      %v1750 = vrot.slane %v1748, 4
      %v1751 = vrot.slane %v657, 7
      %v1752 = vor.u32 %v1751, %v660
      %v1753 = vsel %vm1741, %v1750, %v1752
      %v1754 = vrot.slane %v666, 7
      %v1755 = vor.u32 %v1754, %v669
      %v1756 = vrot.slane %v1754, 4
      %v1757 = vrot.slane %v675, 7
      %v1758 = vor.u32 %v1757, %v678
      %v1759 = vsel %vm1741, %v1756, %v1758
      %v1760 = vrot.slane %v684, 7
      %v1761 = vor.u32 %v1760, %v687
      %v1762 = vrot.slane %v1760, 4
      %v1763 = vrot.slane %v693, 7
      %v1764 = vor.u32 %v1763, %v696
      %v1765 = vsel %vm1741, %v1762, %v1764
      %v1766 = vrot.slane %v702, 7
      %v1767 = vor.u32 %v1766, %v705
      %v1768 = vrot.slane %v1766, 4
      %v1769 = vrot.slane %v711, 7
      %v1770 = vor.u32 %v1769, %v714
      %v1771 = vsel %vm1741, %v1768, %v1770
      %v1772 = vrot.slane %v720, 7
      %v1773 = vor.u32 %v1772, %v723
      %v1774 = vrot.slane %v1772, 4
      %v1775 = vrot.slane %v729, 7
      %v1776 = vor.u32 %v1775, %v732
      %v1777 = vsel %vm1741, %v1774, %v1776
      %v1778 = vrot.slane %v738, 7
      %v1779 = vor.u32 %v1778, %v741
      %v1780 = vrot.slane %v1778, 4
      %v1781 = vrot.slane %v747, 7
      %v1782 = vor.u32 %v1781, %v750
      %v1783 = vsel %vm1741, %v1780, %v1782
      %v1784 = vrot.slane %v756, 7
      %v1785 = vor.u32 %v1784, %v759
      %v1786 = vrot.slane %v1784, 4
      %v1787 = vrot.slane %v765, 7
      %v1788 = vor.u32 %v1787, %v768
      %v1789 = vsel %vm1741, %v1786, %v1788
      %v1790 = vrot.slane %v774, 7
      %v1791 = vor.u32 %v1790, %v777
      %v1792 = vrot.slane %v1790, 4
      %v1793 = vrot.slane %v783, 7
      %v1794 = vor.u32 %v1793, %v786
      %v1795 = vsel %vm1741, %v1792, %v1794
      %v1796 = vrot.slane %v792, 7
      %v1797 = vor.u32 %v1796, %v795
      %v1798 = vrot.slane %v1796, 4
      %v1799 = vrot.slane %v801, 7
      %v1800 = vor.u32 %v1799, %v804
      %v1801 = vsel %vm1741, %v1798, %v1800
      %v1802 = vrot.slane %v810, 7
      %v1803 = vor.u32 %v1802, %v813
      %v1804 = vrot.slane %v1802, 4
      %v1805 = vrot.slane %v819, 7
      %v1806 = vor.u32 %v1805, %v822
      %v1807 = vsel %vm1741, %v1804, %v1806
      %v1808 = vrot.slane %v828, 7
      %v1809 = vor.u32 %v1808, %v831
      %v1810 = vrot.slane %v1808, 4
      %v1811 = vrot.slane %v837, 7
      %v1812 = vor.u32 %v1811, %v840
      %v1813 = vsel %vm1741, %v1810, %v1812
      %v1814 = vrot.slane %v846, 7
      %v1815 = vor.u32 %v1814, %v849
      %v1816 = vrot.slane %v1814, 4
      %v1817 = vrot.slane %v855, 7
      %v1818 = vor.u32 %v1817, %v858
      %v1819 = vsel %vm1741, %v1816, %v1818
      %v1820 = vrot.slane %v864, 7
      %v1821 = vor.u32 %v1820, %v867
      %v1822 = vrot.slane %v1820, 4
      %v1823 = vrot.slane %v873, 7
      %v1824 = vor.u32 %v1823, %v876
      %v1825 = vsel %vm1741, %v1822, %v1824
      %v1826 = vrot.slane %v882, 7
      %v1827 = vor.u32 %v1826, %v885
      %v1828 = vrot.slane %v1826, 4
      %v1829 = vrot.slane %v891, 7
      %v1830 = vor.u32 %v1829, %v894
      %v1831 = vsel %vm1741, %v1828, %v1830
      %v1832 = vrot.slane %v900, 7
      %v1833 = vor.u32 %v1832, %v903
      %v1834 = vrot.slane %v1832, 4
      %v1835 = vrot.slane %v909, 7
      %v1836 = vor.u32 %v1835, %v912
      %v1837 = vsel %vm1741, %v1834, %v1836
      %1838 = vrot.lane.b32.xlu0 %v1743, 64
      %v1839 = vpop.permute.xlu0 %1838
      %1840 = vrot.lane.b32.xlu0 %v1747, 64
      %v1841 = vpop.permute.xlu0 %1840
      %1842 = vrot.lane.b32.xlu0 %v1749, 64
      %v1843 = vpop.permute.xlu0 %1842
      %1844 = vrot.lane.b32.xlu0 %v1753, 64
      %v1845 = vpop.permute.xlu0 %1844
      %1846 = vrot.lane.b32.xlu0 %v1755, 64
      %v1847 = vpop.permute.xlu0 %1846
      %1848 = vrot.lane.b32.xlu0 %v1759, 64
      %v1849 = vpop.permute.xlu0 %1848
      %1850 = vrot.lane.b32.xlu0 %v1761, 64
      %v1851 = vpop.permute.xlu0 %1850
      %1852 = vrot.lane.b32.xlu0 %v1765, 64
      %v1853 = vpop.permute.xlu0 %1852
      %1854 = vrot.lane.b32.xlu0 %v1767, 64
      %v1855 = vpop.permute.xlu0 %1854
      %1856 = vrot.lane.b32.xlu0 %v1771, 64
      %v1857 = vpop.permute.xlu0 %1856
      %1858 = vrot.lane.b32.xlu0 %v1773, 64
      %v1859 = vpop.permute.xlu0 %1858
      %1860 = vrot.lane.b32.xlu0 %v1777, 64
      %v1861 = vpop.permute.xlu0 %1860
      %1862 = vrot.lane.b32.xlu0 %v1779, 64
      %v1863 = vpop.permute.xlu0 %1862
      %1864 = vrot.lane.b32.xlu0 %v1783, 64
      %v1865 = vpop.permute.xlu0 %1864
      %1866 = vrot.lane.b32.xlu0 %v1785, 64
      %v1867 = vpop.permute.xlu0 %1866
      %1868 = vrot.lane.b32.xlu0 %v1789, 64
      %v1869 = vpop.permute.xlu0 %1868
      %1870 = vrot.lane.b32.xlu0 %v1791, 64
      %v1871 = vpop.permute.xlu0 %1870
      %1872 = vrot.lane.b32.xlu0 %v1795, 64
      %v1873 = vpop.permute.xlu0 %1872
      %1874 = vrot.lane.b32.xlu0 %v1797, 64
      %v1875 = vpop.permute.xlu0 %1874
      %1876 = vrot.lane.b32.xlu0 %v1801, 64
      %v1877 = vpop.permute.xlu0 %1876
      %1878 = vrot.lane.b32.xlu0 %v1803, 64
      %v1879 = vpop.permute.xlu0 %1878
      %1880 = vrot.lane.b32.xlu0 %v1807, 64
      %v1881 = vpop.permute.xlu0 %1880
      %1882 = vrot.lane.b32.xlu0 %v1809, 64
      %v1883 = vpop.permute.xlu0 %1882
      %1884 = vrot.lane.b32.xlu0 %v1813, 64
      %v1885 = vpop.permute.xlu0 %1884
      %1886 = vrot.lane.b32.xlu0 %v1815, 64
      %v1887 = vpop.permute.xlu0 %1886
      %1888 = vrot.lane.b32.xlu0 %v1819, 64
      %v1889 = vpop.permute.xlu0 %1888
      %1890 = vrot.lane.b32.xlu0 %v1821, 64
      %v1891 = vpop.permute.xlu0 %1890
      %1892 = vrot.lane.b32.xlu0 %v1825, 64
      %v1893 = vpop.permute.xlu0 %1892
      %1894 = vrot.lane.b32.xlu0 %v1827, 64
      %v1895 = vpop.permute.xlu0 %1894
      %1896 = vrot.lane.b32.xlu0 %v1831, 64
      %v1897 = vpop.permute.xlu0 %1896
      %1898 = vrot.lane.b32.xlu0 %v1833, 64
      %v1899 = vpop.permute.xlu0 %1898
      %1900 = vrot.lane.b32.xlu0 %v1837, 64
      %v1901 = vpop.permute.xlu0 %1900
      %vm1934 = vcmask 650752
      %vm1935 = vsmask.f32 7938
      %vm1936 = vmand %vm1934, %vm1935
      %v1937 = vld [vmem:[%s949] sm:$0xf]
      %v1938 = vsel %vm1936, %v1839, %v1937
      %1939 = vst [vmem:[%s949] sm:$0xf] %v1938
      %vm1940 = vcmask 650752
      %1941 = vst.msk [vmem:[%s949 + $0x8] sm:$0xf] %vm1940, %v1841
      %v1942 = vld [vmem:[%s949 + $0x10] sm:$0xf]
      %v1943 = vsel %vm1936, %v1843, %v1942
      %1944 = vst [vmem:[%s949 + $0x10] sm:$0xf] %v1943
      %1945 = vst.msk [vmem:[%s949 + $0x18] sm:$0xf] %vm1940, %v1845
      %v1946 = vld [vmem:[%s949 + $0x20] sm:$0xf]
      %v1947 = vsel %vm1936, %v1847, %v1946
      %1948 = vst [vmem:[%s949 + $0x20] sm:$0xf] %v1947
      %1949 = vst.msk [vmem:[%s949 + $0x28] sm:$0xf] %vm1940, %v1849
      %v1950 = vld [vmem:[%s949 + $0x30] sm:$0xf]
      %v1951 = vsel %vm1936, %v1851, %v1950
      %1952 = vst [vmem:[%s949 + $0x30] sm:$0xf] %v1951
      %1953 = vst.msk [vmem:[%s949 + $0x38] sm:$0xf] %vm1940, %v1853
      %v1954 = vld [vmem:[%s949 + $0x40] sm:$0xf]
      %v1955 = vsel %vm1936, %v1855, %v1954
      %1956 = vst [vmem:[%s949 + $0x40] sm:$0xf] %v1955
      %1957 = vst.msk [vmem:[%s949 + $0x48] sm:$0xf] %vm1940, %v1857
      %v1958 = vld [vmem:[%s949 + $0x50] sm:$0xf]
      %v1959 = vsel %vm1936, %v1859, %v1958
      %1960 = vst [vmem:[%s949 + $0x50] sm:$0xf] %v1959
      %1961 = vst.msk [vmem:[%s949 + $0x58] sm:$0xf] %vm1940, %v1861
      %v1962 = vld [vmem:[%s949 + $0x60] sm:$0xf]
      %v1963 = vsel %vm1936, %v1863, %v1962
      %1964 = vst [vmem:[%s949 + $0x60] sm:$0xf] %v1963
      %1965 = vst.msk [vmem:[%s949 + $0x68] sm:$0xf] %vm1940, %v1865
      %v1966 = vld [vmem:[%s949 + $0x70] sm:$0xf]
      %v1967 = vsel %vm1936, %v1867, %v1966
      %1968 = vst [vmem:[%s949 + $0x70] sm:$0xf] %v1967
      %1969 = vst.msk [vmem:[%s949 + $0x78] sm:$0xf] %vm1940, %v1869
      %v1970 = vld [vmem:[%s949 + $0x80] sm:$0xf]
      %v1971 = vsel %vm1936, %v1871, %v1970
      %1972 = vst [vmem:[%s949 + $0x80] sm:$0xf] %v1971
      %1973 = vst.msk [vmem:[%s949 + $0x88] sm:$0xf] %vm1940, %v1873
      %v1974 = vld [vmem:[%s949 + $0x90] sm:$0xf]
      %v1975 = vsel %vm1936, %v1875, %v1974
      %1976 = vst [vmem:[%s949 + $0x90] sm:$0xf] %v1975
      %1977 = vst.msk [vmem:[%s949 + $0x98] sm:$0xf] %vm1940, %v1877
      %v1978 = vld [vmem:[%s949 + $0xa0] sm:$0xf]
      %v1979 = vsel %vm1936, %v1879, %v1978
      %1980 = vst [vmem:[%s949 + $0xa0] sm:$0xf] %v1979
      %1981 = vst.msk [vmem:[%s949 + $0xa8] sm:$0xf] %vm1940, %v1881
      %v1982 = vld [vmem:[%s949 + $0xb0] sm:$0xf]
      %v1983 = vsel %vm1936, %v1883, %v1982
      %1984 = vst [vmem:[%s949 + $0xb0] sm:$0xf] %v1983
      %1985 = vst.msk [vmem:[%s949 + $0xb8] sm:$0xf] %vm1940, %v1885
      %v1986 = vld [vmem:[%s949 + $0xc0] sm:$0xf]
      %v1987 = vsel %vm1936, %v1887, %v1986
      %1988 = vst [vmem:[%s949 + $0xc0] sm:$0xf] %v1987
      %1989 = vst.msk [vmem:[%s949 + $0xc8] sm:$0xf] %vm1940, %v1889
      %v1990 = vld [vmem:[%s949 + $0xd0] sm:$0xf]
      %v1991 = vsel %vm1936, %v1891, %v1990
      %1992 = vst [vmem:[%s949 + $0xd0] sm:$0xf] %v1991
      %1993 = vst.msk [vmem:[%s949 + $0xd8] sm:$0xf] %vm1940, %v1893
      %v1994 = vld [vmem:[%s949 + $0xe0] sm:$0xf]
      %v1995 = vsel %vm1936, %v1895, %v1994
      %1996 = vst [vmem:[%s949 + $0xe0] sm:$0xf] %v1995
      %1997 = vst.msk [vmem:[%s949 + $0xe8] sm:$0xf] %vm1940, %v1897
      %v1998 = vld [vmem:[%s949 + $0xf0] sm:$0xf]
      %v1999 = vsel %vm1936, %v1899, %v1998
      %2000 = vst [vmem:[%s949 + $0xf0] sm:$0xf] %v1999
      %2001 = vst.msk [vmem:[%s949 + $0xf8] sm:$0xf] %vm1940, %v1901
      %2002 = vrot.lane.b32.xlu0 %v539, 80
      %v2003 = vpop.permute.xlu0 %2002
      %2004 = vrot.lane.b32.xlu0 %v540, 80
      %v2005 = vpop.permute.xlu0 %2004
      %2006 = vrot.lane.b32.xlu0 %v541, 80
      %v2007 = vpop.permute.xlu0 %2006
      %2008 = vrot.lane.b32.xlu0 %v542, 80
      %v2009 = vpop.permute.xlu0 %2008
      %2010 = vrot.lane.b32.xlu0 %v543, 80
      %v2011 = vpop.permute.xlu0 %2010
      %2012 = vrot.lane.b32.xlu0 %v544, 80
      %v2013 = vpop.permute.xlu0 %2012
      %2014 = vrot.lane.b32.xlu0 %v545, 80
      %v2015 = vpop.permute.xlu0 %2014
      %2016 = vrot.lane.b32.xlu0 %v546, 80
      %v2017 = vpop.permute.xlu0 %2016
      %2018 = vrot.lane.b32.xlu0 %v547, 80
      %v2019 = vpop.permute.xlu0 %2018
      %2020 = vrot.lane.b32.xlu0 %v548, 80
      %v2021 = vpop.permute.xlu0 %2020
      %2022 = vrot.lane.b32.xlu0 %v549, 80
      %v2023 = vpop.permute.xlu0 %2022
      %2024 = vrot.lane.b32.xlu0 %v550, 80
      %v2025 = vpop.permute.xlu0 %2024
      %2026 = vrot.lane.b32.xlu0 %v551, 80
      %v2027 = vpop.permute.xlu0 %2026
      %2028 = vrot.lane.b32.xlu0 %v552, 80
      %v2029 = vpop.permute.xlu0 %2028
      %2030 = vrot.lane.b32.xlu0 %v553, 80
      %v2031 = vpop.permute.xlu0 %2030
      %2032 = vrot.lane.b32.xlu0 %v554, 80
      %v2033 = vpop.permute.xlu0 %2032
      %2034 = vrot.lane.b32.xlu0 %v555, 80
      %v2035 = vpop.permute.xlu0 %2034
      %2036 = vrot.lane.b32.xlu0 %v556, 80
      %v2037 = vpop.permute.xlu0 %2036
      %2038 = vrot.lane.b32.xlu0 %v557, 80
      %v2039 = vpop.permute.xlu0 %2038
      %2040 = vrot.lane.b32.xlu0 %v558, 80
      %v2041 = vpop.permute.xlu0 %2040
      %2042 = vrot.lane.b32.xlu0 %v559, 80
      %v2043 = vpop.permute.xlu0 %2042
      %2044 = vrot.lane.b32.xlu0 %v560, 80
      %v2045 = vpop.permute.xlu0 %2044
      %2046 = vrot.lane.b32.xlu0 %v561, 80
      %v2047 = vpop.permute.xlu0 %2046
      %2048 = vrot.lane.b32.xlu0 %v562, 80
      %v2049 = vpop.permute.xlu0 %2048
      %2050 = vrot.lane.b32.xlu0 %v563, 80
      %v2051 = vpop.permute.xlu0 %2050
      %2052 = vrot.lane.b32.xlu0 %v564, 80
      %v2053 = vpop.permute.xlu0 %2052
      %2054 = vrot.lane.b32.xlu0 %v565, 80
      %v2055 = vpop.permute.xlu0 %2054
      %2056 = vrot.lane.b32.xlu0 %v566, 80
      %v2057 = vpop.permute.xlu0 %2056
      %2058 = vrot.lane.b32.xlu0 %v567, 80
      %v2059 = vpop.permute.xlu0 %2058
      %2060 = vrot.lane.b32.xlu0 %v568, 80
      %v2061 = vpop.permute.xlu0 %2060
      %2062 = vrot.lane.b32.xlu0 %v569, 80
      %v2063 = vpop.permute.xlu0 %2062
      %2064 = vrot.lane.b32.xlu0 %v570, 80
      %v2065 = vpop.permute.xlu0 %2064
      %vm2098 = vcmask 781952
      %2099 = vst.msk [vmem:[%s949] sm:$0xf] %vm2098, %v2003
      %2100 = vst.msk [vmem:[%s949 + $0x8] sm:$0xf] %vm2098, %v2005
      %2101 = vst.msk [vmem:[%s949 + $0x10] sm:$0xf] %vm2098, %v2007
      %2102 = vst.msk [vmem:[%s949 + $0x18] sm:$0xf] %vm2098, %v2009
      %2103 = vst.msk [vmem:[%s949 + $0x20] sm:$0xf] %vm2098, %v2011
      %2104 = vst.msk [vmem:[%s949 + $0x28] sm:$0xf] %vm2098, %v2013
      %2105 = vst.msk [vmem:[%s949 + $0x30] sm:$0xf] %vm2098, %v2015
      %2106 = vst.msk [vmem:[%s949 + $0x38] sm:$0xf] %vm2098, %v2017
      %2107 = vst.msk [vmem:[%s949 + $0x40] sm:$0xf] %vm2098, %v2019
      %2108 = vst.msk [vmem:[%s949 + $0x48] sm:$0xf] %vm2098, %v2021
      %2109 = vst.msk [vmem:[%s949 + $0x50] sm:$0xf] %vm2098, %v2023
      %2110 = vst.msk [vmem:[%s949 + $0x58] sm:$0xf] %vm2098, %v2025
      %2111 = vst.msk [vmem:[%s949 + $0x60] sm:$0xf] %vm2098, %v2027
      %2112 = vst.msk [vmem:[%s949 + $0x68] sm:$0xf] %vm2098, %v2029
      %2113 = vst.msk [vmem:[%s949 + $0x70] sm:$0xf] %vm2098, %v2031
      %2114 = vst.msk [vmem:[%s949 + $0x78] sm:$0xf] %vm2098, %v2033
      %2115 = vst.msk [vmem:[%s949 + $0x80] sm:$0xf] %vm2098, %v2035
      %2116 = vst.msk [vmem:[%s949 + $0x88] sm:$0xf] %vm2098, %v2037
      %2117 = vst.msk [vmem:[%s949 + $0x90] sm:$0xf] %vm2098, %v2039
      %2118 = vst.msk [vmem:[%s949 + $0x98] sm:$0xf] %vm2098, %v2041
      %2119 = vst.msk [vmem:[%s949 + $0xa0] sm:$0xf] %vm2098, %v2043
      %2120 = vst.msk [vmem:[%s949 + $0xa8] sm:$0xf] %vm2098, %v2045
      %2121 = vst.msk [vmem:[%s949 + $0xb0] sm:$0xf] %vm2098, %v2047
      %2122 = vst.msk [vmem:[%s949 + $0xb8] sm:$0xf] %vm2098, %v2049
      %2123 = vst.msk [vmem:[%s949 + $0xc0] sm:$0xf] %vm2098, %v2051
      %2124 = vst.msk [vmem:[%s949 + $0xc8] sm:$0xf] %vm2098, %v2053
      %2125 = vst.msk [vmem:[%s949 + $0xd0] sm:$0xf] %vm2098, %v2055
      %2126 = vst.msk [vmem:[%s949 + $0xd8] sm:$0xf] %vm2098, %v2057
      %2127 = vst.msk [vmem:[%s949 + $0xe0] sm:$0xf] %vm2098, %v2059
      %2128 = vst.msk [vmem:[%s949 + $0xe8] sm:$0xf] %vm2098, %v2061
      %2129 = vst.msk [vmem:[%s949 + $0xf0] sm:$0xf] %vm2098, %v2063
      %2130 = vst.msk [vmem:[%s949 + $0xf8] sm:$0xf] %vm2098, %v2065
      %vm2131 = vsmask.f32 3328
      %vm2132 = vsmask.f32 7440
      %vm2133 = vmor %vm2131, %vm2132
      %v2134 = vrot.slane %v630, 4
      %v2135 = vrot.slane %v633, 5
      %v2136 = vor.u32 %v2134, %v2135
      %v2137 = vrot.slane %v2136, 4
      %v2138 = vrot.slane %v642, 5
      %v2139 = vsel %vm2133, %v2137, %v2138
      %v2140 = vrot.slane %v639, 4
      %v2141 = vor.u32 %v2140, %v2138
      %v2142 = vrot.slane %v2141, 4
      %v2143 = vrot.slane %v648, 4
      %v2144 = vrot.slane %v651, 5
      %v2145 = vor.u32 %v2143, %v2144
      %v2146 = vrot.slane %v2145, 4
      %v2147 = vrot.slane %v660, 5
      %v2148 = vsel %vm2133, %v2146, %v2147
      %v2149 = vrot.slane %v657, 4
      %v2150 = vor.u32 %v2149, %v2147
      %v2151 = vrot.slane %v2150, 4
      %v2152 = vrot.slane %v666, 4
      %v2153 = vrot.slane %v669, 5
      %v2154 = vor.u32 %v2152, %v2153
      %v2155 = vrot.slane %v2154, 4
      %v2156 = vrot.slane %v678, 5
      %v2157 = vsel %vm2133, %v2155, %v2156
      %v2158 = vrot.slane %v675, 4
      %v2159 = vor.u32 %v2158, %v2156
      %v2160 = vrot.slane %v2159, 4
      %v2161 = vrot.slane %v684, 4
      %v2162 = vrot.slane %v687, 5
      %v2163 = vor.u32 %v2161, %v2162
      %v2164 = vrot.slane %v2163, 4
      %v2165 = vrot.slane %v696, 5
      %v2166 = vsel %vm2133, %v2164, %v2165
      %v2167 = vrot.slane %v693, 4
      %v2168 = vor.u32 %v2167, %v2165
      %v2169 = vrot.slane %v2168, 4
      %v2170 = vrot.slane %v702, 4
      %v2171 = vrot.slane %v705, 5
      %v2172 = vor.u32 %v2170, %v2171
      %v2173 = vrot.slane %v2172, 4
      %v2174 = vrot.slane %v714, 5
      %v2175 = vsel %vm2133, %v2173, %v2174
      %v2176 = vrot.slane %v711, 4
      %v2177 = vor.u32 %v2176, %v2174
      %v2178 = vrot.slane %v2177, 4
      %v2179 = vrot.slane %v720, 4
      %v2180 = vrot.slane %v723, 5
      %v2181 = vor.u32 %v2179, %v2180
      %v2182 = vrot.slane %v2181, 4
      %v2183 = vrot.slane %v732, 5
      %v2184 = vsel %vm2133, %v2182, %v2183
      %v2185 = vrot.slane %v729, 4
      %v2186 = vor.u32 %v2185, %v2183
      %v2187 = vrot.slane %v2186, 4
      %v2188 = vrot.slane %v738, 4
      %v2189 = vrot.slane %v741, 5
      %v2190 = vor.u32 %v2188, %v2189
      %v2191 = vrot.slane %v2190, 4
      %v2192 = vrot.slane %v750, 5
      %v2193 = vsel %vm2133, %v2191, %v2192
      %v2194 = vrot.slane %v747, 4
      %v2195 = vor.u32 %v2194, %v2192
      %v2196 = vrot.slane %v2195, 4
      %v2197 = vrot.slane %v756, 4
      %v2198 = vrot.slane %v759, 5
      %v2199 = vor.u32 %v2197, %v2198
      %v2200 = vrot.slane %v2199, 4
      %v2201 = vrot.slane %v768, 5
      %v2202 = vsel %vm2133, %v2200, %v2201
      %v2203 = vrot.slane %v765, 4
      %v2204 = vor.u32 %v2203, %v2201
      %v2205 = vrot.slane %v2204, 4
      %v2206 = vrot.slane %v774, 4
      %v2207 = vrot.slane %v777, 5
      %v2208 = vor.u32 %v2206, %v2207
      %v2209 = vrot.slane %v2208, 4
      %v2210 = vrot.slane %v786, 5
      %v2211 = vsel %vm2133, %v2209, %v2210
      %v2212 = vrot.slane %v783, 4
      %v2213 = vor.u32 %v2212, %v2210
      %v2214 = vrot.slane %v2213, 4
      %v2215 = vrot.slane %v792, 4
      %v2216 = vrot.slane %v795, 5
      %v2217 = vor.u32 %v2215, %v2216
      %v2218 = vrot.slane %v2217, 4
      %v2219 = vrot.slane %v804, 5
      %v2220 = vsel %vm2133, %v2218, %v2219
      %v2221 = vrot.slane %v801, 4
      %v2222 = vor.u32 %v2221, %v2219
      %v2223 = vrot.slane %v2222, 4
      %v2224 = vrot.slane %v810, 4
      %v2225 = vrot.slane %v813, 5
      %v2226 = vor.u32 %v2224, %v2225
      %v2227 = vrot.slane %v2226, 4
      %v2228 = vrot.slane %v822, 5
      %v2229 = vsel %vm2133, %v2227, %v2228
      %v2230 = vrot.slane %v819, 4
      %v2231 = vor.u32 %v2230, %v2228
      %v2232 = vrot.slane %v2231, 4
      %v2233 = vrot.slane %v828, 4
      %v2234 = vrot.slane %v831, 5
      %v2235 = vor.u32 %v2233, %v2234
      %v2236 = vrot.slane %v2235, 4
      %v2237 = vrot.slane %v840, 5
      %v2238 = vsel %vm2133, %v2236, %v2237
      %v2239 = vrot.slane %v837, 4
      %v2240 = vor.u32 %v2239, %v2237
      %v2241 = vrot.slane %v2240, 4
      %v2242 = vrot.slane %v846, 4
      %v2243 = vrot.slane %v849, 5
      %v2244 = vor.u32 %v2242, %v2243
      %v2245 = vrot.slane %v2244, 4
      %v2246 = vrot.slane %v858, 5
      %v2247 = vsel %vm2133, %v2245, %v2246
      %v2248 = vrot.slane %v855, 4
      %v2249 = vor.u32 %v2248, %v2246
      %v2250 = vrot.slane %v2249, 4
      %v2251 = vrot.slane %v864, 4
      %v2252 = vrot.slane %v867, 5
      %v2253 = vor.u32 %v2251, %v2252
      %v2254 = vrot.slane %v2253, 4
      %v2255 = vrot.slane %v876, 5
      %v2256 = vsel %vm2133, %v2254, %v2255
      %v2257 = vrot.slane %v873, 4
      %v2258 = vor.u32 %v2257, %v2255
      %v2259 = vrot.slane %v2258, 4
      %v2260 = vrot.slane %v882, 4
      %v2261 = vrot.slane %v885, 5
      %v2262 = vor.u32 %v2260, %v2261
      %v2263 = vrot.slane %v2262, 4
      %v2264 = vrot.slane %v894, 5
      %v2265 = vsel %vm2133, %v2263, %v2264
      %v2266 = vrot.slane %v891, 4
      %v2267 = vor.u32 %v2266, %v2264
      %v2268 = vrot.slane %v2267, 4
      %v2269 = vrot.slane %v900, 4
      %v2270 = vrot.slane %v903, 5
      %v2271 = vor.u32 %v2269, %v2270
      %v2272 = vrot.slane %v2271, 4
      %v2273 = vrot.slane %v912, 5
      %v2274 = vsel %vm2133, %v2272, %v2273
      %v2275 = vrot.slane %v909, 4
      %v2276 = vor.u32 %v2275, %v2273
      %v2277 = vrot.slane %v2276, 4
      %2278 = vrot.lane.b32.xlu0 %v2139, 96
      %v2279 = vpop.permute.xlu0 %2278
      %2280 = vrot.lane.b32.xlu0 %v2142, 96
      %v2281 = vpop.permute.xlu0 %2280
      %2282 = vrot.lane.b32.xlu0 %v2148, 96
      %v2283 = vpop.permute.xlu0 %2282
      %2284 = vrot.lane.b32.xlu0 %v2151, 96
      %v2285 = vpop.permute.xlu0 %2284
      %2286 = vrot.lane.b32.xlu0 %v2157, 96
      %v2287 = vpop.permute.xlu0 %2286
      %2288 = vrot.lane.b32.xlu0 %v2160, 96
      %v2289 = vpop.permute.xlu0 %2288
      %2290 = vrot.lane.b32.xlu0 %v2166, 96
      %v2291 = vpop.permute.xlu0 %2290
      %2292 = vrot.lane.b32.xlu0 %v2169, 96
      %v2293 = vpop.permute.xlu0 %2292
      %2294 = vrot.lane.b32.xlu0 %v2175, 96
      %v2295 = vpop.permute.xlu0 %2294
      %2296 = vrot.lane.b32.xlu0 %v2178, 96
      %v2297 = vpop.permute.xlu0 %2296
      %2298 = vrot.lane.b32.xlu0 %v2184, 96
      %v2299 = vpop.permute.xlu0 %2298
      %2300 = vrot.lane.b32.xlu0 %v2187, 96
      %v2301 = vpop.permute.xlu0 %2300
      %2302 = vrot.lane.b32.xlu0 %v2193, 96
      %v2303 = vpop.permute.xlu0 %2302
      %2304 = vrot.lane.b32.xlu0 %v2196, 96
      %v2305 = vpop.permute.xlu0 %2304
      %2306 = vrot.lane.b32.xlu0 %v2202, 96
      %v2307 = vpop.permute.xlu0 %2306
      %2308 = vrot.lane.b32.xlu0 %v2205, 96
      %v2309 = vpop.permute.xlu0 %2308
      %2310 = vrot.lane.b32.xlu0 %v2211, 96
      %v2311 = vpop.permute.xlu0 %2310
      %2312 = vrot.lane.b32.xlu0 %v2214, 96
      %v2313 = vpop.permute.xlu0 %2312
      %2314 = vrot.lane.b32.xlu0 %v2220, 96
      %v2315 = vpop.permute.xlu0 %2314
      %2316 = vrot.lane.b32.xlu0 %v2223, 96
      %v2317 = vpop.permute.xlu0 %2316
      %2318 = vrot.lane.b32.xlu0 %v2229, 96
      %v2319 = vpop.permute.xlu0 %2318
      %2320 = vrot.lane.b32.xlu0 %v2232, 96
      %v2321 = vpop.permute.xlu0 %2320
      %2322 = vrot.lane.b32.xlu0 %v2238, 96
      %v2323 = vpop.permute.xlu0 %2322
      %2324 = vrot.lane.b32.xlu0 %v2241, 96
      %v2325 = vpop.permute.xlu0 %2324
      %2326 = vrot.lane.b32.xlu0 %v2247, 96
      %v2327 = vpop.permute.xlu0 %2326
      %2328 = vrot.lane.b32.xlu0 %v2250, 96
      %v2329 = vpop.permute.xlu0 %2328
      %2330 = vrot.lane.b32.xlu0 %v2256, 96
      %v2331 = vpop.permute.xlu0 %2330
      %2332 = vrot.lane.b32.xlu0 %v2259, 96
      %v2333 = vpop.permute.xlu0 %2332
      %2334 = vrot.lane.b32.xlu0 %v2265, 96
      %v2335 = vpop.permute.xlu0 %2334
      %2336 = vrot.lane.b32.xlu0 %v2268, 96
      %v2337 = vpop.permute.xlu0 %2336
      %2338 = vrot.lane.b32.xlu0 %v2274, 96
      %v2339 = vpop.permute.xlu0 %2338
      %2340 = vrot.lane.b32.xlu0 %v2277, 96
      %v2341 = vpop.permute.xlu0 %2340
      %vm2374 = vcmask 913152
      %2375 = vst.msk [vmem:[%s949] sm:$0xf] %vm2374, %v2279
      %vm2376 = vcmask 913152
      %vm2377 = vmand %vm2376, %vm2131
      %v2378 = vld [vmem:[%s949 + $0x8] sm:$0xf]
      %v2379 = vsel %vm2377, %v2281, %v2378
      %2380 = vst [vmem:[%s949 + $0x8] sm:$0xf] %v2379
      %2381 = vst.msk [vmem:[%s949 + $0x10] sm:$0xf] %vm2374, %v2283
      %v2382 = vld [vmem:[%s949 + $0x18] sm:$0xf]
      %v2383 = vsel %vm2377, %v2285, %v2382
      %2384 = vst [vmem:[%s949 + $0x18] sm:$0xf] %v2383
      %2385 = vst.msk [vmem:[%s949 + $0x20] sm:$0xf] %vm2374, %v2287
      %v2386 = vld [vmem:[%s949 + $0x28] sm:$0xf]
      %v2387 = vsel %vm2377, %v2289, %v2386
      %2388 = vst [vmem:[%s949 + $0x28] sm:$0xf] %v2387
      %2389 = vst.msk [vmem:[%s949 + $0x30] sm:$0xf] %vm2374, %v2291
      %v2390 = vld [vmem:[%s949 + $0x38] sm:$0xf]
      %v2391 = vsel %vm2377, %v2293, %v2390
      %2392 = vst [vmem:[%s949 + $0x38] sm:$0xf] %v2391
      %2393 = vst.msk [vmem:[%s949 + $0x40] sm:$0xf] %vm2374, %v2295
      %v2394 = vld [vmem:[%s949 + $0x48] sm:$0xf]
      %v2395 = vsel %vm2377, %v2297, %v2394
      %2396 = vst [vmem:[%s949 + $0x48] sm:$0xf] %v2395
      %2397 = vst.msk [vmem:[%s949 + $0x50] sm:$0xf] %vm2374, %v2299
      %v2398 = vld [vmem:[%s949 + $0x58] sm:$0xf]
      %v2399 = vsel %vm2377, %v2301, %v2398
      %2400 = vst [vmem:[%s949 + $0x58] sm:$0xf] %v2399
      %2401 = vst.msk [vmem:[%s949 + $0x60] sm:$0xf] %vm2374, %v2303
      %v2402 = vld [vmem:[%s949 + $0x68] sm:$0xf]
      %v2403 = vsel %vm2377, %v2305, %v2402
      %2404 = vst [vmem:[%s949 + $0x68] sm:$0xf] %v2403
      %2405 = vst.msk [vmem:[%s949 + $0x70] sm:$0xf] %vm2374, %v2307
      %v2406 = vld [vmem:[%s949 + $0x78] sm:$0xf]
      %v2407 = vsel %vm2377, %v2309, %v2406
      %2408 = vst [vmem:[%s949 + $0x78] sm:$0xf] %v2407
      %2409 = vst.msk [vmem:[%s949 + $0x80] sm:$0xf] %vm2374, %v2311
      %v2410 = vld [vmem:[%s949 + $0x88] sm:$0xf]
      %v2411 = vsel %vm2377, %v2313, %v2410
      %2412 = vst [vmem:[%s949 + $0x88] sm:$0xf] %v2411
      %2413 = vst.msk [vmem:[%s949 + $0x90] sm:$0xf] %vm2374, %v2315
      %v2414 = vld [vmem:[%s949 + $0x98] sm:$0xf]
      %v2415 = vsel %vm2377, %v2317, %v2414
      %2416 = vst [vmem:[%s949 + $0x98] sm:$0xf] %v2415
      %2417 = vst.msk [vmem:[%s949 + $0xa0] sm:$0xf] %vm2374, %v2319
      %v2418 = vld [vmem:[%s949 + $0xa8] sm:$0xf]
      %v2419 = vsel %vm2377, %v2321, %v2418
      %2420 = vst [vmem:[%s949 + $0xa8] sm:$0xf] %v2419
      %2421 = vst.msk [vmem:[%s949 + $0xb0] sm:$0xf] %vm2374, %v2323
      %v2422 = vld [vmem:[%s949 + $0xb8] sm:$0xf]
      %v2423 = vsel %vm2377, %v2325, %v2422
      %2424 = vst [vmem:[%s949 + $0xb8] sm:$0xf] %v2423
      %2425 = vst.msk [vmem:[%s949 + $0xc0] sm:$0xf] %vm2374, %v2327
      %v2426 = vld [vmem:[%s949 + $0xc8] sm:$0xf]
      %v2427 = vsel %vm2377, %v2329, %v2426
      %2428 = vst [vmem:[%s949 + $0xc8] sm:$0xf] %v2427
      %2429 = vst.msk [vmem:[%s949 + $0xd0] sm:$0xf] %vm2374, %v2331
      %v2430 = vld [vmem:[%s949 + $0xd8] sm:$0xf]
      %v2431 = vsel %vm2377, %v2333, %v2430
      %2432 = vst [vmem:[%s949 + $0xd8] sm:$0xf] %v2431
      %2433 = vst.msk [vmem:[%s949 + $0xe0] sm:$0xf] %vm2374, %v2335
      %v2434 = vld [vmem:[%s949 + $0xe8] sm:$0xf]
      %v2435 = vsel %vm2377, %v2337, %v2434
      %2436 = vst [vmem:[%s949 + $0xe8] sm:$0xf] %v2435
      %2437 = vst.msk [vmem:[%s949 + $0xf0] sm:$0xf] %vm2374, %v2339
      %v2438 = vld [vmem:[%s949 + $0xf8] sm:$0xf]
      %v2439 = vsel %vm2377, %v2341, %v2438
      %2440 = vst [vmem:[%s949 + $0xf8] sm:$0xf] %v2439
      %vm2441 = vcmask 1042432
      %vm2442 = vcmask 1046532
      %vm2443 = vmor %vm2441, %vm2442
      %v2444 = vrot.slane %v539, 5
      %v2445 = vrot.slane %v2444, 4
      %v2446 = vrot.slane %v540, 5
      %v2447 = vsel %vm2443, %v2445, %v2446
      %v2448 = vrot.slane %v2446, 4
      %v2449 = vrot.slane %v541, 5
      %v2450 = vrot.slane %v2449, 4
      %v2451 = vrot.slane %v542, 5
      %v2452 = vsel %vm2443, %v2450, %v2451
      %v2453 = vrot.slane %v2451, 4
      %v2454 = vrot.slane %v543, 5
      %v2455 = vrot.slane %v2454, 4
      %v2456 = vrot.slane %v544, 5
      %v2457 = vsel %vm2443, %v2455, %v2456
      %v2458 = vrot.slane %v2456, 4
      %v2459 = vrot.slane %v545, 5
      %v2460 = vrot.slane %v2459, 4
      %v2461 = vrot.slane %v546, 5
      %v2462 = vsel %vm2443, %v2460, %v2461
      %v2463 = vrot.slane %v2461, 4
      %v2464 = vrot.slane %v547, 5
      %v2465 = vrot.slane %v2464, 4
      %v2466 = vrot.slane %v548, 5
      %v2467 = vsel %vm2443, %v2465, %v2466
      %v2468 = vrot.slane %v2466, 4
      %v2469 = vrot.slane %v549, 5
      %v2470 = vrot.slane %v2469, 4
      %v2471 = vrot.slane %v550, 5
      %v2472 = vsel %vm2443, %v2470, %v2471
      %v2473 = vrot.slane %v2471, 4
      %v2474 = vrot.slane %v551, 5
      %v2475 = vrot.slane %v2474, 4
      %v2476 = vrot.slane %v552, 5
      %v2477 = vsel %vm2443, %v2475, %v2476
      %v2478 = vrot.slane %v2476, 4
      %v2479 = vrot.slane %v553, 5
      %v2480 = vrot.slane %v2479, 4
      %v2481 = vrot.slane %v554, 5
      %v2482 = vsel %vm2443, %v2480, %v2481
      %v2483 = vrot.slane %v2481, 4
      %v2484 = vrot.slane %v555, 5
      %v2485 = vrot.slane %v2484, 4
      %v2486 = vrot.slane %v556, 5
      %v2487 = vsel %vm2443, %v2485, %v2486
      %v2488 = vrot.slane %v2486, 4
      %v2489 = vrot.slane %v557, 5
      %v2490 = vrot.slane %v2489, 4
      %v2491 = vrot.slane %v558, 5
      %v2492 = vsel %vm2443, %v2490, %v2491
      %v2493 = vrot.slane %v2491, 4
      %v2494 = vrot.slane %v559, 5
      %v2495 = vrot.slane %v2494, 4
      %v2496 = vrot.slane %v560, 5
      %v2497 = vsel %vm2443, %v2495, %v2496
      %v2498 = vrot.slane %v2496, 4
      %v2499 = vrot.slane %v561, 5
      %v2500 = vrot.slane %v2499, 4
      %v2501 = vrot.slane %v562, 5
      %v2502 = vsel %vm2443, %v2500, %v2501
      %v2503 = vrot.slane %v2501, 4
      %v2504 = vrot.slane %v563, 5
      %v2505 = vrot.slane %v2504, 4
      %v2506 = vrot.slane %v564, 5
      %v2507 = vsel %vm2443, %v2505, %v2506
      %v2508 = vrot.slane %v2506, 4
      %v2509 = vrot.slane %v565, 5
      %v2510 = vrot.slane %v2509, 4
      %v2511 = vrot.slane %v566, 5
      %v2512 = vsel %vm2443, %v2510, %v2511
      %v2513 = vrot.slane %v2511, 4
      %v2514 = vrot.slane %v567, 5
      %v2515 = vrot.slane %v2514, 4
      %v2516 = vrot.slane %v568, 5
      %v2517 = vsel %vm2443, %v2515, %v2516
      %v2518 = vrot.slane %v2516, 4
      %v2519 = vrot.slane %v569, 5
      %v2520 = vrot.slane %v2519, 4
      %v2521 = vrot.slane %v570, 5
      %v2522 = vsel %vm2443, %v2520, %v2521
      %v2523 = vrot.slane %v2521, 4
      %2524 = vrot.lane.b32.xlu0 %v2447, 112
      %v2525 = vpop.permute.xlu0 %2524
      %2526 = vrot.lane.b32.xlu0 %v2448, 112
      %v2527 = vpop.permute.xlu0 %2526
      %2528 = vrot.lane.b32.xlu0 %v2452, 112
      %v2529 = vpop.permute.xlu0 %2528
      %2530 = vrot.lane.b32.xlu0 %v2453, 112
      %v2531 = vpop.permute.xlu0 %2530
      %2532 = vrot.lane.b32.xlu0 %v2457, 112
      %v2533 = vpop.permute.xlu0 %2532
      %2534 = vrot.lane.b32.xlu0 %v2458, 112
      %v2535 = vpop.permute.xlu0 %2534
      %2536 = vrot.lane.b32.xlu0 %v2462, 112
      %v2537 = vpop.permute.xlu0 %2536
      %2538 = vrot.lane.b32.xlu0 %v2463, 112
      %v2539 = vpop.permute.xlu0 %2538
      %2540 = vrot.lane.b32.xlu0 %v2467, 112
      %v2541 = vpop.permute.xlu0 %2540
      %2542 = vrot.lane.b32.xlu0 %v2468, 112
      %v2543 = vpop.permute.xlu0 %2542
      %2544 = vrot.lane.b32.xlu0 %v2472, 112
      %v2545 = vpop.permute.xlu0 %2544
      %2546 = vrot.lane.b32.xlu0 %v2473, 112
      %v2547 = vpop.permute.xlu0 %2546
      %2548 = vrot.lane.b32.xlu0 %v2477, 112
      %v2549 = vpop.permute.xlu0 %2548
      %2550 = vrot.lane.b32.xlu0 %v2478, 112
      %v2551 = vpop.permute.xlu0 %2550
      %2552 = vrot.lane.b32.xlu0 %v2482, 112
      %v2553 = vpop.permute.xlu0 %2552
      %2554 = vrot.lane.b32.xlu0 %v2483, 112
      %v2555 = vpop.permute.xlu0 %2554
      %2556 = vrot.lane.b32.xlu0 %v2487, 112
      %v2557 = vpop.permute.xlu0 %2556
      %2558 = vrot.lane.b32.xlu0 %v2488, 112
      %v2559 = vpop.permute.xlu0 %2558
      %2560 = vrot.lane.b32.xlu0 %v2492, 112
      %v2561 = vpop.permute.xlu0 %2560
      %2562 = vrot.lane.b32.xlu0 %v2493, 112
      %v2563 = vpop.permute.xlu0 %2562
      %2564 = vrot.lane.b32.xlu0 %v2497, 112
      %v2565 = vpop.permute.xlu0 %2564
      %2566 = vrot.lane.b32.xlu0 %v2498, 112
      %v2567 = vpop.permute.xlu0 %2566
      %2568 = vrot.lane.b32.xlu0 %v2502, 112
      %v2569 = vpop.permute.xlu0 %2568
      %2570 = vrot.lane.b32.xlu0 %v2503, 112
      %v2571 = vpop.permute.xlu0 %2570
      %2572 = vrot.lane.b32.xlu0 %v2507, 112
      %v2573 = vpop.permute.xlu0 %2572
      %2574 = vrot.lane.b32.xlu0 %v2508, 112
      %v2575 = vpop.permute.xlu0 %2574
      %2576 = vrot.lane.b32.xlu0 %v2512, 112
      %v2577 = vpop.permute.xlu0 %2576
      %2578 = vrot.lane.b32.xlu0 %v2513, 112
      %v2579 = vpop.permute.xlu0 %2578
      %2580 = vrot.lane.b32.xlu0 %v2517, 112
      %v2581 = vpop.permute.xlu0 %2580
      %2582 = vrot.lane.b32.xlu0 %v2518, 112
      %v2583 = vpop.permute.xlu0 %2582
      %2584 = vrot.lane.b32.xlu0 %v2522, 112
      %v2585 = vpop.permute.xlu0 %2584
      %2586 = vrot.lane.b32.xlu0 %v2523, 112
      %v2587 = vpop.permute.xlu0 %2586
      %vm2620 = vcmask 1044352
      %2621 = vst.msk [vmem:[%s949] sm:$0xf] %vm2620, %v2525
      %vm2622 = vcmask 1043328
      %2623 = vst.msk [vmem:[%s949 + $0x8] sm:$0x7] %vm2622, %v2527
      %2624 = vst.msk [vmem:[%s949 + $0x10] sm:$0xf] %vm2620, %v2529
      %2625 = vst.msk [vmem:[%s949 + $0x18] sm:$0x7] %vm2622, %v2531
      %2626 = vst.msk [vmem:[%s949 + $0x20] sm:$0xf] %vm2620, %v2533
      %2627 = vst.msk [vmem:[%s949 + $0x28] sm:$0x7] %vm2622, %v2535
      %2628 = vst.msk [vmem:[%s949 + $0x30] sm:$0xf] %vm2620, %v2537
      %2629 = vst.msk [vmem:[%s949 + $0x38] sm:$0x7] %vm2622, %v2539
      %2630 = vst.msk [vmem:[%s949 + $0x40] sm:$0xf] %vm2620, %v2541
      %2631 = vst.msk [vmem:[%s949 + $0x48] sm:$0x7] %vm2622, %v2543
      %2632 = vst.msk [vmem:[%s949 + $0x50] sm:$0xf] %vm2620, %v2545
      %2633 = vst.msk [vmem:[%s949 + $0x58] sm:$0x7] %vm2622, %v2547
      %2634 = vst.msk [vmem:[%s949 + $0x60] sm:$0xf] %vm2620, %v2549
      %2635 = vst.msk [vmem:[%s949 + $0x68] sm:$0x7] %vm2622, %v2551
      %2636 = vst.msk [vmem:[%s949 + $0x70] sm:$0xf] %vm2620, %v2553
      %2637 = vst.msk [vmem:[%s949 + $0x78] sm:$0x7] %vm2622, %v2555
      %2638 = vst.msk [vmem:[%s949 + $0x80] sm:$0xf] %vm2620, %v2557
      %2639 = vst.msk [vmem:[%s949 + $0x88] sm:$0x7] %vm2622, %v2559
      %2640 = vst.msk [vmem:[%s949 + $0x90] sm:$0xf] %vm2620, %v2561
      %2641 = vst.msk [vmem:[%s949 + $0x98] sm:$0x7] %vm2622, %v2563
      %2642 = vst.msk [vmem:[%s949 + $0xa0] sm:$0xf] %vm2620, %v2565
      %2643 = vst.msk [vmem:[%s949 + $0xa8] sm:$0x7] %vm2622, %v2567
      %2644 = vst.msk [vmem:[%s949 + $0xb0] sm:$0xf] %vm2620, %v2569
      %2645 = vst.msk [vmem:[%s949 + $0xb8] sm:$0x7] %vm2622, %v2571
      %2646 = vst.msk [vmem:[%s949 + $0xc0] sm:$0xf] %vm2620, %v2573
      %2647 = vst.msk [vmem:[%s949 + $0xc8] sm:$0x7] %vm2622, %v2575
      %2648 = vst.msk [vmem:[%s949 + $0xd0] sm:$0xf] %vm2620, %v2577
      %2649 = vst.msk [vmem:[%s949 + $0xd8] sm:$0x7] %vm2622, %v2579
      %2650 = vst.msk [vmem:[%s949 + $0xe0] sm:$0xf] %vm2620, %v2581
      %2651 = vst.msk [vmem:[%s949 + $0xe8] sm:$0x7] %vm2622, %v2583
      %2652 = vst.msk [vmem:[%s949 + $0xf0] sm:$0xf] %vm2620, %v2585
      %2653 = vst.msk [vmem:[%s949 + $0xf8] sm:$0x7] %vm2622, %v2587
      %v2654 = vrot.slane %v645, 4
      %v2655 = vrot.slane %v663, 4
      %v2656 = vrot.slane %v681, 4
      %v2657 = vrot.slane %v699, 4
      %v2658 = vrot.slane %v717, 4
      %v2659 = vrot.slane %v735, 4
      %v2660 = vrot.slane %v753, 4
      %v2661 = vrot.slane %v771, 4
      %v2662 = vrot.slane %v789, 4
      %v2663 = vrot.slane %v807, 4
      %v2664 = vrot.slane %v825, 4
      %v2665 = vrot.slane %v843, 4
      %v2666 = vrot.slane %v861, 4
      %v2667 = vrot.slane %v879, 4
      %v2668 = vrot.slane %v897, 4
      %v2669 = vrot.slane %v915, 4
      %2686 = vst.msk [vmem:[%s949 + $0x4] sm:$0xf] %vm956, %v646
      %vm2687 = vcmask 124928
      %vm2688 = vmand %vm2687, %vm626
      %v2689 = vld [vmem:[%s949 + $0xc] sm:$0x7]
      %v2690 = vsel %vm2688, %v2654, %v2689
      %2691 = vst [vmem:[%s949 + $0xc] sm:$0x7] %v2690
      %2692 = vst.msk [vmem:[%s949 + $0x14] sm:$0xf] %vm956, %v664
      %v2693 = vld [vmem:[%s949 + $0x1c] sm:$0x7]
      %v2694 = vsel %vm2688, %v2655, %v2693
      %2695 = vst [vmem:[%s949 + $0x1c] sm:$0x7] %v2694
      %2696 = vst.msk [vmem:[%s949 + $0x24] sm:$0xf] %vm956, %v682
      %v2697 = vld [vmem:[%s949 + $0x2c] sm:$0x7]
      %v2698 = vsel %vm2688, %v2656, %v2697
      %2699 = vst [vmem:[%s949 + $0x2c] sm:$0x7] %v2698
      %2700 = vst.msk [vmem:[%s949 + $0x34] sm:$0xf] %vm956, %v700
      %v2701 = vld [vmem:[%s949 + $0x3c] sm:$0x7]
      %v2702 = vsel %vm2688, %v2657, %v2701
      %2703 = vst [vmem:[%s949 + $0x3c] sm:$0x7] %v2702
      %2704 = vst.msk [vmem:[%s949 + $0x44] sm:$0xf] %vm956, %v718
      %v2705 = vld [vmem:[%s949 + $0x4c] sm:$0x7]
      %v2706 = vsel %vm2688, %v2658, %v2705
      %2707 = vst [vmem:[%s949 + $0x4c] sm:$0x7] %v2706
      %2708 = vst.msk [vmem:[%s949 + $0x54] sm:$0xf] %vm956, %v736
      %v2709 = vld [vmem:[%s949 + $0x5c] sm:$0x7]
      %v2710 = vsel %vm2688, %v2659, %v2709
      %2711 = vst [vmem:[%s949 + $0x5c] sm:$0x7] %v2710
      %2712 = vst.msk [vmem:[%s949 + $0x64] sm:$0xf] %vm956, %v754
      %v2713 = vld [vmem:[%s949 + $0x6c] sm:$0x7]
      %v2714 = vsel %vm2688, %v2660, %v2713
      %2715 = vst [vmem:[%s949 + $0x6c] sm:$0x7] %v2714
      %2716 = vst.msk [vmem:[%s949 + $0x74] sm:$0xf] %vm956, %v772
      %v2717 = vld [vmem:[%s949 + $0x7c] sm:$0x7]
      %v2718 = vsel %vm2688, %v2661, %v2717
      %2719 = vst [vmem:[%s949 + $0x7c] sm:$0x7] %v2718
      %2720 = vst.msk [vmem:[%s949 + $0x84] sm:$0xf] %vm956, %v790
      %v2721 = vld [vmem:[%s949 + $0x8c] sm:$0x7]
      %v2722 = vsel %vm2688, %v2662, %v2721
      %2723 = vst [vmem:[%s949 + $0x8c] sm:$0x7] %v2722
      %2724 = vst.msk [vmem:[%s949 + $0x94] sm:$0xf] %vm956, %v808
      %v2725 = vld [vmem:[%s949 + $0x9c] sm:$0x7]
      %v2726 = vsel %vm2688, %v2663, %v2725
      %2727 = vst [vmem:[%s949 + $0x9c] sm:$0x7] %v2726
      %2728 = vst.msk [vmem:[%s949 + $0xa4] sm:$0xf] %vm956, %v826
      %v2729 = vld [vmem:[%s949 + $0xac] sm:$0x7]
      %v2730 = vsel %vm2688, %v2664, %v2729
      %2731 = vst [vmem:[%s949 + $0xac] sm:$0x7] %v2730
      %2732 = vst.msk [vmem:[%s949 + $0xb4] sm:$0xf] %vm956, %v844
      %v2733 = vld [vmem:[%s949 + $0xbc] sm:$0x7]
      %v2734 = vsel %vm2688, %v2665, %v2733
      %2735 = vst [vmem:[%s949 + $0xbc] sm:$0x7] %v2734
      %2736 = vst.msk [vmem:[%s949 + $0xc4] sm:$0xf] %vm956, %v862
      %v2737 = vld [vmem:[%s949 + $0xcc] sm:$0x7]
      %v2738 = vsel %vm2688, %v2666, %v2737
      %2739 = vst [vmem:[%s949 + $0xcc] sm:$0x7] %v2738
      %2740 = vst.msk [vmem:[%s949 + $0xd4] sm:$0xf] %vm956, %v880
      %v2741 = vld [vmem:[%s949 + $0xdc] sm:$0x7]
      %v2742 = vsel %vm2688, %v2667, %v2741
      %2743 = vst [vmem:[%s949 + $0xdc] sm:$0x7] %v2742
      %2744 = vst.msk [vmem:[%s949 + $0xe4] sm:$0xf] %vm956, %v898
      %v2745 = vld [vmem:[%s949 + $0xec] sm:$0x7]
      %v2746 = vsel %vm2688, %v2668, %v2745
      %2747 = vst [vmem:[%s949 + $0xec] sm:$0x7] %v2746
      %2748 = vst.msk [vmem:[%s949 + $0xf4] sm:$0xf] %vm956, %v916
      %v2749 = vld [vmem:[%s949 + $0xfc] sm:$0x7]
      %v2750 = vsel %vm2688, %v2669, %v2749
      %2751 = vst [vmem:[%s949 + $0xfc] sm:$0x7] %v2750
      %v2752 = vrot.slane %v1055, 4
      %v2753 = vrot.slane %v1059, 4
      %v2754 = vrot.slane %v1063, 4
      %v2755 = vrot.slane %v1067, 4
      %v2756 = vrot.slane %v1071, 4
      %v2757 = vrot.slane %v1075, 4
      %v2758 = vrot.slane %v1079, 4
      %v2759 = vrot.slane %v1083, 4
      %v2760 = vrot.slane %v1087, 4
      %v2761 = vrot.slane %v1091, 4
      %v2762 = vrot.slane %v1095, 4
      %v2763 = vrot.slane %v1099, 4
      %v2764 = vrot.slane %v1103, 4
      %v2765 = vrot.slane %v1107, 4
      %v2766 = vrot.slane %v1111, 4
      %v2767 = vrot.slane %v1115, 4
      %2768 = vrot.lane.b32.xlu0 %v2752, 16
      %v2769 = vpop.permute.xlu0 %2768
      %2770 = vrot.lane.b32.xlu0 %v2753, 16
      %v2771 = vpop.permute.xlu0 %2770
      %2772 = vrot.lane.b32.xlu0 %v2754, 16
      %v2773 = vpop.permute.xlu0 %2772
      %2774 = vrot.lane.b32.xlu0 %v2755, 16
      %v2775 = vpop.permute.xlu0 %2774
      %2776 = vrot.lane.b32.xlu0 %v2756, 16
      %v2777 = vpop.permute.xlu0 %2776
      %2778 = vrot.lane.b32.xlu0 %v2757, 16
      %v2779 = vpop.permute.xlu0 %2778
      %2780 = vrot.lane.b32.xlu0 %v2758, 16
      %v2781 = vpop.permute.xlu0 %2780
      %2782 = vrot.lane.b32.xlu0 %v2759, 16
      %v2783 = vpop.permute.xlu0 %2782
      %2784 = vrot.lane.b32.xlu0 %v2760, 16
      %v2785 = vpop.permute.xlu0 %2784
      %2786 = vrot.lane.b32.xlu0 %v2761, 16
      %v2787 = vpop.permute.xlu0 %2786
      %2788 = vrot.lane.b32.xlu0 %v2762, 16
      %v2789 = vpop.permute.xlu0 %2788
      %2790 = vrot.lane.b32.xlu0 %v2763, 16
      %v2791 = vpop.permute.xlu0 %2790
      %2792 = vrot.lane.b32.xlu0 %v2764, 16
      %v2793 = vpop.permute.xlu0 %2792
      %2794 = vrot.lane.b32.xlu0 %v2765, 16
      %v2795 = vpop.permute.xlu0 %2794
      %2796 = vrot.lane.b32.xlu0 %v2766, 16
      %v2797 = vpop.permute.xlu0 %2796
      %2798 = vrot.lane.b32.xlu0 %v2767, 16
      %v2799 = vpop.permute.xlu0 %2798
      %2816 = vst.msk [vmem:[%s949 + $0x4] sm:$0xf] %vm1215, %v1120
      %vm2817 = vcmask 255104
      %2818 = vst.msk [vmem:[%s949 + $0xc] sm:$0x3] %vm2817, %v2769
      %2819 = vst.msk [vmem:[%s949 + $0x14] sm:$0xf] %vm1215, %v1124
      %2820 = vst.msk [vmem:[%s949 + $0x1c] sm:$0x3] %vm2817, %v2771
      %2821 = vst.msk [vmem:[%s949 + $0x24] sm:$0xf] %vm1215, %v1128
      %2822 = vst.msk [vmem:[%s949 + $0x2c] sm:$0x3] %vm2817, %v2773
      %2823 = vst.msk [vmem:[%s949 + $0x34] sm:$0xf] %vm1215, %v1132
      %2824 = vst.msk [vmem:[%s949 + $0x3c] sm:$0x3] %vm2817, %v2775
      %2825 = vst.msk [vmem:[%s949 + $0x44] sm:$0xf] %vm1215, %v1136
      %2826 = vst.msk [vmem:[%s949 + $0x4c] sm:$0x3] %vm2817, %v2777
      %2827 = vst.msk [vmem:[%s949 + $0x54] sm:$0xf] %vm1215, %v1140
      %2828 = vst.msk [vmem:[%s949 + $0x5c] sm:$0x3] %vm2817, %v2779
      %2829 = vst.msk [vmem:[%s949 + $0x64] sm:$0xf] %vm1215, %v1144
      %2830 = vst.msk [vmem:[%s949 + $0x6c] sm:$0x3] %vm2817, %v2781
      %2831 = vst.msk [vmem:[%s949 + $0x74] sm:$0xf] %vm1215, %v1148
      %2832 = vst.msk [vmem:[%s949 + $0x7c] sm:$0x3] %vm2817, %v2783
      %2833 = vst.msk [vmem:[%s949 + $0x84] sm:$0xf] %vm1215, %v1152
      %2834 = vst.msk [vmem:[%s949 + $0x8c] sm:$0x3] %vm2817, %v2785
      %2835 = vst.msk [vmem:[%s949 + $0x94] sm:$0xf] %vm1215, %v1156
      %2836 = vst.msk [vmem:[%s949 + $0x9c] sm:$0x3] %vm2817, %v2787
      %2837 = vst.msk [vmem:[%s949 + $0xa4] sm:$0xf] %vm1215, %v1160
      %2838 = vst.msk [vmem:[%s949 + $0xac] sm:$0x3] %vm2817, %v2789
      %2839 = vst.msk [vmem:[%s949 + $0xb4] sm:$0xf] %vm1215, %v1164
      %2840 = vst.msk [vmem:[%s949 + $0xbc] sm:$0x3] %vm2817, %v2791
      %2841 = vst.msk [vmem:[%s949 + $0xc4] sm:$0xf] %vm1215, %v1168
      %2842 = vst.msk [vmem:[%s949 + $0xcc] sm:$0x3] %vm2817, %v2793
      %2843 = vst.msk [vmem:[%s949 + $0xd4] sm:$0xf] %vm1215, %v1172
      %2844 = vst.msk [vmem:[%s949 + $0xdc] sm:$0x3] %vm2817, %v2795
      %2845 = vst.msk [vmem:[%s949 + $0xe4] sm:$0xf] %vm1215, %v1176
      %2846 = vst.msk [vmem:[%s949 + $0xec] sm:$0x3] %vm2817, %v2797
      %2847 = vst.msk [vmem:[%s949 + $0xf4] sm:$0xf] %vm1215, %v1180
      %2848 = vst.msk [vmem:[%s949 + $0xfc] sm:$0x3] %vm2817, %v2799
      %v2849 = vrot.slane %v1256, 4
      %v2850 = vrot.slane %v1264, 4
      %v2851 = vrot.slane %v1272, 4
      %v2852 = vrot.slane %v1280, 4
      %v2853 = vrot.slane %v1288, 4
      %v2854 = vrot.slane %v1296, 4
      %v2855 = vrot.slane %v1304, 4
      %v2856 = vrot.slane %v1312, 4
      %v2857 = vrot.slane %v1320, 4
      %v2858 = vrot.slane %v1328, 4
      %v2859 = vrot.slane %v1336, 4
      %v2860 = vrot.slane %v1344, 4
      %v2861 = vrot.slane %v1352, 4
      %v2862 = vrot.slane %v1360, 4
      %v2863 = vrot.slane %v1368, 4
      %v2864 = vrot.slane %v1376, 4
      %2865 = vrot.lane.b32.xlu0 %v2849, 32
      %v2866 = vpop.permute.xlu0 %2865
      %2867 = vrot.lane.b32.xlu0 %v2850, 32
      %v2868 = vpop.permute.xlu0 %2867
      %2869 = vrot.lane.b32.xlu0 %v2851, 32
      %v2870 = vpop.permute.xlu0 %2869
      %2871 = vrot.lane.b32.xlu0 %v2852, 32
      %v2872 = vpop.permute.xlu0 %2871
      %2873 = vrot.lane.b32.xlu0 %v2853, 32
      %v2874 = vpop.permute.xlu0 %2873
      %2875 = vrot.lane.b32.xlu0 %v2854, 32
      %v2876 = vpop.permute.xlu0 %2875
      %2877 = vrot.lane.b32.xlu0 %v2855, 32
      %v2878 = vpop.permute.xlu0 %2877
      %2879 = vrot.lane.b32.xlu0 %v2856, 32
      %v2880 = vpop.permute.xlu0 %2879
      %2881 = vrot.lane.b32.xlu0 %v2857, 32
      %v2882 = vpop.permute.xlu0 %2881
      %2883 = vrot.lane.b32.xlu0 %v2858, 32
      %v2884 = vpop.permute.xlu0 %2883
      %2885 = vrot.lane.b32.xlu0 %v2859, 32
      %v2886 = vpop.permute.xlu0 %2885
      %2887 = vrot.lane.b32.xlu0 %v2860, 32
      %v2888 = vpop.permute.xlu0 %2887
      %2889 = vrot.lane.b32.xlu0 %v2861, 32
      %v2890 = vpop.permute.xlu0 %2889
      %2891 = vrot.lane.b32.xlu0 %v2862, 32
      %v2892 = vpop.permute.xlu0 %2891
      %2893 = vrot.lane.b32.xlu0 %v2863, 32
      %v2894 = vpop.permute.xlu0 %2893
      %2895 = vrot.lane.b32.xlu0 %v2864, 32
      %v2896 = vpop.permute.xlu0 %2895
      %2913 = vst.msk [vmem:[%s949 + $0x4] sm:$0xf] %vm1480, %v1381
      %vm2914 = vcmask 386304
      %vm2915 = vmand %vm2914, %vm1247
      %v2916 = vld [vmem:[%s949 + $0xc] sm:$0x3]
      %v2917 = vsel %vm2915, %v2866, %v2916
      %2918 = vst [vmem:[%s949 + $0xc] sm:$0x3] %v2917
      %2919 = vst.msk [vmem:[%s949 + $0x14] sm:$0xf] %vm1480, %v1385
      %v2920 = vld [vmem:[%s949 + $0x1c] sm:$0x3]
      %v2921 = vsel %vm2915, %v2868, %v2920
      %2922 = vst [vmem:[%s949 + $0x1c] sm:$0x3] %v2921
      %2923 = vst.msk [vmem:[%s949 + $0x24] sm:$0xf] %vm1480, %v1389
      %v2924 = vld [vmem:[%s949 + $0x2c] sm:$0x3]
      %v2925 = vsel %vm2915, %v2870, %v2924
      %2926 = vst [vmem:[%s949 + $0x2c] sm:$0x3] %v2925
      %2927 = vst.msk [vmem:[%s949 + $0x34] sm:$0xf] %vm1480, %v1393
      %v2928 = vld [vmem:[%s949 + $0x3c] sm:$0x3]
      %v2929 = vsel %vm2915, %v2872, %v2928
      %2930 = vst [vmem:[%s949 + $0x3c] sm:$0x3] %v2929
      %2931 = vst.msk [vmem:[%s949 + $0x44] sm:$0xf] %vm1480, %v1397
      %v2932 = vld [vmem:[%s949 + $0x4c] sm:$0x3]
      %v2933 = vsel %vm2915, %v2874, %v2932
      %2934 = vst [vmem:[%s949 + $0x4c] sm:$0x3] %v2933
      %2935 = vst.msk [vmem:[%s949 + $0x54] sm:$0xf] %vm1480, %v1401
      %v2936 = vld [vmem:[%s949 + $0x5c] sm:$0x3]
      %v2937 = vsel %vm2915, %v2876, %v2936
      %2938 = vst [vmem:[%s949 + $0x5c] sm:$0x3] %v2937
      %2939 = vst.msk [vmem:[%s949 + $0x64] sm:$0xf] %vm1480, %v1405
      %v2940 = vld [vmem:[%s949 + $0x6c] sm:$0x3]
      %v2941 = vsel %vm2915, %v2878, %v2940
      %2942 = vst [vmem:[%s949 + $0x6c] sm:$0x3] %v2941
      %2943 = vst.msk [vmem:[%s949 + $0x74] sm:$0xf] %vm1480, %v1409
      %v2944 = vld [vmem:[%s949 + $0x7c] sm:$0x3]
      %v2945 = vsel %vm2915, %v2880, %v2944
      %2946 = vst [vmem:[%s949 + $0x7c] sm:$0x3] %v2945
      %2947 = vst.msk [vmem:[%s949 + $0x84] sm:$0xf] %vm1480, %v1413
      %v2948 = vld [vmem:[%s949 + $0x8c] sm:$0x3]
      %v2949 = vsel %vm2915, %v2882, %v2948
      %2950 = vst [vmem:[%s949 + $0x8c] sm:$0x3] %v2949
      %2951 = vst.msk [vmem:[%s949 + $0x94] sm:$0xf] %vm1480, %v1417
      %v2952 = vld [vmem:[%s949 + $0x9c] sm:$0x3]
      %v2953 = vsel %vm2915, %v2884, %v2952
      %2954 = vst [vmem:[%s949 + $0x9c] sm:$0x3] %v2953
      %2955 = vst.msk [vmem:[%s949 + $0xa4] sm:$0xf] %vm1480, %v1421
      %v2956 = vld [vmem:[%s949 + $0xac] sm:$0x3]
      %v2957 = vsel %vm2915, %v2886, %v2956
      %2958 = vst [vmem:[%s949 + $0xac] sm:$0x3] %v2957
      %2959 = vst.msk [vmem:[%s949 + $0xb4] sm:$0xf] %vm1480, %v1425
      %v2960 = vld [vmem:[%s949 + $0xbc] sm:$0x3]
      %v2961 = vsel %vm2915, %v2888, %v2960
      %2962 = vst [vmem:[%s949 + $0xbc] sm:$0x3] %v2961
      %2963 = vst.msk [vmem:[%s949 + $0xc4] sm:$0xf] %vm1480, %v1429
      %v2964 = vld [vmem:[%s949 + $0xcc] sm:$0x3]
      %v2965 = vsel %vm2915, %v2890, %v2964
      %2966 = vst [vmem:[%s949 + $0xcc] sm:$0x3] %v2965
      %2967 = vst.msk [vmem:[%s949 + $0xd4] sm:$0xf] %vm1480, %v1433
      %v2968 = vld [vmem:[%s949 + $0xdc] sm:$0x3]
      %v2969 = vsel %vm2915, %v2892, %v2968
      %2970 = vst [vmem:[%s949 + $0xdc] sm:$0x3] %v2969
      %2971 = vst.msk [vmem:[%s949 + $0xe4] sm:$0xf] %vm1480, %v1437
      %v2972 = vld [vmem:[%s949 + $0xec] sm:$0x3]
      %v2973 = vsel %vm2915, %v2894, %v2972
      %2974 = vst [vmem:[%s949 + $0xec] sm:$0x3] %v2973
      %2975 = vst.msk [vmem:[%s949 + $0xf4] sm:$0xf] %vm1480, %v1441
      %v2976 = vld [vmem:[%s949 + $0xfc] sm:$0x3]
      %v2977 = vsel %vm2915, %v2896, %v2976
      %2978 = vst [vmem:[%s949 + $0xfc] sm:$0x3] %v2977
      %vm2979 = vcmask 523264
      %2980 = vst.msk [vmem:[#allocation3] sm:$0xff] %vm2979, 0.0
      %2981 = vst.msk [vmem:[#allocation3 + $0x8] sm:$0xff] %vm2979, 0.0
      %2982 = vst.msk [vmem:[#allocation3 + $0x10] sm:$0xff] %vm2979, 0.0
      %2983 = vst.msk [vmem:[#allocation3 + $0x18] sm:$0xff] %vm2979, 0.0
      %2984 = vst.msk [vmem:[#allocation3 + $0x20] sm:$0xff] %vm2979, 0.0
      %2985 = vst.msk [vmem:[#allocation3 + $0x28] sm:$0xff] %vm2979, 0.0
      %2986 = vst.msk [vmem:[#allocation3 + $0x30] sm:$0xff] %vm2979, 0.0
      %2987 = vst.msk [vmem:[#allocation3 + $0x38] sm:$0xff] %vm2979, 0.0
      %2988 = vst.msk [vmem:[#allocation3 + $0x40] sm:$0xff] %vm2979, 0.0
      %2989 = vst.msk [vmem:[#allocation3 + $0x48] sm:$0xff] %vm2979, 0.0
      %2990 = vst.msk [vmem:[#allocation3 + $0x50] sm:$0xff] %vm2979, 0.0
      %2991 = vst.msk [vmem:[#allocation3 + $0x58] sm:$0xff] %vm2979, 0.0
      %2992 = vst.msk [vmem:[#allocation3 + $0x60] sm:$0xff] %vm2979, 0.0
      %2993 = vst.msk [vmem:[#allocation3 + $0x68] sm:$0xff] %vm2979, 0.0
      %2994 = vst.msk [vmem:[#allocation3 + $0x70] sm:$0xff] %vm2979, 0.0
      %2995 = vst.msk [vmem:[#allocation3 + $0x78] sm:$0xff] %vm2979, 0.0
      %2996 = vst.msk [vmem:[#allocation3 + $0x80] sm:$0xff] %vm2979, 0.0
      %2997 = vst.msk [vmem:[#allocation3 + $0x88] sm:$0xff] %vm2979, 0.0
      %2998 = vst.msk [vmem:[#allocation3 + $0x90] sm:$0xff] %vm2979, 0.0
      %2999 = vst.msk [vmem:[#allocation3 + $0x98] sm:$0xff] %vm2979, 0.0
      %3000 = vst.msk [vmem:[#allocation3 + $0xa0] sm:$0xff] %vm2979, 0.0
      %3001 = vst.msk [vmem:[#allocation3 + $0xa8] sm:$0xff] %vm2979, 0.0
      %3002 = vst.msk [vmem:[#allocation3 + $0xb0] sm:$0xff] %vm2979, 0.0
      %3003 = vst.msk [vmem:[#allocation3 + $0xb8] sm:$0xff] %vm2979, 0.0
      %3004 = vst.msk [vmem:[#allocation3 + $0xc0] sm:$0xff] %vm2979, 0.0
      %3005 = vst.msk [vmem:[#allocation3 + $0xc8] sm:$0xff] %vm2979, 0.0
      %3006 = vst.msk [vmem:[#allocation3 + $0xd0] sm:$0xff] %vm2979, 0.0
      %3007 = vst.msk [vmem:[#allocation3 + $0xd8] sm:$0xff] %vm2979, 0.0
      %3008 = vst.msk [vmem:[#allocation3 + $0xe0] sm:$0xff] %vm2979, 0.0
      %3009 = vst.msk [vmem:[#allocation3 + $0xe8] sm:$0xff] %vm2979, 0.0
      %3010 = vst.msk [vmem:[#allocation3 + $0xf0] sm:$0xff] %vm2979, 0.0
      %3011 = vst.msk [vmem:[#allocation3 + $0xf8] sm:$0xff] %vm2979, 0.0
      %v3012 = vld [vmem:[#allocation2] sm:$0xff]
      %v3013 = vld [vmem:[#allocation2 + $0x8] sm:$0xff]
      %v3014 = vld [vmem:[#allocation2 + $0x10] sm:$0xff]
      %v3015 = vld [vmem:[#allocation2 + $0x18] sm:$0xff]
      %v3016 = vld [vmem:[#allocation2 + $0x20] sm:$0xff]
      %v3017 = vld [vmem:[#allocation2 + $0x28] sm:$0xff]
      %v3018 = vld [vmem:[#allocation2 + $0x30] sm:$0xff]
      %v3019 = vld [vmem:[#allocation2 + $0x38] sm:$0xff]
      %v3020 = vld [vmem:[#allocation2 + $0x40] sm:$0xff]
      %v3021 = vld [vmem:[#allocation2 + $0x48] sm:$0xff]
      %v3022 = vld [vmem:[#allocation2 + $0x50] sm:$0xff]
      %v3023 = vld [vmem:[#allocation2 + $0x58] sm:$0xff]
      %v3024 = vld [vmem:[#allocation2 + $0x60] sm:$0xff]
      %v3025 = vld [vmem:[#allocation2 + $0x68] sm:$0xff]
      %v3026 = vld [vmem:[#allocation2 + $0x70] sm:$0xff]
      %v3027 = vld [vmem:[#allocation2 + $0x78] sm:$0xff]
      %v3028 = vld [vmem:[#allocation2 + $0x80] sm:$0xff]
      %v3029 = vld [vmem:[#allocation2 + $0x88] sm:$0xff]
      %v3030 = vld [vmem:[#allocation2 + $0x90] sm:$0xff]
      %v3031 = vld [vmem:[#allocation2 + $0x98] sm:$0xff]
      %v3032 = vld [vmem:[#allocation2 + $0xa0] sm:$0xff]
      %v3033 = vld [vmem:[#allocation2 + $0xa8] sm:$0xff]
      %v3034 = vld [vmem:[#allocation2 + $0xb0] sm:$0xff]
      %v3035 = vld [vmem:[#allocation2 + $0xb8] sm:$0xff]
      %v3036 = vld [vmem:[#allocation2 + $0xc0] sm:$0xff]
      %v3037 = vld [vmem:[#allocation2 + $0xc8] sm:$0xff]
      %v3038 = vld [vmem:[#allocation2 + $0xd0] sm:$0xff]
      %v3039 = vld [vmem:[#allocation2 + $0xd8] sm:$0xff]
      %v3040 = vld [vmem:[#allocation2 + $0xe0] sm:$0xff]
      %v3041 = vld [vmem:[#allocation2 + $0xe8] sm:$0xff]
      %v3042 = vld [vmem:[#allocation2 + $0xf0] sm:$0xff]
      %v3043 = vld [vmem:[#allocation2 + $0xf8] sm:$0xff]
      %v3044 = vld [vmem:[#allocation3] sm:$0xff]
      %v3045 = vld [vmem:[#allocation3 + $0x8] sm:$0xff]
      %v3046 = vld [vmem:[#allocation3 + $0x10] sm:$0xff]
      %v3047 = vld [vmem:[#allocation3 + $0x18] sm:$0xff]
      %v3048 = vld [vmem:[#allocation3 + $0x20] sm:$0xff]
      %v3049 = vld [vmem:[#allocation3 + $0x28] sm:$0xff]
      %v3050 = vld [vmem:[#allocation3 + $0x30] sm:$0xff]
      %v3051 = vld [vmem:[#allocation3 + $0x38] sm:$0xff]
      %v3052 = vld [vmem:[#allocation3 + $0x40] sm:$0xff]
      %v3053 = vld [vmem:[#allocation3 + $0x48] sm:$0xff]
      %v3054 = vld [vmem:[#allocation3 + $0x50] sm:$0xff]
      %v3055 = vld [vmem:[#allocation3 + $0x58] sm:$0xff]
      %v3056 = vld [vmem:[#allocation3 + $0x60] sm:$0xff]
      %v3057 = vld [vmem:[#allocation3 + $0x68] sm:$0xff]
      %v3058 = vld [vmem:[#allocation3 + $0x70] sm:$0xff]
      %v3059 = vld [vmem:[#allocation3 + $0x78] sm:$0xff]
      %v3060 = vld [vmem:[#allocation3 + $0x80] sm:$0xff]
      %v3061 = vld [vmem:[#allocation3 + $0x88] sm:$0xff]
      %v3062 = vld [vmem:[#allocation3 + $0x90] sm:$0xff]
      %v3063 = vld [vmem:[#allocation3 + $0x98] sm:$0xff]
      %v3064 = vld [vmem:[#allocation3 + $0xa0] sm:$0xff]
      %v3065 = vld [vmem:[#allocation3 + $0xa8] sm:$0xff]
      %v3066 = vld [vmem:[#allocation3 + $0xb0] sm:$0xff]
      %v3067 = vld [vmem:[#allocation3 + $0xb8] sm:$0xff]
      %v3068 = vld [vmem:[#allocation3 + $0xc0] sm:$0xff]
      %v3069 = vld [vmem:[#allocation3 + $0xc8] sm:$0xff]
      %v3070 = vld [vmem:[#allocation3 + $0xd0] sm:$0xff]
      %v3071 = vld [vmem:[#allocation3 + $0xd8] sm:$0xff]
      %v3072 = vld [vmem:[#allocation3 + $0xe0] sm:$0xff]
      %v3073 = vld [vmem:[#allocation3 + $0xe8] sm:$0xff]
      %v3074 = vld [vmem:[#allocation3 + $0xf0] sm:$0xff]
      %v3075 = vld [vmem:[#allocation3 + $0xf8] sm:$0xff]
      %v3076 = vld [vmem:[%s3] sm:$0xf]
      %v3077 = vld [vmem:[%s3 + $0x4] sm:$0xf]
      %v3078 = vld [vmem:[%s3 + $0x8] sm:$0xf]
      %v3079 = vld [vmem:[%s3 + $0xc] sm:$0xf]
      %v3080 = vld [vmem:[%s3 + $0x10] sm:$0xf]
      %v3081 = vld [vmem:[%s3 + $0x14] sm:$0xf]
      %v3082 = vld [vmem:[%s3 + $0x18] sm:$0xf]
      %v3083 = vld [vmem:[%s3 + $0x1c] sm:$0xf]
      %v3084 = vld [vmem:[%s3 + $0x20] sm:$0xf]
      %v3085 = vld [vmem:[%s3 + $0x24] sm:$0xf]
      %v3086 = vld [vmem:[%s3 + $0x28] sm:$0xf]
      %v3087 = vld [vmem:[%s3 + $0x2c] sm:$0xf]
      %v3088 = vld [vmem:[%s3 + $0x30] sm:$0xf]
      %v3089 = vld [vmem:[%s3 + $0x34] sm:$0xf]
      %v3090 = vld [vmem:[%s3 + $0x38] sm:$0xf]
      %v3091 = vld [vmem:[%s3 + $0x3c] sm:$0xf]
      %v3092 = vld [vmem:[%s3 + $0x40] sm:$0xf]
      %v3093 = vld [vmem:[%s3 + $0x44] sm:$0xf]
      %v3094 = vld [vmem:[%s3 + $0x48] sm:$0xf]
      %v3095 = vld [vmem:[%s3 + $0x4c] sm:$0xf]
      %v3096 = vld [vmem:[%s3 + $0x50] sm:$0xf]
      %v3097 = vld [vmem:[%s3 + $0x54] sm:$0xf]
      %v3130 = vunpack.c.l.b16 %v3012
      %v3131 = vunpack.c.h.b16 %v3012
      %v3132 = vunpack.c.l.b16 %v3013
      %v3133 = vunpack.c.h.b16 %v3013
      %v3134 = vunpack.c.l.b16 %v3014
      %v3135 = vunpack.c.h.b16 %v3014
      %v3136 = vunpack.c.l.b16 %v3015
      %v3137 = vunpack.c.h.b16 %v3015
      %v3138 = vunpack.c.l.b16 %v3016
      %v3139 = vunpack.c.h.b16 %v3016
      %v3140 = vunpack.c.l.b16 %v3017
      %v3141 = vunpack.c.h.b16 %v3017
      %v3142 = vunpack.c.l.b16 %v3018
      %v3143 = vunpack.c.h.b16 %v3018
      %v3144 = vunpack.c.l.b16 %v3019
      %v3145 = vunpack.c.h.b16 %v3019
      %v3146 = vunpack.c.l.b16 %v3020
      %v3147 = vunpack.c.h.b16 %v3020
      %v3148 = vunpack.c.l.b16 %v3021
      %v3149 = vunpack.c.h.b16 %v3021
      %v3150 = vunpack.c.l.b16 %v3022
      %v3151 = vunpack.c.h.b16 %v3022
      %v3152 = vunpack.c.l.b16 %v3023
      %v3153 = vunpack.c.h.b16 %v3023
      %v3154 = vunpack.c.l.b16 %v3024
      %v3155 = vunpack.c.h.b16 %v3024
      %v3156 = vunpack.c.l.b16 %v3025
      %v3157 = vunpack.c.h.b16 %v3025
      %v3158 = vunpack.c.l.b16 %v3026
      %v3159 = vunpack.c.h.b16 %v3026
      %v3160 = vunpack.c.l.b16 %v3027
      %v3161 = vunpack.c.h.b16 %v3027
      %v3162 = vunpack.c.l.b16 %v3028
      %v3163 = vunpack.c.h.b16 %v3028
      %v3164 = vunpack.c.l.b16 %v3029
      %v3165 = vunpack.c.h.b16 %v3029
      %v3166 = vunpack.c.l.b16 %v3030
      %v3167 = vunpack.c.h.b16 %v3030
      %v3168 = vunpack.c.l.b16 %v3031
      %v3169 = vunpack.c.h.b16 %v3031
      %v3170 = vunpack.c.l.b16 %v3032
      %v3171 = vunpack.c.h.b16 %v3032
      %v3172 = vunpack.c.l.b16 %v3033
      %v3173 = vunpack.c.h.b16 %v3033
      %v3174 = vunpack.c.l.b16 %v3034
      %v3175 = vunpack.c.h.b16 %v3034
      %v3176 = vunpack.c.l.b16 %v3035
      %v3177 = vunpack.c.h.b16 %v3035
      %v3178 = vunpack.c.l.b16 %v3036
      %v3179 = vunpack.c.h.b16 %v3036
      %v3180 = vunpack.c.l.b16 %v3037
      %v3181 = vunpack.c.h.b16 %v3037
      %v3182 = vunpack.c.l.b16 %v3038
      %v3183 = vunpack.c.h.b16 %v3038
      %v3184 = vunpack.c.l.b16 %v3039
      %v3185 = vunpack.c.h.b16 %v3039
      %v3186 = vunpack.c.l.b16 %v3040
      %v3187 = vunpack.c.h.b16 %v3040
      %v3188 = vunpack.c.l.b16 %v3041
      %v3189 = vunpack.c.h.b16 %v3041
      %v3190 = vunpack.c.l.b16 %v3042
      %v3191 = vunpack.c.h.b16 %v3042
      %v3192 = vunpack.c.l.b16 %v3043
      %v3193 = vunpack.c.h.b16 %v3043
      %v3194 = vpack.c.b16 %v3132, %v3130
      %v3195 = vpack.c.b16 %v3133, %v3131
      %v3196 = vpack.c.b16 %v3136, %v3134
      %v3197 = vpack.c.b16 %v3137, %v3135
      %v3198 = vpack.c.b16 %v3140, %v3138
      %v3199 = vpack.c.b16 %v3141, %v3139
      %v3200 = vpack.c.b16 %v3144, %v3142
      %v3201 = vpack.c.b16 %v3145, %v3143
      %v3202 = vpack.c.b16 %v3148, %v3146
      %v3203 = vpack.c.b16 %v3149, %v3147
      %v3204 = vpack.c.b16 %v3152, %v3150
      %v3205 = vpack.c.b16 %v3153, %v3151
      %v3206 = vpack.c.b16 %v3156, %v3154
      %v3207 = vpack.c.b16 %v3157, %v3155
      %v3208 = vpack.c.b16 %v3160, %v3158
      %v3209 = vpack.c.b16 %v3161, %v3159
      %v3210 = vpack.c.b16 %v3164, %v3162
      %v3211 = vpack.c.b16 %v3165, %v3163
      %v3212 = vpack.c.b16 %v3168, %v3166
      %v3213 = vpack.c.b16 %v3169, %v3167
      %v3214 = vpack.c.b16 %v3172, %v3170
      %v3215 = vpack.c.b16 %v3173, %v3171
      %v3216 = vpack.c.b16 %v3176, %v3174
      %v3217 = vpack.c.b16 %v3177, %v3175
      %v3218 = vpack.c.b16 %v3180, %v3178
      %v3219 = vpack.c.b16 %v3181, %v3179
      %v3220 = vpack.c.b16 %v3184, %v3182
      %v3221 = vpack.c.b16 %v3185, %v3183
      %v3222 = vpack.c.b16 %v3188, %v3186
      %v3223 = vpack.c.b16 %v3189, %v3187
      %v3224 = vpack.c.b16 %v3192, %v3190
      %v3225 = vpack.c.b16 %v3193, %v3191
      %v3264 = vunpack.c.l.b16 %v3076
      %v3265 = vunpack.c.l.b16 %v3077
      %v3266 = vunpack.c.l.b16 %v3078
      %v3267 = vunpack.c.l.b16 %v3079
      %v3268 = vunpack.c.l.b16 %v3080
      %v3269 = vunpack.c.l.b16 %v3081
      %v3270 = vunpack.c.l.b16 %v3082
      %v3271 = vunpack.c.l.b16 %v3083
      %v3272 = vunpack.c.l.b16 %v3084
      %v3273 = vunpack.c.l.b16 %v3085
      %v3274 = vunpack.c.l.b16 %v3086
      %v3275 = vunpack.c.l.b16 %v3087
      %v3276 = vunpack.c.l.b16 %v3088
      %v3277 = vunpack.c.l.b16 %v3089
      %v3278 = vunpack.c.l.b16 %v3090
      %v3279 = vunpack.c.l.b16 %v3091
      %v3280 = vunpack.c.l.b16 %v3092
      %v3281 = vunpack.c.l.b16 %v3093
      %v3282 = vunpack.c.l.b16 %v3094
      %v3283 = vunpack.c.l.b16 %v3095
      %v3284 = vunpack.c.l.b16 %v3096
      %v3285 = vunpack.c.l.b16 %v3097
      %v3286 = vpack.c.b16 %v3265, %v3264
      %v3287 = vpack.c.b16 %v3267, %v3266
      %v3288 = vpack.c.b16 %v3269, %v3268
      %v3289 = vpack.c.b16 %v3271, %v3270
      %v3290 = vpack.c.b16 %v3273, %v3272
      %v3291 = vpack.c.b16 %v3275, %v3274
      %v3292 = vpack.c.b16 %v3277, %v3276
      %v3293 = vpack.c.b16 %v3279, %v3278
      %v3294 = vpack.c.b16 %v3281, %v3280
      %v3295 = vpack.c.b16 %v3283, %v3282
      %v3296 = vpack.c.b16 %v3285, %v3284
      %vm3308 = vcmask 392192
      %v3310 = vsel %vm3308, %v3195, 0
      %v3313 = vsel %vm3308, %v3197, 0
      %v3316 = vsel %vm3308, %v3199, 0
      %v3319 = vsel %vm3308, %v3201, 0
      %v3322 = vsel %vm3308, %v3203, 0
      %v3325 = vsel %vm3308, %v3205, 0
      %v3328 = vsel %vm3308, %v3207, 0
      %v3331 = vsel %vm3308, %v3209, 0
      %v3334 = vsel %vm3308, %v3211, 0
      %v3337 = vsel %vm3308, %v3213, 0
      %v3340 = vsel %vm3308, %v3215, 0
      %v3343 = vsel %vm3308, %v3217, 0
      %v3346 = vsel %vm3308, %v3219, 0
      %v3349 = vsel %vm3308, %v3221, 0
      %v3352 = vsel %vm3308, %v3223, 0
      %v3355 = vsel %vm3308, %v3225, 0
      %3357 = vmatpush.bf16.msra.mxu0 %v3293
      %3358 = vmatpush.bf16.msra.mxu0 %v3292
      %3359 = vmatpush.bf16.msra.mxu0 %v3291
      %3360 = vmatpush.bf16.msra.mxu0 %v3290
      %3361 = vmatpush.bf16.msra.mxu0 %v3289
      %3362 = vmatpush.bf16.msra.mxu0 %v3288
      %3363 = vmatpush.bf16.msra.mxu0 %v3287
      %3364 = vmatpush.bf16.msra.mxu0 %v3286
      %3365 = vmatmul.bf16.gmra.mxu0 %v3194
      %v3366 = vpop.f32.mrf.mxu0
      %v3367 = vadd.f32 0.0, %v3366
      %v3368 = vpop.f32.mrf.mxu0
      %v3369 = vadd.f32 0.0, %v3368
      %3370 = vmatmul.bf16.gmra.mxu0 %v3196
      %v3371 = vpop.f32.mrf.mxu0
      %v3372 = vadd.f32 0.0, %v3371
      %v3373 = vpop.f32.mrf.mxu0
      %v3374 = vadd.f32 0.0, %v3373
      %3375 = vmatmul.bf16.gmra.mxu0 %v3198
      %v3376 = vpop.f32.mrf.mxu0
      %v3377 = vadd.f32 0.0, %v3376
      %v3378 = vpop.f32.mrf.mxu0
      %v3379 = vadd.f32 0.0, %v3378
      %3380 = vmatmul.bf16.gmra.mxu0 %v3200
      %v3381 = vpop.f32.mrf.mxu0
      %v3382 = vadd.f32 0.0, %v3381
      %v3383 = vpop.f32.mrf.mxu0
      %v3384 = vadd.f32 0.0, %v3383
      %3385 = vmatmul.bf16.gmra.mxu0 %v3202
      %v3386 = vpop.f32.mrf.mxu0
      %v3387 = vadd.f32 0.0, %v3386
      %v3388 = vpop.f32.mrf.mxu0
      %v3389 = vadd.f32 0.0, %v3388
      %3390 = vmatmul.bf16.gmra.mxu0 %v3204
      %v3391 = vpop.f32.mrf.mxu0
      %v3392 = vadd.f32 0.0, %v3391
      %v3393 = vpop.f32.mrf.mxu0
      %v3394 = vadd.f32 0.0, %v3393
      %3395 = vmatmul.bf16.gmra.mxu0 %v3206
      %v3396 = vpop.f32.mrf.mxu0
      %v3397 = vadd.f32 0.0, %v3396
      %v3398 = vpop.f32.mrf.mxu0
      %v3399 = vadd.f32 0.0, %v3398
      %3400 = vmatmul.bf16.gmra.mxu0 %v3208
      %v3401 = vpop.f32.mrf.mxu0
      %v3402 = vadd.f32 0.0, %v3401
      %v3403 = vpop.f32.mrf.mxu0
      %v3404 = vadd.f32 0.0, %v3403
      %3405 = vmatmul.bf16.gmra.mxu0 %v3210
      %v3406 = vpop.f32.mrf.mxu0
      %v3407 = vadd.f32 0.0, %v3406
      %v3408 = vpop.f32.mrf.mxu0
      %v3409 = vadd.f32 0.0, %v3408
      %3410 = vmatmul.bf16.gmra.mxu0 %v3212
      %v3411 = vpop.f32.mrf.mxu0
      %v3412 = vadd.f32 0.0, %v3411
      %v3413 = vpop.f32.mrf.mxu0
      %v3414 = vadd.f32 0.0, %v3413
      %3415 = vmatmul.bf16.gmra.mxu0 %v3214
      %v3416 = vpop.f32.mrf.mxu0
      %v3417 = vadd.f32 0.0, %v3416
      %v3418 = vpop.f32.mrf.mxu0
      %v3419 = vadd.f32 0.0, %v3418
      %3420 = vmatmul.bf16.gmra.mxu0 %v3216
      %v3421 = vpop.f32.mrf.mxu0
      %v3422 = vadd.f32 0.0, %v3421
      %v3423 = vpop.f32.mrf.mxu0
      %v3424 = vadd.f32 0.0, %v3423
      %3425 = vmatmul.bf16.gmra.mxu0 %v3218
      %v3426 = vpop.f32.mrf.mxu0
      %v3427 = vadd.f32 0.0, %v3426
      %v3428 = vpop.f32.mrf.mxu0
      %v3429 = vadd.f32 0.0, %v3428
      %3430 = vmatmul.bf16.gmra.mxu0 %v3220
      %v3431 = vpop.f32.mrf.mxu0
      %v3432 = vadd.f32 0.0, %v3431
      %v3433 = vpop.f32.mrf.mxu0
      %v3434 = vadd.f32 0.0, %v3433
      %3435 = vmatmul.bf16.gmra.mxu0 %v3222
      %v3436 = vpop.f32.mrf.mxu0
      %v3437 = vadd.f32 0.0, %v3436
      %v3438 = vpop.f32.mrf.mxu0
      %v3439 = vadd.f32 0.0, %v3438
      %3440 = vmatmul.bf16.gmra.mxu0 %v3224
      %v3441 = vpop.f32.mrf.mxu0
      %v3442 = vadd.f32 0.0, %v3441
      %v3443 = vpop.f32.mrf.mxu0
      %v3444 = vadd.f32 0.0, %v3443
      %3445 = vdwg.mxu0
      %3446 = vmatpush.bf16.msra.mxu0 0
      %3447 = vmatpush.bf16.msra.mxu0 0
      %3448 = vmatpush.bf16.msra.mxu0 0
      %3449 = vmatpush.bf16.msra.mxu0 0
      %3450 = vmatpush.bf16.msra.mxu0 0
      %3451 = vmatpush.bf16.msra.mxu0 %v3296
      %3452 = vmatpush.bf16.msra.mxu0 %v3295
      %3453 = vmatpush.bf16.msra.mxu0 %v3294
      %3454 = vmatmul.bf16.gmra.mxu0 %v3310
      %v3455 = vpop.f32.mrf.mxu0
      %v3456 = vadd.f32 %v3367, %v3455
      %v3457 = vpop.f32.mrf.mxu0
      %v3458 = vadd.f32 %v3369, %v3457
      %3459 = vmatmul.bf16.gmra.mxu0 %v3313
      %v3460 = vpop.f32.mrf.mxu0
      %v3461 = vadd.f32 %v3372, %v3460
      %v3462 = vpop.f32.mrf.mxu0
      %v3463 = vadd.f32 %v3374, %v3462
      %3464 = vmatmul.bf16.gmra.mxu0 %v3316
      %v3465 = vpop.f32.mrf.mxu0
      %v3466 = vadd.f32 %v3377, %v3465
      %v3467 = vpop.f32.mrf.mxu0
      %v3468 = vadd.f32 %v3379, %v3467
      %3469 = vmatmul.bf16.gmra.mxu0 %v3319
      %v3470 = vpop.f32.mrf.mxu0
      %v3471 = vadd.f32 %v3382, %v3470
      %v3472 = vpop.f32.mrf.mxu0
      %v3473 = vadd.f32 %v3384, %v3472
      %3474 = vmatmul.bf16.gmra.mxu0 %v3322
      %v3475 = vpop.f32.mrf.mxu0
      %v3476 = vadd.f32 %v3387, %v3475
      %v3477 = vpop.f32.mrf.mxu0
      %v3478 = vadd.f32 %v3389, %v3477
      %3479 = vmatmul.bf16.gmra.mxu0 %v3325
      %v3480 = vpop.f32.mrf.mxu0
      %v3481 = vadd.f32 %v3392, %v3480
      %v3482 = vpop.f32.mrf.mxu0
      %v3483 = vadd.f32 %v3394, %v3482
      %3484 = vmatmul.bf16.gmra.mxu0 %v3328
      %v3485 = vpop.f32.mrf.mxu0
      %v3486 = vadd.f32 %v3397, %v3485
      %v3487 = vpop.f32.mrf.mxu0
      %v3488 = vadd.f32 %v3399, %v3487
      %3489 = vmatmul.bf16.gmra.mxu0 %v3331
      %v3490 = vpop.f32.mrf.mxu0
      %v3491 = vadd.f32 %v3402, %v3490
      %v3492 = vpop.f32.mrf.mxu0
      %v3493 = vadd.f32 %v3404, %v3492
      %3494 = vmatmul.bf16.gmra.mxu0 %v3334
      %v3495 = vpop.f32.mrf.mxu0
      %v3496 = vadd.f32 %v3407, %v3495
      %v3497 = vpop.f32.mrf.mxu0
      %v3498 = vadd.f32 %v3409, %v3497
      %3499 = vmatmul.bf16.gmra.mxu0 %v3337
      %v3500 = vpop.f32.mrf.mxu0
      %v3501 = vadd.f32 %v3412, %v3500
      %v3502 = vpop.f32.mrf.mxu0
      %v3503 = vadd.f32 %v3414, %v3502
      %3504 = vmatmul.bf16.gmra.mxu0 %v3340
      %v3505 = vpop.f32.mrf.mxu0
      %v3506 = vadd.f32 %v3417, %v3505
      %v3507 = vpop.f32.mrf.mxu0
      %v3508 = vadd.f32 %v3419, %v3507
      %3509 = vmatmul.bf16.gmra.mxu0 %v3343
      %v3510 = vpop.f32.mrf.mxu0
      %v3511 = vadd.f32 %v3422, %v3510
      %v3512 = vpop.f32.mrf.mxu0
      %v3513 = vadd.f32 %v3424, %v3512
      %3514 = vmatmul.bf16.gmra.mxu0 %v3346
      %v3515 = vpop.f32.mrf.mxu0
      %v3516 = vadd.f32 %v3427, %v3515
      %v3517 = vpop.f32.mrf.mxu0
      %v3518 = vadd.f32 %v3429, %v3517
      %3519 = vmatmul.bf16.gmra.mxu0 %v3349
      %v3520 = vpop.f32.mrf.mxu0
      %v3521 = vadd.f32 %v3432, %v3520
      %v3522 = vpop.f32.mrf.mxu0
      %v3523 = vadd.f32 %v3434, %v3522
      %3524 = vmatmul.bf16.gmra.mxu0 %v3352
      %v3525 = vpop.f32.mrf.mxu0
      %v3526 = vadd.f32 %v3437, %v3525
      %v3527 = vpop.f32.mrf.mxu0
      %v3528 = vadd.f32 %v3439, %v3527
      %3529 = vmatmul.bf16.gmra.mxu0 %v3355
      %v3530 = vpop.f32.mrf.mxu0
      %v3531 = vadd.f32 %v3442, %v3530
      %v3532 = vpop.f32.mrf.mxu0
      %v3533 = vadd.f32 %v3444, %v3532
      %3534 = vdwg.mxu0
      %v3535 = vadd.f32 %v3044, %v3456
      %v3536 = vadd.f32 %v3045, %v3458
      %v3537 = vadd.f32 %v3046, %v3461
      %v3538 = vadd.f32 %v3047, %v3463
      %v3539 = vadd.f32 %v3048, %v3466
      %v3540 = vadd.f32 %v3049, %v3468
      %v3541 = vadd.f32 %v3050, %v3471
      %v3542 = vadd.f32 %v3051, %v3473
      %v3543 = vadd.f32 %v3052, %v3476
      %v3544 = vadd.f32 %v3053, %v3478
      %v3545 = vadd.f32 %v3054, %v3481
      %v3546 = vadd.f32 %v3055, %v3483
      %v3547 = vadd.f32 %v3056, %v3486
      %v3548 = vadd.f32 %v3057, %v3488
      %v3549 = vadd.f32 %v3058, %v3491
      %v3550 = vadd.f32 %v3059, %v3493
      %v3551 = vadd.f32 %v3060, %v3496
      %v3552 = vadd.f32 %v3061, %v3498
      %v3553 = vadd.f32 %v3062, %v3501
      %v3554 = vadd.f32 %v3063, %v3503
      %v3555 = vadd.f32 %v3064, %v3506
      %v3556 = vadd.f32 %v3065, %v3508
      %v3557 = vadd.f32 %v3066, %v3511
      %v3558 = vadd.f32 %v3067, %v3513
      %v3559 = vadd.f32 %v3068, %v3516
      %v3560 = vadd.f32 %v3069, %v3518
      %v3561 = vadd.f32 %v3070, %v3521
      %v3562 = vadd.f32 %v3071, %v3523
      %v3563 = vadd.f32 %v3072, %v3526
      %v3564 = vadd.f32 %v3073, %v3528
      %v3565 = vadd.f32 %v3074, %v3531
      %v3566 = vadd.f32 %v3075, %v3533
      %3567 = vst.msk [vmem:[#allocation3] sm:$0xff] %vm2979, %v3535
      %3568 = vst.msk [vmem:[#allocation3 + $0x8] sm:$0xff] %vm2979, %v3536
      %3569 = vst.msk [vmem:[#allocation3 + $0x10] sm:$0xff] %vm2979, %v3537
      %3570 = vst.msk [vmem:[#allocation3 + $0x18] sm:$0xff] %vm2979, %v3538
      %3571 = vst.msk [vmem:[#allocation3 + $0x20] sm:$0xff] %vm2979, %v3539
      %3572 = vst.msk [vmem:[#allocation3 + $0x28] sm:$0xff] %vm2979, %v3540
      %3573 = vst.msk [vmem:[#allocation3 + $0x30] sm:$0xff] %vm2979, %v3541
      %3574 = vst.msk [vmem:[#allocation3 + $0x38] sm:$0xff] %vm2979, %v3542
      %3575 = vst.msk [vmem:[#allocation3 + $0x40] sm:$0xff] %vm2979, %v3543
      %3576 = vst.msk [vmem:[#allocation3 + $0x48] sm:$0xff] %vm2979, %v3544
      %3577 = vst.msk [vmem:[#allocation3 + $0x50] sm:$0xff] %vm2979, %v3545
      %3578 = vst.msk [vmem:[#allocation3 + $0x58] sm:$0xff] %vm2979, %v3546
      %3579 = vst.msk [vmem:[#allocation3 + $0x60] sm:$0xff] %vm2979, %v3547
      %3580 = vst.msk [vmem:[#allocation3 + $0x68] sm:$0xff] %vm2979, %v3548
      %3581 = vst.msk [vmem:[#allocation3 + $0x70] sm:$0xff] %vm2979, %v3549
      %3582 = vst.msk [vmem:[#allocation3 + $0x78] sm:$0xff] %vm2979, %v3550
      %3583 = vst.msk [vmem:[#allocation3 + $0x80] sm:$0xff] %vm2979, %v3551
      %3584 = vst.msk [vmem:[#allocation3 + $0x88] sm:$0xff] %vm2979, %v3552
      %3585 = vst.msk [vmem:[#allocation3 + $0x90] sm:$0xff] %vm2979, %v3553
      %3586 = vst.msk [vmem:[#allocation3 + $0x98] sm:$0xff] %vm2979, %v3554
      %3587 = vst.msk [vmem:[#allocation3 + $0xa0] sm:$0xff] %vm2979, %v3555
      %3588 = vst.msk [vmem:[#allocation3 + $0xa8] sm:$0xff] %vm2979, %v3556
      %3589 = vst.msk [vmem:[#allocation3 + $0xb0] sm:$0xff] %vm2979, %v3557
      %3590 = vst.msk [vmem:[#allocation3 + $0xb8] sm:$0xff] %vm2979, %v3558
      %3591 = vst.msk [vmem:[#allocation3 + $0xc0] sm:$0xff] %vm2979, %v3559
      %3592 = vst.msk [vmem:[#allocation3 + $0xc8] sm:$0xff] %vm2979, %v3560
      %3593 = vst.msk [vmem:[#allocation3 + $0xd0] sm:$0xff] %vm2979, %v3561
      %3594 = vst.msk [vmem:[#allocation3 + $0xd8] sm:$0xff] %vm2979, %v3562
      %3595 = vst.msk [vmem:[#allocation3 + $0xe0] sm:$0xff] %vm2979, %v3563
      %3596 = vst.msk [vmem:[#allocation3 + $0xe8] sm:$0xff] %vm2979, %v3564
      %3597 = vst.msk [vmem:[#allocation3 + $0xf0] sm:$0xff] %vm2979, %v3565
      %3598 = vst.msk [vmem:[#allocation3 + $0xf8] sm:$0xff] %vm2979, %v3566
      %s3599 = scalar_lea.vmem [#allocation2], 16
      %v3600 = vld [vmem:[%s3599] sm:$0xff]
      %v3601 = vld [vmem:[%s3599 + $0x8] sm:$0xff]
      %v3602 = vld [vmem:[%s3599 + $0x10] sm:$0xff]
      %v3603 = vld [vmem:[%s3599 + $0x18] sm:$0xff]
      %v3604 = vld [vmem:[%s3599 + $0x20] sm:$0xff]
      %v3605 = vld [vmem:[%s3599 + $0x28] sm:$0xff]
      %v3606 = vld [vmem:[%s3599 + $0x30] sm:$0xff]
      %v3607 = vld [vmem:[%s3599 + $0x38] sm:$0xff]
      %v3608 = vld [vmem:[%s3599 + $0x40] sm:$0xff]
      %v3609 = vld [vmem:[%s3599 + $0x48] sm:$0xff]
      %v3610 = vld [vmem:[%s3599 + $0x50] sm:$0xff]
      %v3611 = vld [vmem:[%s3599 + $0x58] sm:$0xff]
      %v3612 = vld [vmem:[%s3599 + $0x60] sm:$0xff]
      %v3613 = vld [vmem:[%s3599 + $0x68] sm:$0xff]
      %v3614 = vld [vmem:[%s3599 + $0x70] sm:$0xff]
      %v3615 = vld [vmem:[%s3599 + $0x78] sm:$0xff]
      %v3616 = vld [vmem:[%s3599 + $0x80] sm:$0xff]
      %v3617 = vld [vmem:[%s3599 + $0x88] sm:$0xff]
      %v3618 = vld [vmem:[%s3599 + $0x90] sm:$0xff]
      %v3619 = vld [vmem:[%s3599 + $0x98] sm:$0xff]
      %v3620 = vld [vmem:[%s3599 + $0xa0] sm:$0xff]
      %v3621 = vld [vmem:[%s3599 + $0xa8] sm:$0xff]
      %v3622 = vld [vmem:[%s3599 + $0xb0] sm:$0xff]
      %v3623 = vld [vmem:[%s3599 + $0xb8] sm:$0xff]
      %v3624 = vld [vmem:[%s3599 + $0xc0] sm:$0xff]
      %v3625 = vld [vmem:[%s3599 + $0xc8] sm:$0xff]
      %v3626 = vld [vmem:[%s3599 + $0xd0] sm:$0xff]
      %v3627 = vld [vmem:[%s3599 + $0xd8] sm:$0xff]
      %v3628 = vld [vmem:[%s3599 + $0xe0] sm:$0xff]
      %v3629 = vld [vmem:[%s3599 + $0xe8] sm:$0xff]
      %v3630 = vld [vmem:[%s3599 + $0xf0] sm:$0xff]
      %v3631 = vld [vmem:[%s3599 + $0xf8] sm:$0xff]
      %v3632 = vld [vmem:[#allocation3] sm:$0xff]
      %v3633 = vld [vmem:[#allocation3 + $0x8] sm:$0xff]
      %v3634 = vld [vmem:[#allocation3 + $0x10] sm:$0xff]
      %v3635 = vld [vmem:[#allocation3 + $0x18] sm:$0xff]
      %v3636 = vld [vmem:[#allocation3 + $0x20] sm:$0xff]
      %v3637 = vld [vmem:[#allocation3 + $0x28] sm:$0xff]
      %v3638 = vld [vmem:[#allocation3 + $0x30] sm:$0xff]
      %v3639 = vld [vmem:[#allocation3 + $0x38] sm:$0xff]
      %v3640 = vld [vmem:[#allocation3 + $0x40] sm:$0xff]
      %v3641 = vld [vmem:[#allocation3 + $0x48] sm:$0xff]
      %v3642 = vld [vmem:[#allocation3 + $0x50] sm:$0xff]
      %v3643 = vld [vmem:[#allocation3 + $0x58] sm:$0xff]
      %v3644 = vld [vmem:[#allocation3 + $0x60] sm:$0xff]
      %v3645 = vld [vmem:[#allocation3 + $0x68] sm:$0xff]
      %v3646 = vld [vmem:[#allocation3 + $0x70] sm:$0xff]
      %v3647 = vld [vmem:[#allocation3 + $0x78] sm:$0xff]
      %v3648 = vld [vmem:[#allocation3 + $0x80] sm:$0xff]
      %v3649 = vld [vmem:[#allocation3 + $0x88] sm:$0xff]
      %v3650 = vld [vmem:[#allocation3 + $0x90] sm:$0xff]
      %v3651 = vld [vmem:[#allocation3 + $0x98] sm:$0xff]
      %v3652 = vld [vmem:[#allocation3 + $0xa0] sm:$0xff]
      %v3653 = vld [vmem:[#allocation3 + $0xa8] sm:$0xff]
      %v3654 = vld [vmem:[#allocation3 + $0xb0] sm:$0xff]
      %v3655 = vld [vmem:[#allocation3 + $0xb8] sm:$0xff]
      %v3656 = vld [vmem:[#allocation3 + $0xc0] sm:$0xff]
      %v3657 = vld [vmem:[#allocation3 + $0xc8] sm:$0xff]
      %v3658 = vld [vmem:[#allocation3 + $0xd0] sm:$0xff]
      %v3659 = vld [vmem:[#allocation3 + $0xd8] sm:$0xff]
      %v3660 = vld [vmem:[#allocation3 + $0xe0] sm:$0xff]
      %v3661 = vld [vmem:[#allocation3 + $0xe8] sm:$0xff]
      %v3662 = vld [vmem:[#allocation3 + $0xf0] sm:$0xff]
      %v3663 = vld [vmem:[#allocation3 + $0xf8] sm:$0xff]
      %s3664 = scalar_lea.vmem %s3, 88
      %v3665 = vld [vmem:[%s3664] sm:$0xf]
      %v3666 = vld [vmem:[%s3664 + $0x4] sm:$0xf]
      %v3667 = vld [vmem:[%s3664 + $0x8] sm:$0xf]
      %v3668 = vld [vmem:[%s3664 + $0xc] sm:$0xf]
      %v3669 = vld [vmem:[%s3664 + $0x10] sm:$0xf]
      %v3670 = vld [vmem:[%s3664 + $0x14] sm:$0xf]
      %v3671 = vld [vmem:[%s3664 + $0x18] sm:$0xf]
      %v3672 = vld [vmem:[%s3664 + $0x1c] sm:$0xf]
      %v3673 = vld [vmem:[%s3664 + $0x20] sm:$0xf]
      %v3674 = vld [vmem:[%s3664 + $0x24] sm:$0xf]
      %v3675 = vld [vmem:[%s3664 + $0x28] sm:$0xf]
      %v3676 = vld [vmem:[%s3664 + $0x2c] sm:$0xf]
      %v3677 = vld [vmem:[%s3664 + $0x30] sm:$0xf]
      %v3678 = vld [vmem:[%s3664 + $0x34] sm:$0xf]
      %v3679 = vld [vmem:[%s3664 + $0x38] sm:$0xf]
      %v3680 = vld [vmem:[%s3664 + $0x3c] sm:$0xf]
      %v3681 = vld [vmem:[%s3664 + $0x40] sm:$0xf]
      %v3682 = vld [vmem:[%s3664 + $0x44] sm:$0xf]
      %v3683 = vld [vmem:[%s3664 + $0x48] sm:$0xf]
      %v3684 = vld [vmem:[%s3664 + $0x4c] sm:$0xf]
      %v3685 = vld [vmem:[%s3664 + $0x50] sm:$0xf]
      %v3686 = vld [vmem:[%s3664 + $0x54] sm:$0xf]
      %v3719 = vunpack.c.l.b16 %v3600
      %v3720 = vunpack.c.h.b16 %v3600
      %v3721 = vunpack.c.l.b16 %v3601
      %v3722 = vunpack.c.h.b16 %v3601
      %v3723 = vunpack.c.l.b16 %v3602
      %v3724 = vunpack.c.h.b16 %v3602
      %v3725 = vunpack.c.l.b16 %v3603
      %v3726 = vunpack.c.h.b16 %v3603
      %v3727 = vunpack.c.l.b16 %v3604
      %v3728 = vunpack.c.h.b16 %v3604
      %v3729 = vunpack.c.l.b16 %v3605
      %v3730 = vunpack.c.h.b16 %v3605
      %v3731 = vunpack.c.l.b16 %v3606
      %v3732 = vunpack.c.h.b16 %v3606
      %v3733 = vunpack.c.l.b16 %v3607
      %v3734 = vunpack.c.h.b16 %v3607
      %v3735 = vunpack.c.l.b16 %v3608
      %v3736 = vunpack.c.h.b16 %v3608
      %v3737 = vunpack.c.l.b16 %v3609
      %v3738 = vunpack.c.h.b16 %v3609
      %v3739 = vunpack.c.l.b16 %v3610
      %v3740 = vunpack.c.h.b16 %v3610
      %v3741 = vunpack.c.l.b16 %v3611
      %v3742 = vunpack.c.h.b16 %v3611
      %v3743 = vunpack.c.l.b16 %v3612
      %v3744 = vunpack.c.h.b16 %v3612
      %v3745 = vunpack.c.l.b16 %v3613
      %v3746 = vunpack.c.h.b16 %v3613
      %v3747 = vunpack.c.l.b16 %v3614
      %v3748 = vunpack.c.h.b16 %v3614
      %v3749 = vunpack.c.l.b16 %v3615
      %v3750 = vunpack.c.h.b16 %v3615
      %v3751 = vunpack.c.l.b16 %v3616
      %v3752 = vunpack.c.h.b16 %v3616
      %v3753 = vunpack.c.l.b16 %v3617
      %v3754 = vunpack.c.h.b16 %v3617
      %v3755 = vunpack.c.l.b16 %v3618
      %v3756 = vunpack.c.h.b16 %v3618
      %v3757 = vunpack.c.l.b16 %v3619
      %v3758 = vunpack.c.h.b16 %v3619
      %v3759 = vunpack.c.l.b16 %v3620
      %v3760 = vunpack.c.h.b16 %v3620
      %v3761 = vunpack.c.l.b16 %v3621
      %v3762 = vunpack.c.h.b16 %v3621
      %v3763 = vunpack.c.l.b16 %v3622
      %v3764 = vunpack.c.h.b16 %v3622
      %v3765 = vunpack.c.l.b16 %v3623
      %v3766 = vunpack.c.h.b16 %v3623
      %v3767 = vunpack.c.l.b16 %v3624
      %v3768 = vunpack.c.h.b16 %v3624
      %v3769 = vunpack.c.l.b16 %v3625
      %v3770 = vunpack.c.h.b16 %v3625
      %v3771 = vunpack.c.l.b16 %v3626
      %v3772 = vunpack.c.h.b16 %v3626
      %v3773 = vunpack.c.l.b16 %v3627
      %v3774 = vunpack.c.h.b16 %v3627
      %v3775 = vunpack.c.l.b16 %v3628
      %v3776 = vunpack.c.h.b16 %v3628
      %v3777 = vunpack.c.l.b16 %v3629
      %v3778 = vunpack.c.h.b16 %v3629
      %v3779 = vunpack.c.l.b16 %v3630
      %v3780 = vunpack.c.h.b16 %v3630
      %v3781 = vunpack.c.l.b16 %v3631
      %v3782 = vunpack.c.h.b16 %v3631
      %v3783 = vpack.c.b16 %v3721, %v3719
      %v3784 = vpack.c.b16 %v3722, %v3720
      %v3785 = vpack.c.b16 %v3725, %v3723
      %v3786 = vpack.c.b16 %v3726, %v3724
      %v3787 = vpack.c.b16 %v3729, %v3727
      %v3788 = vpack.c.b16 %v3730, %v3728
      %v3789 = vpack.c.b16 %v3733, %v3731
      %v3790 = vpack.c.b16 %v3734, %v3732
      %v3791 = vpack.c.b16 %v3737, %v3735
      %v3792 = vpack.c.b16 %v3738, %v3736
      %v3793 = vpack.c.b16 %v3741, %v3739
      %v3794 = vpack.c.b16 %v3742, %v3740
      %v3795 = vpack.c.b16 %v3745, %v3743
      %v3796 = vpack.c.b16 %v3746, %v3744
      %v3797 = vpack.c.b16 %v3749, %v3747
      %v3798 = vpack.c.b16 %v3750, %v3748
      %v3799 = vpack.c.b16 %v3753, %v3751
      %v3800 = vpack.c.b16 %v3754, %v3752
      %v3801 = vpack.c.b16 %v3757, %v3755
      %v3802 = vpack.c.b16 %v3758, %v3756
      %v3803 = vpack.c.b16 %v3761, %v3759
      %v3804 = vpack.c.b16 %v3762, %v3760
      %v3805 = vpack.c.b16 %v3765, %v3763
      %v3806 = vpack.c.b16 %v3766, %v3764
      %v3807 = vpack.c.b16 %v3769, %v3767
      %v3808 = vpack.c.b16 %v3770, %v3768
      %v3809 = vpack.c.b16 %v3773, %v3771
      %v3810 = vpack.c.b16 %v3774, %v3772
      %v3811 = vpack.c.b16 %v3777, %v3775
      %v3812 = vpack.c.b16 %v3778, %v3776
      %v3813 = vpack.c.b16 %v3781, %v3779
      %v3814 = vpack.c.b16 %v3782, %v3780
      %v3853 = vunpack.c.l.b16 %v3665
      %v3854 = vunpack.c.l.b16 %v3666
      %v3855 = vunpack.c.l.b16 %v3667
      %v3856 = vunpack.c.l.b16 %v3668
      %v3857 = vunpack.c.l.b16 %v3669
      %v3858 = vunpack.c.l.b16 %v3670
      %v3859 = vunpack.c.l.b16 %v3671
      %v3860 = vunpack.c.l.b16 %v3672
      %v3861 = vunpack.c.l.b16 %v3673
      %v3862 = vunpack.c.l.b16 %v3674
      %v3863 = vunpack.c.l.b16 %v3675
      %v3864 = vunpack.c.l.b16 %v3676
      %v3865 = vunpack.c.l.b16 %v3677
      %v3866 = vunpack.c.l.b16 %v3678
      %v3867 = vunpack.c.l.b16 %v3679
      %v3868 = vunpack.c.l.b16 %v3680
      %v3869 = vunpack.c.l.b16 %v3681
      %v3870 = vunpack.c.l.b16 %v3682
      %v3871 = vunpack.c.l.b16 %v3683
      %v3872 = vunpack.c.l.b16 %v3684
      %v3873 = vunpack.c.l.b16 %v3685
      %v3874 = vunpack.c.l.b16 %v3686
      %v3875 = vpack.c.b16 %v3854, %v3853
      %v3876 = vpack.c.b16 %v3856, %v3855
      %v3877 = vpack.c.b16 %v3858, %v3857
      %v3878 = vpack.c.b16 %v3860, %v3859
      %v3879 = vpack.c.b16 %v3862, %v3861
      %v3880 = vpack.c.b16 %v3864, %v3863
      %v3881 = vpack.c.b16 %v3866, %v3865
      %v3882 = vpack.c.b16 %v3868, %v3867
      %v3883 = vpack.c.b16 %v3870, %v3869
      %v3884 = vpack.c.b16 %v3872, %v3871
      %v3885 = vpack.c.b16 %v3874, %v3873
      %v3898 = vsel %vm3308, %v3784, 0
      %v3901 = vsel %vm3308, %v3786, 0
      %v3904 = vsel %vm3308, %v3788, 0
      %v3907 = vsel %vm3308, %v3790, 0
      %v3910 = vsel %vm3308, %v3792, 0
      %v3913 = vsel %vm3308, %v3794, 0
      %v3916 = vsel %vm3308, %v3796, 0
      %v3919 = vsel %vm3308, %v3798, 0
      %v3922 = vsel %vm3308, %v3800, 0
      %v3925 = vsel %vm3308, %v3802, 0
      %v3928 = vsel %vm3308, %v3804, 0
      %v3931 = vsel %vm3308, %v3806, 0
      %v3934 = vsel %vm3308, %v3808, 0
      %v3937 = vsel %vm3308, %v3810, 0
      %v3940 = vsel %vm3308, %v3812, 0
      %v3943 = vsel %vm3308, %v3814, 0
      %3945 = vmatpush.bf16.msra.mxu0 %v3882
      %3946 = vmatpush.bf16.msra.mxu0 %v3881
      %3947 = vmatpush.bf16.msra.mxu0 %v3880
      %3948 = vmatpush.bf16.msra.mxu0 %v3879
      %3949 = vmatpush.bf16.msra.mxu0 %v3878
      %3950 = vmatpush.bf16.msra.mxu0 %v3877
      %3951 = vmatpush.bf16.msra.mxu0 %v3876
      %3952 = vmatpush.bf16.msra.mxu0 %v3875
      %3953 = vmatmul.bf16.gmra.mxu0 %v3783
      %v3954 = vpop.f32.mrf.mxu0
      %v3955 = vadd.f32 0.0, %v3954
      %v3956 = vpop.f32.mrf.mxu0
      %v3957 = vadd.f32 0.0, %v3956
      %3958 = vmatmul.bf16.gmra.mxu0 %v3785
      %v3959 = vpop.f32.mrf.mxu0
      %v3960 = vadd.f32 0.0, %v3959
      %v3961 = vpop.f32.mrf.mxu0
      %v3962 = vadd.f32 0.0, %v3961
      %3963 = vmatmul.bf16.gmra.mxu0 %v3787
      %v3964 = vpop.f32.mrf.mxu0
      %v3965 = vadd.f32 0.0, %v3964
      %v3966 = vpop.f32.mrf.mxu0
      %v3967 = vadd.f32 0.0, %v3966
      %3968 = vmatmul.bf16.gmra.mxu0 %v3789
      %v3969 = vpop.f32.mrf.mxu0
      %v3970 = vadd.f32 0.0, %v3969
      %v3971 = vpop.f32.mrf.mxu0
      %v3972 = vadd.f32 0.0, %v3971
      %3973 = vmatmul.bf16.gmra.mxu0 %v3791
      %v3974 = vpop.f32.mrf.mxu0
      %v3975 = vadd.f32 0.0, %v3974
      %v3976 = vpop.f32.mrf.mxu0
      %v3977 = vadd.f32 0.0, %v3976
      %3978 = vmatmul.bf16.gmra.mxu0 %v3793
      %v3979 = vpop.f32.mrf.mxu0
      %v3980 = vadd.f32 0.0, %v3979
      %v3981 = vpop.f32.mrf.mxu0
      %v3982 = vadd.f32 0.0, %v3981
      %3983 = vmatmul.bf16.gmra.mxu0 %v3795
      %v3984 = vpop.f32.mrf.mxu0
      %v3985 = vadd.f32 0.0, %v3984
      %v3986 = vpop.f32.mrf.mxu0
      %v3987 = vadd.f32 0.0, %v3986
      %3988 = vmatmul.bf16.gmra.mxu0 %v3797
      %v3989 = vpop.f32.mrf.mxu0
      %v3990 = vadd.f32 0.0, %v3989
      %v3991 = vpop.f32.mrf.mxu0
      %v3992 = vadd.f32 0.0, %v3991
      %3993 = vmatmul.bf16.gmra.mxu0 %v3799
      %v3994 = vpop.f32.mrf.mxu0
      %v3995 = vadd.f32 0.0, %v3994
      %v3996 = vpop.f32.mrf.mxu0
      %v3997 = vadd.f32 0.0, %v3996
      %3998 = vmatmul.bf16.gmra.mxu0 %v3801
      %v3999 = vpop.f32.mrf.mxu0
      %v4000 = vadd.f32 0.0, %v3999
      %v4001 = vpop.f32.mrf.mxu0
      %v4002 = vadd.f32 0.0, %v4001
      %4003 = vmatmul.bf16.gmra.mxu0 %v3803
      %v4004 = vpop.f32.mrf.mxu0
      %v4005 = vadd.f32 0.0, %v4004
      %v4006 = vpop.f32.mrf.mxu0
      %v4007 = vadd.f32 0.0, %v4006
      %4008 = vmatmul.bf16.gmra.mxu0 %v3805
      %v4009 = vpop.f32.mrf.mxu0
      %v4010 = vadd.f32 0.0, %v4009
      %v4011 = vpop.f32.mrf.mxu0
      %v4012 = vadd.f32 0.0, %v4011
      %4013 = vmatmul.bf16.gmra.mxu0 %v3807
      %v4014 = vpop.f32.mrf.mxu0
      %v4015 = vadd.f32 0.0, %v4014
      %v4016 = vpop.f32.mrf.mxu0
      %v4017 = vadd.f32 0.0, %v4016
      %4018 = vmatmul.bf16.gmra.mxu0 %v3809
      %v4019 = vpop.f32.mrf.mxu0
      %v4020 = vadd.f32 0.0, %v4019
      %v4021 = vpop.f32.mrf.mxu0
      %v4022 = vadd.f32 0.0, %v4021
      %4023 = vmatmul.bf16.gmra.mxu0 %v3811
      %v4024 = vpop.f32.mrf.mxu0
      %v4025 = vadd.f32 0.0, %v4024
      %v4026 = vpop.f32.mrf.mxu0
      %v4027 = vadd.f32 0.0, %v4026
      %4028 = vmatmul.bf16.gmra.mxu0 %v3813
      %v4029 = vpop.f32.mrf.mxu0
      %v4030 = vadd.f32 0.0, %v4029
      %v4031 = vpop.f32.mrf.mxu0
      %v4032 = vadd.f32 0.0, %v4031
      %4033 = vdwg.mxu0
      %4034 = vmatpush.bf16.msra.mxu0 0
      %4035 = vmatpush.bf16.msra.mxu0 0
      %4036 = vmatpush.bf16.msra.mxu0 0
      %4037 = vmatpush.bf16.msra.mxu0 0
      %4038 = vmatpush.bf16.msra.mxu0 0
      %4039 = vmatpush.bf16.msra.mxu0 %v3885
      %4040 = vmatpush.bf16.msra.mxu0 %v3884
      %4041 = vmatpush.bf16.msra.mxu0 %v3883
      %4042 = vmatmul.bf16.gmra.mxu0 %v3898
      %v4043 = vpop.f32.mrf.mxu0
      %v4044 = vadd.f32 %v3955, %v4043
      %v4045 = vpop.f32.mrf.mxu0
      %v4046 = vadd.f32 %v3957, %v4045
      %4047 = vmatmul.bf16.gmra.mxu0 %v3901
      %v4048 = vpop.f32.mrf.mxu0
      %v4049 = vadd.f32 %v3960, %v4048
      %v4050 = vpop.f32.mrf.mxu0
      %v4051 = vadd.f32 %v3962, %v4050
      %4052 = vmatmul.bf16.gmra.mxu0 %v3904
      %v4053 = vpop.f32.mrf.mxu0
      %v4054 = vadd.f32 %v3965, %v4053
      %v4055 = vpop.f32.mrf.mxu0
      %v4056 = vadd.f32 %v3967, %v4055
      %4057 = vmatmul.bf16.gmra.mxu0 %v3907
      %v4058 = vpop.f32.mrf.mxu0
      %v4059 = vadd.f32 %v3970, %v4058
      %v4060 = vpop.f32.mrf.mxu0
      %v4061 = vadd.f32 %v3972, %v4060
      %4062 = vmatmul.bf16.gmra.mxu0 %v3910
      %v4063 = vpop.f32.mrf.mxu0
      %v4064 = vadd.f32 %v3975, %v4063
      %v4065 = vpop.f32.mrf.mxu0
      %v4066 = vadd.f32 %v3977, %v4065
      %4067 = vmatmul.bf16.gmra.mxu0 %v3913
      %v4068 = vpop.f32.mrf.mxu0
      %v4069 = vadd.f32 %v3980, %v4068
      %v4070 = vpop.f32.mrf.mxu0
      %v4071 = vadd.f32 %v3982, %v4070
      %4072 = vmatmul.bf16.gmra.mxu0 %v3916
      %v4073 = vpop.f32.mrf.mxu0
      %v4074 = vadd.f32 %v3985, %v4073
      %v4075 = vpop.f32.mrf.mxu0
      %v4076 = vadd.f32 %v3987, %v4075
      %4077 = vmatmul.bf16.gmra.mxu0 %v3919
      %v4078 = vpop.f32.mrf.mxu0
      %v4079 = vadd.f32 %v3990, %v4078
      %v4080 = vpop.f32.mrf.mxu0
      %v4081 = vadd.f32 %v3992, %v4080
      %4082 = vmatmul.bf16.gmra.mxu0 %v3922
      %v4083 = vpop.f32.mrf.mxu0
      %v4084 = vadd.f32 %v3995, %v4083
      %v4085 = vpop.f32.mrf.mxu0
      %v4086 = vadd.f32 %v3997, %v4085
      %4087 = vmatmul.bf16.gmra.mxu0 %v3925
      %v4088 = vpop.f32.mrf.mxu0
      %v4089 = vadd.f32 %v4000, %v4088
      %v4090 = vpop.f32.mrf.mxu0
      %v4091 = vadd.f32 %v4002, %v4090
      %4092 = vmatmul.bf16.gmra.mxu0 %v3928
      %v4093 = vpop.f32.mrf.mxu0
      %v4094 = vadd.f32 %v4005, %v4093
      %v4095 = vpop.f32.mrf.mxu0
      %v4096 = vadd.f32 %v4007, %v4095
      %4097 = vmatmul.bf16.gmra.mxu0 %v3931
      %v4098 = vpop.f32.mrf.mxu0
      %v4099 = vadd.f32 %v4010, %v4098
      %v4100 = vpop.f32.mrf.mxu0
      %v4101 = vadd.f32 %v4012, %v4100
      %4102 = vmatmul.bf16.gmra.mxu0 %v3934
      %v4103 = vpop.f32.mrf.mxu0
      %v4104 = vadd.f32 %v4015, %v4103
      %v4105 = vpop.f32.mrf.mxu0
      %v4106 = vadd.f32 %v4017, %v4105
      %4107 = vmatmul.bf16.gmra.mxu0 %v3937
      %v4108 = vpop.f32.mrf.mxu0
      %v4109 = vadd.f32 %v4020, %v4108
      %v4110 = vpop.f32.mrf.mxu0
      %v4111 = vadd.f32 %v4022, %v4110
      %4112 = vmatmul.bf16.gmra.mxu0 %v3940
      %v4113 = vpop.f32.mrf.mxu0
      %v4114 = vadd.f32 %v4025, %v4113
      %v4115 = vpop.f32.mrf.mxu0
      %v4116 = vadd.f32 %v4027, %v4115
      %4117 = vmatmul.bf16.gmra.mxu0 %v3943
      %v4118 = vpop.f32.mrf.mxu0
      %v4119 = vadd.f32 %v4030, %v4118
      %v4120 = vpop.f32.mrf.mxu0
      %v4121 = vadd.f32 %v4032, %v4120
      %4122 = vdwg.mxu0
      %v4123 = vadd.f32 %v3632, %v4044
      %v4124 = vadd.f32 %v3633, %v4046
      %v4125 = vadd.f32 %v3634, %v4049
      %v4126 = vadd.f32 %v3635, %v4051
      %v4127 = vadd.f32 %v3636, %v4054
      %v4128 = vadd.f32 %v3637, %v4056
      %v4129 = vadd.f32 %v3638, %v4059
      %v4130 = vadd.f32 %v3639, %v4061
      %v4131 = vadd.f32 %v3640, %v4064
      %v4132 = vadd.f32 %v3641, %v4066
      %v4133 = vadd.f32 %v3642, %v4069
      %v4134 = vadd.f32 %v3643, %v4071
      %v4135 = vadd.f32 %v3644, %v4074
      %v4136 = vadd.f32 %v3645, %v4076
      %v4137 = vadd.f32 %v3646, %v4079
      %v4138 = vadd.f32 %v3647, %v4081
      %v4139 = vadd.f32 %v3648, %v4084
      %v4140 = vadd.f32 %v3649, %v4086
      %v4141 = vadd.f32 %v3650, %v4089
      %v4142 = vadd.f32 %v3651, %v4091
      %v4143 = vadd.f32 %v3652, %v4094
      %v4144 = vadd.f32 %v3653, %v4096
      %v4145 = vadd.f32 %v3654, %v4099
      %v4146 = vadd.f32 %v3655, %v4101
      %v4147 = vadd.f32 %v3656, %v4104
      %v4148 = vadd.f32 %v3657, %v4106
      %v4149 = vadd.f32 %v3658, %v4109
      %v4150 = vadd.f32 %v3659, %v4111
      %v4151 = vadd.f32 %v3660, %v4114
      %v4152 = vadd.f32 %v3661, %v4116
      %v4153 = vadd.f32 %v3662, %v4119
      %v4154 = vadd.f32 %v3663, %v4121
      %4155 = vst.msk [vmem:[#allocation3] sm:$0xff] %vm2979, %v4123
      %4156 = vst.msk [vmem:[#allocation3 + $0x8] sm:$0xff] %vm2979, %v4124
      %4157 = vst.msk [vmem:[#allocation3 + $0x10] sm:$0xff] %vm2979, %v4125
      %4158 = vst.msk [vmem:[#allocation3 + $0x18] sm:$0xff] %vm2979, %v4126
      %4159 = vst.msk [vmem:[#allocation3 + $0x20] sm:$0xff] %vm2979, %v4127
      %4160 = vst.msk [vmem:[#allocation3 + $0x28] sm:$0xff] %vm2979, %v4128
      %4161 = vst.msk [vmem:[#allocation3 + $0x30] sm:$0xff] %vm2979, %v4129
      %4162 = vst.msk [vmem:[#allocation3 + $0x38] sm:$0xff] %vm2979, %v4130
      %4163 = vst.msk [vmem:[#allocation3 + $0x40] sm:$0xff] %vm2979, %v4131
      %4164 = vst.msk [vmem:[#allocation3 + $0x48] sm:$0xff] %vm2979, %v4132
      %4165 = vst.msk [vmem:[#allocation3 + $0x50] sm:$0xff] %vm2979, %v4133
      %4166 = vst.msk [vmem:[#allocation3 + $0x58] sm:$0xff] %vm2979, %v4134
      %4167 = vst.msk [vmem:[#allocation3 + $0x60] sm:$0xff] %vm2979, %v4135
      %4168 = vst.msk [vmem:[#allocation3 + $0x68] sm:$0xff] %vm2979, %v4136
      %4169 = vst.msk [vmem:[#allocation3 + $0x70] sm:$0xff] %vm2979, %v4137
      %4170 = vst.msk [vmem:[#allocation3 + $0x78] sm:$0xff] %vm2979, %v4138
      %4171 = vst.msk [vmem:[#allocation3 + $0x80] sm:$0xff] %vm2979, %v4139
      %4172 = vst.msk [vmem:[#allocation3 + $0x88] sm:$0xff] %vm2979, %v4140
      %4173 = vst.msk [vmem:[#allocation3 + $0x90] sm:$0xff] %vm2979, %v4141
      %4174 = vst.msk [vmem:[#allocation3 + $0x98] sm:$0xff] %vm2979, %v4142
      %4175 = vst.msk [vmem:[#allocation3 + $0xa0] sm:$0xff] %vm2979, %v4143
      %4176 = vst.msk [vmem:[#allocation3 + $0xa8] sm:$0xff] %vm2979, %v4144
      %4177 = vst.msk [vmem:[#allocation3 + $0xb0] sm:$0xff] %vm2979, %v4145
      %4178 = vst.msk [vmem:[#allocation3 + $0xb8] sm:$0xff] %vm2979, %v4146
      %4179 = vst.msk [vmem:[#allocation3 + $0xc0] sm:$0xff] %vm2979, %v4147
      %4180 = vst.msk [vmem:[#allocation3 + $0xc8] sm:$0xff] %vm2979, %v4148
      %4181 = vst.msk [vmem:[#allocation3 + $0xd0] sm:$0xff] %vm2979, %v4149
      %4182 = vst.msk [vmem:[#allocation3 + $0xd8] sm:$0xff] %vm2979, %v4150
      %4183 = vst.msk [vmem:[#allocation3 + $0xe0] sm:$0xff] %vm2979, %v4151
      %4184 = vst.msk [vmem:[#allocation3 + $0xe8] sm:$0xff] %vm2979, %v4152
      %4185 = vst.msk [vmem:[#allocation3 + $0xf0] sm:$0xff] %vm2979, %v4153
      %4186 = vst.msk [vmem:[#allocation3 + $0xf8] sm:$0xff] %vm2979, %v4154
      %s4187 = scalar_lea.vmem [#allocation2], 32
      %v4188 = vld [vmem:[%s4187] sm:$0xff]
      %v4189 = vld [vmem:[%s4187 + $0x8] sm:$0xff]
      %v4190 = vld [vmem:[%s4187 + $0x10] sm:$0xff]
      %v4191 = vld [vmem:[%s4187 + $0x18] sm:$0xff]
      %v4192 = vld [vmem:[%s4187 + $0x20] sm:$0xff]
      %v4193 = vld [vmem:[%s4187 + $0x28] sm:$0xff]
      %v4194 = vld [vmem:[%s4187 + $0x30] sm:$0xff]
      %v4195 = vld [vmem:[%s4187 + $0x38] sm:$0xff]
      %v4196 = vld [vmem:[%s4187 + $0x40] sm:$0xff]
      %v4197 = vld [vmem:[%s4187 + $0x48] sm:$0xff]
      %v4198 = vld [vmem:[%s4187 + $0x50] sm:$0xff]
      %v4199 = vld [vmem:[%s4187 + $0x58] sm:$0xff]
      %v4200 = vld [vmem:[%s4187 + $0x60] sm:$0xff]
      %v4201 = vld [vmem:[%s4187 + $0x68] sm:$0xff]
      %v4202 = vld [vmem:[%s4187 + $0x70] sm:$0xff]
      %v4203 = vld [vmem:[%s4187 + $0x78] sm:$0xff]
      %v4204 = vld [vmem:[%s4187 + $0x80] sm:$0xff]
      %v4205 = vld [vmem:[%s4187 + $0x88] sm:$0xff]
      %v4206 = vld [vmem:[%s4187 + $0x90] sm:$0xff]
      %v4207 = vld [vmem:[%s4187 + $0x98] sm:$0xff]
      %v4208 = vld [vmem:[%s4187 + $0xa0] sm:$0xff]
      %v4209 = vld [vmem:[%s4187 + $0xa8] sm:$0xff]
      %v4210 = vld [vmem:[%s4187 + $0xb0] sm:$0xff]
      %v4211 = vld [vmem:[%s4187 + $0xb8] sm:$0xff]
      %v4212 = vld [vmem:[%s4187 + $0xc0] sm:$0xff]
      %v4213 = vld [vmem:[%s4187 + $0xc8] sm:$0xff]
      %v4214 = vld [vmem:[%s4187 + $0xd0] sm:$0xff]
      %v4215 = vld [vmem:[%s4187 + $0xd8] sm:$0xff]
      %v4216 = vld [vmem:[%s4187 + $0xe0] sm:$0xff]
      %v4217 = vld [vmem:[%s4187 + $0xe8] sm:$0xff]
      %v4218 = vld [vmem:[%s4187 + $0xf0] sm:$0xff]
      %v4219 = vld [vmem:[%s4187 + $0xf8] sm:$0xff]
      %v4220 = vld [vmem:[#allocation3] sm:$0xff]
      %v4221 = vld [vmem:[#allocation3 + $0x8] sm:$0xff]
      %v4222 = vld [vmem:[#allocation3 + $0x10] sm:$0xff]
      %v4223 = vld [vmem:[#allocation3 + $0x18] sm:$0xff]
      %v4224 = vld [vmem:[#allocation3 + $0x20] sm:$0xff]
      %v4225 = vld [vmem:[#allocation3 + $0x28] sm:$0xff]
      %v4226 = vld [vmem:[#allocation3 + $0x30] sm:$0xff]
      %v4227 = vld [vmem:[#allocation3 + $0x38] sm:$0xff]
      %v4228 = vld [vmem:[#allocation3 + $0x40] sm:$0xff]
      %v4229 = vld [vmem:[#allocation3 + $0x48] sm:$0xff]
      %v4230 = vld [vmem:[#allocation3 + $0x50] sm:$0xff]
      %v4231 = vld [vmem:[#allocation3 + $0x58] sm:$0xff]
      %v4232 = vld [vmem:[#allocation3 + $0x60] sm:$0xff]
      %v4233 = vld [vmem:[#allocation3 + $0x68] sm:$0xff]
      %v4234 = vld [vmem:[#allocation3 + $0x70] sm:$0xff]
      %v4235 = vld [vmem:[#allocation3 + $0x78] sm:$0xff]
      %v4236 = vld [vmem:[#allocation3 + $0x80] sm:$0xff]
      %v4237 = vld [vmem:[#allocation3 + $0x88] sm:$0xff]
      %v4238 = vld [vmem:[#allocation3 + $0x90] sm:$0xff]
      %v4239 = vld [vmem:[#allocation3 + $0x98] sm:$0xff]
      %v4240 = vld [vmem:[#allocation3 + $0xa0] sm:$0xff]
      %v4241 = vld [vmem:[#allocation3 + $0xa8] sm:$0xff]
      %v4242 = vld [vmem:[#allocation3 + $0xb0] sm:$0xff]
      %v4243 = vld [vmem:[#allocation3 + $0xb8] sm:$0xff]
      %v4244 = vld [vmem:[#allocation3 + $0xc0] sm:$0xff]
      %v4245 = vld [vmem:[#allocation3 + $0xc8] sm:$0xff]
      %v4246 = vld [vmem:[#allocation3 + $0xd0] sm:$0xff]
      %v4247 = vld [vmem:[#allocation3 + $0xd8] sm:$0xff]
      %v4248 = vld [vmem:[#allocation3 + $0xe0] sm:$0xff]
      %v4249 = vld [vmem:[#allocation3 + $0xe8] sm:$0xff]
      %v4250 = vld [vmem:[#allocation3 + $0xf0] sm:$0xff]
      %v4251 = vld [vmem:[#allocation3 + $0xf8] sm:$0xff]
      %s4252 = scalar_lea.vmem %s3, 176
      %v4253 = vld [vmem:[%s4252] sm:$0xf]
      %v4254 = vld [vmem:[%s4252 + $0x4] sm:$0xf]
      %v4255 = vld [vmem:[%s4252 + $0x8] sm:$0xf]
      %v4256 = vld [vmem:[%s4252 + $0xc] sm:$0xf]
      %v4257 = vld [vmem:[%s4252 + $0x10] sm:$0xf]
      %v4258 = vld [vmem:[%s4252 + $0x14] sm:$0xf]
      %v4259 = vld [vmem:[%s4252 + $0x18] sm:$0xf]
      %v4260 = vld [vmem:[%s4252 + $0x1c] sm:$0xf]
      %v4261 = vld [vmem:[%s4252 + $0x20] sm:$0xf]
      %v4262 = vld [vmem:[%s4252 + $0x24] sm:$0xf]
      %v4263 = vld [vmem:[%s4252 + $0x28] sm:$0xf]
      %v4264 = vld [vmem:[%s4252 + $0x2c] sm:$0xf]
      %v4265 = vld [vmem:[%s4252 + $0x30] sm:$0xf]
      %v4266 = vld [vmem:[%s4252 + $0x34] sm:$0xf]
      %v4267 = vld [vmem:[%s4252 + $0x38] sm:$0xf]
      %v4268 = vld [vmem:[%s4252 + $0x3c] sm:$0xf]
      %v4269 = vld [vmem:[%s4252 + $0x40] sm:$0xf]
      %v4270 = vld [vmem:[%s4252 + $0x44] sm:$0xf]
      %v4271 = vld [vmem:[%s4252 + $0x48] sm:$0xf]
      %v4272 = vld [vmem:[%s4252 + $0x4c] sm:$0xf]
      %v4273 = vld [vmem:[%s4252 + $0x50] sm:$0xf]
      %v4274 = vld [vmem:[%s4252 + $0x54] sm:$0xf]
      %v4307 = vunpack.c.l.b16 %v4188
      %v4308 = vunpack.c.h.b16 %v4188
      %v4309 = vunpack.c.l.b16 %v4189
      %v4310 = vunpack.c.h.b16 %v4189
      %v4311 = vunpack.c.l.b16 %v4190
      %v4312 = vunpack.c.h.b16 %v4190
      %v4313 = vunpack.c.l.b16 %v4191
      %v4314 = vunpack.c.h.b16 %v4191
      %v4315 = vunpack.c.l.b16 %v4192
      %v4316 = vunpack.c.h.b16 %v4192
      %v4317 = vunpack.c.l.b16 %v4193
      %v4318 = vunpack.c.h.b16 %v4193
      %v4319 = vunpack.c.l.b16 %v4194
      %v4320 = vunpack.c.h.b16 %v4194
      %v4321 = vunpack.c.l.b16 %v4195
      %v4322 = vunpack.c.h.b16 %v4195
      %v4323 = vunpack.c.l.b16 %v4196
      %v4324 = vunpack.c.h.b16 %v4196
      %v4325 = vunpack.c.l.b16 %v4197
      %v4326 = vunpack.c.h.b16 %v4197
      %v4327 = vunpack.c.l.b16 %v4198
      %v4328 = vunpack.c.h.b16 %v4198
      %v4329 = vunpack.c.l.b16 %v4199
      %v4330 = vunpack.c.h.b16 %v4199
      %v4331 = vunpack.c.l.b16 %v4200
      %v4332 = vunpack.c.h.b16 %v4200
      %v4333 = vunpack.c.l.b16 %v4201
      %v4334 = vunpack.c.h.b16 %v4201
      %v4335 = vunpack.c.l.b16 %v4202
      %v4336 = vunpack.c.h.b16 %v4202
      %v4337 = vunpack.c.l.b16 %v4203
      %v4338 = vunpack.c.h.b16 %v4203
      %v4339 = vunpack.c.l.b16 %v4204
      %v4340 = vunpack.c.h.b16 %v4204
      %v4341 = vunpack.c.l.b16 %v4205
      %v4342 = vunpack.c.h.b16 %v4205
      %v4343 = vunpack.c.l.b16 %v4206
      %v4344 = vunpack.c.h.b16 %v4206
      %v4345 = vunpack.c.l.b16 %v4207
      %v4346 = vunpack.c.h.b16 %v4207
      %v4347 = vunpack.c.l.b16 %v4208
      %v4348 = vunpack.c.h.b16 %v4208
      %v4349 = vunpack.c.l.b16 %v4209
      %v4350 = vunpack.c.h.b16 %v4209
      %v4351 = vunpack.c.l.b16 %v4210
      %v4352 = vunpack.c.h.b16 %v4210
      %v4353 = vunpack.c.l.b16 %v4211
      %v4354 = vunpack.c.h.b16 %v4211
      %v4355 = vunpack.c.l.b16 %v4212
      %v4356 = vunpack.c.h.b16 %v4212
      %v4357 = vunpack.c.l.b16 %v4213
      %v4358 = vunpack.c.h.b16 %v4213
      %v4359 = vunpack.c.l.b16 %v4214
      %v4360 = vunpack.c.h.b16 %v4214
      %v4361 = vunpack.c.l.b16 %v4215
      %v4362 = vunpack.c.h.b16 %v4215
      %v4363 = vunpack.c.l.b16 %v4216
      %v4364 = vunpack.c.h.b16 %v4216
      %v4365 = vunpack.c.l.b16 %v4217
      %v4366 = vunpack.c.h.b16 %v4217
      %v4367 = vunpack.c.l.b16 %v4218
      %v4368 = vunpack.c.h.b16 %v4218
      %v4369 = vunpack.c.l.b16 %v4219
      %v4370 = vunpack.c.h.b16 %v4219
      %v4371 = vpack.c.b16 %v4309, %v4307
      %v4372 = vpack.c.b16 %v4310, %v4308
      %v4373 = vpack.c.b16 %v4313, %v4311
      %v4374 = vpack.c.b16 %v4314, %v4312
      %v4375 = vpack.c.b16 %v4317, %v4315
      %v4376 = vpack.c.b16 %v4318, %v4316
      %v4377 = vpack.c.b16 %v4321, %v4319
      %v4378 = vpack.c.b16 %v4322, %v4320
      %v4379 = vpack.c.b16 %v4325, %v4323
      %v4380 = vpack.c.b16 %v4326, %v4324
      %v4381 = vpack.c.b16 %v4329, %v4327
      %v4382 = vpack.c.b16 %v4330, %v4328
      %v4383 = vpack.c.b16 %v4333, %v4331
      %v4384 = vpack.c.b16 %v4334, %v4332
      %v4385 = vpack.c.b16 %v4337, %v4335
      %v4386 = vpack.c.b16 %v4338, %v4336
      %v4387 = vpack.c.b16 %v4341, %v4339
      %v4388 = vpack.c.b16 %v4342, %v4340
      %v4389 = vpack.c.b16 %v4345, %v4343
      %v4390 = vpack.c.b16 %v4346, %v4344
      %v4391 = vpack.c.b16 %v4349, %v4347
      %v4392 = vpack.c.b16 %v4350, %v4348
      %v4393 = vpack.c.b16 %v4353, %v4351
      %v4394 = vpack.c.b16 %v4354, %v4352
      %v4395 = vpack.c.b16 %v4357, %v4355
      %v4396 = vpack.c.b16 %v4358, %v4356
      %v4397 = vpack.c.b16 %v4361, %v4359
      %v4398 = vpack.c.b16 %v4362, %v4360
      %v4399 = vpack.c.b16 %v4365, %v4363
      %v4400 = vpack.c.b16 %v4366, %v4364
      %v4401 = vpack.c.b16 %v4369, %v4367
      %v4402 = vpack.c.b16 %v4370, %v4368
      %v4441 = vunpack.c.l.b16 %v4253
      %v4442 = vunpack.c.l.b16 %v4254
      %v4443 = vunpack.c.l.b16 %v4255
      %v4444 = vunpack.c.l.b16 %v4256
      %v4445 = vunpack.c.l.b16 %v4257
      %v4446 = vunpack.c.l.b16 %v4258
      %v4447 = vunpack.c.l.b16 %v4259
      %v4448 = vunpack.c.l.b16 %v4260
      %v4449 = vunpack.c.l.b16 %v4261
      %v4450 = vunpack.c.l.b16 %v4262
      %v4451 = vunpack.c.l.b16 %v4263
      %v4452 = vunpack.c.l.b16 %v4264
      %v4453 = vunpack.c.l.b16 %v4265
      %v4454 = vunpack.c.l.b16 %v4266
      %v4455 = vunpack.c.l.b16 %v4267
      %v4456 = vunpack.c.l.b16 %v4268
      %v4457 = vunpack.c.l.b16 %v4269
      %v4458 = vunpack.c.l.b16 %v4270
      %v4459 = vunpack.c.l.b16 %v4271
      %v4460 = vunpack.c.l.b16 %v4272
      %v4461 = vunpack.c.l.b16 %v4273
      %v4462 = vunpack.c.l.b16 %v4274
      %v4463 = vpack.c.b16 %v4442, %v4441
      %v4464 = vpack.c.b16 %v4444, %v4443
      %v4465 = vpack.c.b16 %v4446, %v4445
      %v4466 = vpack.c.b16 %v4448, %v4447
      %v4467 = vpack.c.b16 %v4450, %v4449
      %v4468 = vpack.c.b16 %v4452, %v4451
      %v4469 = vpack.c.b16 %v4454, %v4453
      %v4470 = vpack.c.b16 %v4456, %v4455
      %v4471 = vpack.c.b16 %v4458, %v4457
      %v4472 = vpack.c.b16 %v4460, %v4459
      %v4473 = vpack.c.b16 %v4462, %v4461
      %v4486 = vsel %vm3308, %v4372, 0
      %v4489 = vsel %vm3308, %v4374, 0
      %v4492 = vsel %vm3308, %v4376, 0
      %v4495 = vsel %vm3308, %v4378, 0
      %v4498 = vsel %vm3308, %v4380, 0
      %v4501 = vsel %vm3308, %v4382, 0
      %v4504 = vsel %vm3308, %v4384, 0
      %v4507 = vsel %vm3308, %v4386, 0
      %v4510 = vsel %vm3308, %v4388, 0
      %v4513 = vsel %vm3308, %v4390, 0
      %v4516 = vsel %vm3308, %v4392, 0
      %v4519 = vsel %vm3308, %v4394, 0
      %v4522 = vsel %vm3308, %v4396, 0
      %v4525 = vsel %vm3308, %v4398, 0
      %v4528 = vsel %vm3308, %v4400, 0
      %v4531 = vsel %vm3308, %v4402, 0
      %4533 = vmatpush.bf16.msra.mxu0 %v4470
      %4534 = vmatpush.bf16.msra.mxu0 %v4469
      %4535 = vmatpush.bf16.msra.mxu0 %v4468
      %4536 = vmatpush.bf16.msra.mxu0 %v4467
      %4537 = vmatpush.bf16.msra.mxu0 %v4466
      %4538 = vmatpush.bf16.msra.mxu0 %v4465
      %4539 = vmatpush.bf16.msra.mxu0 %v4464
      %4540 = vmatpush.bf16.msra.mxu0 %v4463
      %4541 = vmatmul.bf16.gmra.mxu0 %v4371
      %v4542 = vpop.f32.mrf.mxu0
      %v4543 = vadd.f32 0.0, %v4542
      %v4544 = vpop.f32.mrf.mxu0
      %v4545 = vadd.f32 0.0, %v4544
      %4546 = vmatmul.bf16.gmra.mxu0 %v4373
      %v4547 = vpop.f32.mrf.mxu0
      %v4548 = vadd.f32 0.0, %v4547
      %v4549 = vpop.f32.mrf.mxu0
      %v4550 = vadd.f32 0.0, %v4549
      %4551 = vmatmul.bf16.gmra.mxu0 %v4375
      %v4552 = vpop.f32.mrf.mxu0
      %v4553 = vadd.f32 0.0, %v4552
      %v4554 = vpop.f32.mrf.mxu0
      %v4555 = vadd.f32 0.0, %v4554
      %4556 = vmatmul.bf16.gmra.mxu0 %v4377
      %v4557 = vpop.f32.mrf.mxu0
      %v4558 = vadd.f32 0.0, %v4557
      %v4559 = vpop.f32.mrf.mxu0
      %v4560 = vadd.f32 0.0, %v4559
      %4561 = vmatmul.bf16.gmra.mxu0 %v4379
      %v4562 = vpop.f32.mrf.mxu0
      %v4563 = vadd.f32 0.0, %v4562
      %v4564 = vpop.f32.mrf.mxu0
      %v4565 = vadd.f32 0.0, %v4564
      %4566 = vmatmul.bf16.gmra.mxu0 %v4381
      %v4567 = vpop.f32.mrf.mxu0
      %v4568 = vadd.f32 0.0, %v4567
      %v4569 = vpop.f32.mrf.mxu0
      %v4570 = vadd.f32 0.0, %v4569
      %4571 = vmatmul.bf16.gmra.mxu0 %v4383
      %v4572 = vpop.f32.mrf.mxu0
      %v4573 = vadd.f32 0.0, %v4572
      %v4574 = vpop.f32.mrf.mxu0
      %v4575 = vadd.f32 0.0, %v4574
      %4576 = vmatmul.bf16.gmra.mxu0 %v4385
      %v4577 = vpop.f32.mrf.mxu0
      %v4578 = vadd.f32 0.0, %v4577
      %v4579 = vpop.f32.mrf.mxu0
      %v4580 = vadd.f32 0.0, %v4579
      %4581 = vmatmul.bf16.gmra.mxu0 %v4387
      %v4582 = vpop.f32.mrf.mxu0
      %v4583 = vadd.f32 0.0, %v4582
      %v4584 = vpop.f32.mrf.mxu0
      %v4585 = vadd.f32 0.0, %v4584
      %4586 = vmatmul.bf16.gmra.mxu0 %v4389
      %v4587 = vpop.f32.mrf.mxu0
      %v4588 = vadd.f32 0.0, %v4587
      %v4589 = vpop.f32.mrf.mxu0
      %v4590 = vadd.f32 0.0, %v4589
      %4591 = vmatmul.bf16.gmra.mxu0 %v4391
      %v4592 = vpop.f32.mrf.mxu0
      %v4593 = vadd.f32 0.0, %v4592
      %v4594 = vpop.f32.mrf.mxu0
      %v4595 = vadd.f32 0.0, %v4594
      %4596 = vmatmul.bf16.gmra.mxu0 %v4393
      %v4597 = vpop.f32.mrf.mxu0
      %v4598 = vadd.f32 0.0, %v4597
      %v4599 = vpop.f32.mrf.mxu0
      %v4600 = vadd.f32 0.0, %v4599
      %4601 = vmatmul.bf16.gmra.mxu0 %v4395
      %v4602 = vpop.f32.mrf.mxu0
      %v4603 = vadd.f32 0.0, %v4602
      %v4604 = vpop.f32.mrf.mxu0
      %v4605 = vadd.f32 0.0, %v4604
      %4606 = vmatmul.bf16.gmra.mxu0 %v4397
      %v4607 = vpop.f32.mrf.mxu0
      %v4608 = vadd.f32 0.0, %v4607
      %v4609 = vpop.f32.mrf.mxu0
      %v4610 = vadd.f32 0.0, %v4609
      %4611 = vmatmul.bf16.gmra.mxu0 %v4399
      %v4612 = vpop.f32.mrf.mxu0
      %v4613 = vadd.f32 0.0, %v4612
      %v4614 = vpop.f32.mrf.mxu0
      %v4615 = vadd.f32 0.0, %v4614
      %4616 = vmatmul.bf16.gmra.mxu0 %v4401
      %v4617 = vpop.f32.mrf.mxu0
      %v4618 = vadd.f32 0.0, %v4617
      %v4619 = vpop.f32.mrf.mxu0
      %v4620 = vadd.f32 0.0, %v4619
      %4621 = vdwg.mxu0
      %4622 = vmatpush.bf16.msra.mxu0 0
      %4623 = vmatpush.bf16.msra.mxu0 0
      %4624 = vmatpush.bf16.msra.mxu0 0
      %4625 = vmatpush.bf16.msra.mxu0 0
      %4626 = vmatpush.bf16.msra.mxu0 0
      %4627 = vmatpush.bf16.msra.mxu0 %v4473
      %4628 = vmatpush.bf16.msra.mxu0 %v4472
      %4629 = vmatpush.bf16.msra.mxu0 %v4471
      %4630 = vmatmul.bf16.gmra.mxu0 %v4486
      %v4631 = vpop.f32.mrf.mxu0
      %v4632 = vadd.f32 %v4543, %v4631
      %v4633 = vpop.f32.mrf.mxu0
      %v4634 = vadd.f32 %v4545, %v4633
      %4635 = vmatmul.bf16.gmra.mxu0 %v4489
      %v4636 = vpop.f32.mrf.mxu0
      %v4637 = vadd.f32 %v4548, %v4636
      %v4638 = vpop.f32.mrf.mxu0
      %v4639 = vadd.f32 %v4550, %v4638
      %4640 = vmatmul.bf16.gmra.mxu0 %v4492
      %v4641 = vpop.f32.mrf.mxu0
      %v4642 = vadd.f32 %v4553, %v4641
      %v4643 = vpop.f32.mrf.mxu0
      %v4644 = vadd.f32 %v4555, %v4643
      %4645 = vmatmul.bf16.gmra.mxu0 %v4495
      %v4646 = vpop.f32.mrf.mxu0
      %v4647 = vadd.f32 %v4558, %v4646
      %v4648 = vpop.f32.mrf.mxu0
      %v4649 = vadd.f32 %v4560, %v4648
      %4650 = vmatmul.bf16.gmra.mxu0 %v4498
      %v4651 = vpop.f32.mrf.mxu0
      %v4652 = vadd.f32 %v4563, %v4651
      %v4653 = vpop.f32.mrf.mxu0
      %v4654 = vadd.f32 %v4565, %v4653
      %4655 = vmatmul.bf16.gmra.mxu0 %v4501
      %v4656 = vpop.f32.mrf.mxu0
      %v4657 = vadd.f32 %v4568, %v4656
      %v4658 = vpop.f32.mrf.mxu0
      %v4659 = vadd.f32 %v4570, %v4658
      %4660 = vmatmul.bf16.gmra.mxu0 %v4504
      %v4661 = vpop.f32.mrf.mxu0
      %v4662 = vadd.f32 %v4573, %v4661
      %v4663 = vpop.f32.mrf.mxu0
      %v4664 = vadd.f32 %v4575, %v4663
      %4665 = vmatmul.bf16.gmra.mxu0 %v4507
      %v4666 = vpop.f32.mrf.mxu0
      %v4667 = vadd.f32 %v4578, %v4666
      %v4668 = vpop.f32.mrf.mxu0
      %v4669 = vadd.f32 %v4580, %v4668
      %4670 = vmatmul.bf16.gmra.mxu0 %v4510
      %v4671 = vpop.f32.mrf.mxu0
      %v4672 = vadd.f32 %v4583, %v4671
      %v4673 = vpop.f32.mrf.mxu0
      %v4674 = vadd.f32 %v4585, %v4673
      %4675 = vmatmul.bf16.gmra.mxu0 %v4513
      %v4676 = vpop.f32.mrf.mxu0
      %v4677 = vadd.f32 %v4588, %v4676
      %v4678 = vpop.f32.mrf.mxu0
      %v4679 = vadd.f32 %v4590, %v4678
      %4680 = vmatmul.bf16.gmra.mxu0 %v4516
      %v4681 = vpop.f32.mrf.mxu0
      %v4682 = vadd.f32 %v4593, %v4681
      %v4683 = vpop.f32.mrf.mxu0
      %v4684 = vadd.f32 %v4595, %v4683
      %4685 = vmatmul.bf16.gmra.mxu0 %v4519
      %v4686 = vpop.f32.mrf.mxu0
      %v4687 = vadd.f32 %v4598, %v4686
      %v4688 = vpop.f32.mrf.mxu0
      %v4689 = vadd.f32 %v4600, %v4688
      %4690 = vmatmul.bf16.gmra.mxu0 %v4522
      %v4691 = vpop.f32.mrf.mxu0
      %v4692 = vadd.f32 %v4603, %v4691
      %v4693 = vpop.f32.mrf.mxu0
      %v4694 = vadd.f32 %v4605, %v4693
      %4695 = vmatmul.bf16.gmra.mxu0 %v4525
      %v4696 = vpop.f32.mrf.mxu0
      %v4697 = vadd.f32 %v4608, %v4696
      %v4698 = vpop.f32.mrf.mxu0
      %v4699 = vadd.f32 %v4610, %v4698
      %4700 = vmatmul.bf16.gmra.mxu0 %v4528
      %v4701 = vpop.f32.mrf.mxu0
      %v4702 = vadd.f32 %v4613, %v4701
      %v4703 = vpop.f32.mrf.mxu0
      %v4704 = vadd.f32 %v4615, %v4703
      %4705 = vmatmul.bf16.gmra.mxu0 %v4531
      %v4706 = vpop.f32.mrf.mxu0
      %v4707 = vadd.f32 %v4618, %v4706
      %v4708 = vpop.f32.mrf.mxu0
      %v4709 = vadd.f32 %v4620, %v4708
      %4710 = vdwg.mxu0
      %v4711 = vadd.f32 %v4220, %v4632
      %v4712 = vadd.f32 %v4221, %v4634
      %v4713 = vadd.f32 %v4222, %v4637
      %v4714 = vadd.f32 %v4223, %v4639
      %v4715 = vadd.f32 %v4224, %v4642
      %v4716 = vadd.f32 %v4225, %v4644
      %v4717 = vadd.f32 %v4226, %v4647
      %v4718 = vadd.f32 %v4227, %v4649
      %v4719 = vadd.f32 %v4228, %v4652
      %v4720 = vadd.f32 %v4229, %v4654
      %v4721 = vadd.f32 %v4230, %v4657
      %v4722 = vadd.f32 %v4231, %v4659
      %v4723 = vadd.f32 %v4232, %v4662
      %v4724 = vadd.f32 %v4233, %v4664
      %v4725 = vadd.f32 %v4234, %v4667
      %v4726 = vadd.f32 %v4235, %v4669
      %v4727 = vadd.f32 %v4236, %v4672
      %v4728 = vadd.f32 %v4237, %v4674
      %v4729 = vadd.f32 %v4238, %v4677
      %v4730 = vadd.f32 %v4239, %v4679
      %v4731 = vadd.f32 %v4240, %v4682
      %v4732 = vadd.f32 %v4241, %v4684
      %v4733 = vadd.f32 %v4242, %v4687
      %v4734 = vadd.f32 %v4243, %v4689
      %v4735 = vadd.f32 %v4244, %v4692
      %v4736 = vadd.f32 %v4245, %v4694
      %v4737 = vadd.f32 %v4246, %v4697
      %v4738 = vadd.f32 %v4247, %v4699
      %v4739 = vadd.f32 %v4248, %v4702
      %v4740 = vadd.f32 %v4249, %v4704
      %v4741 = vadd.f32 %v4250, %v4707
      %v4742 = vadd.f32 %v4251, %v4709
      %4743 = vst.msk [vmem:[#allocation3] sm:$0xff] %vm2979, %v4711
      %4744 = vst.msk [vmem:[#allocation3 + $0x8] sm:$0xff] %vm2979, %v4712
      %4745 = vst.msk [vmem:[#allocation3 + $0x10] sm:$0xff] %vm2979, %v4713
      %4746 = vst.msk [vmem:[#allocation3 + $0x18] sm:$0xff] %vm2979, %v4714
      %4747 = vst.msk [vmem:[#allocation3 + $0x20] sm:$0xff] %vm2979, %v4715
      %4748 = vst.msk [vmem:[#allocation3 + $0x28] sm:$0xff] %vm2979, %v4716
      %4749 = vst.msk [vmem:[#allocation3 + $0x30] sm:$0xff] %vm2979, %v4717
      %4750 = vst.msk [vmem:[#allocation3 + $0x38] sm:$0xff] %vm2979, %v4718
      %4751 = vst.msk [vmem:[#allocation3 + $0x40] sm:$0xff] %vm2979, %v4719
      %4752 = vst.msk [vmem:[#allocation3 + $0x48] sm:$0xff] %vm2979, %v4720
      %4753 = vst.msk [vmem:[#allocation3 + $0x50] sm:$0xff] %vm2979, %v4721
      %4754 = vst.msk [vmem:[#allocation3 + $0x58] sm:$0xff] %vm2979, %v4722
      %4755 = vst.msk [vmem:[#allocation3 + $0x60] sm:$0xff] %vm2979, %v4723
      %4756 = vst.msk [vmem:[#allocation3 + $0x68] sm:$0xff] %vm2979, %v4724
      %4757 = vst.msk [vmem:[#allocation3 + $0x70] sm:$0xff] %vm2979, %v4725
      %4758 = vst.msk [vmem:[#allocation3 + $0x78] sm:$0xff] %vm2979, %v4726
      %4759 = vst.msk [vmem:[#allocation3 + $0x80] sm:$0xff] %vm2979, %v4727
      %4760 = vst.msk [vmem:[#allocation3 + $0x88] sm:$0xff] %vm2979, %v4728
      %4761 = vst.msk [vmem:[#allocation3 + $0x90] sm:$0xff] %vm2979, %v4729
      %4762 = vst.msk [vmem:[#allocation3 + $0x98] sm:$0xff] %vm2979, %v4730
      %4763 = vst.msk [vmem:[#allocation3 + $0xa0] sm:$0xff] %vm2979, %v4731
      %4764 = vst.msk [vmem:[#allocation3 + $0xa8] sm:$0xff] %vm2979, %v4732
      %4765 = vst.msk [vmem:[#allocation3 + $0xb0] sm:$0xff] %vm2979, %v4733
      %4766 = vst.msk [vmem:[#allocation3 + $0xb8] sm:$0xff] %vm2979, %v4734
      %4767 = vst.msk [vmem:[#allocation3 + $0xc0] sm:$0xff] %vm2979, %v4735
      %4768 = vst.msk [vmem:[#allocation3 + $0xc8] sm:$0xff] %vm2979, %v4736
      %4769 = vst.msk [vmem:[#allocation3 + $0xd0] sm:$0xff] %vm2979, %v4737
      %4770 = vst.msk [vmem:[#allocation3 + $0xd8] sm:$0xff] %vm2979, %v4738
      %4771 = vst.msk [vmem:[#allocation3 + $0xe0] sm:$0xff] %vm2979, %v4739
      %4772 = vst.msk [vmem:[#allocation3 + $0xe8] sm:$0xff] %vm2979, %v4740
      %4773 = vst.msk [vmem:[#allocation3 + $0xf0] sm:$0xff] %vm2979, %v4741
      %4774 = vst.msk [vmem:[#allocation3 + $0xf8] sm:$0xff] %vm2979, %v4742
      %s4775 = scalar_lea.vmem [#allocation2], 48
      %v4776 = vld [vmem:[%s4775] sm:$0xff]
      %v4777 = vld [vmem:[%s4775 + $0x8] sm:$0xff]
      %v4778 = vld [vmem:[%s4775 + $0x10] sm:$0xff]
      %v4779 = vld [vmem:[%s4775 + $0x18] sm:$0xff]
      %v4780 = vld [vmem:[%s4775 + $0x20] sm:$0xff]
      %v4781 = vld [vmem:[%s4775 + $0x28] sm:$0xff]
      %v4782 = vld [vmem:[%s4775 + $0x30] sm:$0xff]
      %v4783 = vld [vmem:[%s4775 + $0x38] sm:$0xff]
      %v4784 = vld [vmem:[%s4775 + $0x40] sm:$0xff]
      %v4785 = vld [vmem:[%s4775 + $0x48] sm:$0xff]
      %v4786 = vld [vmem:[%s4775 + $0x50] sm:$0xff]
      %v4787 = vld [vmem:[%s4775 + $0x58] sm:$0xff]
      %v4788 = vld [vmem:[%s4775 + $0x60] sm:$0xff]
      %v4789 = vld [vmem:[%s4775 + $0x68] sm:$0xff]
      %v4790 = vld [vmem:[%s4775 + $0x70] sm:$0xff]
      %v4791 = vld [vmem:[%s4775 + $0x78] sm:$0xff]
      %v4792 = vld [vmem:[%s4775 + $0x80] sm:$0xff]
      %v4793 = vld [vmem:[%s4775 + $0x88] sm:$0xff]
      %v4794 = vld [vmem:[%s4775 + $0x90] sm:$0xff]
      %v4795 = vld [vmem:[%s4775 + $0x98] sm:$0xff]
      %v4796 = vld [vmem:[%s4775 + $0xa0] sm:$0xff]
      %v4797 = vld [vmem:[%s4775 + $0xa8] sm:$0xff]
      %v4798 = vld [vmem:[%s4775 + $0xb0] sm:$0xff]
      %v4799 = vld [vmem:[%s4775 + $0xb8] sm:$0xff]
      %v4800 = vld [vmem:[%s4775 + $0xc0] sm:$0xff]
      %v4801 = vld [vmem:[%s4775 + $0xc8] sm:$0xff]
      %v4802 = vld [vmem:[%s4775 + $0xd0] sm:$0xff]
      %v4803 = vld [vmem:[%s4775 + $0xd8] sm:$0xff]
      %v4804 = vld [vmem:[%s4775 + $0xe0] sm:$0xff]
      %v4805 = vld [vmem:[%s4775 + $0xe8] sm:$0xff]
      %v4806 = vld [vmem:[%s4775 + $0xf0] sm:$0xff]
      %v4807 = vld [vmem:[%s4775 + $0xf8] sm:$0xff]
      %v4808 = vld [vmem:[#allocation3] sm:$0xff]
      %v4809 = vld [vmem:[#allocation3 + $0x8] sm:$0xff]
      %v4810 = vld [vmem:[#allocation3 + $0x10] sm:$0xff]
      %v4811 = vld [vmem:[#allocation3 + $0x18] sm:$0xff]
      %v4812 = vld [vmem:[#allocation3 + $0x20] sm:$0xff]
      %v4813 = vld [vmem:[#allocation3 + $0x28] sm:$0xff]
      %v4814 = vld [vmem:[#allocation3 + $0x30] sm:$0xff]
      %v4815 = vld [vmem:[#allocation3 + $0x38] sm:$0xff]
      %v4816 = vld [vmem:[#allocation3 + $0x40] sm:$0xff]
      %v4817 = vld [vmem:[#allocation3 + $0x48] sm:$0xff]
      %v4818 = vld [vmem:[#allocation3 + $0x50] sm:$0xff]
      %v4819 = vld [vmem:[#allocation3 + $0x58] sm:$0xff]
      %v4820 = vld [vmem:[#allocation3 + $0x60] sm:$0xff]
      %v4821 = vld [vmem:[#allocation3 + $0x68] sm:$0xff]
      %v4822 = vld [vmem:[#allocation3 + $0x70] sm:$0xff]
      %v4823 = vld [vmem:[#allocation3 + $0x78] sm:$0xff]
      %v4824 = vld [vmem:[#allocation3 + $0x80] sm:$0xff]
      %v4825 = vld [vmem:[#allocation3 + $0x88] sm:$0xff]
      %v4826 = vld [vmem:[#allocation3 + $0x90] sm:$0xff]
      %v4827 = vld [vmem:[#allocation3 + $0x98] sm:$0xff]
      %v4828 = vld [vmem:[#allocation3 + $0xa0] sm:$0xff]
      %v4829 = vld [vmem:[#allocation3 + $0xa8] sm:$0xff]
      %v4830 = vld [vmem:[#allocation3 + $0xb0] sm:$0xff]
      %v4831 = vld [vmem:[#allocation3 + $0xb8] sm:$0xff]
      %v4832 = vld [vmem:[#allocation3 + $0xc0] sm:$0xff]
      %v4833 = vld [vmem:[#allocation3 + $0xc8] sm:$0xff]
      %v4834 = vld [vmem:[#allocation3 + $0xd0] sm:$0xff]
      %v4835 = vld [vmem:[#allocation3 + $0xd8] sm:$0xff]
      %v4836 = vld [vmem:[#allocation3 + $0xe0] sm:$0xff]
      %v4837 = vld [vmem:[#allocation3 + $0xe8] sm:$0xff]
      %v4838 = vld [vmem:[#allocation3 + $0xf0] sm:$0xff]
      %v4839 = vld [vmem:[#allocation3 + $0xf8] sm:$0xff]
      %s4840 = scalar_lea.vmem %s3, 264
      %v4841 = vld [vmem:[%s4840] sm:$0xf]
      %v4842 = vld [vmem:[%s4840 + $0x4] sm:$0xf]
      %v4843 = vld [vmem:[%s4840 + $0x8] sm:$0xf]
      %v4844 = vld [vmem:[%s4840 + $0xc] sm:$0xf]
      %v4845 = vld [vmem:[%s4840 + $0x10] sm:$0xf]
      %v4846 = vld [vmem:[%s4840 + $0x14] sm:$0xf]
      %v4847 = vld [vmem:[%s4840 + $0x18] sm:$0xf]
      %v4848 = vld [vmem:[%s4840 + $0x1c] sm:$0xf]
      %v4849 = vld [vmem:[%s4840 + $0x20] sm:$0xf]
      %v4850 = vld [vmem:[%s4840 + $0x24] sm:$0xf]
      %v4851 = vld [vmem:[%s4840 + $0x28] sm:$0xf]
      %v4852 = vld [vmem:[%s4840 + $0x2c] sm:$0xf]
      %v4853 = vld [vmem:[%s4840 + $0x30] sm:$0xf]
      %v4854 = vld [vmem:[%s4840 + $0x34] sm:$0xf]
      %v4855 = vld [vmem:[%s4840 + $0x38] sm:$0xf]
      %v4856 = vld [vmem:[%s4840 + $0x3c] sm:$0xf]
      %v4857 = vld [vmem:[%s4840 + $0x40] sm:$0xf]
      %v4858 = vld [vmem:[%s4840 + $0x44] sm:$0xf]
      %v4859 = vld [vmem:[%s4840 + $0x48] sm:$0xf]
      %v4860 = vld [vmem:[%s4840 + $0x4c] sm:$0xf]
      %v4861 = vld [vmem:[%s4840 + $0x50] sm:$0xf]
      %v4862 = vld [vmem:[%s4840 + $0x54] sm:$0xf]
      %v4895 = vunpack.c.l.b16 %v4776
      %v4896 = vunpack.c.h.b16 %v4776
      %v4897 = vunpack.c.l.b16 %v4777
      %v4898 = vunpack.c.h.b16 %v4777
      %v4899 = vunpack.c.l.b16 %v4778
      %v4900 = vunpack.c.h.b16 %v4778
      %v4901 = vunpack.c.l.b16 %v4779
      %v4902 = vunpack.c.h.b16 %v4779
      %v4903 = vunpack.c.l.b16 %v4780
      %v4904 = vunpack.c.h.b16 %v4780
      %v4905 = vunpack.c.l.b16 %v4781
      %v4906 = vunpack.c.h.b16 %v4781
      %v4907 = vunpack.c.l.b16 %v4782
      %v4908 = vunpack.c.h.b16 %v4782
      %v4909 = vunpack.c.l.b16 %v4783
      %v4910 = vunpack.c.h.b16 %v4783
      %v4911 = vunpack.c.l.b16 %v4784
      %v4912 = vunpack.c.h.b16 %v4784
      %v4913 = vunpack.c.l.b16 %v4785
      %v4914 = vunpack.c.h.b16 %v4785
      %v4915 = vunpack.c.l.b16 %v4786
      %v4916 = vunpack.c.h.b16 %v4786
      %v4917 = vunpack.c.l.b16 %v4787
      %v4918 = vunpack.c.h.b16 %v4787
      %v4919 = vunpack.c.l.b16 %v4788
      %v4920 = vunpack.c.h.b16 %v4788
      %v4921 = vunpack.c.l.b16 %v4789
      %v4922 = vunpack.c.h.b16 %v4789
      %v4923 = vunpack.c.l.b16 %v4790
      %v4924 = vunpack.c.h.b16 %v4790
      %v4925 = vunpack.c.l.b16 %v4791
      %v4926 = vunpack.c.h.b16 %v4791
      %v4927 = vunpack.c.l.b16 %v4792
      %v4928 = vunpack.c.h.b16 %v4792
      %v4929 = vunpack.c.l.b16 %v4793
      %v4930 = vunpack.c.h.b16 %v4793
      %v4931 = vunpack.c.l.b16 %v4794
      %v4932 = vunpack.c.h.b16 %v4794
      %v4933 = vunpack.c.l.b16 %v4795
      %v4934 = vunpack.c.h.b16 %v4795
      %v4935 = vunpack.c.l.b16 %v4796
      %v4936 = vunpack.c.h.b16 %v4796
      %v4937 = vunpack.c.l.b16 %v4797
      %v4938 = vunpack.c.h.b16 %v4797
      %v4939 = vunpack.c.l.b16 %v4798
      %v4940 = vunpack.c.h.b16 %v4798
      %v4941 = vunpack.c.l.b16 %v4799
      %v4942 = vunpack.c.h.b16 %v4799
      %v4943 = vunpack.c.l.b16 %v4800
      %v4944 = vunpack.c.h.b16 %v4800
      %v4945 = vunpack.c.l.b16 %v4801
      %v4946 = vunpack.c.h.b16 %v4801
      %v4947 = vunpack.c.l.b16 %v4802
      %v4948 = vunpack.c.h.b16 %v4802
      %v4949 = vunpack.c.l.b16 %v4803
      %v4950 = vunpack.c.h.b16 %v4803
      %v4951 = vunpack.c.l.b16 %v4804
      %v4952 = vunpack.c.h.b16 %v4804
      %v4953 = vunpack.c.l.b16 %v4805
      %v4954 = vunpack.c.h.b16 %v4805
      %v4955 = vunpack.c.l.b16 %v4806
      %v4956 = vunpack.c.h.b16 %v4806
      %v4957 = vunpack.c.l.b16 %v4807
      %v4958 = vunpack.c.h.b16 %v4807
      %v4959 = vpack.c.b16 %v4897, %v4895
      %v4960 = vpack.c.b16 %v4898, %v4896
      %v4961 = vpack.c.b16 %v4901, %v4899
      %v4962 = vpack.c.b16 %v4902, %v4900
      %v4963 = vpack.c.b16 %v4905, %v4903
      %v4964 = vpack.c.b16 %v4906, %v4904
      %v4965 = vpack.c.b16 %v4909, %v4907
      %v4966 = vpack.c.b16 %v4910, %v4908
      %v4967 = vpack.c.b16 %v4913, %v4911
      %v4968 = vpack.c.b16 %v4914, %v4912
      %v4969 = vpack.c.b16 %v4917, %v4915
      %v4970 = vpack.c.b16 %v4918, %v4916
      %v4971 = vpack.c.b16 %v4921, %v4919
      %v4972 = vpack.c.b16 %v4922, %v4920
      %v4973 = vpack.c.b16 %v4925, %v4923
      %v4974 = vpack.c.b16 %v4926, %v4924
      %v4975 = vpack.c.b16 %v4929, %v4927
      %v4976 = vpack.c.b16 %v4930, %v4928
      %v4977 = vpack.c.b16 %v4933, %v4931
      %v4978 = vpack.c.b16 %v4934, %v4932
      %v4979 = vpack.c.b16 %v4937, %v4935
      %v4980 = vpack.c.b16 %v4938, %v4936
      %v4981 = vpack.c.b16 %v4941, %v4939
      %v4982 = vpack.c.b16 %v4942, %v4940
      %v4983 = vpack.c.b16 %v4945, %v4943
      %v4984 = vpack.c.b16 %v4946, %v4944
      %v4985 = vpack.c.b16 %v4949, %v4947
      %v4986 = vpack.c.b16 %v4950, %v4948
      %v4987 = vpack.c.b16 %v4953, %v4951
      %v4988 = vpack.c.b16 %v4954, %v4952
      %v4989 = vpack.c.b16 %v4957, %v4955
      %v4990 = vpack.c.b16 %v4958, %v4956
      %v5029 = vunpack.c.l.b16 %v4841
      %v5030 = vunpack.c.l.b16 %v4842
      %v5031 = vunpack.c.l.b16 %v4843
      %v5032 = vunpack.c.l.b16 %v4844
      %v5033 = vunpack.c.l.b16 %v4845
      %v5034 = vunpack.c.l.b16 %v4846
      %v5035 = vunpack.c.l.b16 %v4847
      %v5036 = vunpack.c.l.b16 %v4848
      %v5037 = vunpack.c.l.b16 %v4849
      %v5038 = vunpack.c.l.b16 %v4850
      %v5039 = vunpack.c.l.b16 %v4851
      %v5040 = vunpack.c.l.b16 %v4852
      %v5041 = vunpack.c.l.b16 %v4853
      %v5042 = vunpack.c.l.b16 %v4854
      %v5043 = vunpack.c.l.b16 %v4855
      %v5044 = vunpack.c.l.b16 %v4856
      %v5045 = vunpack.c.l.b16 %v4857
      %v5046 = vunpack.c.l.b16 %v4858
      %v5047 = vunpack.c.l.b16 %v4859
      %v5048 = vunpack.c.l.b16 %v4860
      %v5049 = vunpack.c.l.b16 %v4861
      %v5050 = vunpack.c.l.b16 %v4862
      %v5051 = vpack.c.b16 %v5030, %v5029
      %v5052 = vpack.c.b16 %v5032, %v5031
      %v5053 = vpack.c.b16 %v5034, %v5033
      %v5054 = vpack.c.b16 %v5036, %v5035
      %v5055 = vpack.c.b16 %v5038, %v5037
      %v5056 = vpack.c.b16 %v5040, %v5039
      %v5057 = vpack.c.b16 %v5042, %v5041
      %v5058 = vpack.c.b16 %v5044, %v5043
      %v5059 = vpack.c.b16 %v5046, %v5045
      %v5060 = vpack.c.b16 %v5048, %v5047
      %v5061 = vpack.c.b16 %v5050, %v5049
      %v5074 = vsel %vm3308, %v4960, 0
      %v5077 = vsel %vm3308, %v4962, 0
      %v5080 = vsel %vm3308, %v4964, 0
      %v5083 = vsel %vm3308, %v4966, 0
      %v5086 = vsel %vm3308, %v4968, 0
      %v5089 = vsel %vm3308, %v4970, 0
      %v5092 = vsel %vm3308, %v4972, 0
      %v5095 = vsel %vm3308, %v4974, 0
      %v5098 = vsel %vm3308, %v4976, 0
      %v5101 = vsel %vm3308, %v4978, 0
      %v5104 = vsel %vm3308, %v4980, 0
      %v5107 = vsel %vm3308, %v4982, 0
      %v5110 = vsel %vm3308, %v4984, 0
      %v5113 = vsel %vm3308, %v4986, 0
      %v5116 = vsel %vm3308, %v4988, 0
      %v5119 = vsel %vm3308, %v4990, 0
      %5121 = vmatpush.bf16.msra.mxu0 %v5058
      %5122 = vmatpush.bf16.msra.mxu0 %v5057
      %5123 = vmatpush.bf16.msra.mxu0 %v5056
      %5124 = vmatpush.bf16.msra.mxu0 %v5055
      %5125 = vmatpush.bf16.msra.mxu0 %v5054
      %5126 = vmatpush.bf16.msra.mxu0 %v5053
      %5127 = vmatpush.bf16.msra.mxu0 %v5052
      %5128 = vmatpush.bf16.msra.mxu0 %v5051
      %5129 = vmatmul.bf16.gmra.mxu0 %v4959
      %v5130 = vpop.f32.mrf.mxu0
      %v5131 = vadd.f32 0.0, %v5130
      %v5132 = vpop.f32.mrf.mxu0
      %v5133 = vadd.f32 0.0, %v5132
      %5134 = vmatmul.bf16.gmra.mxu0 %v4961
      %v5135 = vpop.f32.mrf.mxu0
      %v5136 = vadd.f32 0.0, %v5135
      %v5137 = vpop.f32.mrf.mxu0
      %v5138 = vadd.f32 0.0, %v5137
      %5139 = vmatmul.bf16.gmra.mxu0 %v4963
      %v5140 = vpop.f32.mrf.mxu0
      %v5141 = vadd.f32 0.0, %v5140
      %v5142 = vpop.f32.mrf.mxu0
      %v5143 = vadd.f32 0.0, %v5142
      %5144 = vmatmul.bf16.gmra.mxu0 %v4965
      %v5145 = vpop.f32.mrf.mxu0
      %v5146 = vadd.f32 0.0, %v5145
      %v5147 = vpop.f32.mrf.mxu0
      %v5148 = vadd.f32 0.0, %v5147
      %5149 = vmatmul.bf16.gmra.mxu0 %v4967
      %v5150 = vpop.f32.mrf.mxu0
      %v5151 = vadd.f32 0.0, %v5150
      %v5152 = vpop.f32.mrf.mxu0
      %v5153 = vadd.f32 0.0, %v5152
      %5154 = vmatmul.bf16.gmra.mxu0 %v4969
      %v5155 = vpop.f32.mrf.mxu0
      %v5156 = vadd.f32 0.0, %v5155
      %v5157 = vpop.f32.mrf.mxu0
      %v5158 = vadd.f32 0.0, %v5157
      %5159 = vmatmul.bf16.gmra.mxu0 %v4971
      %v5160 = vpop.f32.mrf.mxu0
      %v5161 = vadd.f32 0.0, %v5160
      %v5162 = vpop.f32.mrf.mxu0
      %v5163 = vadd.f32 0.0, %v5162
      %5164 = vmatmul.bf16.gmra.mxu0 %v4973
      %v5165 = vpop.f32.mrf.mxu0
      %v5166 = vadd.f32 0.0, %v5165
      %v5167 = vpop.f32.mrf.mxu0
      %v5168 = vadd.f32 0.0, %v5167
      %5169 = vmatmul.bf16.gmra.mxu0 %v4975
      %v5170 = vpop.f32.mrf.mxu0
      %v5171 = vadd.f32 0.0, %v5170
      %v5172 = vpop.f32.mrf.mxu0
      %v5173 = vadd.f32 0.0, %v5172
      %5174 = vmatmul.bf16.gmra.mxu0 %v4977
      %v5175 = vpop.f32.mrf.mxu0
      %v5176 = vadd.f32 0.0, %v5175
      %v5177 = vpop.f32.mrf.mxu0
      %v5178 = vadd.f32 0.0, %v5177
      %5179 = vmatmul.bf16.gmra.mxu0 %v4979
      %v5180 = vpop.f32.mrf.mxu0
      %v5181 = vadd.f32 0.0, %v5180
      %v5182 = vpop.f32.mrf.mxu0
      %v5183 = vadd.f32 0.0, %v5182
      %5184 = vmatmul.bf16.gmra.mxu0 %v4981
      %v5185 = vpop.f32.mrf.mxu0
      %v5186 = vadd.f32 0.0, %v5185
      %v5187 = vpop.f32.mrf.mxu0
      %v5188 = vadd.f32 0.0, %v5187
      %5189 = vmatmul.bf16.gmra.mxu0 %v4983
      %v5190 = vpop.f32.mrf.mxu0
      %v5191 = vadd.f32 0.0, %v5190
      %v5192 = vpop.f32.mrf.mxu0
      %v5193 = vadd.f32 0.0, %v5192
      %5194 = vmatmul.bf16.gmra.mxu0 %v4985
      %v5195 = vpop.f32.mrf.mxu0
      %v5196 = vadd.f32 0.0, %v5195
      %v5197 = vpop.f32.mrf.mxu0
      %v5198 = vadd.f32 0.0, %v5197
      %5199 = vmatmul.bf16.gmra.mxu0 %v4987
      %v5200 = vpop.f32.mrf.mxu0
      %v5201 = vadd.f32 0.0, %v5200
      %v5202 = vpop.f32.mrf.mxu0
      %v5203 = vadd.f32 0.0, %v5202
      %5204 = vmatmul.bf16.gmra.mxu0 %v4989
      %v5205 = vpop.f32.mrf.mxu0
      %v5206 = vadd.f32 0.0, %v5205
      %v5207 = vpop.f32.mrf.mxu0
      %v5208 = vadd.f32 0.0, %v5207
      %5209 = vdwg.mxu0
      %5210 = vmatpush.bf16.msra.mxu0 0
      %5211 = vmatpush.bf16.msra.mxu0 0
      %5212 = vmatpush.bf16.msra.mxu0 0
      %5213 = vmatpush.bf16.msra.mxu0 0
      %5214 = vmatpush.bf16.msra.mxu0 0
      %5215 = vmatpush.bf16.msra.mxu0 %v5061
      %5216 = vmatpush.bf16.msra.mxu0 %v5060
      %5217 = vmatpush.bf16.msra.mxu0 %v5059
      %5218 = vmatmul.bf16.gmra.mxu0 %v5074
      %v5219 = vpop.f32.mrf.mxu0
      %v5220 = vadd.f32 %v5131, %v5219
      %v5221 = vpop.f32.mrf.mxu0
      %v5222 = vadd.f32 %v5133, %v5221
      %5223 = vmatmul.bf16.gmra.mxu0 %v5077
      %v5224 = vpop.f32.mrf.mxu0
      %v5225 = vadd.f32 %v5136, %v5224
      %v5226 = vpop.f32.mrf.mxu0
      %v5227 = vadd.f32 %v5138, %v5226
      %5228 = vmatmul.bf16.gmra.mxu0 %v5080
      %v5229 = vpop.f32.mrf.mxu0
      %v5230 = vadd.f32 %v5141, %v5229
      %v5231 = vpop.f32.mrf.mxu0
      %v5232 = vadd.f32 %v5143, %v5231
      %5233 = vmatmul.bf16.gmra.mxu0 %v5083
      %v5234 = vpop.f32.mrf.mxu0
      %v5235 = vadd.f32 %v5146, %v5234
      %v5236 = vpop.f32.mrf.mxu0
      %v5237 = vadd.f32 %v5148, %v5236
      %5238 = vmatmul.bf16.gmra.mxu0 %v5086
      %v5239 = vpop.f32.mrf.mxu0
      %v5240 = vadd.f32 %v5151, %v5239
      %v5241 = vpop.f32.mrf.mxu0
      %v5242 = vadd.f32 %v5153, %v5241
      %5243 = vmatmul.bf16.gmra.mxu0 %v5089
      %v5244 = vpop.f32.mrf.mxu0
      %v5245 = vadd.f32 %v5156, %v5244
      %v5246 = vpop.f32.mrf.mxu0
      %v5247 = vadd.f32 %v5158, %v5246
      %5248 = vmatmul.bf16.gmra.mxu0 %v5092
      %v5249 = vpop.f32.mrf.mxu0
      %v5250 = vadd.f32 %v5161, %v5249
      %v5251 = vpop.f32.mrf.mxu0
      %v5252 = vadd.f32 %v5163, %v5251
      %5253 = vmatmul.bf16.gmra.mxu0 %v5095
      %v5254 = vpop.f32.mrf.mxu0
      %v5255 = vadd.f32 %v5166, %v5254
      %v5256 = vpop.f32.mrf.mxu0
      %v5257 = vadd.f32 %v5168, %v5256
      %5258 = vmatmul.bf16.gmra.mxu0 %v5098
      %v5259 = vpop.f32.mrf.mxu0
      %v5260 = vadd.f32 %v5171, %v5259
      %v5261 = vpop.f32.mrf.mxu0
      %v5262 = vadd.f32 %v5173, %v5261
      %5263 = vmatmul.bf16.gmra.mxu0 %v5101
      %v5264 = vpop.f32.mrf.mxu0
      %v5265 = vadd.f32 %v5176, %v5264
      %v5266 = vpop.f32.mrf.mxu0
      %v5267 = vadd.f32 %v5178, %v5266
      %5268 = vmatmul.bf16.gmra.mxu0 %v5104
      %v5269 = vpop.f32.mrf.mxu0
      %v5270 = vadd.f32 %v5181, %v5269
      %v5271 = vpop.f32.mrf.mxu0
      %v5272 = vadd.f32 %v5183, %v5271
      %5273 = vmatmul.bf16.gmra.mxu0 %v5107
      %v5274 = vpop.f32.mrf.mxu0
      %v5275 = vadd.f32 %v5186, %v5274
      %v5276 = vpop.f32.mrf.mxu0
      %v5277 = vadd.f32 %v5188, %v5276
      %5278 = vmatmul.bf16.gmra.mxu0 %v5110
      %v5279 = vpop.f32.mrf.mxu0
      %v5280 = vadd.f32 %v5191, %v5279
      %v5281 = vpop.f32.mrf.mxu0
      %v5282 = vadd.f32 %v5193, %v5281
      %5283 = vmatmul.bf16.gmra.mxu0 %v5113
      %v5284 = vpop.f32.mrf.mxu0
      %v5285 = vadd.f32 %v5196, %v5284
      %v5286 = vpop.f32.mrf.mxu0
      %v5287 = vadd.f32 %v5198, %v5286
      %5288 = vmatmul.bf16.gmra.mxu0 %v5116
      %v5289 = vpop.f32.mrf.mxu0
      %v5290 = vadd.f32 %v5201, %v5289
      %v5291 = vpop.f32.mrf.mxu0
      %v5292 = vadd.f32 %v5203, %v5291
      %5293 = vmatmul.bf16.gmra.mxu0 %v5119
      %v5294 = vpop.f32.mrf.mxu0
      %v5295 = vadd.f32 %v5206, %v5294
      %v5296 = vpop.f32.mrf.mxu0
      %v5297 = vadd.f32 %v5208, %v5296
      %5298 = vdwg.mxu0
      %v5299 = vadd.f32 %v4808, %v5220
      %v5300 = vadd.f32 %v4809, %v5222
      %v5301 = vadd.f32 %v4810, %v5225
      %v5302 = vadd.f32 %v4811, %v5227
      %v5303 = vadd.f32 %v4812, %v5230
      %v5304 = vadd.f32 %v4813, %v5232
      %v5305 = vadd.f32 %v4814, %v5235
      %v5306 = vadd.f32 %v4815, %v5237
      %v5307 = vadd.f32 %v4816, %v5240
      %v5308 = vadd.f32 %v4817, %v5242
      %v5309 = vadd.f32 %v4818, %v5245
      %v5310 = vadd.f32 %v4819, %v5247
      %v5311 = vadd.f32 %v4820, %v5250
      %v5312 = vadd.f32 %v4821, %v5252
      %v5313 = vadd.f32 %v4822, %v5255
      %v5314 = vadd.f32 %v4823, %v5257
      %v5315 = vadd.f32 %v4824, %v5260
      %v5316 = vadd.f32 %v4825, %v5262
      %v5317 = vadd.f32 %v4826, %v5265
      %v5318 = vadd.f32 %v4827, %v5267
      %v5319 = vadd.f32 %v4828, %v5270
      %v5320 = vadd.f32 %v4829, %v5272
      %v5321 = vadd.f32 %v4830, %v5275
      %v5322 = vadd.f32 %v4831, %v5277
      %v5323 = vadd.f32 %v4832, %v5280
      %v5324 = vadd.f32 %v4833, %v5282
      %v5325 = vadd.f32 %v4834, %v5285
      %v5326 = vadd.f32 %v4835, %v5287
      %v5327 = vadd.f32 %v4836, %v5290
      %v5328 = vadd.f32 %v4837, %v5292
      %v5329 = vadd.f32 %v4838, %v5295
      %v5330 = vadd.f32 %v4839, %v5297
      %5331 = vst.msk [vmem:[#allocation3] sm:$0xff] %vm2979, %v5299
      %5332 = vst.msk [vmem:[#allocation3 + $0x8] sm:$0xff] %vm2979, %v5300
      %5333 = vst.msk [vmem:[#allocation3 + $0x10] sm:$0xff] %vm2979, %v5301
      %5334 = vst.msk [vmem:[#allocation3 + $0x18] sm:$0xff] %vm2979, %v5302
      %5335 = vst.msk [vmem:[#allocation3 + $0x20] sm:$0xff] %vm2979, %v5303
      %5336 = vst.msk [vmem:[#allocation3 + $0x28] sm:$0xff] %vm2979, %v5304
      %5337 = vst.msk [vmem:[#allocation3 + $0x30] sm:$0xff] %vm2979, %v5305
      %5338 = vst.msk [vmem:[#allocation3 + $0x38] sm:$0xff] %vm2979, %v5306
      %5339 = vst.msk [vmem:[#allocation3 + $0x40] sm:$0xff] %vm2979, %v5307
      %5340 = vst.msk [vmem:[#allocation3 + $0x48] sm:$0xff] %vm2979, %v5308
      %5341 = vst.msk [vmem:[#allocation3 + $0x50] sm:$0xff] %vm2979, %v5309
      %5342 = vst.msk [vmem:[#allocation3 + $0x58] sm:$0xff] %vm2979, %v5310
      %5343 = vst.msk [vmem:[#allocation3 + $0x60] sm:$0xff] %vm2979, %v5311
      %5344 = vst.msk [vmem:[#allocation3 + $0x68] sm:$0xff] %vm2979, %v5312
      %5345 = vst.msk [vmem:[#allocation3 + $0x70] sm:$0xff] %vm2979, %v5313
      %5346 = vst.msk [vmem:[#allocation3 + $0x78] sm:$0xff] %vm2979, %v5314
      %5347 = vst.msk [vmem:[#allocation3 + $0x80] sm:$0xff] %vm2979, %v5315
      %5348 = vst.msk [vmem:[#allocation3 + $0x88] sm:$0xff] %vm2979, %v5316
      %5349 = vst.msk [vmem:[#allocation3 + $0x90] sm:$0xff] %vm2979, %v5317
      %5350 = vst.msk [vmem:[#allocation3 + $0x98] sm:$0xff] %vm2979, %v5318
      %5351 = vst.msk [vmem:[#allocation3 + $0xa0] sm:$0xff] %vm2979, %v5319
      %5352 = vst.msk [vmem:[#allocation3 + $0xa8] sm:$0xff] %vm2979, %v5320
      %5353 = vst.msk [vmem:[#allocation3 + $0xb0] sm:$0xff] %vm2979, %v5321
      %5354 = vst.msk [vmem:[#allocation3 + $0xb8] sm:$0xff] %vm2979, %v5322
      %5355 = vst.msk [vmem:[#allocation3 + $0xc0] sm:$0xff] %vm2979, %v5323
      %5356 = vst.msk [vmem:[#allocation3 + $0xc8] sm:$0xff] %vm2979, %v5324
      %5357 = vst.msk [vmem:[#allocation3 + $0xd0] sm:$0xff] %vm2979, %v5325
      %5358 = vst.msk [vmem:[#allocation3 + $0xd8] sm:$0xff] %vm2979, %v5326
      %5359 = vst.msk [vmem:[#allocation3 + $0xe0] sm:$0xff] %vm2979, %v5327
      %5360 = vst.msk [vmem:[#allocation3 + $0xe8] sm:$0xff] %vm2979, %v5328
      %5361 = vst.msk [vmem:[#allocation3 + $0xf0] sm:$0xff] %vm2979, %v5329
      %5362 = vst.msk [vmem:[#allocation3 + $0xf8] sm:$0xff] %vm2979, %v5330
      %s5363 = scalar_lea.vmem [#allocation2], 64
      %v5364 = vld [vmem:[%s5363] sm:$0xff]
      %v5365 = vld [vmem:[%s5363 + $0x8] sm:$0xff]
      %v5366 = vld [vmem:[%s5363 + $0x10] sm:$0xff]
      %v5367 = vld [vmem:[%s5363 + $0x18] sm:$0xff]
      %v5368 = vld [vmem:[%s5363 + $0x20] sm:$0xff]
      %v5369 = vld [vmem:[%s5363 + $0x28] sm:$0xff]
      %v5370 = vld [vmem:[%s5363 + $0x30] sm:$0xff]
      %v5371 = vld [vmem:[%s5363 + $0x38] sm:$0xff]
      %v5372 = vld [vmem:[%s5363 + $0x40] sm:$0xff]
      %v5373 = vld [vmem:[%s5363 + $0x48] sm:$0xff]
      %v5374 = vld [vmem:[%s5363 + $0x50] sm:$0xff]
      %v5375 = vld [vmem:[%s5363 + $0x58] sm:$0xff]
      %v5376 = vld [vmem:[%s5363 + $0x60] sm:$0xff]
      %v5377 = vld [vmem:[%s5363 + $0x68] sm:$0xff]
      %v5378 = vld [vmem:[%s5363 + $0x70] sm:$0xff]
      %v5379 = vld [vmem:[%s5363 + $0x78] sm:$0xff]
      %v5380 = vld [vmem:[%s5363 + $0x80] sm:$0xff]
      %v5381 = vld [vmem:[%s5363 + $0x88] sm:$0xff]
      %v5382 = vld [vmem:[%s5363 + $0x90] sm:$0xff]
      %v5383 = vld [vmem:[%s5363 + $0x98] sm:$0xff]
      %v5384 = vld [vmem:[%s5363 + $0xa0] sm:$0xff]
      %v5385 = vld [vmem:[%s5363 + $0xa8] sm:$0xff]
      %v5386 = vld [vmem:[%s5363 + $0xb0] sm:$0xff]
      %v5387 = vld [vmem:[%s5363 + $0xb8] sm:$0xff]
      %v5388 = vld [vmem:[%s5363 + $0xc0] sm:$0xff]
      %v5389 = vld [vmem:[%s5363 + $0xc8] sm:$0xff]
      %v5390 = vld [vmem:[%s5363 + $0xd0] sm:$0xff]
      %v5391 = vld [vmem:[%s5363 + $0xd8] sm:$0xff]
      %v5392 = vld [vmem:[%s5363 + $0xe0] sm:$0xff]
      %v5393 = vld [vmem:[%s5363 + $0xe8] sm:$0xff]
      %v5394 = vld [vmem:[%s5363 + $0xf0] sm:$0xff]
      %v5395 = vld [vmem:[%s5363 + $0xf8] sm:$0xff]
      %v5396 = vld [vmem:[#allocation3] sm:$0xff]
      %v5397 = vld [vmem:[#allocation3 + $0x8] sm:$0xff]
      %v5398 = vld [vmem:[#allocation3 + $0x10] sm:$0xff]
      %v5399 = vld [vmem:[#allocation3 + $0x18] sm:$0xff]
      %v5400 = vld [vmem:[#allocation3 + $0x20] sm:$0xff]
      %v5401 = vld [vmem:[#allocation3 + $0x28] sm:$0xff]
      %v5402 = vld [vmem:[#allocation3 + $0x30] sm:$0xff]
      %v5403 = vld [vmem:[#allocation3 + $0x38] sm:$0xff]
      %v5404 = vld [vmem:[#allocation3 + $0x40] sm:$0xff]
      %v5405 = vld [vmem:[#allocation3 + $0x48] sm:$0xff]
      %v5406 = vld [vmem:[#allocation3 + $0x50] sm:$0xff]
      %v5407 = vld [vmem:[#allocation3 + $0x58] sm:$0xff]
      %v5408 = vld [vmem:[#allocation3 + $0x60] sm:$0xff]
      %v5409 = vld [vmem:[#allocation3 + $0x68] sm:$0xff]
      %v5410 = vld [vmem:[#allocation3 + $0x70] sm:$0xff]
      %v5411 = vld [vmem:[#allocation3 + $0x78] sm:$0xff]
      %v5412 = vld [vmem:[#allocation3 + $0x80] sm:$0xff]
      %v5413 = vld [vmem:[#allocation3 + $0x88] sm:$0xff]
      %v5414 = vld [vmem:[#allocation3 + $0x90] sm:$0xff]
      %v5415 = vld [vmem:[#allocation3 + $0x98] sm:$0xff]
      %v5416 = vld [vmem:[#allocation3 + $0xa0] sm:$0xff]
      %v5417 = vld [vmem:[#allocation3 + $0xa8] sm:$0xff]
      %v5418 = vld [vmem:[#allocation3 + $0xb0] sm:$0xff]
      %v5419 = vld [vmem:[#allocation3 + $0xb8] sm:$0xff]
      %v5420 = vld [vmem:[#allocation3 + $0xc0] sm:$0xff]
      %v5421 = vld [vmem:[#allocation3 + $0xc8] sm:$0xff]
      %v5422 = vld [vmem:[#allocation3 + $0xd0] sm:$0xff]
      %v5423 = vld [vmem:[#allocation3 + $0xd8] sm:$0xff]
      %v5424 = vld [vmem:[#allocation3 + $0xe0] sm:$0xff]
      %v5425 = vld [vmem:[#allocation3 + $0xe8] sm:$0xff]
      %v5426 = vld [vmem:[#allocation3 + $0xf0] sm:$0xff]
      %v5427 = vld [vmem:[#allocation3 + $0xf8] sm:$0xff]
      %s5428 = scalar_lea.vmem %s3, 352
      %v5429 = vld [vmem:[%s5428] sm:$0xf]
      %v5430 = vld [vmem:[%s5428 + $0x4] sm:$0xf]
      %v5431 = vld [vmem:[%s5428 + $0x8] sm:$0xf]
      %v5432 = vld [vmem:[%s5428 + $0xc] sm:$0xf]
      %v5433 = vld [vmem:[%s5428 + $0x10] sm:$0xf]
      %v5434 = vld [vmem:[%s5428 + $0x14] sm:$0xf]
      %v5435 = vld [vmem:[%s5428 + $0x18] sm:$0xf]
      %v5436 = vld [vmem:[%s5428 + $0x1c] sm:$0xf]
      %v5437 = vld [vmem:[%s5428 + $0x20] sm:$0xf]
      %v5438 = vld [vmem:[%s5428 + $0x24] sm:$0xf]
      %v5439 = vld [vmem:[%s5428 + $0x28] sm:$0xf]
      %v5440 = vld [vmem:[%s5428 + $0x2c] sm:$0xf]
      %v5441 = vld [vmem:[%s5428 + $0x30] sm:$0xf]
      %v5442 = vld [vmem:[%s5428 + $0x34] sm:$0xf]
      %v5443 = vld [vmem:[%s5428 + $0x38] sm:$0xf]
      %v5444 = vld [vmem:[%s5428 + $0x3c] sm:$0xf]
      %v5445 = vld [vmem:[%s5428 + $0x40] sm:$0xf]
      %v5446 = vld [vmem:[%s5428 + $0x44] sm:$0xf]
      %v5447 = vld [vmem:[%s5428 + $0x48] sm:$0xf]
      %v5448 = vld [vmem:[%s5428 + $0x4c] sm:$0xf]
      %v5449 = vld [vmem:[%s5428 + $0x50] sm:$0xf]
      %v5450 = vld [vmem:[%s5428 + $0x54] sm:$0xf]
      %v5483 = vunpack.c.l.b16 %v5364
      %v5484 = vunpack.c.h.b16 %v5364
      %v5485 = vunpack.c.l.b16 %v5365
      %v5486 = vunpack.c.h.b16 %v5365
      %v5487 = vunpack.c.l.b16 %v5366
      %v5488 = vunpack.c.h.b16 %v5366
      %v5489 = vunpack.c.l.b16 %v5367
      %v5490 = vunpack.c.h.b16 %v5367
      %v5491 = vunpack.c.l.b16 %v5368
      %v5492 = vunpack.c.h.b16 %v5368
      %v5493 = vunpack.c.l.b16 %v5369
      %v5494 = vunpack.c.h.b16 %v5369
      %v5495 = vunpack.c.l.b16 %v5370
      %v5496 = vunpack.c.h.b16 %v5370
      %v5497 = vunpack.c.l.b16 %v5371
      %v5498 = vunpack.c.h.b16 %v5371
      %v5499 = vunpack.c.l.b16 %v5372
      %v5500 = vunpack.c.h.b16 %v5372
      %v5501 = vunpack.c.l.b16 %v5373
      %v5502 = vunpack.c.h.b16 %v5373
      %v5503 = vunpack.c.l.b16 %v5374
      %v5504 = vunpack.c.h.b16 %v5374
      %v5505 = vunpack.c.l.b16 %v5375
      %v5506 = vunpack.c.h.b16 %v5375
      %v5507 = vunpack.c.l.b16 %v5376
      %v5508 = vunpack.c.h.b16 %v5376
      %v5509 = vunpack.c.l.b16 %v5377
      %v5510 = vunpack.c.h.b16 %v5377
      %v5511 = vunpack.c.l.b16 %v5378
      %v5512 = vunpack.c.h.b16 %v5378
      %v5513 = vunpack.c.l.b16 %v5379
      %v5514 = vunpack.c.h.b16 %v5379
      %v5515 = vunpack.c.l.b16 %v5380
      %v5516 = vunpack.c.h.b16 %v5380
      %v5517 = vunpack.c.l.b16 %v5381
      %v5518 = vunpack.c.h.b16 %v5381
      %v5519 = vunpack.c.l.b16 %v5382
      %v5520 = vunpack.c.h.b16 %v5382
      %v5521 = vunpack.c.l.b16 %v5383
      %v5522 = vunpack.c.h.b16 %v5383
      %v5523 = vunpack.c.l.b16 %v5384
      %v5524 = vunpack.c.h.b16 %v5384
      %v5525 = vunpack.c.l.b16 %v5385
      %v5526 = vunpack.c.h.b16 %v5385
      %v5527 = vunpack.c.l.b16 %v5386
      %v5528 = vunpack.c.h.b16 %v5386
      %v5529 = vunpack.c.l.b16 %v5387
      %v5530 = vunpack.c.h.b16 %v5387
      %v5531 = vunpack.c.l.b16 %v5388
      %v5532 = vunpack.c.h.b16 %v5388
      %v5533 = vunpack.c.l.b16 %v5389
      %v5534 = vunpack.c.h.b16 %v5389
      %v5535 = vunpack.c.l.b16 %v5390
      %v5536 = vunpack.c.h.b16 %v5390
      %v5537 = vunpack.c.l.b16 %v5391
      %v5538 = vunpack.c.h.b16 %v5391
      %v5539 = vunpack.c.l.b16 %v5392
      %v5540 = vunpack.c.h.b16 %v5392
      %v5541 = vunpack.c.l.b16 %v5393
      %v5542 = vunpack.c.h.b16 %v5393
      %v5543 = vunpack.c.l.b16 %v5394
      %v5544 = vunpack.c.h.b16 %v5394
      %v5545 = vunpack.c.l.b16 %v5395
      %v5546 = vunpack.c.h.b16 %v5395
      %v5547 = vpack.c.b16 %v5485, %v5483
      %v5548 = vpack.c.b16 %v5486, %v5484
      %v5549 = vpack.c.b16 %v5489, %v5487
      %v5550 = vpack.c.b16 %v5490, %v5488
      %v5551 = vpack.c.b16 %v5493, %v5491
      %v5552 = vpack.c.b16 %v5494, %v5492
      %v5553 = vpack.c.b16 %v5497, %v5495
      %v5554 = vpack.c.b16 %v5498, %v5496
      %v5555 = vpack.c.b16 %v5501, %v5499
      %v5556 = vpack.c.b16 %v5502, %v5500
      %v5557 = vpack.c.b16 %v5505, %v5503
      %v5558 = vpack.c.b16 %v5506, %v5504
      %v5559 = vpack.c.b16 %v5509, %v5507
      %v5560 = vpack.c.b16 %v5510, %v5508
      %v5561 = vpack.c.b16 %v5513, %v5511
      %v5562 = vpack.c.b16 %v5514, %v5512
      %v5563 = vpack.c.b16 %v5517, %v5515
      %v5564 = vpack.c.b16 %v5518, %v5516
      %v5565 = vpack.c.b16 %v5521, %v5519
      %v5566 = vpack.c.b16 %v5522, %v5520
      %v5567 = vpack.c.b16 %v5525, %v5523
      %v5568 = vpack.c.b16 %v5526, %v5524
      %v5569 = vpack.c.b16 %v5529, %v5527
      %v5570 = vpack.c.b16 %v5530, %v5528
      %v5571 = vpack.c.b16 %v5533, %v5531
      %v5572 = vpack.c.b16 %v5534, %v5532
      %v5573 = vpack.c.b16 %v5537, %v5535
      %v5574 = vpack.c.b16 %v5538, %v5536
      %v5575 = vpack.c.b16 %v5541, %v5539
      %v5576 = vpack.c.b16 %v5542, %v5540
      %v5577 = vpack.c.b16 %v5545, %v5543
      %v5578 = vpack.c.b16 %v5546, %v5544
      %v5617 = vunpack.c.l.b16 %v5429
      %v5618 = vunpack.c.l.b16 %v5430
      %v5619 = vunpack.c.l.b16 %v5431
      %v5620 = vunpack.c.l.b16 %v5432
      %v5621 = vunpack.c.l.b16 %v5433
      %v5622 = vunpack.c.l.b16 %v5434
      %v5623 = vunpack.c.l.b16 %v5435
      %v5624 = vunpack.c.l.b16 %v5436
      %v5625 = vunpack.c.l.b16 %v5437
      %v5626 = vunpack.c.l.b16 %v5438
      %v5627 = vunpack.c.l.b16 %v5439
      %v5628 = vunpack.c.l.b16 %v5440
      %v5629 = vunpack.c.l.b16 %v5441
      %v5630 = vunpack.c.l.b16 %v5442
      %v5631 = vunpack.c.l.b16 %v5443
      %v5632 = vunpack.c.l.b16 %v5444
      %v5633 = vunpack.c.l.b16 %v5445
      %v5634 = vunpack.c.l.b16 %v5446
      %v5635 = vunpack.c.l.b16 %v5447
      %v5636 = vunpack.c.l.b16 %v5448
      %v5637 = vunpack.c.l.b16 %v5449
      %v5638 = vunpack.c.l.b16 %v5450
      %v5639 = vpack.c.b16 %v5618, %v5617
      %v5640 = vpack.c.b16 %v5620, %v5619
      %v5641 = vpack.c.b16 %v5622, %v5621
      %v5642 = vpack.c.b16 %v5624, %v5623
      %v5643 = vpack.c.b16 %v5626, %v5625
      %v5644 = vpack.c.b16 %v5628, %v5627
      %v5645 = vpack.c.b16 %v5630, %v5629
      %v5646 = vpack.c.b16 %v5632, %v5631
      %v5647 = vpack.c.b16 %v5634, %v5633
      %v5648 = vpack.c.b16 %v5636, %v5635
      %v5649 = vpack.c.b16 %v5638, %v5637
      %v5662 = vsel %vm3308, %v5548, 0
      %v5665 = vsel %vm3308, %v5550, 0
      %v5668 = vsel %vm3308, %v5552, 0
      %v5671 = vsel %vm3308, %v5554, 0
      %v5674 = vsel %vm3308, %v5556, 0
      %v5677 = vsel %vm3308, %v5558, 0
      %v5680 = vsel %vm3308, %v5560, 0
      %v5683 = vsel %vm3308, %v5562, 0
      %v5686 = vsel %vm3308, %v5564, 0
      %v5689 = vsel %vm3308, %v5566, 0
      %v5692 = vsel %vm3308, %v5568, 0
      %v5695 = vsel %vm3308, %v5570, 0
      %v5698 = vsel %vm3308, %v5572, 0
      %v5701 = vsel %vm3308, %v5574, 0
      %v5704 = vsel %vm3308, %v5576, 0
      %v5707 = vsel %vm3308, %v5578, 0
      %5709 = vmatpush.bf16.msra.mxu0 %v5646
      %5710 = vmatpush.bf16.msra.mxu0 %v5645
      %5711 = vmatpush.bf16.msra.mxu0 %v5644
      %5712 = vmatpush.bf16.msra.mxu0 %v5643
      %5713 = vmatpush.bf16.msra.mxu0 %v5642
      %5714 = vmatpush.bf16.msra.mxu0 %v5641
      %5715 = vmatpush.bf16.msra.mxu0 %v5640
      %5716 = vmatpush.bf16.msra.mxu0 %v5639
      %5717 = vmatmul.bf16.gmra.mxu0 %v5547
      %v5718 = vpop.f32.mrf.mxu0
      %v5719 = vadd.f32 0.0, %v5718
      %v5720 = vpop.f32.mrf.mxu0
      %v5721 = vadd.f32 0.0, %v5720
      %5722 = vmatmul.bf16.gmra.mxu0 %v5549
      %v5723 = vpop.f32.mrf.mxu0
      %v5724 = vadd.f32 0.0, %v5723
      %v5725 = vpop.f32.mrf.mxu0
      %v5726 = vadd.f32 0.0, %v5725
      %5727 = vmatmul.bf16.gmra.mxu0 %v5551
      %v5728 = vpop.f32.mrf.mxu0
      %v5729 = vadd.f32 0.0, %v5728
      %v5730 = vpop.f32.mrf.mxu0
      %v5731 = vadd.f32 0.0, %v5730
      %5732 = vmatmul.bf16.gmra.mxu0 %v5553
      %v5733 = vpop.f32.mrf.mxu0
      %v5734 = vadd.f32 0.0, %v5733
      %v5735 = vpop.f32.mrf.mxu0
      %v5736 = vadd.f32 0.0, %v5735
      %5737 = vmatmul.bf16.gmra.mxu0 %v5555
      %v5738 = vpop.f32.mrf.mxu0
      %v5739 = vadd.f32 0.0, %v5738
      %v5740 = vpop.f32.mrf.mxu0
      %v5741 = vadd.f32 0.0, %v5740
      %5742 = vmatmul.bf16.gmra.mxu0 %v5557
      %v5743 = vpop.f32.mrf.mxu0
      %v5744 = vadd.f32 0.0, %v5743
      %v5745 = vpop.f32.mrf.mxu0
      %v5746 = vadd.f32 0.0, %v5745
      %5747 = vmatmul.bf16.gmra.mxu0 %v5559
      %v5748 = vpop.f32.mrf.mxu0
      %v5749 = vadd.f32 0.0, %v5748
      %v5750 = vpop.f32.mrf.mxu0
      %v5751 = vadd.f32 0.0, %v5750
      %5752 = vmatmul.bf16.gmra.mxu0 %v5561
      %v5753 = vpop.f32.mrf.mxu0
      %v5754 = vadd.f32 0.0, %v5753
      %v5755 = vpop.f32.mrf.mxu0
      %v5756 = vadd.f32 0.0, %v5755
      %5757 = vmatmul.bf16.gmra.mxu0 %v5563
      %v5758 = vpop.f32.mrf.mxu0
      %v5759 = vadd.f32 0.0, %v5758
      %v5760 = vpop.f32.mrf.mxu0
      %v5761 = vadd.f32 0.0, %v5760
      %5762 = vmatmul.bf16.gmra.mxu0 %v5565
      %v5763 = vpop.f32.mrf.mxu0
      %v5764 = vadd.f32 0.0, %v5763
      %v5765 = vpop.f32.mrf.mxu0
      %v5766 = vadd.f32 0.0, %v5765
      %5767 = vmatmul.bf16.gmra.mxu0 %v5567
      %v5768 = vpop.f32.mrf.mxu0
      %v5769 = vadd.f32 0.0, %v5768
      %v5770 = vpop.f32.mrf.mxu0
      %v5771 = vadd.f32 0.0, %v5770
      %5772 = vmatmul.bf16.gmra.mxu0 %v5569
      %v5773 = vpop.f32.mrf.mxu0
      %v5774 = vadd.f32 0.0, %v5773
      %v5775 = vpop.f32.mrf.mxu0
      %v5776 = vadd.f32 0.0, %v5775
      %5777 = vmatmul.bf16.gmra.mxu0 %v5571
      %v5778 = vpop.f32.mrf.mxu0
      %v5779 = vadd.f32 0.0, %v5778
      %v5780 = vpop.f32.mrf.mxu0
      %v5781 = vadd.f32 0.0, %v5780
      %5782 = vmatmul.bf16.gmra.mxu0 %v5573
      %v5783 = vpop.f32.mrf.mxu0
      %v5784 = vadd.f32 0.0, %v5783
      %v5785 = vpop.f32.mrf.mxu0
      %v5786 = vadd.f32 0.0, %v5785
      %5787 = vmatmul.bf16.gmra.mxu0 %v5575
      %v5788 = vpop.f32.mrf.mxu0
      %v5789 = vadd.f32 0.0, %v5788
      %v5790 = vpop.f32.mrf.mxu0
      %v5791 = vadd.f32 0.0, %v5790
      %5792 = vmatmul.bf16.gmra.mxu0 %v5577
      %v5793 = vpop.f32.mrf.mxu0
      %v5794 = vadd.f32 0.0, %v5793
      %v5795 = vpop.f32.mrf.mxu0
      %v5796 = vadd.f32 0.0, %v5795
      %5797 = vdwg.mxu0
      %5798 = vmatpush.bf16.msra.mxu0 0
      %5799 = vmatpush.bf16.msra.mxu0 0
      %5800 = vmatpush.bf16.msra.mxu0 0
      %5801 = vmatpush.bf16.msra.mxu0 0
      %5802 = vmatpush.bf16.msra.mxu0 0
      %5803 = vmatpush.bf16.msra.mxu0 %v5649
      %5804 = vmatpush.bf16.msra.mxu0 %v5648
      %5805 = vmatpush.bf16.msra.mxu0 %v5647
      %5806 = vmatmul.bf16.gmra.mxu0 %v5662
      %v5807 = vpop.f32.mrf.mxu0
      %v5808 = vadd.f32 %v5719, %v5807
      %v5809 = vpop.f32.mrf.mxu0
      %v5810 = vadd.f32 %v5721, %v5809
      %5811 = vmatmul.bf16.gmra.mxu0 %v5665
      %v5812 = vpop.f32.mrf.mxu0
      %v5813 = vadd.f32 %v5724, %v5812
      %v5814 = vpop.f32.mrf.mxu0
      %v5815 = vadd.f32 %v5726, %v5814
      %5816 = vmatmul.bf16.gmra.mxu0 %v5668
      %v5817 = vpop.f32.mrf.mxu0
      %v5818 = vadd.f32 %v5729, %v5817
      %v5819 = vpop.f32.mrf.mxu0
      %v5820 = vadd.f32 %v5731, %v5819
      %5821 = vmatmul.bf16.gmra.mxu0 %v5671
      %v5822 = vpop.f32.mrf.mxu0
      %v5823 = vadd.f32 %v5734, %v5822
      %v5824 = vpop.f32.mrf.mxu0
      %v5825 = vadd.f32 %v5736, %v5824
      %5826 = vmatmul.bf16.gmra.mxu0 %v5674
      %v5827 = vpop.f32.mrf.mxu0
      %v5828 = vadd.f32 %v5739, %v5827
      %v5829 = vpop.f32.mrf.mxu0
      %v5830 = vadd.f32 %v5741, %v5829
      %5831 = vmatmul.bf16.gmra.mxu0 %v5677
      %v5832 = vpop.f32.mrf.mxu0
      %v5833 = vadd.f32 %v5744, %v5832
      %v5834 = vpop.f32.mrf.mxu0
      %v5835 = vadd.f32 %v5746, %v5834
      %5836 = vmatmul.bf16.gmra.mxu0 %v5680
      %v5837 = vpop.f32.mrf.mxu0
      %v5838 = vadd.f32 %v5749, %v5837
      %v5839 = vpop.f32.mrf.mxu0
      %v5840 = vadd.f32 %v5751, %v5839
      %5841 = vmatmul.bf16.gmra.mxu0 %v5683
      %v5842 = vpop.f32.mrf.mxu0
      %v5843 = vadd.f32 %v5754, %v5842
      %v5844 = vpop.f32.mrf.mxu0
      %v5845 = vadd.f32 %v5756, %v5844
      %5846 = vmatmul.bf16.gmra.mxu0 %v5686
      %v5847 = vpop.f32.mrf.mxu0
      %v5848 = vadd.f32 %v5759, %v5847
      %v5849 = vpop.f32.mrf.mxu0
      %v5850 = vadd.f32 %v5761, %v5849
      %5851 = vmatmul.bf16.gmra.mxu0 %v5689
      %v5852 = vpop.f32.mrf.mxu0
      %v5853 = vadd.f32 %v5764, %v5852
      %v5854 = vpop.f32.mrf.mxu0
      %v5855 = vadd.f32 %v5766, %v5854
      %5856 = vmatmul.bf16.gmra.mxu0 %v5692
      %v5857 = vpop.f32.mrf.mxu0
      %v5858 = vadd.f32 %v5769, %v5857
      %v5859 = vpop.f32.mrf.mxu0
      %v5860 = vadd.f32 %v5771, %v5859
      %5861 = vmatmul.bf16.gmra.mxu0 %v5695
      %v5862 = vpop.f32.mrf.mxu0
      %v5863 = vadd.f32 %v5774, %v5862
      %v5864 = vpop.f32.mrf.mxu0
      %v5865 = vadd.f32 %v5776, %v5864
      %5866 = vmatmul.bf16.gmra.mxu0 %v5698
      %v5867 = vpop.f32.mrf.mxu0
      %v5868 = vadd.f32 %v5779, %v5867
      %v5869 = vpop.f32.mrf.mxu0
      %v5870 = vadd.f32 %v5781, %v5869
      %5871 = vmatmul.bf16.gmra.mxu0 %v5701
      %v5872 = vpop.f32.mrf.mxu0
      %v5873 = vadd.f32 %v5784, %v5872
      %v5874 = vpop.f32.mrf.mxu0
      %v5875 = vadd.f32 %v5786, %v5874
      %5876 = vmatmul.bf16.gmra.mxu0 %v5704
      %v5877 = vpop.f32.mrf.mxu0
      %v5878 = vadd.f32 %v5789, %v5877
      %v5879 = vpop.f32.mrf.mxu0
      %v5880 = vadd.f32 %v5791, %v5879
      %5881 = vmatmul.bf16.gmra.mxu0 %v5707
      %v5882 = vpop.f32.mrf.mxu0
      %v5883 = vadd.f32 %v5794, %v5882
      %v5884 = vpop.f32.mrf.mxu0
      %v5885 = vadd.f32 %v5796, %v5884
      %5886 = vdwg.mxu0
      %v5887 = vadd.f32 %v5396, %v5808
      %v5888 = vadd.f32 %v5397, %v5810
      %v5889 = vadd.f32 %v5398, %v5813
      %v5890 = vadd.f32 %v5399, %v5815
      %v5891 = vadd.f32 %v5400, %v5818
      %v5892 = vadd.f32 %v5401, %v5820
      %v5893 = vadd.f32 %v5402, %v5823
      %v5894 = vadd.f32 %v5403, %v5825
      %v5895 = vadd.f32 %v5404, %v5828
      %v5896 = vadd.f32 %v5405, %v5830
      %v5897 = vadd.f32 %v5406, %v5833
      %v5898 = vadd.f32 %v5407, %v5835
      %v5899 = vadd.f32 %v5408, %v5838
      %v5900 = vadd.f32 %v5409, %v5840
      %v5901 = vadd.f32 %v5410, %v5843
      %v5902 = vadd.f32 %v5411, %v5845
      %v5903 = vadd.f32 %v5412, %v5848
      %v5904 = vadd.f32 %v5413, %v5850
      %v5905 = vadd.f32 %v5414, %v5853
      %v5906 = vadd.f32 %v5415, %v5855
      %v5907 = vadd.f32 %v5416, %v5858
      %v5908 = vadd.f32 %v5417, %v5860
      %v5909 = vadd.f32 %v5418, %v5863
      %v5910 = vadd.f32 %v5419, %v5865
      %v5911 = vadd.f32 %v5420, %v5868
      %v5912 = vadd.f32 %v5421, %v5870
      %v5913 = vadd.f32 %v5422, %v5873
      %v5914 = vadd.f32 %v5423, %v5875
      %v5915 = vadd.f32 %v5424, %v5878
      %v5916 = vadd.f32 %v5425, %v5880
      %v5917 = vadd.f32 %v5426, %v5883
      %v5918 = vadd.f32 %v5427, %v5885
      %5919 = vst.msk [vmem:[#allocation3] sm:$0xff] %vm2979, %v5887
      %5920 = vst.msk [vmem:[#allocation3 + $0x8] sm:$0xff] %vm2979, %v5888
      %5921 = vst.msk [vmem:[#allocation3 + $0x10] sm:$0xff] %vm2979, %v5889
      %5922 = vst.msk [vmem:[#allocation3 + $0x18] sm:$0xff] %vm2979, %v5890
      %5923 = vst.msk [vmem:[#allocation3 + $0x20] sm:$0xff] %vm2979, %v5891
      %5924 = vst.msk [vmem:[#allocation3 + $0x28] sm:$0xff] %vm2979, %v5892
      %5925 = vst.msk [vmem:[#allocation3 + $0x30] sm:$0xff] %vm2979, %v5893
      %5926 = vst.msk [vmem:[#allocation3 + $0x38] sm:$0xff] %vm2979, %v5894
      %5927 = vst.msk [vmem:[#allocation3 + $0x40] sm:$0xff] %vm2979, %v5895
      %5928 = vst.msk [vmem:[#allocation3 + $0x48] sm:$0xff] %vm2979, %v5896
      %5929 = vst.msk [vmem:[#allocation3 + $0x50] sm:$0xff] %vm2979, %v5897
      %5930 = vst.msk [vmem:[#allocation3 + $0x58] sm:$0xff] %vm2979, %v5898
      %5931 = vst.msk [vmem:[#allocation3 + $0x60] sm:$0xff] %vm2979, %v5899
      %5932 = vst.msk [vmem:[#allocation3 + $0x68] sm:$0xff] %vm2979, %v5900
      %5933 = vst.msk [vmem:[#allocation3 + $0x70] sm:$0xff] %vm2979, %v5901
      %5934 = vst.msk [vmem:[#allocation3 + $0x78] sm:$0xff] %vm2979, %v5902
      %5935 = vst.msk [vmem:[#allocation3 + $0x80] sm:$0xff] %vm2979, %v5903
      %5936 = vst.msk [vmem:[#allocation3 + $0x88] sm:$0xff] %vm2979, %v5904
      %5937 = vst.msk [vmem:[#allocation3 + $0x90] sm:$0xff] %vm2979, %v5905
      %5938 = vst.msk [vmem:[#allocation3 + $0x98] sm:$0xff] %vm2979, %v5906
      %5939 = vst.msk [vmem:[#allocation3 + $0xa0] sm:$0xff] %vm2979, %v5907
      %5940 = vst.msk [vmem:[#allocation3 + $0xa8] sm:$0xff] %vm2979, %v5908
      %5941 = vst.msk [vmem:[#allocation3 + $0xb0] sm:$0xff] %vm2979, %v5909
      %5942 = vst.msk [vmem:[#allocation3 + $0xb8] sm:$0xff] %vm2979, %v5910
      %5943 = vst.msk [vmem:[#allocation3 + $0xc0] sm:$0xff] %vm2979, %v5911
      %5944 = vst.msk [vmem:[#allocation3 + $0xc8] sm:$0xff] %vm2979, %v5912
      %5945 = vst.msk [vmem:[#allocation3 + $0xd0] sm:$0xff] %vm2979, %v5913
      %5946 = vst.msk [vmem:[#allocation3 + $0xd8] sm:$0xff] %vm2979, %v5914
      %5947 = vst.msk [vmem:[#allocation3 + $0xe0] sm:$0xff] %vm2979, %v5915
      %5948 = vst.msk [vmem:[#allocation3 + $0xe8] sm:$0xff] %vm2979, %v5916
      %5949 = vst.msk [vmem:[#allocation3 + $0xf0] sm:$0xff] %vm2979, %v5917
      %5950 = vst.msk [vmem:[#allocation3 + $0xf8] sm:$0xff] %vm2979, %v5918
      %v5951 = vld [vmem:[%s949] sm:$0xff]
      %v5952 = vld [vmem:[%s949 + $0x8] sm:$0xff]
      %v5953 = vld [vmem:[%s949 + $0x10] sm:$0xff]
      %v5954 = vld [vmem:[%s949 + $0x18] sm:$0xff]
      %v5955 = vld [vmem:[%s949 + $0x20] sm:$0xff]
      %v5956 = vld [vmem:[%s949 + $0x28] sm:$0xff]
      %v5957 = vld [vmem:[%s949 + $0x30] sm:$0xff]
      %v5958 = vld [vmem:[%s949 + $0x38] sm:$0xff]
      %v5959 = vld [vmem:[%s949 + $0x40] sm:$0xff]
      %v5960 = vld [vmem:[%s949 + $0x48] sm:$0xff]
      %v5961 = vld [vmem:[%s949 + $0x50] sm:$0xff]
      %v5962 = vld [vmem:[%s949 + $0x58] sm:$0xff]
      %v5963 = vld [vmem:[%s949 + $0x60] sm:$0xff]
      %v5964 = vld [vmem:[%s949 + $0x68] sm:$0xff]
      %v5965 = vld [vmem:[%s949 + $0x70] sm:$0xff]
      %v5966 = vld [vmem:[%s949 + $0x78] sm:$0xff]
      %v5967 = vld [vmem:[%s949 + $0x80] sm:$0xff]
      %v5968 = vld [vmem:[%s949 + $0x88] sm:$0xff]
      %v5969 = vld [vmem:[%s949 + $0x90] sm:$0xff]
      %v5970 = vld [vmem:[%s949 + $0x98] sm:$0xff]
      %v5971 = vld [vmem:[%s949 + $0xa0] sm:$0xff]
      %v5972 = vld [vmem:[%s949 + $0xa8] sm:$0xff]
      %v5973 = vld [vmem:[%s949 + $0xb0] sm:$0xff]
      %v5974 = vld [vmem:[%s949 + $0xb8] sm:$0xff]
      %v5975 = vld [vmem:[%s949 + $0xc0] sm:$0xff]
      %v5976 = vld [vmem:[%s949 + $0xc8] sm:$0xff]
      %v5977 = vld [vmem:[%s949 + $0xd0] sm:$0xff]
      %v5978 = vld [vmem:[%s949 + $0xd8] sm:$0xff]
      %v5979 = vld [vmem:[%s949 + $0xe0] sm:$0xff]
      %v5980 = vld [vmem:[%s949 + $0xe8] sm:$0xff]
      %v5981 = vld [vmem:[%s949 + $0xf0] sm:$0xff]
      %v5982 = vld [vmem:[%s949 + $0xf8] sm:$0xff]
      %v5983 = vld [vmem:[#allocation3] sm:$0xff]
      %v5984 = vld [vmem:[#allocation3 + $0x8] sm:$0xff]
      %v5985 = vld [vmem:[#allocation3 + $0x10] sm:$0xff]
      %v5986 = vld [vmem:[#allocation3 + $0x18] sm:$0xff]
      %v5987 = vld [vmem:[#allocation3 + $0x20] sm:$0xff]
      %v5988 = vld [vmem:[#allocation3 + $0x28] sm:$0xff]
      %v5989 = vld [vmem:[#allocation3 + $0x30] sm:$0xff]
      %v5990 = vld [vmem:[#allocation3 + $0x38] sm:$0xff]
      %v5991 = vld [vmem:[#allocation3 + $0x40] sm:$0xff]
      %v5992 = vld [vmem:[#allocation3 + $0x48] sm:$0xff]
      %v5993 = vld [vmem:[#allocation3 + $0x50] sm:$0xff]
      %v5994 = vld [vmem:[#allocation3 + $0x58] sm:$0xff]
      %v5995 = vld [vmem:[#allocation3 + $0x60] sm:$0xff]
      %v5996 = vld [vmem:[#allocation3 + $0x68] sm:$0xff]
      %v5997 = vld [vmem:[#allocation3 + $0x70] sm:$0xff]
      %v5998 = vld [vmem:[#allocation3 + $0x78] sm:$0xff]
      %v5999 = vld [vmem:[#allocation3 + $0x80] sm:$0xff]
      %v6000 = vld [vmem:[#allocation3 + $0x88] sm:$0xff]
      %v6001 = vld [vmem:[#allocation3 + $0x90] sm:$0xff]
      %v6002 = vld [vmem:[#allocation3 + $0x98] sm:$0xff]
      %v6003 = vld [vmem:[#allocation3 + $0xa0] sm:$0xff]
      %v6004 = vld [vmem:[#allocation3 + $0xa8] sm:$0xff]
      %v6005 = vld [vmem:[#allocation3 + $0xb0] sm:$0xff]
      %v6006 = vld [vmem:[#allocation3 + $0xb8] sm:$0xff]
      %v6007 = vld [vmem:[#allocation3 + $0xc0] sm:$0xff]
      %v6008 = vld [vmem:[#allocation3 + $0xc8] sm:$0xff]
      %v6009 = vld [vmem:[#allocation3 + $0xd0] sm:$0xff]
      %v6010 = vld [vmem:[#allocation3 + $0xd8] sm:$0xff]
      %v6011 = vld [vmem:[#allocation3 + $0xe0] sm:$0xff]
      %v6012 = vld [vmem:[#allocation3 + $0xe8] sm:$0xff]
      %v6013 = vld [vmem:[#allocation3 + $0xf0] sm:$0xff]
      %v6014 = vld [vmem:[#allocation3 + $0xf8] sm:$0xff]
      %s6015 = scalar_lea.vmem %s3, 440
      %v6016 = vld [vmem:[%s6015] sm:$0xf]
      %v6017 = vld [vmem:[%s6015 + $0x4] sm:$0xf]
      %v6018 = vld [vmem:[%s6015 + $0x8] sm:$0xf]
      %v6019 = vld [vmem:[%s6015 + $0xc] sm:$0xf]
      %v6020 = vld [vmem:[%s6015 + $0x10] sm:$0xf]
      %v6021 = vld [vmem:[%s6015 + $0x14] sm:$0xf]
      %v6022 = vld [vmem:[%s6015 + $0x18] sm:$0xf]
      %v6023 = vld [vmem:[%s6015 + $0x1c] sm:$0xf]
      %v6024 = vld [vmem:[%s6015 + $0x20] sm:$0xf]
      %v6025 = vld [vmem:[%s6015 + $0x24] sm:$0xf]
      %v6026 = vld [vmem:[%s6015 + $0x28] sm:$0xf]
      %v6027 = vld [vmem:[%s6015 + $0x2c] sm:$0xf]
      %v6028 = vld [vmem:[%s6015 + $0x30] sm:$0xf]
      %v6029 = vld [vmem:[%s6015 + $0x34] sm:$0xf]
      %v6030 = vld [vmem:[%s6015 + $0x38] sm:$0xf]
      %v6031 = vld [vmem:[%s6015 + $0x3c] sm:$0xf]
      %v6032 = vld [vmem:[%s6015 + $0x40] sm:$0xf]
      %v6033 = vld [vmem:[%s6015 + $0x44] sm:$0xf]
      %v6034 = vld [vmem:[%s6015 + $0x48] sm:$0xf]
      %v6035 = vld [vmem:[%s6015 + $0x4c] sm:$0xf]
      %v6036 = vld [vmem:[%s6015 + $0x50] sm:$0xf]
      %v6037 = vld [vmem:[%s6015 + $0x54] sm:$0xf]
      %v6070 = vunpack.c.l.b16 %v5951
      %v6071 = vunpack.c.h.b16 %v5951
      %v6072 = vunpack.c.l.b16 %v5952
      %v6073 = vunpack.c.h.b16 %v5952
      %v6074 = vunpack.c.l.b16 %v5953
      %v6075 = vunpack.c.h.b16 %v5953
      %v6076 = vunpack.c.l.b16 %v5954
      %v6077 = vunpack.c.h.b16 %v5954
      %v6078 = vunpack.c.l.b16 %v5955
      %v6079 = vunpack.c.h.b16 %v5955
      %v6080 = vunpack.c.l.b16 %v5956
      %v6081 = vunpack.c.h.b16 %v5956
      %v6082 = vunpack.c.l.b16 %v5957
      %v6083 = vunpack.c.h.b16 %v5957
      %v6084 = vunpack.c.l.b16 %v5958
      %v6085 = vunpack.c.h.b16 %v5958
      %v6086 = vunpack.c.l.b16 %v5959
      %v6087 = vunpack.c.h.b16 %v5959
      %v6088 = vunpack.c.l.b16 %v5960
      %v6089 = vunpack.c.h.b16 %v5960
      %v6090 = vunpack.c.l.b16 %v5961
      %v6091 = vunpack.c.h.b16 %v5961
      %v6092 = vunpack.c.l.b16 %v5962
      %v6093 = vunpack.c.h.b16 %v5962
      %v6094 = vunpack.c.l.b16 %v5963
      %v6095 = vunpack.c.h.b16 %v5963
      %v6096 = vunpack.c.l.b16 %v5964
      %v6097 = vunpack.c.h.b16 %v5964
      %v6098 = vunpack.c.l.b16 %v5965
      %v6099 = vunpack.c.h.b16 %v5965
      %v6100 = vunpack.c.l.b16 %v5966
      %v6101 = vunpack.c.h.b16 %v5966
      %v6102 = vunpack.c.l.b16 %v5967
      %v6103 = vunpack.c.h.b16 %v5967
      %v6104 = vunpack.c.l.b16 %v5968
      %v6105 = vunpack.c.h.b16 %v5968
      %v6106 = vunpack.c.l.b16 %v5969
      %v6107 = vunpack.c.h.b16 %v5969
      %v6108 = vunpack.c.l.b16 %v5970
      %v6109 = vunpack.c.h.b16 %v5970
      %v6110 = vunpack.c.l.b16 %v5971
      %v6111 = vunpack.c.h.b16 %v5971
      %v6112 = vunpack.c.l.b16 %v5972
      %v6113 = vunpack.c.h.b16 %v5972
      %v6114 = vunpack.c.l.b16 %v5973
      %v6115 = vunpack.c.h.b16 %v5973
      %v6116 = vunpack.c.l.b16 %v5974
      %v6117 = vunpack.c.h.b16 %v5974
      %v6118 = vunpack.c.l.b16 %v5975
      %v6119 = vunpack.c.h.b16 %v5975
      %v6120 = vunpack.c.l.b16 %v5976
      %v6121 = vunpack.c.h.b16 %v5976
      %v6122 = vunpack.c.l.b16 %v5977
      %v6123 = vunpack.c.h.b16 %v5977
      %v6124 = vunpack.c.l.b16 %v5978
      %v6125 = vunpack.c.h.b16 %v5978
      %v6126 = vunpack.c.l.b16 %v5979
      %v6127 = vunpack.c.h.b16 %v5979
      %v6128 = vunpack.c.l.b16 %v5980
      %v6129 = vunpack.c.h.b16 %v5980
      %v6130 = vunpack.c.l.b16 %v5981
      %v6131 = vunpack.c.h.b16 %v5981
      %v6132 = vunpack.c.l.b16 %v5982
      %v6133 = vunpack.c.h.b16 %v5982
      %v6134 = vpack.c.b16 %v6072, %v6070
      %v6135 = vpack.c.b16 %v6073, %v6071
      %v6136 = vpack.c.b16 %v6076, %v6074
      %v6137 = vpack.c.b16 %v6077, %v6075
      %v6138 = vpack.c.b16 %v6080, %v6078
      %v6139 = vpack.c.b16 %v6081, %v6079
      %v6140 = vpack.c.b16 %v6084, %v6082
      %v6141 = vpack.c.b16 %v6085, %v6083
      %v6142 = vpack.c.b16 %v6088, %v6086
      %v6143 = vpack.c.b16 %v6089, %v6087
      %v6144 = vpack.c.b16 %v6092, %v6090
      %v6145 = vpack.c.b16 %v6093, %v6091
      %v6146 = vpack.c.b16 %v6096, %v6094
      %v6147 = vpack.c.b16 %v6097, %v6095
      %v6148 = vpack.c.b16 %v6100, %v6098
      %v6149 = vpack.c.b16 %v6101, %v6099
      %v6150 = vpack.c.b16 %v6104, %v6102
      %v6151 = vpack.c.b16 %v6105, %v6103
      %v6152 = vpack.c.b16 %v6108, %v6106
      %v6153 = vpack.c.b16 %v6109, %v6107
      %v6154 = vpack.c.b16 %v6112, %v6110
      %v6155 = vpack.c.b16 %v6113, %v6111
      %v6156 = vpack.c.b16 %v6116, %v6114
      %v6157 = vpack.c.b16 %v6117, %v6115
      %v6158 = vpack.c.b16 %v6120, %v6118
      %v6159 = vpack.c.b16 %v6121, %v6119
      %v6160 = vpack.c.b16 %v6124, %v6122
      %v6161 = vpack.c.b16 %v6125, %v6123
      %v6162 = vpack.c.b16 %v6128, %v6126
      %v6163 = vpack.c.b16 %v6129, %v6127
      %v6164 = vpack.c.b16 %v6132, %v6130
      %v6165 = vpack.c.b16 %v6133, %v6131
      %v6204 = vunpack.c.l.b16 %v6016
      %v6205 = vunpack.c.l.b16 %v6017
      %v6206 = vunpack.c.l.b16 %v6018
      %v6207 = vunpack.c.l.b16 %v6019
      %v6208 = vunpack.c.l.b16 %v6020
      %v6209 = vunpack.c.l.b16 %v6021
      %v6210 = vunpack.c.l.b16 %v6022
      %v6211 = vunpack.c.l.b16 %v6023
      %v6212 = vunpack.c.l.b16 %v6024
      %v6213 = vunpack.c.l.b16 %v6025
      %v6214 = vunpack.c.l.b16 %v6026
      %v6215 = vunpack.c.l.b16 %v6027
      %v6216 = vunpack.c.l.b16 %v6028
      %v6217 = vunpack.c.l.b16 %v6029
      %v6218 = vunpack.c.l.b16 %v6030
      %v6219 = vunpack.c.l.b16 %v6031
      %v6220 = vunpack.c.l.b16 %v6032
      %v6221 = vunpack.c.l.b16 %v6033
      %v6222 = vunpack.c.l.b16 %v6034
      %v6223 = vunpack.c.l.b16 %v6035
      %v6224 = vunpack.c.l.b16 %v6036
      %v6225 = vunpack.c.l.b16 %v6037
      %v6226 = vpack.c.b16 %v6205, %v6204
      %v6227 = vpack.c.b16 %v6207, %v6206
      %v6228 = vpack.c.b16 %v6209, %v6208
      %v6229 = vpack.c.b16 %v6211, %v6210
      %v6230 = vpack.c.b16 %v6213, %v6212
      %v6231 = vpack.c.b16 %v6215, %v6214
      %v6232 = vpack.c.b16 %v6217, %v6216
      %v6233 = vpack.c.b16 %v6219, %v6218
      %v6234 = vpack.c.b16 %v6221, %v6220
      %v6235 = vpack.c.b16 %v6223, %v6222
      %v6236 = vpack.c.b16 %v6225, %v6224
      %v6249 = vsel %vm3308, %v6135, 0
      %v6252 = vsel %vm3308, %v6137, 0
      %v6255 = vsel %vm3308, %v6139, 0
      %v6258 = vsel %vm3308, %v6141, 0
      %v6261 = vsel %vm3308, %v6143, 0
      %v6264 = vsel %vm3308, %v6145, 0
      %v6267 = vsel %vm3308, %v6147, 0
      %v6270 = vsel %vm3308, %v6149, 0
      %v6273 = vsel %vm3308, %v6151, 0
      %v6276 = vsel %vm3308, %v6153, 0
      %v6279 = vsel %vm3308, %v6155, 0
      %v6282 = vsel %vm3308, %v6157, 0
      %v6285 = vsel %vm3308, %v6159, 0
      %v6288 = vsel %vm3308, %v6161, 0
      %v6291 = vsel %vm3308, %v6163, 0
      %v6294 = vsel %vm3308, %v6165, 0
      %6296 = vmatpush.bf16.msra.mxu0 %v6233
      %6297 = vmatpush.bf16.msra.mxu0 %v6232
      %6298 = vmatpush.bf16.msra.mxu0 %v6231
      %6299 = vmatpush.bf16.msra.mxu0 %v6230
      %6300 = vmatpush.bf16.msra.mxu0 %v6229
      %6301 = vmatpush.bf16.msra.mxu0 %v6228
      %6302 = vmatpush.bf16.msra.mxu0 %v6227
      %6303 = vmatpush.bf16.msra.mxu0 %v6226
      %6304 = vmatmul.bf16.gmra.mxu0 %v6134
      %v6305 = vpop.f32.mrf.mxu0
      %v6306 = vadd.f32 0.0, %v6305
      %v6307 = vpop.f32.mrf.mxu0
      %v6308 = vadd.f32 0.0, %v6307
      %6309 = vmatmul.bf16.gmra.mxu0 %v6136
      %v6310 = vpop.f32.mrf.mxu0
      %v6311 = vadd.f32 0.0, %v6310
      %v6312 = vpop.f32.mrf.mxu0
      %v6313 = vadd.f32 0.0, %v6312
      %6314 = vmatmul.bf16.gmra.mxu0 %v6138
      %v6315 = vpop.f32.mrf.mxu0
      %v6316 = vadd.f32 0.0, %v6315
      %v6317 = vpop.f32.mrf.mxu0
      %v6318 = vadd.f32 0.0, %v6317
      %6319 = vmatmul.bf16.gmra.mxu0 %v6140
      %v6320 = vpop.f32.mrf.mxu0
      %v6321 = vadd.f32 0.0, %v6320
      %v6322 = vpop.f32.mrf.mxu0
      %v6323 = vadd.f32 0.0, %v6322
      %6324 = vmatmul.bf16.gmra.mxu0 %v6142
      %v6325 = vpop.f32.mrf.mxu0
      %v6326 = vadd.f32 0.0, %v6325
      %v6327 = vpop.f32.mrf.mxu0
      %v6328 = vadd.f32 0.0, %v6327
      %6329 = vmatmul.bf16.gmra.mxu0 %v6144
      %v6330 = vpop.f32.mrf.mxu0
      %v6331 = vadd.f32 0.0, %v6330
      %v6332 = vpop.f32.mrf.mxu0
      %v6333 = vadd.f32 0.0, %v6332
      %6334 = vmatmul.bf16.gmra.mxu0 %v6146
      %v6335 = vpop.f32.mrf.mxu0
      %v6336 = vadd.f32 0.0, %v6335
      %v6337 = vpop.f32.mrf.mxu0
      %v6338 = vadd.f32 0.0, %v6337
      %6339 = vmatmul.bf16.gmra.mxu0 %v6148
      %v6340 = vpop.f32.mrf.mxu0
      %v6341 = vadd.f32 0.0, %v6340
      %v6342 = vpop.f32.mrf.mxu0
      %v6343 = vadd.f32 0.0, %v6342
      %6344 = vmatmul.bf16.gmra.mxu0 %v6150
      %v6345 = vpop.f32.mrf.mxu0
      %v6346 = vadd.f32 0.0, %v6345
      %v6347 = vpop.f32.mrf.mxu0
      %v6348 = vadd.f32 0.0, %v6347
      %6349 = vmatmul.bf16.gmra.mxu0 %v6152
      %v6350 = vpop.f32.mrf.mxu0
      %v6351 = vadd.f32 0.0, %v6350
      %v6352 = vpop.f32.mrf.mxu0
      %v6353 = vadd.f32 0.0, %v6352
      %6354 = vmatmul.bf16.gmra.mxu0 %v6154
      %v6355 = vpop.f32.mrf.mxu0
      %v6356 = vadd.f32 0.0, %v6355
      %v6357 = vpop.f32.mrf.mxu0
      %v6358 = vadd.f32 0.0, %v6357
      %6359 = vmatmul.bf16.gmra.mxu0 %v6156
      %v6360 = vpop.f32.mrf.mxu0
      %v6361 = vadd.f32 0.0, %v6360
      %v6362 = vpop.f32.mrf.mxu0
      %v6363 = vadd.f32 0.0, %v6362
      %6364 = vmatmul.bf16.gmra.mxu0 %v6158
      %v6365 = vpop.f32.mrf.mxu0
      %v6366 = vadd.f32 0.0, %v6365
      %v6367 = vpop.f32.mrf.mxu0
      %v6368 = vadd.f32 0.0, %v6367
      %6369 = vmatmul.bf16.gmra.mxu0 %v6160
      %v6370 = vpop.f32.mrf.mxu0
      %v6371 = vadd.f32 0.0, %v6370
      %v6372 = vpop.f32.mrf.mxu0
      %v6373 = vadd.f32 0.0, %v6372
      %6374 = vmatmul.bf16.gmra.mxu0 %v6162
      %v6375 = vpop.f32.mrf.mxu0
      %v6376 = vadd.f32 0.0, %v6375
      %v6377 = vpop.f32.mrf.mxu0
      %v6378 = vadd.f32 0.0, %v6377
      %6379 = vmatmul.bf16.gmra.mxu0 %v6164
      %v6380 = vpop.f32.mrf.mxu0
      %v6381 = vadd.f32 0.0, %v6380
      %v6382 = vpop.f32.mrf.mxu0
      %v6383 = vadd.f32 0.0, %v6382
      %6384 = vdwg.mxu0
      %6385 = vmatpush.bf16.msra.mxu0 0
      %6386 = vmatpush.bf16.msra.mxu0 0
      %6387 = vmatpush.bf16.msra.mxu0 0
      %6388 = vmatpush.bf16.msra.mxu0 0
      %6389 = vmatpush.bf16.msra.mxu0 0
      %6390 = vmatpush.bf16.msra.mxu0 %v6236
      %6391 = vmatpush.bf16.msra.mxu0 %v6235
      %6392 = vmatpush.bf16.msra.mxu0 %v6234
      %6393 = vmatmul.bf16.gmra.mxu0 %v6249
      %v6394 = vpop.f32.mrf.mxu0
      %v6395 = vadd.f32 %v6306, %v6394
      %v6396 = vpop.f32.mrf.mxu0
      %v6397 = vadd.f32 %v6308, %v6396
      %6398 = vmatmul.bf16.gmra.mxu0 %v6252
      %v6399 = vpop.f32.mrf.mxu0
      %v6400 = vadd.f32 %v6311, %v6399
      %v6401 = vpop.f32.mrf.mxu0
      %v6402 = vadd.f32 %v6313, %v6401
      %6403 = vmatmul.bf16.gmra.mxu0 %v6255
      %v6404 = vpop.f32.mrf.mxu0
      %v6405 = vadd.f32 %v6316, %v6404
      %v6406 = vpop.f32.mrf.mxu0
      %v6407 = vadd.f32 %v6318, %v6406
      %6408 = vmatmul.bf16.gmra.mxu0 %v6258
      %v6409 = vpop.f32.mrf.mxu0
      %v6410 = vadd.f32 %v6321, %v6409
      %v6411 = vpop.f32.mrf.mxu0
      %v6412 = vadd.f32 %v6323, %v6411
      %6413 = vmatmul.bf16.gmra.mxu0 %v6261
      %v6414 = vpop.f32.mrf.mxu0
      %v6415 = vadd.f32 %v6326, %v6414
      %v6416 = vpop.f32.mrf.mxu0
      %v6417 = vadd.f32 %v6328, %v6416
      %6418 = vmatmul.bf16.gmra.mxu0 %v6264
      %v6419 = vpop.f32.mrf.mxu0
      %v6420 = vadd.f32 %v6331, %v6419
      %v6421 = vpop.f32.mrf.mxu0
      %v6422 = vadd.f32 %v6333, %v6421
      %6423 = vmatmul.bf16.gmra.mxu0 %v6267
      %v6424 = vpop.f32.mrf.mxu0
      %v6425 = vadd.f32 %v6336, %v6424
      %v6426 = vpop.f32.mrf.mxu0
      %v6427 = vadd.f32 %v6338, %v6426
      %6428 = vmatmul.bf16.gmra.mxu0 %v6270
      %v6429 = vpop.f32.mrf.mxu0
      %v6430 = vadd.f32 %v6341, %v6429
      %v6431 = vpop.f32.mrf.mxu0
      %v6432 = vadd.f32 %v6343, %v6431
      %6433 = vmatmul.bf16.gmra.mxu0 %v6273
      %v6434 = vpop.f32.mrf.mxu0
      %v6435 = vadd.f32 %v6346, %v6434
      %v6436 = vpop.f32.mrf.mxu0
      %v6437 = vadd.f32 %v6348, %v6436
      %6438 = vmatmul.bf16.gmra.mxu0 %v6276
      %v6439 = vpop.f32.mrf.mxu0
      %v6440 = vadd.f32 %v6351, %v6439
      %v6441 = vpop.f32.mrf.mxu0
      %v6442 = vadd.f32 %v6353, %v6441
      %6443 = vmatmul.bf16.gmra.mxu0 %v6279
      %v6444 = vpop.f32.mrf.mxu0
      %v6445 = vadd.f32 %v6356, %v6444
      %v6446 = vpop.f32.mrf.mxu0
      %v6447 = vadd.f32 %v6358, %v6446
      %6448 = vmatmul.bf16.gmra.mxu0 %v6282
      %v6449 = vpop.f32.mrf.mxu0
      %v6450 = vadd.f32 %v6361, %v6449
      %v6451 = vpop.f32.mrf.mxu0
      %v6452 = vadd.f32 %v6363, %v6451
      %6453 = vmatmul.bf16.gmra.mxu0 %v6285
      %v6454 = vpop.f32.mrf.mxu0
      %v6455 = vadd.f32 %v6366, %v6454
      %v6456 = vpop.f32.mrf.mxu0
      %v6457 = vadd.f32 %v6368, %v6456
      %6458 = vmatmul.bf16.gmra.mxu0 %v6288
      %v6459 = vpop.f32.mrf.mxu0
      %v6460 = vadd.f32 %v6371, %v6459
      %v6461 = vpop.f32.mrf.mxu0
      %v6462 = vadd.f32 %v6373, %v6461
      %6463 = vmatmul.bf16.gmra.mxu0 %v6291
      %v6464 = vpop.f32.mrf.mxu0
      %v6465 = vadd.f32 %v6376, %v6464
      %v6466 = vpop.f32.mrf.mxu0
      %v6467 = vadd.f32 %v6378, %v6466
      %6468 = vmatmul.bf16.gmra.mxu0 %v6294
      %v6469 = vpop.f32.mrf.mxu0
      %v6470 = vadd.f32 %v6381, %v6469
      %v6471 = vpop.f32.mrf.mxu0
      %v6472 = vadd.f32 %v6383, %v6471
      %6473 = vdwg.mxu0
      %v6474 = vadd.f32 %v5983, %v6395
      %v6475 = vadd.f32 %v5984, %v6397
      %v6476 = vadd.f32 %v5985, %v6400
      %v6477 = vadd.f32 %v5986, %v6402
      %v6478 = vadd.f32 %v5987, %v6405
      %v6479 = vadd.f32 %v5988, %v6407
      %v6480 = vadd.f32 %v5989, %v6410
      %v6481 = vadd.f32 %v5990, %v6412
      %v6482 = vadd.f32 %v5991, %v6415
      %v6483 = vadd.f32 %v5992, %v6417
      %v6484 = vadd.f32 %v5993, %v6420
      %v6485 = vadd.f32 %v5994, %v6422
      %v6486 = vadd.f32 %v5995, %v6425
      %v6487 = vadd.f32 %v5996, %v6427
      %v6488 = vadd.f32 %v5997, %v6430
      %v6489 = vadd.f32 %v5998, %v6432
      %v6490 = vadd.f32 %v5999, %v6435
      %v6491 = vadd.f32 %v6000, %v6437
      %v6492 = vadd.f32 %v6001, %v6440
      %v6493 = vadd.f32 %v6002, %v6442
      %v6494 = vadd.f32 %v6003, %v6445
      %v6495 = vadd.f32 %v6004, %v6447
      %v6496 = vadd.f32 %v6005, %v6450
      %v6497 = vadd.f32 %v6006, %v6452
      %v6498 = vadd.f32 %v6007, %v6455
      %v6499 = vadd.f32 %v6008, %v6457
      %v6500 = vadd.f32 %v6009, %v6460
      %v6501 = vadd.f32 %v6010, %v6462
      %v6502 = vadd.f32 %v6011, %v6465
      %v6503 = vadd.f32 %v6012, %v6467
      %v6504 = vadd.f32 %v6013, %v6470
      %v6505 = vadd.f32 %v6014, %v6472
      %6506 = vst.msk [vmem:[#allocation3] sm:$0xff] %vm2979, %v6474
      %6507 = vst.msk [vmem:[#allocation3 + $0x8] sm:$0xff] %vm2979, %v6475
      %6508 = vst.msk [vmem:[#allocation3 + $0x10] sm:$0xff] %vm2979, %v6476
      %6509 = vst.msk [vmem:[#allocation3 + $0x18] sm:$0xff] %vm2979, %v6477
      %6510 = vst.msk [vmem:[#allocation3 + $0x20] sm:$0xff] %vm2979, %v6478
      %6511 = vst.msk [vmem:[#allocation3 + $0x28] sm:$0xff] %vm2979, %v6479
      %6512 = vst.msk [vmem:[#allocation3 + $0x30] sm:$0xff] %vm2979, %v6480
      %6513 = vst.msk [vmem:[#allocation3 + $0x38] sm:$0xff] %vm2979, %v6481
      %6514 = vst.msk [vmem:[#allocation3 + $0x40] sm:$0xff] %vm2979, %v6482
      %6515 = vst.msk [vmem:[#allocation3 + $0x48] sm:$0xff] %vm2979, %v6483
      %6516 = vst.msk [vmem:[#allocation3 + $0x50] sm:$0xff] %vm2979, %v6484
      %6517 = vst.msk [vmem:[#allocation3 + $0x58] sm:$0xff] %vm2979, %v6485
      %6518 = vst.msk [vmem:[#allocation3 + $0x60] sm:$0xff] %vm2979, %v6486
      %6519 = vst.msk [vmem:[#allocation3 + $0x68] sm:$0xff] %vm2979, %v6487
      %6520 = vst.msk [vmem:[#allocation3 + $0x70] sm:$0xff] %vm2979, %v6488
      %6521 = vst.msk [vmem:[#allocation3 + $0x78] sm:$0xff] %vm2979, %v6489
      %6522 = vst.msk [vmem:[#allocation3 + $0x80] sm:$0xff] %vm2979, %v6490
      %6523 = vst.msk [vmem:[#allocation3 + $0x88] sm:$0xff] %vm2979, %v6491
      %6524 = vst.msk [vmem:[#allocation3 + $0x90] sm:$0xff] %vm2979, %v6492
      %6525 = vst.msk [vmem:[#allocation3 + $0x98] sm:$0xff] %vm2979, %v6493
      %6526 = vst.msk [vmem:[#allocation3 + $0xa0] sm:$0xff] %vm2979, %v6494
      %6527 = vst.msk [vmem:[#allocation3 + $0xa8] sm:$0xff] %vm2979, %v6495
      %6528 = vst.msk [vmem:[#allocation3 + $0xb0] sm:$0xff] %vm2979, %v6496
      %6529 = vst.msk [vmem:[#allocation3 + $0xb8] sm:$0xff] %vm2979, %v6497
      %6530 = vst.msk [vmem:[#allocation3 + $0xc0] sm:$0xff] %vm2979, %v6498
      %6531 = vst.msk [vmem:[#allocation3 + $0xc8] sm:$0xff] %vm2979, %v6499
      %6532 = vst.msk [vmem:[#allocation3 + $0xd0] sm:$0xff] %vm2979, %v6500
      %6533 = vst.msk [vmem:[#allocation3 + $0xd8] sm:$0xff] %vm2979, %v6501
      %6534 = vst.msk [vmem:[#allocation3 + $0xe0] sm:$0xff] %vm2979, %v6502
      %6535 = vst.msk [vmem:[#allocation3 + $0xe8] sm:$0xff] %vm2979, %v6503
      %6536 = vst.msk [vmem:[#allocation3 + $0xf0] sm:$0xff] %vm2979, %v6504
      %6537 = vst.msk [vmem:[#allocation3 + $0xf8] sm:$0xff] %vm2979, %v6505
      %s6538 = scalar_lea.vmem [#allocation2], 96
      %v6539 = vld [vmem:[%s6538] sm:$0xff]
      %v6540 = vld [vmem:[%s6538 + $0x8] sm:$0xff]
      %v6541 = vld [vmem:[%s6538 + $0x10] sm:$0xff]
      %v6542 = vld [vmem:[%s6538 + $0x18] sm:$0xff]
      %v6543 = vld [vmem:[%s6538 + $0x20] sm:$0xff]
      %v6544 = vld [vmem:[%s6538 + $0x28] sm:$0xff]
      %v6545 = vld [vmem:[%s6538 + $0x30] sm:$0xff]
      %v6546 = vld [vmem:[%s6538 + $0x38] sm:$0xff]
      %v6547 = vld [vmem:[%s6538 + $0x40] sm:$0xff]
      %v6548 = vld [vmem:[%s6538 + $0x48] sm:$0xff]
      %v6549 = vld [vmem:[%s6538 + $0x50] sm:$0xff]
      %v6550 = vld [vmem:[%s6538 + $0x58] sm:$0xff]
      %v6551 = vld [vmem:[%s6538 + $0x60] sm:$0xff]
      %v6552 = vld [vmem:[%s6538 + $0x68] sm:$0xff]
      %v6553 = vld [vmem:[%s6538 + $0x70] sm:$0xff]
      %v6554 = vld [vmem:[%s6538 + $0x78] sm:$0xff]
      %v6555 = vld [vmem:[%s6538 + $0x80] sm:$0xff]
      %v6556 = vld [vmem:[%s6538 + $0x88] sm:$0xff]
      %v6557 = vld [vmem:[%s6538 + $0x90] sm:$0xff]
      %v6558 = vld [vmem:[%s6538 + $0x98] sm:$0xff]
      %v6559 = vld [vmem:[%s6538 + $0xa0] sm:$0xff]
      %v6560 = vld [vmem:[%s6538 + $0xa8] sm:$0xff]
      %v6561 = vld [vmem:[%s6538 + $0xb0] sm:$0xff]
      %v6562 = vld [vmem:[%s6538 + $0xb8] sm:$0xff]
      %v6563 = vld [vmem:[%s6538 + $0xc0] sm:$0xff]
      %v6564 = vld [vmem:[%s6538 + $0xc8] sm:$0xff]
      %v6565 = vld [vmem:[%s6538 + $0xd0] sm:$0xff]
      %v6566 = vld [vmem:[%s6538 + $0xd8] sm:$0xff]
      %v6567 = vld [vmem:[%s6538 + $0xe0] sm:$0xff]
      %v6568 = vld [vmem:[%s6538 + $0xe8] sm:$0xff]
      %v6569 = vld [vmem:[%s6538 + $0xf0] sm:$0xff]
      %v6570 = vld [vmem:[%s6538 + $0xf8] sm:$0xff]
      %v6571 = vld [vmem:[#allocation3] sm:$0xff]
      %v6572 = vld [vmem:[#allocation3 + $0x8] sm:$0xff]
      %v6573 = vld [vmem:[#allocation3 + $0x10] sm:$0xff]
      %v6574 = vld [vmem:[#allocation3 + $0x18] sm:$0xff]
      %v6575 = vld [vmem:[#allocation3 + $0x20] sm:$0xff]
      %v6576 = vld [vmem:[#allocation3 + $0x28] sm:$0xff]
      %v6577 = vld [vmem:[#allocation3 + $0x30] sm:$0xff]
      %v6578 = vld [vmem:[#allocation3 + $0x38] sm:$0xff]
      %v6579 = vld [vmem:[#allocation3 + $0x40] sm:$0xff]
      %v6580 = vld [vmem:[#allocation3 + $0x48] sm:$0xff]
      %v6581 = vld [vmem:[#allocation3 + $0x50] sm:$0xff]
      %v6582 = vld [vmem:[#allocation3 + $0x58] sm:$0xff]
      %v6583 = vld [vmem:[#allocation3 + $0x60] sm:$0xff]
      %v6584 = vld [vmem:[#allocation3 + $0x68] sm:$0xff]
      %v6585 = vld [vmem:[#allocation3 + $0x70] sm:$0xff]
      %v6586 = vld [vmem:[#allocation3 + $0x78] sm:$0xff]
      %v6587 = vld [vmem:[#allocation3 + $0x80] sm:$0xff]
      %v6588 = vld [vmem:[#allocation3 + $0x88] sm:$0xff]
      %v6589 = vld [vmem:[#allocation3 + $0x90] sm:$0xff]
      %v6590 = vld [vmem:[#allocation3 + $0x98] sm:$0xff]
      %v6591 = vld [vmem:[#allocation3 + $0xa0] sm:$0xff]
      %v6592 = vld [vmem:[#allocation3 + $0xa8] sm:$0xff]
      %v6593 = vld [vmem:[#allocation3 + $0xb0] sm:$0xff]
      %v6594 = vld [vmem:[#allocation3 + $0xb8] sm:$0xff]
      %v6595 = vld [vmem:[#allocation3 + $0xc0] sm:$0xff]
      %v6596 = vld [vmem:[#allocation3 + $0xc8] sm:$0xff]
      %v6597 = vld [vmem:[#allocation3 + $0xd0] sm:$0xff]
      %v6598 = vld [vmem:[#allocation3 + $0xd8] sm:$0xff]
      %v6599 = vld [vmem:[#allocation3 + $0xe0] sm:$0xff]
      %v6600 = vld [vmem:[#allocation3 + $0xe8] sm:$0xff]
      %v6601 = vld [vmem:[#allocation3 + $0xf0] sm:$0xff]
      %v6602 = vld [vmem:[#allocation3 + $0xf8] sm:$0xff]
      %s6603 = scalar_lea.vmem %s3, 528
      %v6604 = vld [vmem:[%s6603] sm:$0xf]
      %v6605 = vld [vmem:[%s6603 + $0x4] sm:$0xf]
      %v6606 = vld [vmem:[%s6603 + $0x8] sm:$0xf]
      %v6607 = vld [vmem:[%s6603 + $0xc] sm:$0xf]
      %v6608 = vld [vmem:[%s6603 + $0x10] sm:$0xf]
      %v6609 = vld [vmem:[%s6603 + $0x14] sm:$0xf]
      %v6610 = vld [vmem:[%s6603 + $0x18] sm:$0xf]
      %v6611 = vld [vmem:[%s6603 + $0x1c] sm:$0xf]
      %v6612 = vld [vmem:[%s6603 + $0x20] sm:$0xf]
      %v6613 = vld [vmem:[%s6603 + $0x24] sm:$0xf]
      %v6614 = vld [vmem:[%s6603 + $0x28] sm:$0xf]
      %v6615 = vld [vmem:[%s6603 + $0x2c] sm:$0xf]
      %v6616 = vld [vmem:[%s6603 + $0x30] sm:$0xf]
      %v6617 = vld [vmem:[%s6603 + $0x34] sm:$0xf]
      %v6618 = vld [vmem:[%s6603 + $0x38] sm:$0xf]
      %v6619 = vld [vmem:[%s6603 + $0x3c] sm:$0xf]
      %v6620 = vld [vmem:[%s6603 + $0x40] sm:$0xf]
      %v6621 = vld [vmem:[%s6603 + $0x44] sm:$0xf]
      %v6622 = vld [vmem:[%s6603 + $0x48] sm:$0xf]
      %v6623 = vld [vmem:[%s6603 + $0x4c] sm:$0xf]
      %v6624 = vld [vmem:[%s6603 + $0x50] sm:$0xf]
      %v6625 = vld [vmem:[%s6603 + $0x54] sm:$0xf]
      %v6658 = vunpack.c.l.b16 %v6539
      %v6659 = vunpack.c.h.b16 %v6539
      %v6660 = vunpack.c.l.b16 %v6540
      %v6661 = vunpack.c.h.b16 %v6540
      %v6662 = vunpack.c.l.b16 %v6541
      %v6663 = vunpack.c.h.b16 %v6541
      %v6664 = vunpack.c.l.b16 %v6542
      %v6665 = vunpack.c.h.b16 %v6542
      %v6666 = vunpack.c.l.b16 %v6543
      %v6667 = vunpack.c.h.b16 %v6543
      %v6668 = vunpack.c.l.b16 %v6544
      %v6669 = vunpack.c.h.b16 %v6544
      %v6670 = vunpack.c.l.b16 %v6545
      %v6671 = vunpack.c.h.b16 %v6545
      %v6672 = vunpack.c.l.b16 %v6546
      %v6673 = vunpack.c.h.b16 %v6546
      %v6674 = vunpack.c.l.b16 %v6547
      %v6675 = vunpack.c.h.b16 %v6547
      %v6676 = vunpack.c.l.b16 %v6548
      %v6677 = vunpack.c.h.b16 %v6548
      %v6678 = vunpack.c.l.b16 %v6549
      %v6679 = vunpack.c.h.b16 %v6549
      %v6680 = vunpack.c.l.b16 %v6550
      %v6681 = vunpack.c.h.b16 %v6550
      %v6682 = vunpack.c.l.b16 %v6551
      %v6683 = vunpack.c.h.b16 %v6551
      %v6684 = vunpack.c.l.b16 %v6552
      %v6685 = vunpack.c.h.b16 %v6552
      %v6686 = vunpack.c.l.b16 %v6553
      %v6687 = vunpack.c.h.b16 %v6553
      %v6688 = vunpack.c.l.b16 %v6554
      %v6689 = vunpack.c.h.b16 %v6554
      %v6690 = vunpack.c.l.b16 %v6555
      %v6691 = vunpack.c.h.b16 %v6555
      %v6692 = vunpack.c.l.b16 %v6556
      %v6693 = vunpack.c.h.b16 %v6556
      %v6694 = vunpack.c.l.b16 %v6557
      %v6695 = vunpack.c.h.b16 %v6557
      %v6696 = vunpack.c.l.b16 %v6558
      %v6697 = vunpack.c.h.b16 %v6558
      %v6698 = vunpack.c.l.b16 %v6559
      %v6699 = vunpack.c.h.b16 %v6559
      %v6700 = vunpack.c.l.b16 %v6560
      %v6701 = vunpack.c.h.b16 %v6560
      %v6702 = vunpack.c.l.b16 %v6561
      %v6703 = vunpack.c.h.b16 %v6561
      %v6704 = vunpack.c.l.b16 %v6562
      %v6705 = vunpack.c.h.b16 %v6562
      %v6706 = vunpack.c.l.b16 %v6563
      %v6707 = vunpack.c.h.b16 %v6563
      %v6708 = vunpack.c.l.b16 %v6564
      %v6709 = vunpack.c.h.b16 %v6564
      %v6710 = vunpack.c.l.b16 %v6565
      %v6711 = vunpack.c.h.b16 %v6565
      %v6712 = vunpack.c.l.b16 %v6566
      %v6713 = vunpack.c.h.b16 %v6566
      %v6714 = vunpack.c.l.b16 %v6567
      %v6715 = vunpack.c.h.b16 %v6567
      %v6716 = vunpack.c.l.b16 %v6568
      %v6717 = vunpack.c.h.b16 %v6568
      %v6718 = vunpack.c.l.b16 %v6569
      %v6719 = vunpack.c.h.b16 %v6569
      %v6720 = vunpack.c.l.b16 %v6570
      %v6721 = vunpack.c.h.b16 %v6570
      %v6722 = vpack.c.b16 %v6660, %v6658
      %v6723 = vpack.c.b16 %v6661, %v6659
      %v6724 = vpack.c.b16 %v6664, %v6662
      %v6725 = vpack.c.b16 %v6665, %v6663
      %v6726 = vpack.c.b16 %v6668, %v6666
      %v6727 = vpack.c.b16 %v6669, %v6667
      %v6728 = vpack.c.b16 %v6672, %v6670
      %v6729 = vpack.c.b16 %v6673, %v6671
      %v6730 = vpack.c.b16 %v6676, %v6674
      %v6731 = vpack.c.b16 %v6677, %v6675
      %v6732 = vpack.c.b16 %v6680, %v6678
      %v6733 = vpack.c.b16 %v6681, %v6679
      %v6734 = vpack.c.b16 %v6684, %v6682
      %v6735 = vpack.c.b16 %v6685, %v6683
      %v6736 = vpack.c.b16 %v6688, %v6686
      %v6737 = vpack.c.b16 %v6689, %v6687
      %v6738 = vpack.c.b16 %v6692, %v6690
      %v6739 = vpack.c.b16 %v6693, %v6691
      %v6740 = vpack.c.b16 %v6696, %v6694
      %v6741 = vpack.c.b16 %v6697, %v6695
      %v6742 = vpack.c.b16 %v6700, %v6698
      %v6743 = vpack.c.b16 %v6701, %v6699
      %v6744 = vpack.c.b16 %v6704, %v6702
      %v6745 = vpack.c.b16 %v6705, %v6703
      %v6746 = vpack.c.b16 %v6708, %v6706
      %v6747 = vpack.c.b16 %v6709, %v6707
      %v6748 = vpack.c.b16 %v6712, %v6710
      %v6749 = vpack.c.b16 %v6713, %v6711
      %v6750 = vpack.c.b16 %v6716, %v6714
      %v6751 = vpack.c.b16 %v6717, %v6715
      %v6752 = vpack.c.b16 %v6720, %v6718
      %v6753 = vpack.c.b16 %v6721, %v6719
      %v6792 = vunpack.c.l.b16 %v6604
      %v6793 = vunpack.c.l.b16 %v6605
      %v6794 = vunpack.c.l.b16 %v6606
      %v6795 = vunpack.c.l.b16 %v6607
      %v6796 = vunpack.c.l.b16 %v6608
      %v6797 = vunpack.c.l.b16 %v6609
      %v6798 = vunpack.c.l.b16 %v6610
      %v6799 = vunpack.c.l.b16 %v6611
      %v6800 = vunpack.c.l.b16 %v6612
      %v6801 = vunpack.c.l.b16 %v6613
      %v6802 = vunpack.c.l.b16 %v6614
      %v6803 = vunpack.c.l.b16 %v6615
      %v6804 = vunpack.c.l.b16 %v6616
      %v6805 = vunpack.c.l.b16 %v6617
      %v6806 = vunpack.c.l.b16 %v6618
      %v6807 = vunpack.c.l.b16 %v6619
      %v6808 = vunpack.c.l.b16 %v6620
      %v6809 = vunpack.c.l.b16 %v6621
      %v6810 = vunpack.c.l.b16 %v6622
      %v6811 = vunpack.c.l.b16 %v6623
      %v6812 = vunpack.c.l.b16 %v6624
      %v6813 = vunpack.c.l.b16 %v6625
      %v6814 = vpack.c.b16 %v6793, %v6792
      %v6815 = vpack.c.b16 %v6795, %v6794
      %v6816 = vpack.c.b16 %v6797, %v6796
      %v6817 = vpack.c.b16 %v6799, %v6798
      %v6818 = vpack.c.b16 %v6801, %v6800
      %v6819 = vpack.c.b16 %v6803, %v6802
      %v6820 = vpack.c.b16 %v6805, %v6804
      %v6821 = vpack.c.b16 %v6807, %v6806
      %v6822 = vpack.c.b16 %v6809, %v6808
      %v6823 = vpack.c.b16 %v6811, %v6810
      %v6824 = vpack.c.b16 %v6813, %v6812
      %v6837 = vsel %vm3308, %v6723, 0
      %v6840 = vsel %vm3308, %v6725, 0
      %v6843 = vsel %vm3308, %v6727, 0
      %v6846 = vsel %vm3308, %v6729, 0
      %v6849 = vsel %vm3308, %v6731, 0
      %v6852 = vsel %vm3308, %v6733, 0
      %v6855 = vsel %vm3308, %v6735, 0
      %v6858 = vsel %vm3308, %v6737, 0
      %v6861 = vsel %vm3308, %v6739, 0
      %v6864 = vsel %vm3308, %v6741, 0
      %v6867 = vsel %vm3308, %v6743, 0
      %v6870 = vsel %vm3308, %v6745, 0
      %v6873 = vsel %vm3308, %v6747, 0
      %v6876 = vsel %vm3308, %v6749, 0
      %v6879 = vsel %vm3308, %v6751, 0
      %v6882 = vsel %vm3308, %v6753, 0
      %6884 = vmatpush.bf16.msra.mxu0 %v6821
      %6885 = vmatpush.bf16.msra.mxu0 %v6820
      %6886 = vmatpush.bf16.msra.mxu0 %v6819
      %6887 = vmatpush.bf16.msra.mxu0 %v6818
      %6888 = vmatpush.bf16.msra.mxu0 %v6817
      %6889 = vmatpush.bf16.msra.mxu0 %v6816
      %6890 = vmatpush.bf16.msra.mxu0 %v6815
      %6891 = vmatpush.bf16.msra.mxu0 %v6814
      %6892 = vmatmul.bf16.gmra.mxu0 %v6722
      %v6893 = vpop.f32.mrf.mxu0
      %v6894 = vadd.f32 0.0, %v6893
      %v6895 = vpop.f32.mrf.mxu0
      %v6896 = vadd.f32 0.0, %v6895
      %6897 = vmatmul.bf16.gmra.mxu0 %v6724
      %v6898 = vpop.f32.mrf.mxu0
      %v6899 = vadd.f32 0.0, %v6898
      %v6900 = vpop.f32.mrf.mxu0
      %v6901 = vadd.f32 0.0, %v6900
      %6902 = vmatmul.bf16.gmra.mxu0 %v6726
      %v6903 = vpop.f32.mrf.mxu0
      %v6904 = vadd.f32 0.0, %v6903
      %v6905 = vpop.f32.mrf.mxu0
      %v6906 = vadd.f32 0.0, %v6905
      %6907 = vmatmul.bf16.gmra.mxu0 %v6728
      %v6908 = vpop.f32.mrf.mxu0
      %v6909 = vadd.f32 0.0, %v6908
      %v6910 = vpop.f32.mrf.mxu0
      %v6911 = vadd.f32 0.0, %v6910
      %6912 = vmatmul.bf16.gmra.mxu0 %v6730
      %v6913 = vpop.f32.mrf.mxu0
      %v6914 = vadd.f32 0.0, %v6913
      %v6915 = vpop.f32.mrf.mxu0
      %v6916 = vadd.f32 0.0, %v6915
      %6917 = vmatmul.bf16.gmra.mxu0 %v6732
      %v6918 = vpop.f32.mrf.mxu0
      %v6919 = vadd.f32 0.0, %v6918
      %v6920 = vpop.f32.mrf.mxu0
      %v6921 = vadd.f32 0.0, %v6920
      %6922 = vmatmul.bf16.gmra.mxu0 %v6734
      %v6923 = vpop.f32.mrf.mxu0
      %v6924 = vadd.f32 0.0, %v6923
      %v6925 = vpop.f32.mrf.mxu0
      %v6926 = vadd.f32 0.0, %v6925
      %6927 = vmatmul.bf16.gmra.mxu0 %v6736
      %v6928 = vpop.f32.mrf.mxu0
      %v6929 = vadd.f32 0.0, %v6928
      %v6930 = vpop.f32.mrf.mxu0
      %v6931 = vadd.f32 0.0, %v6930
      %6932 = vmatmul.bf16.gmra.mxu0 %v6738
      %v6933 = vpop.f32.mrf.mxu0
      %v6934 = vadd.f32 0.0, %v6933
      %v6935 = vpop.f32.mrf.mxu0
      %v6936 = vadd.f32 0.0, %v6935
      %6937 = vmatmul.bf16.gmra.mxu0 %v6740
      %v6938 = vpop.f32.mrf.mxu0
      %v6939 = vadd.f32 0.0, %v6938
      %v6940 = vpop.f32.mrf.mxu0
      %v6941 = vadd.f32 0.0, %v6940
      %6942 = vmatmul.bf16.gmra.mxu0 %v6742
      %v6943 = vpop.f32.mrf.mxu0
      %v6944 = vadd.f32 0.0, %v6943
      %v6945 = vpop.f32.mrf.mxu0
      %v6946 = vadd.f32 0.0, %v6945
      %6947 = vmatmul.bf16.gmra.mxu0 %v6744
      %v6948 = vpop.f32.mrf.mxu0
      %v6949 = vadd.f32 0.0, %v6948
      %v6950 = vpop.f32.mrf.mxu0
      %v6951 = vadd.f32 0.0, %v6950
      %6952 = vmatmul.bf16.gmra.mxu0 %v6746
      %v6953 = vpop.f32.mrf.mxu0
      %v6954 = vadd.f32 0.0, %v6953
      %v6955 = vpop.f32.mrf.mxu0
      %v6956 = vadd.f32 0.0, %v6955
      %6957 = vmatmul.bf16.gmra.mxu0 %v6748
      %v6958 = vpop.f32.mrf.mxu0
      %v6959 = vadd.f32 0.0, %v6958
      %v6960 = vpop.f32.mrf.mxu0
      %v6961 = vadd.f32 0.0, %v6960
      %6962 = vmatmul.bf16.gmra.mxu0 %v6750
      %v6963 = vpop.f32.mrf.mxu0
      %v6964 = vadd.f32 0.0, %v6963
      %v6965 = vpop.f32.mrf.mxu0
      %v6966 = vadd.f32 0.0, %v6965
      %6967 = vmatmul.bf16.gmra.mxu0 %v6752
      %v6968 = vpop.f32.mrf.mxu0
      %v6969 = vadd.f32 0.0, %v6968
      %v6970 = vpop.f32.mrf.mxu0
      %v6971 = vadd.f32 0.0, %v6970
      %6972 = vdwg.mxu0
      %6973 = vmatpush.bf16.msra.mxu0 0
      %6974 = vmatpush.bf16.msra.mxu0 0
      %6975 = vmatpush.bf16.msra.mxu0 0
      %6976 = vmatpush.bf16.msra.mxu0 0
      %6977 = vmatpush.bf16.msra.mxu0 0
      %6978 = vmatpush.bf16.msra.mxu0 %v6824
      %6979 = vmatpush.bf16.msra.mxu0 %v6823
      %6980 = vmatpush.bf16.msra.mxu0 %v6822
      %6981 = vmatmul.bf16.gmra.mxu0 %v6837
      %v6982 = vpop.f32.mrf.mxu0
      %v6983 = vadd.f32 %v6894, %v6982
      %v6984 = vpop.f32.mrf.mxu0
      %v6985 = vadd.f32 %v6896, %v6984
      %6986 = vmatmul.bf16.gmra.mxu0 %v6840
      %v6987 = vpop.f32.mrf.mxu0
      %v6988 = vadd.f32 %v6899, %v6987
      %v6989 = vpop.f32.mrf.mxu0
      %v6990 = vadd.f32 %v6901, %v6989
      %6991 = vmatmul.bf16.gmra.mxu0 %v6843
      %v6992 = vpop.f32.mrf.mxu0
      %v6993 = vadd.f32 %v6904, %v6992
      %v6994 = vpop.f32.mrf.mxu0
      %v6995 = vadd.f32 %v6906, %v6994
      %6996 = vmatmul.bf16.gmra.mxu0 %v6846
      %v6997 = vpop.f32.mrf.mxu0
      %v6998 = vadd.f32 %v6909, %v6997
      %v6999 = vpop.f32.mrf.mxu0
      %v7000 = vadd.f32 %v6911, %v6999
      %7001 = vmatmul.bf16.gmra.mxu0 %v6849
      %v7002 = vpop.f32.mrf.mxu0
      %v7003 = vadd.f32 %v6914, %v7002
      %v7004 = vpop.f32.mrf.mxu0
      %v7005 = vadd.f32 %v6916, %v7004
      %7006 = vmatmul.bf16.gmra.mxu0 %v6852
      %v7007 = vpop.f32.mrf.mxu0
      %v7008 = vadd.f32 %v6919, %v7007
      %v7009 = vpop.f32.mrf.mxu0
      %v7010 = vadd.f32 %v6921, %v7009
      %7011 = vmatmul.bf16.gmra.mxu0 %v6855
      %v7012 = vpop.f32.mrf.mxu0
      %v7013 = vadd.f32 %v6924, %v7012
      %v7014 = vpop.f32.mrf.mxu0
      %v7015 = vadd.f32 %v6926, %v7014
      %7016 = vmatmul.bf16.gmra.mxu0 %v6858
      %v7017 = vpop.f32.mrf.mxu0
      %v7018 = vadd.f32 %v6929, %v7017
      %v7019 = vpop.f32.mrf.mxu0
      %v7020 = vadd.f32 %v6931, %v7019
      %7021 = vmatmul.bf16.gmra.mxu0 %v6861
      %v7022 = vpop.f32.mrf.mxu0
      %v7023 = vadd.f32 %v6934, %v7022
      %v7024 = vpop.f32.mrf.mxu0
      %v7025 = vadd.f32 %v6936, %v7024
      %7026 = vmatmul.bf16.gmra.mxu0 %v6864
      %v7027 = vpop.f32.mrf.mxu0
      %v7028 = vadd.f32 %v6939, %v7027
      %v7029 = vpop.f32.mrf.mxu0
      %v7030 = vadd.f32 %v6941, %v7029
      %7031 = vmatmul.bf16.gmra.mxu0 %v6867
      %v7032 = vpop.f32.mrf.mxu0
      %v7033 = vadd.f32 %v6944, %v7032
      %v7034 = vpop.f32.mrf.mxu0
      %v7035 = vadd.f32 %v6946, %v7034
      %7036 = vmatmul.bf16.gmra.mxu0 %v6870
      %v7037 = vpop.f32.mrf.mxu0
      %v7038 = vadd.f32 %v6949, %v7037
      %v7039 = vpop.f32.mrf.mxu0
      %v7040 = vadd.f32 %v6951, %v7039
      %7041 = vmatmul.bf16.gmra.mxu0 %v6873
      %v7042 = vpop.f32.mrf.mxu0
      %v7043 = vadd.f32 %v6954, %v7042
      %v7044 = vpop.f32.mrf.mxu0
      %v7045 = vadd.f32 %v6956, %v7044
      %7046 = vmatmul.bf16.gmra.mxu0 %v6876
      %v7047 = vpop.f32.mrf.mxu0
      %v7048 = vadd.f32 %v6959, %v7047
      %v7049 = vpop.f32.mrf.mxu0
      %v7050 = vadd.f32 %v6961, %v7049
      %7051 = vmatmul.bf16.gmra.mxu0 %v6879
      %v7052 = vpop.f32.mrf.mxu0
      %v7053 = vadd.f32 %v6964, %v7052
      %v7054 = vpop.f32.mrf.mxu0
      %v7055 = vadd.f32 %v6966, %v7054
      %7056 = vmatmul.bf16.gmra.mxu0 %v6882
      %v7057 = vpop.f32.mrf.mxu0
      %v7058 = vadd.f32 %v6969, %v7057
      %v7059 = vpop.f32.mrf.mxu0
      %v7060 = vadd.f32 %v6971, %v7059
      %7061 = vdwg.mxu0
      %v7062 = vadd.f32 %v6571, %v6983
      %v7063 = vadd.f32 %v6572, %v6985
      %v7064 = vadd.f32 %v6573, %v6988
      %v7065 = vadd.f32 %v6574, %v6990
      %v7066 = vadd.f32 %v6575, %v6993
      %v7067 = vadd.f32 %v6576, %v6995
      %v7068 = vadd.f32 %v6577, %v6998
      %v7069 = vadd.f32 %v6578, %v7000
      %v7070 = vadd.f32 %v6579, %v7003
      %v7071 = vadd.f32 %v6580, %v7005
      %v7072 = vadd.f32 %v6581, %v7008
      %v7073 = vadd.f32 %v6582, %v7010
      %v7074 = vadd.f32 %v6583, %v7013
      %v7075 = vadd.f32 %v6584, %v7015
      %v7076 = vadd.f32 %v6585, %v7018
      %v7077 = vadd.f32 %v6586, %v7020
      %v7078 = vadd.f32 %v6587, %v7023
      %v7079 = vadd.f32 %v6588, %v7025
      %v7080 = vadd.f32 %v6589, %v7028
      %v7081 = vadd.f32 %v6590, %v7030
      %v7082 = vadd.f32 %v6591, %v7033
      %v7083 = vadd.f32 %v6592, %v7035
      %v7084 = vadd.f32 %v6593, %v7038
      %v7085 = vadd.f32 %v6594, %v7040
      %v7086 = vadd.f32 %v6595, %v7043
      %v7087 = vadd.f32 %v6596, %v7045
      %v7088 = vadd.f32 %v6597, %v7048
      %v7089 = vadd.f32 %v6598, %v7050
      %v7090 = vadd.f32 %v6599, %v7053
      %v7091 = vadd.f32 %v6600, %v7055
      %v7092 = vadd.f32 %v6601, %v7058
      %v7093 = vadd.f32 %v6602, %v7060
      %7094 = vst.msk [vmem:[#allocation3] sm:$0xff] %vm2979, %v7062
      %7095 = vst.msk [vmem:[#allocation3 + $0x8] sm:$0xff] %vm2979, %v7063
      %7096 = vst.msk [vmem:[#allocation3 + $0x10] sm:$0xff] %vm2979, %v7064
      %7097 = vst.msk [vmem:[#allocation3 + $0x18] sm:$0xff] %vm2979, %v7065
      %7098 = vst.msk [vmem:[#allocation3 + $0x20] sm:$0xff] %vm2979, %v7066
      %7099 = vst.msk [vmem:[#allocation3 + $0x28] sm:$0xff] %vm2979, %v7067
      %7100 = vst.msk [vmem:[#allocation3 + $0x30] sm:$0xff] %vm2979, %v7068
      %7101 = vst.msk [vmem:[#allocation3 + $0x38] sm:$0xff] %vm2979, %v7069
      %7102 = vst.msk [vmem:[#allocation3 + $0x40] sm:$0xff] %vm2979, %v7070
      %7103 = vst.msk [vmem:[#allocation3 + $0x48] sm:$0xff] %vm2979, %v7071
      %7104 = vst.msk [vmem:[#allocation3 + $0x50] sm:$0xff] %vm2979, %v7072
      %7105 = vst.msk [vmem:[#allocation3 + $0x58] sm:$0xff] %vm2979, %v7073
      %7106 = vst.msk [vmem:[#allocation3 + $0x60] sm:$0xff] %vm2979, %v7074
      %7107 = vst.msk [vmem:[#allocation3 + $0x68] sm:$0xff] %vm2979, %v7075
      %7108 = vst.msk [vmem:[#allocation3 + $0x70] sm:$0xff] %vm2979, %v7076
      %7109 = vst.msk [vmem:[#allocation3 + $0x78] sm:$0xff] %vm2979, %v7077
      %7110 = vst.msk [vmem:[#allocation3 + $0x80] sm:$0xff] %vm2979, %v7078
      %7111 = vst.msk [vmem:[#allocation3 + $0x88] sm:$0xff] %vm2979, %v7079
      %7112 = vst.msk [vmem:[#allocation3 + $0x90] sm:$0xff] %vm2979, %v7080
      %7113 = vst.msk [vmem:[#allocation3 + $0x98] sm:$0xff] %vm2979, %v7081
      %7114 = vst.msk [vmem:[#allocation3 + $0xa0] sm:$0xff] %vm2979, %v7082
      %7115 = vst.msk [vmem:[#allocation3 + $0xa8] sm:$0xff] %vm2979, %v7083
      %7116 = vst.msk [vmem:[#allocation3 + $0xb0] sm:$0xff] %vm2979, %v7084
      %7117 = vst.msk [vmem:[#allocation3 + $0xb8] sm:$0xff] %vm2979, %v7085
      %7118 = vst.msk [vmem:[#allocation3 + $0xc0] sm:$0xff] %vm2979, %v7086
      %7119 = vst.msk [vmem:[#allocation3 + $0xc8] sm:$0xff] %vm2979, %v7087
      %7120 = vst.msk [vmem:[#allocation3 + $0xd0] sm:$0xff] %vm2979, %v7088
      %7121 = vst.msk [vmem:[#allocation3 + $0xd8] sm:$0xff] %vm2979, %v7089
      %7122 = vst.msk [vmem:[#allocation3 + $0xe0] sm:$0xff] %vm2979, %v7090
      %7123 = vst.msk [vmem:[#allocation3 + $0xe8] sm:$0xff] %vm2979, %v7091
      %7124 = vst.msk [vmem:[#allocation3 + $0xf0] sm:$0xff] %vm2979, %v7092
      %7125 = vst.msk [vmem:[#allocation3 + $0xf8] sm:$0xff] %vm2979, %v7093
      %s7126 = scalar_lea.vmem [#allocation2], 112
      %v7127 = vld [vmem:[%s7126] sm:$0xff]
      %v7128 = vld [vmem:[%s7126 + $0x8] sm:$0xff]
      %v7129 = vld [vmem:[%s7126 + $0x10] sm:$0xff]
      %v7130 = vld [vmem:[%s7126 + $0x18] sm:$0xff]
      %v7131 = vld [vmem:[%s7126 + $0x20] sm:$0xff]
      %v7132 = vld [vmem:[%s7126 + $0x28] sm:$0xff]
      %v7133 = vld [vmem:[%s7126 + $0x30] sm:$0xff]
      %v7134 = vld [vmem:[%s7126 + $0x38] sm:$0xff]
      %v7135 = vld [vmem:[%s7126 + $0x40] sm:$0xff]
      %v7136 = vld [vmem:[%s7126 + $0x48] sm:$0xff]
      %v7137 = vld [vmem:[%s7126 + $0x50] sm:$0xff]
      %v7138 = vld [vmem:[%s7126 + $0x58] sm:$0xff]
      %v7139 = vld [vmem:[%s7126 + $0x60] sm:$0xff]
      %v7140 = vld [vmem:[%s7126 + $0x68] sm:$0xff]
      %v7141 = vld [vmem:[%s7126 + $0x70] sm:$0xff]
      %v7142 = vld [vmem:[%s7126 + $0x78] sm:$0xff]
      %v7143 = vld [vmem:[%s7126 + $0x80] sm:$0xff]
      %v7144 = vld [vmem:[%s7126 + $0x88] sm:$0xff]
      %v7145 = vld [vmem:[%s7126 + $0x90] sm:$0xff]
      %v7146 = vld [vmem:[%s7126 + $0x98] sm:$0xff]
      %v7147 = vld [vmem:[%s7126 + $0xa0] sm:$0xff]
      %v7148 = vld [vmem:[%s7126 + $0xa8] sm:$0xff]
      %v7149 = vld [vmem:[%s7126 + $0xb0] sm:$0xff]
      %v7150 = vld [vmem:[%s7126 + $0xb8] sm:$0xff]
      %v7151 = vld [vmem:[%s7126 + $0xc0] sm:$0xff]
      %v7152 = vld [vmem:[%s7126 + $0xc8] sm:$0xff]
      %v7153 = vld [vmem:[%s7126 + $0xd0] sm:$0xff]
      %v7154 = vld [vmem:[%s7126 + $0xd8] sm:$0xff]
      %v7155 = vld [vmem:[%s7126 + $0xe0] sm:$0xff]
      %v7156 = vld [vmem:[%s7126 + $0xe8] sm:$0xff]
      %v7157 = vld [vmem:[%s7126 + $0xf0] sm:$0xff]
      %v7158 = vld [vmem:[%s7126 + $0xf8] sm:$0xff]
      %v7159 = vld [vmem:[#allocation3] sm:$0xff]
      %v7160 = vld [vmem:[#allocation3 + $0x8] sm:$0xff]
      %v7161 = vld [vmem:[#allocation3 + $0x10] sm:$0xff]
      %v7162 = vld [vmem:[#allocation3 + $0x18] sm:$0xff]
      %v7163 = vld [vmem:[#allocation3 + $0x20] sm:$0xff]
      %v7164 = vld [vmem:[#allocation3 + $0x28] sm:$0xff]
      %v7165 = vld [vmem:[#allocation3 + $0x30] sm:$0xff]
      %v7166 = vld [vmem:[#allocation3 + $0x38] sm:$0xff]
      %v7167 = vld [vmem:[#allocation3 + $0x40] sm:$0xff]
      %v7168 = vld [vmem:[#allocation3 + $0x48] sm:$0xff]
      %v7169 = vld [vmem:[#allocation3 + $0x50] sm:$0xff]
      %v7170 = vld [vmem:[#allocation3 + $0x58] sm:$0xff]
      %v7171 = vld [vmem:[#allocation3 + $0x60] sm:$0xff]
      %v7172 = vld [vmem:[#allocation3 + $0x68] sm:$0xff]
      %v7173 = vld [vmem:[#allocation3 + $0x70] sm:$0xff]
      %v7174 = vld [vmem:[#allocation3 + $0x78] sm:$0xff]
      %v7175 = vld [vmem:[#allocation3 + $0x80] sm:$0xff]
      %v7176 = vld [vmem:[#allocation3 + $0x88] sm:$0xff]
      %v7177 = vld [vmem:[#allocation3 + $0x90] sm:$0xff]
      %v7178 = vld [vmem:[#allocation3 + $0x98] sm:$0xff]
      %v7179 = vld [vmem:[#allocation3 + $0xa0] sm:$0xff]
      %v7180 = vld [vmem:[#allocation3 + $0xa8] sm:$0xff]
      %v7181 = vld [vmem:[#allocation3 + $0xb0] sm:$0xff]
      %v7182 = vld [vmem:[#allocation3 + $0xb8] sm:$0xff]
      %v7183 = vld [vmem:[#allocation3 + $0xc0] sm:$0xff]
      %v7184 = vld [vmem:[#allocation3 + $0xc8] sm:$0xff]
      %v7185 = vld [vmem:[#allocation3 + $0xd0] sm:$0xff]
      %v7186 = vld [vmem:[#allocation3 + $0xd8] sm:$0xff]
      %v7187 = vld [vmem:[#allocation3 + $0xe0] sm:$0xff]
      %v7188 = vld [vmem:[#allocation3 + $0xe8] sm:$0xff]
      %v7189 = vld [vmem:[#allocation3 + $0xf0] sm:$0xff]
      %v7190 = vld [vmem:[#allocation3 + $0xf8] sm:$0xff]
      %s7191 = scalar_lea.vmem %s3, 616
      %v7192 = vld [vmem:[%s7191] sm:$0xf]
      %v7193 = vld [vmem:[%s7191 + $0x4] sm:$0xf]
      %v7194 = vld [vmem:[%s7191 + $0x8] sm:$0xf]
      %v7195 = vld [vmem:[%s7191 + $0xc] sm:$0xf]
      %v7196 = vld [vmem:[%s7191 + $0x10] sm:$0xf]
      %v7197 = vld [vmem:[%s7191 + $0x14] sm:$0xf]
      %v7198 = vld [vmem:[%s7191 + $0x18] sm:$0xf]
      %v7199 = vld [vmem:[%s7191 + $0x1c] sm:$0xf]
      %v7200 = vld [vmem:[%s7191 + $0x20] sm:$0xf]
      %v7201 = vld [vmem:[%s7191 + $0x24] sm:$0xf]
      %v7202 = vld [vmem:[%s7191 + $0x28] sm:$0xf]
      %v7203 = vld [vmem:[%s7191 + $0x2c] sm:$0xf]
      %v7204 = vld [vmem:[%s7191 + $0x30] sm:$0xf]
      %v7205 = vld [vmem:[%s7191 + $0x34] sm:$0xf]
      %v7206 = vld [vmem:[%s7191 + $0x38] sm:$0xf]
      %v7207 = vld [vmem:[%s7191 + $0x3c] sm:$0xf]
      %v7208 = vld [vmem:[%s7191 + $0x40] sm:$0xf]
      %v7209 = vld [vmem:[%s7191 + $0x44] sm:$0xf]
      %v7210 = vld [vmem:[%s7191 + $0x48] sm:$0xf]
      %v7211 = vld [vmem:[%s7191 + $0x4c] sm:$0xf]
      %v7212 = vld [vmem:[%s7191 + $0x50] sm:$0xf]
      %v7213 = vld [vmem:[%s7191 + $0x54] sm:$0xf]
      %v7246 = vunpack.c.l.b16 %v7127
      %v7247 = vunpack.c.h.b16 %v7127
      %v7248 = vunpack.c.l.b16 %v7128
      %v7249 = vunpack.c.h.b16 %v7128
      %v7250 = vunpack.c.l.b16 %v7129
      %v7251 = vunpack.c.h.b16 %v7129
      %v7252 = vunpack.c.l.b16 %v7130
      %v7253 = vunpack.c.h.b16 %v7130
      %v7254 = vunpack.c.l.b16 %v7131
      %v7255 = vunpack.c.h.b16 %v7131
      %v7256 = vunpack.c.l.b16 %v7132
      %v7257 = vunpack.c.h.b16 %v7132
      %v7258 = vunpack.c.l.b16 %v7133
      %v7259 = vunpack.c.h.b16 %v7133
      %v7260 = vunpack.c.l.b16 %v7134
      %v7261 = vunpack.c.h.b16 %v7134
      %v7262 = vunpack.c.l.b16 %v7135
      %v7263 = vunpack.c.h.b16 %v7135
      %v7264 = vunpack.c.l.b16 %v7136
      %v7265 = vunpack.c.h.b16 %v7136
      %v7266 = vunpack.c.l.b16 %v7137
      %v7267 = vunpack.c.h.b16 %v7137
      %v7268 = vunpack.c.l.b16 %v7138
      %v7269 = vunpack.c.h.b16 %v7138
      %v7270 = vunpack.c.l.b16 %v7139
      %v7271 = vunpack.c.h.b16 %v7139
      %v7272 = vunpack.c.l.b16 %v7140
      %v7273 = vunpack.c.h.b16 %v7140
      %v7274 = vunpack.c.l.b16 %v7141
      %v7275 = vunpack.c.h.b16 %v7141
      %v7276 = vunpack.c.l.b16 %v7142
      %v7277 = vunpack.c.h.b16 %v7142
      %v7278 = vunpack.c.l.b16 %v7143
      %v7279 = vunpack.c.h.b16 %v7143
      %v7280 = vunpack.c.l.b16 %v7144
      %v7281 = vunpack.c.h.b16 %v7144
      %v7282 = vunpack.c.l.b16 %v7145
      %v7283 = vunpack.c.h.b16 %v7145
      %v7284 = vunpack.c.l.b16 %v7146
      %v7285 = vunpack.c.h.b16 %v7146
      %v7286 = vunpack.c.l.b16 %v7147
      %v7287 = vunpack.c.h.b16 %v7147
      %v7288 = vunpack.c.l.b16 %v7148
      %v7289 = vunpack.c.h.b16 %v7148
      %v7290 = vunpack.c.l.b16 %v7149
      %v7291 = vunpack.c.h.b16 %v7149
      %v7292 = vunpack.c.l.b16 %v7150
      %v7293 = vunpack.c.h.b16 %v7150
      %v7294 = vunpack.c.l.b16 %v7151
      %v7295 = vunpack.c.h.b16 %v7151
      %v7296 = vunpack.c.l.b16 %v7152
      %v7297 = vunpack.c.h.b16 %v7152
      %v7298 = vunpack.c.l.b16 %v7153
      %v7299 = vunpack.c.h.b16 %v7153
      %v7300 = vunpack.c.l.b16 %v7154
      %v7301 = vunpack.c.h.b16 %v7154
      %v7302 = vunpack.c.l.b16 %v7155
      %v7303 = vunpack.c.h.b16 %v7155
      %v7304 = vunpack.c.l.b16 %v7156
      %v7305 = vunpack.c.h.b16 %v7156
      %v7306 = vunpack.c.l.b16 %v7157
      %v7307 = vunpack.c.h.b16 %v7157
      %v7308 = vunpack.c.l.b16 %v7158
      %v7309 = vunpack.c.h.b16 %v7158
      %v7310 = vpack.c.b16 %v7248, %v7246
      %v7311 = vpack.c.b16 %v7249, %v7247
      %v7312 = vpack.c.b16 %v7252, %v7250
      %v7313 = vpack.c.b16 %v7253, %v7251
      %v7314 = vpack.c.b16 %v7256, %v7254
      %v7315 = vpack.c.b16 %v7257, %v7255
      %v7316 = vpack.c.b16 %v7260, %v7258
      %v7317 = vpack.c.b16 %v7261, %v7259
      %v7318 = vpack.c.b16 %v7264, %v7262
      %v7319 = vpack.c.b16 %v7265, %v7263
      %v7320 = vpack.c.b16 %v7268, %v7266
      %v7321 = vpack.c.b16 %v7269, %v7267
      %v7322 = vpack.c.b16 %v7272, %v7270
      %v7323 = vpack.c.b16 %v7273, %v7271
      %v7324 = vpack.c.b16 %v7276, %v7274
      %v7325 = vpack.c.b16 %v7277, %v7275
      %v7326 = vpack.c.b16 %v7280, %v7278
      %v7327 = vpack.c.b16 %v7281, %v7279
      %v7328 = vpack.c.b16 %v7284, %v7282
      %v7329 = vpack.c.b16 %v7285, %v7283
      %v7330 = vpack.c.b16 %v7288, %v7286
      %v7331 = vpack.c.b16 %v7289, %v7287
      %v7332 = vpack.c.b16 %v7292, %v7290
      %v7333 = vpack.c.b16 %v7293, %v7291
      %v7334 = vpack.c.b16 %v7296, %v7294
      %v7335 = vpack.c.b16 %v7297, %v7295
      %v7336 = vpack.c.b16 %v7300, %v7298
      %v7337 = vpack.c.b16 %v7301, %v7299
      %v7338 = vpack.c.b16 %v7304, %v7302
      %v7339 = vpack.c.b16 %v7305, %v7303
      %v7340 = vpack.c.b16 %v7308, %v7306
      %v7341 = vpack.c.b16 %v7309, %v7307
      %v7380 = vunpack.c.l.b16 %v7192
      %v7381 = vunpack.c.l.b16 %v7193
      %v7382 = vunpack.c.l.b16 %v7194
      %v7383 = vunpack.c.l.b16 %v7195
      %v7384 = vunpack.c.l.b16 %v7196
      %v7385 = vunpack.c.l.b16 %v7197
      %v7386 = vunpack.c.l.b16 %v7198
      %v7387 = vunpack.c.l.b16 %v7199
      %v7388 = vunpack.c.l.b16 %v7200
      %v7389 = vunpack.c.l.b16 %v7201
      %v7390 = vunpack.c.l.b16 %v7202
      %v7391 = vunpack.c.l.b16 %v7203
      %v7392 = vunpack.c.l.b16 %v7204
      %v7393 = vunpack.c.l.b16 %v7205
      %v7394 = vunpack.c.l.b16 %v7206
      %v7395 = vunpack.c.l.b16 %v7207
      %v7396 = vunpack.c.l.b16 %v7208
      %v7397 = vunpack.c.l.b16 %v7209
      %v7398 = vunpack.c.l.b16 %v7210
      %v7399 = vunpack.c.l.b16 %v7211
      %v7400 = vunpack.c.l.b16 %v7212
      %v7401 = vunpack.c.l.b16 %v7213
      %v7402 = vpack.c.b16 %v7381, %v7380
      %v7403 = vpack.c.b16 %v7383, %v7382
      %v7404 = vpack.c.b16 %v7385, %v7384
      %v7405 = vpack.c.b16 %v7387, %v7386
      %v7406 = vpack.c.b16 %v7389, %v7388
      %v7407 = vpack.c.b16 %v7391, %v7390
      %v7408 = vpack.c.b16 %v7393, %v7392
      %v7409 = vpack.c.b16 %v7395, %v7394
      %v7410 = vpack.c.b16 %v7397, %v7396
      %v7411 = vpack.c.b16 %v7399, %v7398
      %v7412 = vpack.c.b16 %v7401, %v7400
      %v7425 = vsel %vm3308, %v7311, 0
      %v7428 = vsel %vm3308, %v7313, 0
      %v7431 = vsel %vm3308, %v7315, 0
      %v7434 = vsel %vm3308, %v7317, 0
      %v7437 = vsel %vm3308, %v7319, 0
      %v7440 = vsel %vm3308, %v7321, 0
      %v7443 = vsel %vm3308, %v7323, 0
      %v7446 = vsel %vm3308, %v7325, 0
      %v7449 = vsel %vm3308, %v7327, 0
      %v7452 = vsel %vm3308, %v7329, 0
      %v7455 = vsel %vm3308, %v7331, 0
      %v7458 = vsel %vm3308, %v7333, 0
      %v7461 = vsel %vm3308, %v7335, 0
      %v7464 = vsel %vm3308, %v7337, 0
      %v7467 = vsel %vm3308, %v7339, 0
      %v7470 = vsel %vm3308, %v7341, 0
      %7472 = vmatpush.bf16.msra.mxu0 %v7409
      %7473 = vmatpush.bf16.msra.mxu0 %v7408
      %7474 = vmatpush.bf16.msra.mxu0 %v7407
      %7475 = vmatpush.bf16.msra.mxu0 %v7406
      %7476 = vmatpush.bf16.msra.mxu0 %v7405
      %7477 = vmatpush.bf16.msra.mxu0 %v7404
      %7478 = vmatpush.bf16.msra.mxu0 %v7403
      %7479 = vmatpush.bf16.msra.mxu0 %v7402
      %7480 = vmatmul.bf16.gmra.mxu0 %v7310
      %v7481 = vpop.f32.mrf.mxu0
      %v7482 = vadd.f32 0.0, %v7481
      %v7483 = vpop.f32.mrf.mxu0
      %v7484 = vadd.f32 0.0, %v7483
      %7485 = vmatmul.bf16.gmra.mxu0 %v7312
      %v7486 = vpop.f32.mrf.mxu0
      %v7487 = vadd.f32 0.0, %v7486
      %v7488 = vpop.f32.mrf.mxu0
      %v7489 = vadd.f32 0.0, %v7488
      %7490 = vmatmul.bf16.gmra.mxu0 %v7314
      %v7491 = vpop.f32.mrf.mxu0
      %v7492 = vadd.f32 0.0, %v7491
      %v7493 = vpop.f32.mrf.mxu0
      %v7494 = vadd.f32 0.0, %v7493
      %7495 = vmatmul.bf16.gmra.mxu0 %v7316
      %v7496 = vpop.f32.mrf.mxu0
      %v7497 = vadd.f32 0.0, %v7496
      %v7498 = vpop.f32.mrf.mxu0
      %v7499 = vadd.f32 0.0, %v7498
      %7500 = vmatmul.bf16.gmra.mxu0 %v7318
      %v7501 = vpop.f32.mrf.mxu0
      %v7502 = vadd.f32 0.0, %v7501
      %v7503 = vpop.f32.mrf.mxu0
      %v7504 = vadd.f32 0.0, %v7503
      %7505 = vmatmul.bf16.gmra.mxu0 %v7320
      %v7506 = vpop.f32.mrf.mxu0
      %v7507 = vadd.f32 0.0, %v7506
      %v7508 = vpop.f32.mrf.mxu0
      %v7509 = vadd.f32 0.0, %v7508
      %7510 = vmatmul.bf16.gmra.mxu0 %v7322
      %v7511 = vpop.f32.mrf.mxu0
      %v7512 = vadd.f32 0.0, %v7511
      %v7513 = vpop.f32.mrf.mxu0
      %v7514 = vadd.f32 0.0, %v7513
      %7515 = vmatmul.bf16.gmra.mxu0 %v7324
      %v7516 = vpop.f32.mrf.mxu0
      %v7517 = vadd.f32 0.0, %v7516
      %v7518 = vpop.f32.mrf.mxu0
      %v7519 = vadd.f32 0.0, %v7518
      %7520 = vmatmul.bf16.gmra.mxu0 %v7326
      %v7521 = vpop.f32.mrf.mxu0
      %v7522 = vadd.f32 0.0, %v7521
      %v7523 = vpop.f32.mrf.mxu0
      %v7524 = vadd.f32 0.0, %v7523
      %7525 = vmatmul.bf16.gmra.mxu0 %v7328
      %v7526 = vpop.f32.mrf.mxu0
      %v7527 = vadd.f32 0.0, %v7526
      %v7528 = vpop.f32.mrf.mxu0
      %v7529 = vadd.f32 0.0, %v7528
      %7530 = vmatmul.bf16.gmra.mxu0 %v7330
      %v7531 = vpop.f32.mrf.mxu0
      %v7532 = vadd.f32 0.0, %v7531
      %v7533 = vpop.f32.mrf.mxu0
      %v7534 = vadd.f32 0.0, %v7533
      %7535 = vmatmul.bf16.gmra.mxu0 %v7332
      %v7536 = vpop.f32.mrf.mxu0
      %v7537 = vadd.f32 0.0, %v7536
      %v7538 = vpop.f32.mrf.mxu0
      %v7539 = vadd.f32 0.0, %v7538
      %7540 = vmatmul.bf16.gmra.mxu0 %v7334
      %v7541 = vpop.f32.mrf.mxu0
      %v7542 = vadd.f32 0.0, %v7541
      %v7543 = vpop.f32.mrf.mxu0
      %v7544 = vadd.f32 0.0, %v7543
      %7545 = vmatmul.bf16.gmra.mxu0 %v7336
      %v7546 = vpop.f32.mrf.mxu0
      %v7547 = vadd.f32 0.0, %v7546
      %v7548 = vpop.f32.mrf.mxu0
      %v7549 = vadd.f32 0.0, %v7548
      %7550 = vmatmul.bf16.gmra.mxu0 %v7338
      %v7551 = vpop.f32.mrf.mxu0
      %v7552 = vadd.f32 0.0, %v7551
      %v7553 = vpop.f32.mrf.mxu0
      %v7554 = vadd.f32 0.0, %v7553
      %7555 = vmatmul.bf16.gmra.mxu0 %v7340
      %v7556 = vpop.f32.mrf.mxu0
      %v7557 = vadd.f32 0.0, %v7556
      %v7558 = vpop.f32.mrf.mxu0
      %v7559 = vadd.f32 0.0, %v7558
      %7560 = vdwg.mxu0
      %7561 = vmatpush.bf16.msra.mxu0 0
      %7562 = vmatpush.bf16.msra.mxu0 0
      %7563 = vmatpush.bf16.msra.mxu0 0
      %7564 = vmatpush.bf16.msra.mxu0 0
      %7565 = vmatpush.bf16.msra.mxu0 0
      %7566 = vmatpush.bf16.msra.mxu0 %v7412
      %7567 = vmatpush.bf16.msra.mxu0 %v7411
      %7568 = vmatpush.bf16.msra.mxu0 %v7410
      %7569 = vmatmul.bf16.gmra.mxu0 %v7425
      %v7570 = vpop.f32.mrf.mxu0
      %v7571 = vadd.f32 %v7482, %v7570
      %v7572 = vpop.f32.mrf.mxu0
      %v7573 = vadd.f32 %v7484, %v7572
      %7574 = vmatmul.bf16.gmra.mxu0 %v7428
      %v7575 = vpop.f32.mrf.mxu0
      %v7576 = vadd.f32 %v7487, %v7575
      %v7577 = vpop.f32.mrf.mxu0
      %v7578 = vadd.f32 %v7489, %v7577
      %7579 = vmatmul.bf16.gmra.mxu0 %v7431
      %v7580 = vpop.f32.mrf.mxu0
      %v7581 = vadd.f32 %v7492, %v7580
      %v7582 = vpop.f32.mrf.mxu0
      %v7583 = vadd.f32 %v7494, %v7582
      %7584 = vmatmul.bf16.gmra.mxu0 %v7434
      %v7585 = vpop.f32.mrf.mxu0
      %v7586 = vadd.f32 %v7497, %v7585
      %v7587 = vpop.f32.mrf.mxu0
      %v7588 = vadd.f32 %v7499, %v7587
      %7589 = vmatmul.bf16.gmra.mxu0 %v7437
      %v7590 = vpop.f32.mrf.mxu0
      %v7591 = vadd.f32 %v7502, %v7590
      %v7592 = vpop.f32.mrf.mxu0
      %v7593 = vadd.f32 %v7504, %v7592
      %7594 = vmatmul.bf16.gmra.mxu0 %v7440
      %v7595 = vpop.f32.mrf.mxu0
      %v7596 = vadd.f32 %v7507, %v7595
      %v7597 = vpop.f32.mrf.mxu0
      %v7598 = vadd.f32 %v7509, %v7597
      %7599 = vmatmul.bf16.gmra.mxu0 %v7443
      %v7600 = vpop.f32.mrf.mxu0
      %v7601 = vadd.f32 %v7512, %v7600
      %v7602 = vpop.f32.mrf.mxu0
      %v7603 = vadd.f32 %v7514, %v7602
      %7604 = vmatmul.bf16.gmra.mxu0 %v7446
      %v7605 = vpop.f32.mrf.mxu0
      %v7606 = vadd.f32 %v7517, %v7605
      %v7607 = vpop.f32.mrf.mxu0
      %v7608 = vadd.f32 %v7519, %v7607
      %7609 = vmatmul.bf16.gmra.mxu0 %v7449
      %v7610 = vpop.f32.mrf.mxu0
      %v7611 = vadd.f32 %v7522, %v7610
      %v7612 = vpop.f32.mrf.mxu0
      %v7613 = vadd.f32 %v7524, %v7612
      %7614 = vmatmul.bf16.gmra.mxu0 %v7452
      %v7615 = vpop.f32.mrf.mxu0
      %v7616 = vadd.f32 %v7527, %v7615
      %v7617 = vpop.f32.mrf.mxu0
      %v7618 = vadd.f32 %v7529, %v7617
      %7619 = vmatmul.bf16.gmra.mxu0 %v7455
      %v7620 = vpop.f32.mrf.mxu0
      %v7621 = vadd.f32 %v7532, %v7620
      %v7622 = vpop.f32.mrf.mxu0
      %v7623 = vadd.f32 %v7534, %v7622
      %7624 = vmatmul.bf16.gmra.mxu0 %v7458
      %v7625 = vpop.f32.mrf.mxu0
      %v7626 = vadd.f32 %v7537, %v7625
      %v7627 = vpop.f32.mrf.mxu0
      %v7628 = vadd.f32 %v7539, %v7627
      %7629 = vmatmul.bf16.gmra.mxu0 %v7461
      %v7630 = vpop.f32.mrf.mxu0
      %v7631 = vadd.f32 %v7542, %v7630
      %v7632 = vpop.f32.mrf.mxu0
      %v7633 = vadd.f32 %v7544, %v7632
      %7634 = vmatmul.bf16.gmra.mxu0 %v7464
      %v7635 = vpop.f32.mrf.mxu0
      %v7636 = vadd.f32 %v7547, %v7635
      %v7637 = vpop.f32.mrf.mxu0
      %v7638 = vadd.f32 %v7549, %v7637
      %7639 = vmatmul.bf16.gmra.mxu0 %v7467
      %v7640 = vpop.f32.mrf.mxu0
      %v7641 = vadd.f32 %v7552, %v7640
      %v7642 = vpop.f32.mrf.mxu0
      %v7643 = vadd.f32 %v7554, %v7642
      %7644 = vmatmul.bf16.gmra.mxu0 %v7470
      %v7645 = vpop.f32.mrf.mxu0
      %v7646 = vadd.f32 %v7557, %v7645
      %v7647 = vpop.f32.mrf.mxu0
      %v7648 = vadd.f32 %v7559, %v7647
      %7649 = vdwg.mxu0
      %v7650 = vadd.f32 %v7159, %v7571
      %v7651 = vadd.f32 %v7160, %v7573
      %v7652 = vadd.f32 %v7161, %v7576
      %v7653 = vadd.f32 %v7162, %v7578
      %v7654 = vadd.f32 %v7163, %v7581
      %v7655 = vadd.f32 %v7164, %v7583
      %v7656 = vadd.f32 %v7165, %v7586
      %v7657 = vadd.f32 %v7166, %v7588
      %v7658 = vadd.f32 %v7167, %v7591
      %v7659 = vadd.f32 %v7168, %v7593
      %v7660 = vadd.f32 %v7169, %v7596
      %v7661 = vadd.f32 %v7170, %v7598
      %v7662 = vadd.f32 %v7171, %v7601
      %v7663 = vadd.f32 %v7172, %v7603
      %v7664 = vadd.f32 %v7173, %v7606
      %v7665 = vadd.f32 %v7174, %v7608
      %v7666 = vadd.f32 %v7175, %v7611
      %v7667 = vadd.f32 %v7176, %v7613
      %v7668 = vadd.f32 %v7177, %v7616
      %v7669 = vadd.f32 %v7178, %v7618
      %v7670 = vadd.f32 %v7179, %v7621
      %v7671 = vadd.f32 %v7180, %v7623
      %v7672 = vadd.f32 %v7181, %v7626
      %v7673 = vadd.f32 %v7182, %v7628
      %v7674 = vadd.f32 %v7183, %v7631
      %v7675 = vadd.f32 %v7184, %v7633
      %v7676 = vadd.f32 %v7185, %v7636
      %v7677 = vadd.f32 %v7186, %v7638
      %v7678 = vadd.f32 %v7187, %v7641
      %v7679 = vadd.f32 %v7188, %v7643
      %v7680 = vadd.f32 %v7189, %v7646
      %v7681 = vadd.f32 %v7190, %v7648
      %7682 = vst.msk [vmem:[#allocation3] sm:$0xff] %vm2979, %v7650
      %7683 = vst.msk [vmem:[#allocation3 + $0x8] sm:$0xff] %vm2979, %v7651
      %7684 = vst.msk [vmem:[#allocation3 + $0x10] sm:$0xff] %vm2979, %v7652
      %7685 = vst.msk [vmem:[#allocation3 + $0x18] sm:$0xff] %vm2979, %v7653
      %7686 = vst.msk [vmem:[#allocation3 + $0x20] sm:$0xff] %vm2979, %v7654
      %7687 = vst.msk [vmem:[#allocation3 + $0x28] sm:$0xff] %vm2979, %v7655
      %7688 = vst.msk [vmem:[#allocation3 + $0x30] sm:$0xff] %vm2979, %v7656
      %7689 = vst.msk [vmem:[#allocation3 + $0x38] sm:$0xff] %vm2979, %v7657
      %7690 = vst.msk [vmem:[#allocation3 + $0x40] sm:$0xff] %vm2979, %v7658
      %7691 = vst.msk [vmem:[#allocation3 + $0x48] sm:$0xff] %vm2979, %v7659
      %7692 = vst.msk [vmem:[#allocation3 + $0x50] sm:$0xff] %vm2979, %v7660
      %7693 = vst.msk [vmem:[#allocation3 + $0x58] sm:$0xff] %vm2979, %v7661
      %7694 = vst.msk [vmem:[#allocation3 + $0x60] sm:$0xff] %vm2979, %v7662
      %7695 = vst.msk [vmem:[#allocation3 + $0x68] sm:$0xff] %vm2979, %v7663
      %7696 = vst.msk [vmem:[#allocation3 + $0x70] sm:$0xff] %vm2979, %v7664
      %7697 = vst.msk [vmem:[#allocation3 + $0x78] sm:$0xff] %vm2979, %v7665
      %7698 = vst.msk [vmem:[#allocation3 + $0x80] sm:$0xff] %vm2979, %v7666
      %7699 = vst.msk [vmem:[#allocation3 + $0x88] sm:$0xff] %vm2979, %v7667
      %7700 = vst.msk [vmem:[#allocation3 + $0x90] sm:$0xff] %vm2979, %v7668
      %7701 = vst.msk [vmem:[#allocation3 + $0x98] sm:$0xff] %vm2979, %v7669
      %7702 = vst.msk [vmem:[#allocation3 + $0xa0] sm:$0xff] %vm2979, %v7670
      %7703 = vst.msk [vmem:[#allocation3 + $0xa8] sm:$0xff] %vm2979, %v7671
      %7704 = vst.msk [vmem:[#allocation3 + $0xb0] sm:$0xff] %vm2979, %v7672
      %7705 = vst.msk [vmem:[#allocation3 + $0xb8] sm:$0xff] %vm2979, %v7673
      %7706 = vst.msk [vmem:[#allocation3 + $0xc0] sm:$0xff] %vm2979, %v7674
      %7707 = vst.msk [vmem:[#allocation3 + $0xc8] sm:$0xff] %vm2979, %v7675
      %7708 = vst.msk [vmem:[#allocation3 + $0xd0] sm:$0xff] %vm2979, %v7676
      %7709 = vst.msk [vmem:[#allocation3 + $0xd8] sm:$0xff] %vm2979, %v7677
      %7710 = vst.msk [vmem:[#allocation3 + $0xe0] sm:$0xff] %vm2979, %v7678
      %7711 = vst.msk [vmem:[#allocation3 + $0xe8] sm:$0xff] %vm2979, %v7679
      %7712 = vst.msk [vmem:[#allocation3 + $0xf0] sm:$0xff] %vm2979, %v7680
      %7713 = vst.msk [vmem:[#allocation3 + $0xf8] sm:$0xff] %vm2979, %v7681
      %s7714 = scalar_lea.vmem [#allocation2], 128
      %v7715 = vld [vmem:[%s7714] sm:$0xff]
      %v7716 = vld [vmem:[%s7714 + $0x8] sm:$0xff]
      %v7717 = vld [vmem:[%s7714 + $0x10] sm:$0xff]
      %v7718 = vld [vmem:[%s7714 + $0x18] sm:$0xff]
      %v7719 = vld [vmem:[%s7714 + $0x20] sm:$0xff]
      %v7720 = vld [vmem:[%s7714 + $0x28] sm:$0xff]
      %v7721 = vld [vmem:[%s7714 + $0x30] sm:$0xff]
      %v7722 = vld [vmem:[%s7714 + $0x38] sm:$0xff]
      %v7723 = vld [vmem:[%s7714 + $0x40] sm:$0xff]
      %v7724 = vld [vmem:[%s7714 + $0x48] sm:$0xff]
      %v7725 = vld [vmem:[%s7714 + $0x50] sm:$0xff]
      %v7726 = vld [vmem:[%s7714 + $0x58] sm:$0xff]
      %v7727 = vld [vmem:[%s7714 + $0x60] sm:$0xff]
      %v7728 = vld [vmem:[%s7714 + $0x68] sm:$0xff]
      %v7729 = vld [vmem:[%s7714 + $0x70] sm:$0xff]
      %v7730 = vld [vmem:[%s7714 + $0x78] sm:$0xff]
      %v7731 = vld [vmem:[%s7714 + $0x80] sm:$0xff]
      %v7732 = vld [vmem:[%s7714 + $0x88] sm:$0xff]
      %v7733 = vld [vmem:[%s7714 + $0x90] sm:$0xff]
      %v7734 = vld [vmem:[%s7714 + $0x98] sm:$0xff]
      %v7735 = vld [vmem:[%s7714 + $0xa0] sm:$0xff]
      %v7736 = vld [vmem:[%s7714 + $0xa8] sm:$0xff]
      %v7737 = vld [vmem:[%s7714 + $0xb0] sm:$0xff]
      %v7738 = vld [vmem:[%s7714 + $0xb8] sm:$0xff]
      %v7739 = vld [vmem:[%s7714 + $0xc0] sm:$0xff]
      %v7740 = vld [vmem:[%s7714 + $0xc8] sm:$0xff]
      %v7741 = vld [vmem:[%s7714 + $0xd0] sm:$0xff]
      %v7742 = vld [vmem:[%s7714 + $0xd8] sm:$0xff]
      %v7743 = vld [vmem:[%s7714 + $0xe0] sm:$0xff]
      %v7744 = vld [vmem:[%s7714 + $0xe8] sm:$0xff]
      %v7745 = vld [vmem:[%s7714 + $0xf0] sm:$0xff]
      %v7746 = vld [vmem:[%s7714 + $0xf8] sm:$0xff]
      %v7747 = vld [vmem:[#allocation3] sm:$0xff]
      %v7748 = vld [vmem:[#allocation3 + $0x8] sm:$0xff]
      %v7749 = vld [vmem:[#allocation3 + $0x10] sm:$0xff]
      %v7750 = vld [vmem:[#allocation3 + $0x18] sm:$0xff]
      %v7751 = vld [vmem:[#allocation3 + $0x20] sm:$0xff]
      %v7752 = vld [vmem:[#allocation3 + $0x28] sm:$0xff]
      %v7753 = vld [vmem:[#allocation3 + $0x30] sm:$0xff]
      %v7754 = vld [vmem:[#allocation3 + $0x38] sm:$0xff]
      %v7755 = vld [vmem:[#allocation3 + $0x40] sm:$0xff]
      %v7756 = vld [vmem:[#allocation3 + $0x48] sm:$0xff]
      %v7757 = vld [vmem:[#allocation3 + $0x50] sm:$0xff]
      %v7758 = vld [vmem:[#allocation3 + $0x58] sm:$0xff]
      %v7759 = vld [vmem:[#allocation3 + $0x60] sm:$0xff]
      %v7760 = vld [vmem:[#allocation3 + $0x68] sm:$0xff]
      %v7761 = vld [vmem:[#allocation3 + $0x70] sm:$0xff]
      %v7762 = vld [vmem:[#allocation3 + $0x78] sm:$0xff]
      %v7763 = vld [vmem:[#allocation3 + $0x80] sm:$0xff]
      %v7764 = vld [vmem:[#allocation3 + $0x88] sm:$0xff]
      %v7765 = vld [vmem:[#allocation3 + $0x90] sm:$0xff]
      %v7766 = vld [vmem:[#allocation3 + $0x98] sm:$0xff]
      %v7767 = vld [vmem:[#allocation3 + $0xa0] sm:$0xff]
      %v7768 = vld [vmem:[#allocation3 + $0xa8] sm:$0xff]
      %v7769 = vld [vmem:[#allocation3 + $0xb0] sm:$0xff]
      %v7770 = vld [vmem:[#allocation3 + $0xb8] sm:$0xff]
      %v7771 = vld [vmem:[#allocation3 + $0xc0] sm:$0xff]
      %v7772 = vld [vmem:[#allocation3 + $0xc8] sm:$0xff]
      %v7773 = vld [vmem:[#allocation3 + $0xd0] sm:$0xff]
      %v7774 = vld [vmem:[#allocation3 + $0xd8] sm:$0xff]
      %v7775 = vld [vmem:[#allocation3 + $0xe0] sm:$0xff]
      %v7776 = vld [vmem:[#allocation3 + $0xe8] sm:$0xff]
      %v7777 = vld [vmem:[#allocation3 + $0xf0] sm:$0xff]
      %v7778 = vld [vmem:[#allocation3 + $0xf8] sm:$0xff]
      %s7779 = scalar_lea.vmem %s3, 704
      %v7780 = vld [vmem:[%s7779] sm:$0xf]
      %v7781 = vld [vmem:[%s7779 + $0x4] sm:$0xf]
      %v7782 = vld [vmem:[%s7779 + $0x8] sm:$0xf]
      %v7783 = vld [vmem:[%s7779 + $0xc] sm:$0xf]
      %v7784 = vld [vmem:[%s7779 + $0x10] sm:$0xf]
      %v7785 = vld [vmem:[%s7779 + $0x14] sm:$0xf]
      %v7786 = vld [vmem:[%s7779 + $0x18] sm:$0xf]
      %v7787 = vld [vmem:[%s7779 + $0x1c] sm:$0xf]
      %v7788 = vld [vmem:[%s7779 + $0x20] sm:$0xf]
      %v7789 = vld [vmem:[%s7779 + $0x24] sm:$0xf]
      %v7790 = vld [vmem:[%s7779 + $0x28] sm:$0xf]
      %v7791 = vld [vmem:[%s7779 + $0x2c] sm:$0xf]
      %v7792 = vld [vmem:[%s7779 + $0x30] sm:$0xf]
      %v7793 = vld [vmem:[%s7779 + $0x34] sm:$0xf]
      %v7794 = vld [vmem:[%s7779 + $0x38] sm:$0xf]
      %v7795 = vld [vmem:[%s7779 + $0x3c] sm:$0xf]
      %v7796 = vld [vmem:[%s7779 + $0x40] sm:$0xf]
      %v7797 = vld [vmem:[%s7779 + $0x44] sm:$0xf]
      %v7798 = vld [vmem:[%s7779 + $0x48] sm:$0xf]
      %v7799 = vld [vmem:[%s7779 + $0x4c] sm:$0xf]
      %v7800 = vld [vmem:[%s7779 + $0x50] sm:$0xf]
      %v7801 = vld [vmem:[%s7779 + $0x54] sm:$0xf]
      %v7834 = vunpack.c.l.b16 %v7715
      %v7835 = vunpack.c.h.b16 %v7715
      %v7836 = vunpack.c.l.b16 %v7716
      %v7837 = vunpack.c.h.b16 %v7716
      %v7838 = vunpack.c.l.b16 %v7717
      %v7839 = vunpack.c.h.b16 %v7717
      %v7840 = vunpack.c.l.b16 %v7718
      %v7841 = vunpack.c.h.b16 %v7718
      %v7842 = vunpack.c.l.b16 %v7719
      %v7843 = vunpack.c.h.b16 %v7719
      %v7844 = vunpack.c.l.b16 %v7720
      %v7845 = vunpack.c.h.b16 %v7720
      %v7846 = vunpack.c.l.b16 %v7721
      %v7847 = vunpack.c.h.b16 %v7721
      %v7848 = vunpack.c.l.b16 %v7722
      %v7849 = vunpack.c.h.b16 %v7722
      %v7850 = vunpack.c.l.b16 %v7723
      %v7851 = vunpack.c.h.b16 %v7723
      %v7852 = vunpack.c.l.b16 %v7724
      %v7853 = vunpack.c.h.b16 %v7724
      %v7854 = vunpack.c.l.b16 %v7725
      %v7855 = vunpack.c.h.b16 %v7725
      %v7856 = vunpack.c.l.b16 %v7726
      %v7857 = vunpack.c.h.b16 %v7726
      %v7858 = vunpack.c.l.b16 %v7727
      %v7859 = vunpack.c.h.b16 %v7727
      %v7860 = vunpack.c.l.b16 %v7728
      %v7861 = vunpack.c.h.b16 %v7728
      %v7862 = vunpack.c.l.b16 %v7729
      %v7863 = vunpack.c.h.b16 %v7729
      %v7864 = vunpack.c.l.b16 %v7730
      %v7865 = vunpack.c.h.b16 %v7730
      %v7866 = vunpack.c.l.b16 %v7731
      %v7867 = vunpack.c.h.b16 %v7731
      %v7868 = vunpack.c.l.b16 %v7732
      %v7869 = vunpack.c.h.b16 %v7732
      %v7870 = vunpack.c.l.b16 %v7733
      %v7871 = vunpack.c.h.b16 %v7733
      %v7872 = vunpack.c.l.b16 %v7734
      %v7873 = vunpack.c.h.b16 %v7734
      %v7874 = vunpack.c.l.b16 %v7735
      %v7875 = vunpack.c.h.b16 %v7735
      %v7876 = vunpack.c.l.b16 %v7736
      %v7877 = vunpack.c.h.b16 %v7736
      %v7878 = vunpack.c.l.b16 %v7737
      %v7879 = vunpack.c.h.b16 %v7737
      %v7880 = vunpack.c.l.b16 %v7738
      %v7881 = vunpack.c.h.b16 %v7738
      %v7882 = vunpack.c.l.b16 %v7739
      %v7883 = vunpack.c.h.b16 %v7739
      %v7884 = vunpack.c.l.b16 %v7740
      %v7885 = vunpack.c.h.b16 %v7740
      %v7886 = vunpack.c.l.b16 %v7741
      %v7887 = vunpack.c.h.b16 %v7741
      %v7888 = vunpack.c.l.b16 %v7742
      %v7889 = vunpack.c.h.b16 %v7742
      %v7890 = vunpack.c.l.b16 %v7743
      %v7891 = vunpack.c.h.b16 %v7743
      %v7892 = vunpack.c.l.b16 %v7744
      %v7893 = vunpack.c.h.b16 %v7744
      %v7894 = vunpack.c.l.b16 %v7745
      %v7895 = vunpack.c.h.b16 %v7745
      %v7896 = vunpack.c.l.b16 %v7746
      %v7897 = vunpack.c.h.b16 %v7746
      %v7898 = vpack.c.b16 %v7836, %v7834
      %v7899 = vpack.c.b16 %v7837, %v7835
      %v7900 = vpack.c.b16 %v7840, %v7838
      %v7901 = vpack.c.b16 %v7841, %v7839
      %v7902 = vpack.c.b16 %v7844, %v7842
      %v7903 = vpack.c.b16 %v7845, %v7843
      %v7904 = vpack.c.b16 %v7848, %v7846
      %v7905 = vpack.c.b16 %v7849, %v7847
      %v7906 = vpack.c.b16 %v7852, %v7850
      %v7907 = vpack.c.b16 %v7853, %v7851
      %v7908 = vpack.c.b16 %v7856, %v7854
      %v7909 = vpack.c.b16 %v7857, %v7855
      %v7910 = vpack.c.b16 %v7860, %v7858
      %v7911 = vpack.c.b16 %v7861, %v7859
      %v7912 = vpack.c.b16 %v7864, %v7862
      %v7913 = vpack.c.b16 %v7865, %v7863
      %v7914 = vpack.c.b16 %v7868, %v7866
      %v7915 = vpack.c.b16 %v7869, %v7867
      %v7916 = vpack.c.b16 %v7872, %v7870
      %v7917 = vpack.c.b16 %v7873, %v7871
      %v7918 = vpack.c.b16 %v7876, %v7874
      %v7919 = vpack.c.b16 %v7877, %v7875
      %v7920 = vpack.c.b16 %v7880, %v7878
      %v7921 = vpack.c.b16 %v7881, %v7879
      %v7922 = vpack.c.b16 %v7884, %v7882
      %v7923 = vpack.c.b16 %v7885, %v7883
      %v7924 = vpack.c.b16 %v7888, %v7886
      %v7925 = vpack.c.b16 %v7889, %v7887
      %v7926 = vpack.c.b16 %v7892, %v7890
      %v7927 = vpack.c.b16 %v7893, %v7891
      %v7928 = vpack.c.b16 %v7896, %v7894
      %v7929 = vpack.c.b16 %v7897, %v7895
      %v7968 = vunpack.c.l.b16 %v7780
      %v7969 = vunpack.c.l.b16 %v7781
      %v7970 = vunpack.c.l.b16 %v7782
      %v7971 = vunpack.c.l.b16 %v7783
      %v7972 = vunpack.c.l.b16 %v7784
      %v7973 = vunpack.c.l.b16 %v7785
      %v7974 = vunpack.c.l.b16 %v7786
      %v7975 = vunpack.c.l.b16 %v7787
      %v7976 = vunpack.c.l.b16 %v7788
      %v7977 = vunpack.c.l.b16 %v7789
      %v7978 = vunpack.c.l.b16 %v7790
      %v7979 = vunpack.c.l.b16 %v7791
      %v7980 = vunpack.c.l.b16 %v7792
      %v7981 = vunpack.c.l.b16 %v7793
      %v7982 = vunpack.c.l.b16 %v7794
      %v7983 = vunpack.c.l.b16 %v7795
      %v7984 = vunpack.c.l.b16 %v7796
      %v7985 = vunpack.c.l.b16 %v7797
      %v7986 = vunpack.c.l.b16 %v7798
      %v7987 = vunpack.c.l.b16 %v7799
      %v7988 = vunpack.c.l.b16 %v7800
      %v7989 = vunpack.c.l.b16 %v7801
      %v7990 = vpack.c.b16 %v7969, %v7968
      %v7991 = vpack.c.b16 %v7971, %v7970
      %v7992 = vpack.c.b16 %v7973, %v7972
      %v7993 = vpack.c.b16 %v7975, %v7974
      %v7994 = vpack.c.b16 %v7977, %v7976
      %v7995 = vpack.c.b16 %v7979, %v7978
      %v7996 = vpack.c.b16 %v7981, %v7980
      %v7997 = vpack.c.b16 %v7983, %v7982
      %v7998 = vpack.c.b16 %v7985, %v7984
      %v7999 = vpack.c.b16 %v7987, %v7986
      %v8000 = vpack.c.b16 %v7989, %v7988
      %v8013 = vsel %vm3308, %v7899, 0
      %v8016 = vsel %vm3308, %v7901, 0
      %v8019 = vsel %vm3308, %v7903, 0
      %v8022 = vsel %vm3308, %v7905, 0
      %v8025 = vsel %vm3308, %v7907, 0
      %v8028 = vsel %vm3308, %v7909, 0
      %v8031 = vsel %vm3308, %v7911, 0
      %v8034 = vsel %vm3308, %v7913, 0
      %v8037 = vsel %vm3308, %v7915, 0
      %v8040 = vsel %vm3308, %v7917, 0
      %v8043 = vsel %vm3308, %v7919, 0
      %v8046 = vsel %vm3308, %v7921, 0
      %v8049 = vsel %vm3308, %v7923, 0
      %v8052 = vsel %vm3308, %v7925, 0
      %v8055 = vsel %vm3308, %v7927, 0
      %v8058 = vsel %vm3308, %v7929, 0
      %8060 = vmatpush.bf16.msra.mxu0 %v7997
      %8061 = vmatpush.bf16.msra.mxu0 %v7996
      %8062 = vmatpush.bf16.msra.mxu0 %v7995
      %8063 = vmatpush.bf16.msra.mxu0 %v7994
      %8064 = vmatpush.bf16.msra.mxu0 %v7993
      %8065 = vmatpush.bf16.msra.mxu0 %v7992
      %8066 = vmatpush.bf16.msra.mxu0 %v7991
      %8067 = vmatpush.bf16.msra.mxu0 %v7990
      %8068 = vmatmul.bf16.gmra.mxu0 %v7898
      %v8069 = vpop.f32.mrf.mxu0
      %v8070 = vadd.f32 0.0, %v8069
      %v8071 = vpop.f32.mrf.mxu0
      %v8072 = vadd.f32 0.0, %v8071
      %8073 = vmatmul.bf16.gmra.mxu0 %v7900
      %v8074 = vpop.f32.mrf.mxu0
      %v8075 = vadd.f32 0.0, %v8074
      %v8076 = vpop.f32.mrf.mxu0
      %v8077 = vadd.f32 0.0, %v8076
      %8078 = vmatmul.bf16.gmra.mxu0 %v7902
      %v8079 = vpop.f32.mrf.mxu0
      %v8080 = vadd.f32 0.0, %v8079
      %v8081 = vpop.f32.mrf.mxu0
      %v8082 = vadd.f32 0.0, %v8081
      %8083 = vmatmul.bf16.gmra.mxu0 %v7904
      %v8084 = vpop.f32.mrf.mxu0
      %v8085 = vadd.f32 0.0, %v8084
      %v8086 = vpop.f32.mrf.mxu0
      %v8087 = vadd.f32 0.0, %v8086
      %8088 = vmatmul.bf16.gmra.mxu0 %v7906
      %v8089 = vpop.f32.mrf.mxu0
      %v8090 = vadd.f32 0.0, %v8089
      %v8091 = vpop.f32.mrf.mxu0
      %v8092 = vadd.f32 0.0, %v8091
      %8093 = vmatmul.bf16.gmra.mxu0 %v7908
      %v8094 = vpop.f32.mrf.mxu0
      %v8095 = vadd.f32 0.0, %v8094
      %v8096 = vpop.f32.mrf.mxu0
      %v8097 = vadd.f32 0.0, %v8096
      %8098 = vmatmul.bf16.gmra.mxu0 %v7910
      %v8099 = vpop.f32.mrf.mxu0
      %v8100 = vadd.f32 0.0, %v8099
      %v8101 = vpop.f32.mrf.mxu0
      %v8102 = vadd.f32 0.0, %v8101
      %8103 = vmatmul.bf16.gmra.mxu0 %v7912
      %v8104 = vpop.f32.mrf.mxu0
      %v8105 = vadd.f32 0.0, %v8104
      %v8106 = vpop.f32.mrf.mxu0
      %v8107 = vadd.f32 0.0, %v8106
      %8108 = vmatmul.bf16.gmra.mxu0 %v7914
      %v8109 = vpop.f32.mrf.mxu0
      %v8110 = vadd.f32 0.0, %v8109
      %v8111 = vpop.f32.mrf.mxu0
      %v8112 = vadd.f32 0.0, %v8111
      %8113 = vmatmul.bf16.gmra.mxu0 %v7916
      %v8114 = vpop.f32.mrf.mxu0
      %v8115 = vadd.f32 0.0, %v8114
      %v8116 = vpop.f32.mrf.mxu0
      %v8117 = vadd.f32 0.0, %v8116
      %8118 = vmatmul.bf16.gmra.mxu0 %v7918
      %v8119 = vpop.f32.mrf.mxu0
      %v8120 = vadd.f32 0.0, %v8119
      %v8121 = vpop.f32.mrf.mxu0
      %v8122 = vadd.f32 0.0, %v8121
      %8123 = vmatmul.bf16.gmra.mxu0 %v7920
      %v8124 = vpop.f32.mrf.mxu0
      %v8125 = vadd.f32 0.0, %v8124
      %v8126 = vpop.f32.mrf.mxu0
      %v8127 = vadd.f32 0.0, %v8126
      %8128 = vmatmul.bf16.gmra.mxu0 %v7922
      %v8129 = vpop.f32.mrf.mxu0
      %v8130 = vadd.f32 0.0, %v8129
      %v8131 = vpop.f32.mrf.mxu0
      %v8132 = vadd.f32 0.0, %v8131
      %8133 = vmatmul.bf16.gmra.mxu0 %v7924
      %v8134 = vpop.f32.mrf.mxu0
      %v8135 = vadd.f32 0.0, %v8134
      %v8136 = vpop.f32.mrf.mxu0
      %v8137 = vadd.f32 0.0, %v8136
      %8138 = vmatmul.bf16.gmra.mxu0 %v7926
      %v8139 = vpop.f32.mrf.mxu0
      %v8140 = vadd.f32 0.0, %v8139
      %v8141 = vpop.f32.mrf.mxu0
      %v8142 = vadd.f32 0.0, %v8141
      %8143 = vmatmul.bf16.gmra.mxu0 %v7928
      %v8144 = vpop.f32.mrf.mxu0
      %v8145 = vadd.f32 0.0, %v8144
      %v8146 = vpop.f32.mrf.mxu0
      %v8147 = vadd.f32 0.0, %v8146
      %8148 = vdwg.mxu0
      %8149 = vmatpush.bf16.msra.mxu0 0
      %8150 = vmatpush.bf16.msra.mxu0 0
      %8151 = vmatpush.bf16.msra.mxu0 0
      %8152 = vmatpush.bf16.msra.mxu0 0
      %8153 = vmatpush.bf16.msra.mxu0 0
      %8154 = vmatpush.bf16.msra.mxu0 %v8000
      %8155 = vmatpush.bf16.msra.mxu0 %v7999
      %8156 = vmatpush.bf16.msra.mxu0 %v7998
      %8157 = vmatmul.bf16.gmra.mxu0 %v8013
      %v8158 = vpop.f32.mrf.mxu0
      %v8159 = vadd.f32 %v8070, %v8158
      %v8160 = vpop.f32.mrf.mxu0
      %v8161 = vadd.f32 %v8072, %v8160
      %8162 = vmatmul.bf16.gmra.mxu0 %v8016
      %v8163 = vpop.f32.mrf.mxu0
      %v8164 = vadd.f32 %v8075, %v8163
      %v8165 = vpop.f32.mrf.mxu0
      %v8166 = vadd.f32 %v8077, %v8165
      %8167 = vmatmul.bf16.gmra.mxu0 %v8019
      %v8168 = vpop.f32.mrf.mxu0
      %v8169 = vadd.f32 %v8080, %v8168
      %v8170 = vpop.f32.mrf.mxu0
      %v8171 = vadd.f32 %v8082, %v8170
      %8172 = vmatmul.bf16.gmra.mxu0 %v8022
      %v8173 = vpop.f32.mrf.mxu0
      %v8174 = vadd.f32 %v8085, %v8173
      %v8175 = vpop.f32.mrf.mxu0
      %v8176 = vadd.f32 %v8087, %v8175
      %8177 = vmatmul.bf16.gmra.mxu0 %v8025
      %v8178 = vpop.f32.mrf.mxu0
      %v8179 = vadd.f32 %v8090, %v8178
      %v8180 = vpop.f32.mrf.mxu0
      %v8181 = vadd.f32 %v8092, %v8180
      %8182 = vmatmul.bf16.gmra.mxu0 %v8028
      %v8183 = vpop.f32.mrf.mxu0
      %v8184 = vadd.f32 %v8095, %v8183
      %v8185 = vpop.f32.mrf.mxu0
      %v8186 = vadd.f32 %v8097, %v8185
      %8187 = vmatmul.bf16.gmra.mxu0 %v8031
      %v8188 = vpop.f32.mrf.mxu0
      %v8189 = vadd.f32 %v8100, %v8188
      %v8190 = vpop.f32.mrf.mxu0
      %v8191 = vadd.f32 %v8102, %v8190
      %8192 = vmatmul.bf16.gmra.mxu0 %v8034
      %v8193 = vpop.f32.mrf.mxu0
      %v8194 = vadd.f32 %v8105, %v8193
      %v8195 = vpop.f32.mrf.mxu0
      %v8196 = vadd.f32 %v8107, %v8195
      %8197 = vmatmul.bf16.gmra.mxu0 %v8037
      %v8198 = vpop.f32.mrf.mxu0
      %v8199 = vadd.f32 %v8110, %v8198
      %v8200 = vpop.f32.mrf.mxu0
      %v8201 = vadd.f32 %v8112, %v8200
      %8202 = vmatmul.bf16.gmra.mxu0 %v8040
      %v8203 = vpop.f32.mrf.mxu0
      %v8204 = vadd.f32 %v8115, %v8203
      %v8205 = vpop.f32.mrf.mxu0
      %v8206 = vadd.f32 %v8117, %v8205
      %8207 = vmatmul.bf16.gmra.mxu0 %v8043
      %v8208 = vpop.f32.mrf.mxu0
      %v8209 = vadd.f32 %v8120, %v8208
      %v8210 = vpop.f32.mrf.mxu0
      %v8211 = vadd.f32 %v8122, %v8210
      %8212 = vmatmul.bf16.gmra.mxu0 %v8046
      %v8213 = vpop.f32.mrf.mxu0
      %v8214 = vadd.f32 %v8125, %v8213
      %v8215 = vpop.f32.mrf.mxu0
      %v8216 = vadd.f32 %v8127, %v8215
      %8217 = vmatmul.bf16.gmra.mxu0 %v8049
      %v8218 = vpop.f32.mrf.mxu0
      %v8219 = vadd.f32 %v8130, %v8218
      %v8220 = vpop.f32.mrf.mxu0
      %v8221 = vadd.f32 %v8132, %v8220
      %8222 = vmatmul.bf16.gmra.mxu0 %v8052
      %v8223 = vpop.f32.mrf.mxu0
      %v8224 = vadd.f32 %v8135, %v8223
      %v8225 = vpop.f32.mrf.mxu0
      %v8226 = vadd.f32 %v8137, %v8225
      %8227 = vmatmul.bf16.gmra.mxu0 %v8055
      %v8228 = vpop.f32.mrf.mxu0
      %v8229 = vadd.f32 %v8140, %v8228
      %v8230 = vpop.f32.mrf.mxu0
      %v8231 = vadd.f32 %v8142, %v8230
      %8232 = vmatmul.bf16.gmra.mxu0 %v8058
      %v8233 = vpop.f32.mrf.mxu0
      %v8234 = vadd.f32 %v8145, %v8233
      %v8235 = vpop.f32.mrf.mxu0
      %v8236 = vadd.f32 %v8147, %v8235
      %8237 = vdwg.mxu0
      %v8238 = vadd.f32 %v7747, %v8159
      %v8239 = vadd.f32 %v7748, %v8161
      %v8240 = vadd.f32 %v7749, %v8164
      %v8241 = vadd.f32 %v7750, %v8166
      %v8242 = vadd.f32 %v7751, %v8169
      %v8243 = vadd.f32 %v7752, %v8171
      %v8244 = vadd.f32 %v7753, %v8174
      %v8245 = vadd.f32 %v7754, %v8176
      %v8246 = vadd.f32 %v7755, %v8179
      %v8247 = vadd.f32 %v7756, %v8181
      %v8248 = vadd.f32 %v7757, %v8184
      %v8249 = vadd.f32 %v7758, %v8186
      %v8250 = vadd.f32 %v7759, %v8189
      %v8251 = vadd.f32 %v7760, %v8191
      %v8252 = vadd.f32 %v7761, %v8194
      %v8253 = vadd.f32 %v7762, %v8196
      %v8254 = vadd.f32 %v7763, %v8199
      %v8255 = vadd.f32 %v7764, %v8201
      %v8256 = vadd.f32 %v7765, %v8204
      %v8257 = vadd.f32 %v7766, %v8206
      %v8258 = vadd.f32 %v7767, %v8209
      %v8259 = vadd.f32 %v7768, %v8211
      %v8260 = vadd.f32 %v7769, %v8214
      %v8261 = vadd.f32 %v7770, %v8216
      %v8262 = vadd.f32 %v7771, %v8219
      %v8263 = vadd.f32 %v7772, %v8221
      %v8264 = vadd.f32 %v7773, %v8224
      %v8265 = vadd.f32 %v7774, %v8226
      %v8266 = vadd.f32 %v7775, %v8229
      %v8267 = vadd.f32 %v7776, %v8231
      %v8268 = vadd.f32 %v7777, %v8234
      %v8269 = vadd.f32 %v7778, %v8236
      %8270 = vst.msk [vmem:[#allocation3] sm:$0xff] %vm2979, %v8238
      %8271 = vst.msk [vmem:[#allocation3 + $0x8] sm:$0xff] %vm2979, %v8239
      %8272 = vst.msk [vmem:[#allocation3 + $0x10] sm:$0xff] %vm2979, %v8240
      %8273 = vst.msk [vmem:[#allocation3 + $0x18] sm:$0xff] %vm2979, %v8241
      %8274 = vst.msk [vmem:[#allocation3 + $0x20] sm:$0xff] %vm2979, %v8242
      %8275 = vst.msk [vmem:[#allocation3 + $0x28] sm:$0xff] %vm2979, %v8243
      %8276 = vst.msk [vmem:[#allocation3 + $0x30] sm:$0xff] %vm2979, %v8244
      %8277 = vst.msk [vmem:[#allocation3 + $0x38] sm:$0xff] %vm2979, %v8245
      %8278 = vst.msk [vmem:[#allocation3 + $0x40] sm:$0xff] %vm2979, %v8246
      %8279 = vst.msk [vmem:[#allocation3 + $0x48] sm:$0xff] %vm2979, %v8247
      %8280 = vst.msk [vmem:[#allocation3 + $0x50] sm:$0xff] %vm2979, %v8248
      %8281 = vst.msk [vmem:[#allocation3 + $0x58] sm:$0xff] %vm2979, %v8249
      %8282 = vst.msk [vmem:[#allocation3 + $0x60] sm:$0xff] %vm2979, %v8250
      %8283 = vst.msk [vmem:[#allocation3 + $0x68] sm:$0xff] %vm2979, %v8251
      %8284 = vst.msk [vmem:[#allocation3 + $0x70] sm:$0xff] %vm2979, %v8252
      %8285 = vst.msk [vmem:[#allocation3 + $0x78] sm:$0xff] %vm2979, %v8253
      %8286 = vst.msk [vmem:[#allocation3 + $0x80] sm:$0xff] %vm2979, %v8254
      %8287 = vst.msk [vmem:[#allocation3 + $0x88] sm:$0xff] %vm2979, %v8255
      %8288 = vst.msk [vmem:[#allocation3 + $0x90] sm:$0xff] %vm2979, %v8256
      %8289 = vst.msk [vmem:[#allocation3 + $0x98] sm:$0xff] %vm2979, %v8257
      %8290 = vst.msk [vmem:[#allocation3 + $0xa0] sm:$0xff] %vm2979, %v8258
      %8291 = vst.msk [vmem:[#allocation3 + $0xa8] sm:$0xff] %vm2979, %v8259
      %8292 = vst.msk [vmem:[#allocation3 + $0xb0] sm:$0xff] %vm2979, %v8260
      %8293 = vst.msk [vmem:[#allocation3 + $0xb8] sm:$0xff] %vm2979, %v8261
      %8294 = vst.msk [vmem:[#allocation3 + $0xc0] sm:$0xff] %vm2979, %v8262
      %8295 = vst.msk [vmem:[#allocation3 + $0xc8] sm:$0xff] %vm2979, %v8263
      %8296 = vst.msk [vmem:[#allocation3 + $0xd0] sm:$0xff] %vm2979, %v8264
      %8297 = vst.msk [vmem:[#allocation3 + $0xd8] sm:$0xff] %vm2979, %v8265
      %8298 = vst.msk [vmem:[#allocation3 + $0xe0] sm:$0xff] %vm2979, %v8266
      %8299 = vst.msk [vmem:[#allocation3 + $0xe8] sm:$0xff] %vm2979, %v8267
      %8300 = vst.msk [vmem:[#allocation3 + $0xf0] sm:$0xff] %vm2979, %v8268
      %8301 = vst.msk [vmem:[#allocation3 + $0xf8] sm:$0xff] %vm2979, %v8269
      %s8302 = scalar_lea.vmem [#allocation2], 144
      %v8303 = vld [vmem:[%s8302] sm:$0xff]
      %v8304 = vld [vmem:[%s8302 + $0x8] sm:$0xff]
      %v8305 = vld [vmem:[%s8302 + $0x10] sm:$0xff]
      %v8306 = vld [vmem:[%s8302 + $0x18] sm:$0xff]
      %v8307 = vld [vmem:[%s8302 + $0x20] sm:$0xff]
      %v8308 = vld [vmem:[%s8302 + $0x28] sm:$0xff]
      %v8309 = vld [vmem:[%s8302 + $0x30] sm:$0xff]
      %v8310 = vld [vmem:[%s8302 + $0x38] sm:$0xff]
      %v8311 = vld [vmem:[%s8302 + $0x40] sm:$0xff]
      %v8312 = vld [vmem:[%s8302 + $0x48] sm:$0xff]
      %v8313 = vld [vmem:[%s8302 + $0x50] sm:$0xff]
      %v8314 = vld [vmem:[%s8302 + $0x58] sm:$0xff]
      %v8315 = vld [vmem:[%s8302 + $0x60] sm:$0xff]
      %v8316 = vld [vmem:[%s8302 + $0x68] sm:$0xff]
      %v8317 = vld [vmem:[%s8302 + $0x70] sm:$0xff]
      %v8318 = vld [vmem:[%s8302 + $0x78] sm:$0xff]
      %v8319 = vld [vmem:[%s8302 + $0x80] sm:$0xff]
      %v8320 = vld [vmem:[%s8302 + $0x88] sm:$0xff]
      %v8321 = vld [vmem:[%s8302 + $0x90] sm:$0xff]
      %v8322 = vld [vmem:[%s8302 + $0x98] sm:$0xff]
      %v8323 = vld [vmem:[%s8302 + $0xa0] sm:$0xff]
      %v8324 = vld [vmem:[%s8302 + $0xa8] sm:$0xff]
      %v8325 = vld [vmem:[%s8302 + $0xb0] sm:$0xff]
      %v8326 = vld [vmem:[%s8302 + $0xb8] sm:$0xff]
      %v8327 = vld [vmem:[%s8302 + $0xc0] sm:$0xff]
      %v8328 = vld [vmem:[%s8302 + $0xc8] sm:$0xff]
      %v8329 = vld [vmem:[%s8302 + $0xd0] sm:$0xff]
      %v8330 = vld [vmem:[%s8302 + $0xd8] sm:$0xff]
      %v8331 = vld [vmem:[%s8302 + $0xe0] sm:$0xff]
      %v8332 = vld [vmem:[%s8302 + $0xe8] sm:$0xff]
      %v8333 = vld [vmem:[%s8302 + $0xf0] sm:$0xff]
      %v8334 = vld [vmem:[%s8302 + $0xf8] sm:$0xff]
      %v8335 = vld [vmem:[#allocation3] sm:$0xff]
      %v8336 = vld [vmem:[#allocation3 + $0x8] sm:$0xff]
      %v8337 = vld [vmem:[#allocation3 + $0x10] sm:$0xff]
      %v8338 = vld [vmem:[#allocation3 + $0x18] sm:$0xff]
      %v8339 = vld [vmem:[#allocation3 + $0x20] sm:$0xff]
      %v8340 = vld [vmem:[#allocation3 + $0x28] sm:$0xff]
      %v8341 = vld [vmem:[#allocation3 + $0x30] sm:$0xff]
      %v8342 = vld [vmem:[#allocation3 + $0x38] sm:$0xff]
      %v8343 = vld [vmem:[#allocation3 + $0x40] sm:$0xff]
      %v8344 = vld [vmem:[#allocation3 + $0x48] sm:$0xff]
      %v8345 = vld [vmem:[#allocation3 + $0x50] sm:$0xff]
      %v8346 = vld [vmem:[#allocation3 + $0x58] sm:$0xff]
      %v8347 = vld [vmem:[#allocation3 + $0x60] sm:$0xff]
      %v8348 = vld [vmem:[#allocation3 + $0x68] sm:$0xff]
      %v8349 = vld [vmem:[#allocation3 + $0x70] sm:$0xff]
      %v8350 = vld [vmem:[#allocation3 + $0x78] sm:$0xff]
      %v8351 = vld [vmem:[#allocation3 + $0x80] sm:$0xff]
      %v8352 = vld [vmem:[#allocation3 + $0x88] sm:$0xff]
      %v8353 = vld [vmem:[#allocation3 + $0x90] sm:$0xff]
      %v8354 = vld [vmem:[#allocation3 + $0x98] sm:$0xff]
      %v8355 = vld [vmem:[#allocation3 + $0xa0] sm:$0xff]
      %v8356 = vld [vmem:[#allocation3 + $0xa8] sm:$0xff]
      %v8357 = vld [vmem:[#allocation3 + $0xb0] sm:$0xff]
      %v8358 = vld [vmem:[#allocation3 + $0xb8] sm:$0xff]
      %v8359 = vld [vmem:[#allocation3 + $0xc0] sm:$0xff]
      %v8360 = vld [vmem:[#allocation3 + $0xc8] sm:$0xff]
      %v8361 = vld [vmem:[#allocation3 + $0xd0] sm:$0xff]
      %v8362 = vld [vmem:[#allocation3 + $0xd8] sm:$0xff]
      %v8363 = vld [vmem:[#allocation3 + $0xe0] sm:$0xff]
      %v8364 = vld [vmem:[#allocation3 + $0xe8] sm:$0xff]
      %v8365 = vld [vmem:[#allocation3 + $0xf0] sm:$0xff]
      %v8366 = vld [vmem:[#allocation3 + $0xf8] sm:$0xff]
      %s8367 = scalar_lea.vmem %s3, 792
      %v8368 = vld [vmem:[%s8367] sm:$0xf]
      %v8369 = vld [vmem:[%s8367 + $0x4] sm:$0xf]
      %v8370 = vld [vmem:[%s8367 + $0x8] sm:$0xf]
      %v8371 = vld [vmem:[%s8367 + $0xc] sm:$0xf]
      %v8372 = vld [vmem:[%s8367 + $0x10] sm:$0xf]
      %v8373 = vld [vmem:[%s8367 + $0x14] sm:$0xf]
      %v8374 = vld [vmem:[%s8367 + $0x18] sm:$0xf]
      %v8375 = vld [vmem:[%s8367 + $0x1c] sm:$0xf]
      %v8376 = vld [vmem:[%s8367 + $0x20] sm:$0xf]
      %v8377 = vld [vmem:[%s8367 + $0x24] sm:$0xf]
      %v8378 = vld [vmem:[%s8367 + $0x28] sm:$0xf]
      %v8379 = vld [vmem:[%s8367 + $0x2c] sm:$0xf]
      %v8380 = vld [vmem:[%s8367 + $0x30] sm:$0xf]
      %v8381 = vld [vmem:[%s8367 + $0x34] sm:$0xf]
      %v8382 = vld [vmem:[%s8367 + $0x38] sm:$0xf]
      %v8383 = vld [vmem:[%s8367 + $0x3c] sm:$0xf]
      %v8384 = vld [vmem:[%s8367 + $0x40] sm:$0xf]
      %v8385 = vld [vmem:[%s8367 + $0x44] sm:$0xf]
      %v8386 = vld [vmem:[%s8367 + $0x48] sm:$0xf]
      %v8387 = vld [vmem:[%s8367 + $0x4c] sm:$0xf]
      %v8388 = vld [vmem:[%s8367 + $0x50] sm:$0xf]
      %v8389 = vld [vmem:[%s8367 + $0x54] sm:$0xf]
      %v8422 = vunpack.c.l.b16 %v8303
      %v8423 = vunpack.c.h.b16 %v8303
      %v8424 = vunpack.c.l.b16 %v8304
      %v8425 = vunpack.c.h.b16 %v8304
      %v8426 = vunpack.c.l.b16 %v8305
      %v8427 = vunpack.c.h.b16 %v8305
      %v8428 = vunpack.c.l.b16 %v8306
      %v8429 = vunpack.c.h.b16 %v8306
      %v8430 = vunpack.c.l.b16 %v8307
      %v8431 = vunpack.c.h.b16 %v8307
      %v8432 = vunpack.c.l.b16 %v8308
      %v8433 = vunpack.c.h.b16 %v8308
      %v8434 = vunpack.c.l.b16 %v8309
      %v8435 = vunpack.c.h.b16 %v8309
      %v8436 = vunpack.c.l.b16 %v8310
      %v8437 = vunpack.c.h.b16 %v8310
      %v8438 = vunpack.c.l.b16 %v8311
      %v8439 = vunpack.c.h.b16 %v8311
      %v8440 = vunpack.c.l.b16 %v8312
      %v8441 = vunpack.c.h.b16 %v8312
      %v8442 = vunpack.c.l.b16 %v8313
      %v8443 = vunpack.c.h.b16 %v8313
      %v8444 = vunpack.c.l.b16 %v8314
      %v8445 = vunpack.c.h.b16 %v8314
      %v8446 = vunpack.c.l.b16 %v8315
      %v8447 = vunpack.c.h.b16 %v8315
      %v8448 = vunpack.c.l.b16 %v8316
      %v8449 = vunpack.c.h.b16 %v8316
      %v8450 = vunpack.c.l.b16 %v8317
      %v8451 = vunpack.c.h.b16 %v8317
      %v8452 = vunpack.c.l.b16 %v8318
      %v8453 = vunpack.c.h.b16 %v8318
      %v8454 = vunpack.c.l.b16 %v8319
      %v8455 = vunpack.c.h.b16 %v8319
      %v8456 = vunpack.c.l.b16 %v8320
      %v8457 = vunpack.c.h.b16 %v8320
      %v8458 = vunpack.c.l.b16 %v8321
      %v8459 = vunpack.c.h.b16 %v8321
      %v8460 = vunpack.c.l.b16 %v8322
      %v8461 = vunpack.c.h.b16 %v8322
      %v8462 = vunpack.c.l.b16 %v8323
      %v8463 = vunpack.c.h.b16 %v8323
      %v8464 = vunpack.c.l.b16 %v8324
      %v8465 = vunpack.c.h.b16 %v8324
      %v8466 = vunpack.c.l.b16 %v8325
      %v8467 = vunpack.c.h.b16 %v8325
      %v8468 = vunpack.c.l.b16 %v8326
      %v8469 = vunpack.c.h.b16 %v8326
      %v8470 = vunpack.c.l.b16 %v8327
      %v8471 = vunpack.c.h.b16 %v8327
      %v8472 = vunpack.c.l.b16 %v8328
      %v8473 = vunpack.c.h.b16 %v8328
      %v8474 = vunpack.c.l.b16 %v8329
      %v8475 = vunpack.c.h.b16 %v8329
      %v8476 = vunpack.c.l.b16 %v8330
      %v8477 = vunpack.c.h.b16 %v8330
      %v8478 = vunpack.c.l.b16 %v8331
      %v8479 = vunpack.c.h.b16 %v8331
      %v8480 = vunpack.c.l.b16 %v8332
      %v8481 = vunpack.c.h.b16 %v8332
      %v8482 = vunpack.c.l.b16 %v8333
      %v8483 = vunpack.c.h.b16 %v8333
      %v8484 = vunpack.c.l.b16 %v8334
      %v8485 = vunpack.c.h.b16 %v8334
      %v8486 = vpack.c.b16 %v8424, %v8422
      %v8487 = vpack.c.b16 %v8425, %v8423
      %v8488 = vpack.c.b16 %v8428, %v8426
      %v8489 = vpack.c.b16 %v8429, %v8427
      %v8490 = vpack.c.b16 %v8432, %v8430
      %v8491 = vpack.c.b16 %v8433, %v8431
      %v8492 = vpack.c.b16 %v8436, %v8434
      %v8493 = vpack.c.b16 %v8437, %v8435
      %v8494 = vpack.c.b16 %v8440, %v8438
      %v8495 = vpack.c.b16 %v8441, %v8439
      %v8496 = vpack.c.b16 %v8444, %v8442
      %v8497 = vpack.c.b16 %v8445, %v8443
      %v8498 = vpack.c.b16 %v8448, %v8446
      %v8499 = vpack.c.b16 %v8449, %v8447
      %v8500 = vpack.c.b16 %v8452, %v8450
      %v8501 = vpack.c.b16 %v8453, %v8451
      %v8502 = vpack.c.b16 %v8456, %v8454
      %v8503 = vpack.c.b16 %v8457, %v8455
      %v8504 = vpack.c.b16 %v8460, %v8458
      %v8505 = vpack.c.b16 %v8461, %v8459
      %v8506 = vpack.c.b16 %v8464, %v8462
      %v8507 = vpack.c.b16 %v8465, %v8463
      %v8508 = vpack.c.b16 %v8468, %v8466
      %v8509 = vpack.c.b16 %v8469, %v8467
      %v8510 = vpack.c.b16 %v8472, %v8470
      %v8511 = vpack.c.b16 %v8473, %v8471
      %v8512 = vpack.c.b16 %v8476, %v8474
      %v8513 = vpack.c.b16 %v8477, %v8475
      %v8514 = vpack.c.b16 %v8480, %v8478
      %v8515 = vpack.c.b16 %v8481, %v8479
      %v8516 = vpack.c.b16 %v8484, %v8482
      %v8517 = vpack.c.b16 %v8485, %v8483
      %v8556 = vunpack.c.l.b16 %v8368
      %v8557 = vunpack.c.l.b16 %v8369
      %v8558 = vunpack.c.l.b16 %v8370
      %v8559 = vunpack.c.l.b16 %v8371
      %v8560 = vunpack.c.l.b16 %v8372
      %v8561 = vunpack.c.l.b16 %v8373
      %v8562 = vunpack.c.l.b16 %v8374
      %v8563 = vunpack.c.l.b16 %v8375
      %v8564 = vunpack.c.l.b16 %v8376
      %v8565 = vunpack.c.l.b16 %v8377
      %v8566 = vunpack.c.l.b16 %v8378
      %v8567 = vunpack.c.l.b16 %v8379
      %v8568 = vunpack.c.l.b16 %v8380
      %v8569 = vunpack.c.l.b16 %v8381
      %v8570 = vunpack.c.l.b16 %v8382
      %v8571 = vunpack.c.l.b16 %v8383
      %v8572 = vunpack.c.l.b16 %v8384
      %v8573 = vunpack.c.l.b16 %v8385
      %v8574 = vunpack.c.l.b16 %v8386
      %v8575 = vunpack.c.l.b16 %v8387
      %v8576 = vunpack.c.l.b16 %v8388
      %v8577 = vunpack.c.l.b16 %v8389
      %v8578 = vpack.c.b16 %v8557, %v8556
      %v8579 = vpack.c.b16 %v8559, %v8558
      %v8580 = vpack.c.b16 %v8561, %v8560
      %v8581 = vpack.c.b16 %v8563, %v8562
      %v8582 = vpack.c.b16 %v8565, %v8564
      %v8583 = vpack.c.b16 %v8567, %v8566
      %v8584 = vpack.c.b16 %v8569, %v8568
      %v8585 = vpack.c.b16 %v8571, %v8570
      %v8586 = vpack.c.b16 %v8573, %v8572
      %v8587 = vpack.c.b16 %v8575, %v8574
      %v8588 = vpack.c.b16 %v8577, %v8576
      %v8601 = vsel %vm3308, %v8487, 0
      %v8604 = vsel %vm3308, %v8489, 0
      %v8607 = vsel %vm3308, %v8491, 0
      %v8610 = vsel %vm3308, %v8493, 0
      %v8613 = vsel %vm3308, %v8495, 0
      %v8616 = vsel %vm3308, %v8497, 0
      %v8619 = vsel %vm3308, %v8499, 0
      %v8622 = vsel %vm3308, %v8501, 0
      %v8625 = vsel %vm3308, %v8503, 0
      %v8628 = vsel %vm3308, %v8505, 0
      %v8631 = vsel %vm3308, %v8507, 0
      %v8634 = vsel %vm3308, %v8509, 0
      %v8637 = vsel %vm3308, %v8511, 0
      %v8640 = vsel %vm3308, %v8513, 0
      %v8643 = vsel %vm3308, %v8515, 0
      %v8646 = vsel %vm3308, %v8517, 0
      %8648 = vmatpush.bf16.msra.mxu0 %v8585
      %8649 = vmatpush.bf16.msra.mxu0 %v8584
      %8650 = vmatpush.bf16.msra.mxu0 %v8583
      %8651 = vmatpush.bf16.msra.mxu0 %v8582
      %8652 = vmatpush.bf16.msra.mxu0 %v8581
      %8653 = vmatpush.bf16.msra.mxu0 %v8580
      %8654 = vmatpush.bf16.msra.mxu0 %v8579
      %8655 = vmatpush.bf16.msra.mxu0 %v8578
      %8656 = vmatmul.bf16.gmra.mxu0 %v8486
      %v8657 = vpop.f32.mrf.mxu0
      %v8658 = vadd.f32 0.0, %v8657
      %v8659 = vpop.f32.mrf.mxu0
      %v8660 = vadd.f32 0.0, %v8659
      %8661 = vmatmul.bf16.gmra.mxu0 %v8488
      %v8662 = vpop.f32.mrf.mxu0
      %v8663 = vadd.f32 0.0, %v8662
      %v8664 = vpop.f32.mrf.mxu0
      %v8665 = vadd.f32 0.0, %v8664
      %8666 = vmatmul.bf16.gmra.mxu0 %v8490
      %v8667 = vpop.f32.mrf.mxu0
      %v8668 = vadd.f32 0.0, %v8667
      %v8669 = vpop.f32.mrf.mxu0
      %v8670 = vadd.f32 0.0, %v8669
      %8671 = vmatmul.bf16.gmra.mxu0 %v8492
      %v8672 = vpop.f32.mrf.mxu0
      %v8673 = vadd.f32 0.0, %v8672
      %v8674 = vpop.f32.mrf.mxu0
      %v8675 = vadd.f32 0.0, %v8674
      %8676 = vmatmul.bf16.gmra.mxu0 %v8494
      %v8677 = vpop.f32.mrf.mxu0
      %v8678 = vadd.f32 0.0, %v8677
      %v8679 = vpop.f32.mrf.mxu0
      %v8680 = vadd.f32 0.0, %v8679
      %8681 = vmatmul.bf16.gmra.mxu0 %v8496
      %v8682 = vpop.f32.mrf.mxu0
      %v8683 = vadd.f32 0.0, %v8682
      %v8684 = vpop.f32.mrf.mxu0
      %v8685 = vadd.f32 0.0, %v8684
      %8686 = vmatmul.bf16.gmra.mxu0 %v8498
      %v8687 = vpop.f32.mrf.mxu0
      %v8688 = vadd.f32 0.0, %v8687
      %v8689 = vpop.f32.mrf.mxu0
      %v8690 = vadd.f32 0.0, %v8689
      %8691 = vmatmul.bf16.gmra.mxu0 %v8500
      %v8692 = vpop.f32.mrf.mxu0
      %v8693 = vadd.f32 0.0, %v8692
      %v8694 = vpop.f32.mrf.mxu0
      %v8695 = vadd.f32 0.0, %v8694
      %8696 = vmatmul.bf16.gmra.mxu0 %v8502
      %v8697 = vpop.f32.mrf.mxu0
      %v8698 = vadd.f32 0.0, %v8697
      %v8699 = vpop.f32.mrf.mxu0
      %v8700 = vadd.f32 0.0, %v8699
      %8701 = vmatmul.bf16.gmra.mxu0 %v8504
      %v8702 = vpop.f32.mrf.mxu0
      %v8703 = vadd.f32 0.0, %v8702
      %v8704 = vpop.f32.mrf.mxu0
      %v8705 = vadd.f32 0.0, %v8704
      %8706 = vmatmul.bf16.gmra.mxu0 %v8506
      %v8707 = vpop.f32.mrf.mxu0
      %v8708 = vadd.f32 0.0, %v8707
      %v8709 = vpop.f32.mrf.mxu0
      %v8710 = vadd.f32 0.0, %v8709
      %8711 = vmatmul.bf16.gmra.mxu0 %v8508
      %v8712 = vpop.f32.mrf.mxu0
      %v8713 = vadd.f32 0.0, %v8712
      %v8714 = vpop.f32.mrf.mxu0
      %v8715 = vadd.f32 0.0, %v8714
      %8716 = vmatmul.bf16.gmra.mxu0 %v8510
      %v8717 = vpop.f32.mrf.mxu0
      %v8718 = vadd.f32 0.0, %v8717
      %v8719 = vpop.f32.mrf.mxu0
      %v8720 = vadd.f32 0.0, %v8719
      %8721 = vmatmul.bf16.gmra.mxu0 %v8512
      %v8722 = vpop.f32.mrf.mxu0
      %v8723 = vadd.f32 0.0, %v8722
      %v8724 = vpop.f32.mrf.mxu0
      %v8725 = vadd.f32 0.0, %v8724
      %8726 = vmatmul.bf16.gmra.mxu0 %v8514
      %v8727 = vpop.f32.mrf.mxu0
      %v8728 = vadd.f32 0.0, %v8727
      %v8729 = vpop.f32.mrf.mxu0
      %v8730 = vadd.f32 0.0, %v8729
      %8731 = vmatmul.bf16.gmra.mxu0 %v8516
      %v8732 = vpop.f32.mrf.mxu0
      %v8733 = vadd.f32 0.0, %v8732
      %v8734 = vpop.f32.mrf.mxu0
      %v8735 = vadd.f32 0.0, %v8734
      %8736 = vdwg.mxu0
      %8737 = vmatpush.bf16.msra.mxu0 0
      %8738 = vmatpush.bf16.msra.mxu0 0
      %8739 = vmatpush.bf16.msra.mxu0 0
      %8740 = vmatpush.bf16.msra.mxu0 0
      %8741 = vmatpush.bf16.msra.mxu0 0
      %8742 = vmatpush.bf16.msra.mxu0 %v8588
      %8743 = vmatpush.bf16.msra.mxu0 %v8587
      %8744 = vmatpush.bf16.msra.mxu0 %v8586
      %8745 = vmatmul.bf16.gmra.mxu0 %v8601
      %v8746 = vpop.f32.mrf.mxu0
      %v8747 = vadd.f32 %v8658, %v8746
      %v8748 = vpop.f32.mrf.mxu0
      %v8749 = vadd.f32 %v8660, %v8748
      %8750 = vmatmul.bf16.gmra.mxu0 %v8604
      %v8751 = vpop.f32.mrf.mxu0
      %v8752 = vadd.f32 %v8663, %v8751
      %v8753 = vpop.f32.mrf.mxu0
      %v8754 = vadd.f32 %v8665, %v8753
      %8755 = vmatmul.bf16.gmra.mxu0 %v8607
      %v8756 = vpop.f32.mrf.mxu0
      %v8757 = vadd.f32 %v8668, %v8756
      %v8758 = vpop.f32.mrf.mxu0
      %v8759 = vadd.f32 %v8670, %v8758
      %8760 = vmatmul.bf16.gmra.mxu0 %v8610
      %v8761 = vpop.f32.mrf.mxu0
      %v8762 = vadd.f32 %v8673, %v8761
      %v8763 = vpop.f32.mrf.mxu0
      %v8764 = vadd.f32 %v8675, %v8763
      %8765 = vmatmul.bf16.gmra.mxu0 %v8613
      %v8766 = vpop.f32.mrf.mxu0
      %v8767 = vadd.f32 %v8678, %v8766
      %v8768 = vpop.f32.mrf.mxu0
      %v8769 = vadd.f32 %v8680, %v8768
      %8770 = vmatmul.bf16.gmra.mxu0 %v8616
      %v8771 = vpop.f32.mrf.mxu0
      %v8772 = vadd.f32 %v8683, %v8771
      %v8773 = vpop.f32.mrf.mxu0
      %v8774 = vadd.f32 %v8685, %v8773
      %8775 = vmatmul.bf16.gmra.mxu0 %v8619
      %v8776 = vpop.f32.mrf.mxu0
      %v8777 = vadd.f32 %v8688, %v8776
      %v8778 = vpop.f32.mrf.mxu0
      %v8779 = vadd.f32 %v8690, %v8778
      %8780 = vmatmul.bf16.gmra.mxu0 %v8622
      %v8781 = vpop.f32.mrf.mxu0
      %v8782 = vadd.f32 %v8693, %v8781
      %v8783 = vpop.f32.mrf.mxu0
      %v8784 = vadd.f32 %v8695, %v8783
      %8785 = vmatmul.bf16.gmra.mxu0 %v8625
      %v8786 = vpop.f32.mrf.mxu0
      %v8787 = vadd.f32 %v8698, %v8786
      %v8788 = vpop.f32.mrf.mxu0
      %v8789 = vadd.f32 %v8700, %v8788
      %8790 = vmatmul.bf16.gmra.mxu0 %v8628
      %v8791 = vpop.f32.mrf.mxu0
      %v8792 = vadd.f32 %v8703, %v8791
      %v8793 = vpop.f32.mrf.mxu0
      %v8794 = vadd.f32 %v8705, %v8793
      %8795 = vmatmul.bf16.gmra.mxu0 %v8631
      %v8796 = vpop.f32.mrf.mxu0
      %v8797 = vadd.f32 %v8708, %v8796
      %v8798 = vpop.f32.mrf.mxu0
      %v8799 = vadd.f32 %v8710, %v8798
      %8800 = vmatmul.bf16.gmra.mxu0 %v8634
      %v8801 = vpop.f32.mrf.mxu0
      %v8802 = vadd.f32 %v8713, %v8801
      %v8803 = vpop.f32.mrf.mxu0
      %v8804 = vadd.f32 %v8715, %v8803
      %8805 = vmatmul.bf16.gmra.mxu0 %v8637
      %v8806 = vpop.f32.mrf.mxu0
      %v8807 = vadd.f32 %v8718, %v8806
      %v8808 = vpop.f32.mrf.mxu0
      %v8809 = vadd.f32 %v8720, %v8808
      %8810 = vmatmul.bf16.gmra.mxu0 %v8640
      %v8811 = vpop.f32.mrf.mxu0
      %v8812 = vadd.f32 %v8723, %v8811
      %v8813 = vpop.f32.mrf.mxu0
      %v8814 = vadd.f32 %v8725, %v8813
      %8815 = vmatmul.bf16.gmra.mxu0 %v8643
      %v8816 = vpop.f32.mrf.mxu0
      %v8817 = vadd.f32 %v8728, %v8816
      %v8818 = vpop.f32.mrf.mxu0
      %v8819 = vadd.f32 %v8730, %v8818
      %8820 = vmatmul.bf16.gmra.mxu0 %v8646
      %v8821 = vpop.f32.mrf.mxu0
      %v8822 = vadd.f32 %v8733, %v8821
      %v8823 = vpop.f32.mrf.mxu0
      %v8824 = vadd.f32 %v8735, %v8823
      %8825 = vdwg.mxu0
      %v8826 = vadd.f32 %v8335, %v8747
      %v8827 = vadd.f32 %v8336, %v8749
      %v8828 = vadd.f32 %v8337, %v8752
      %v8829 = vadd.f32 %v8338, %v8754
      %v8830 = vadd.f32 %v8339, %v8757
      %v8831 = vadd.f32 %v8340, %v8759
      %v8832 = vadd.f32 %v8341, %v8762
      %v8833 = vadd.f32 %v8342, %v8764
      %v8834 = vadd.f32 %v8343, %v8767
      %v8835 = vadd.f32 %v8344, %v8769
      %v8836 = vadd.f32 %v8345, %v8772
      %v8837 = vadd.f32 %v8346, %v8774
      %v8838 = vadd.f32 %v8347, %v8777
      %v8839 = vadd.f32 %v8348, %v8779
      %v8840 = vadd.f32 %v8349, %v8782
      %v8841 = vadd.f32 %v8350, %v8784
      %v8842 = vadd.f32 %v8351, %v8787
      %v8843 = vadd.f32 %v8352, %v8789
      %v8844 = vadd.f32 %v8353, %v8792
      %v8845 = vadd.f32 %v8354, %v8794
      %v8846 = vadd.f32 %v8355, %v8797
      %v8847 = vadd.f32 %v8356, %v8799
      %v8848 = vadd.f32 %v8357, %v8802
      %v8849 = vadd.f32 %v8358, %v8804
      %v8850 = vadd.f32 %v8359, %v8807
      %v8851 = vadd.f32 %v8360, %v8809
      %v8852 = vadd.f32 %v8361, %v8812
      %v8853 = vadd.f32 %v8362, %v8814
      %v8854 = vadd.f32 %v8363, %v8817
      %v8855 = vadd.f32 %v8364, %v8819
      %v8856 = vadd.f32 %v8365, %v8822
      %v8857 = vadd.f32 %v8366, %v8824
      %8858 = vst.msk [vmem:[#allocation3] sm:$0xff] %vm2979, %v8826
      %8859 = vst.msk [vmem:[#allocation3 + $0x8] sm:$0xff] %vm2979, %v8827
      %8860 = vst.msk [vmem:[#allocation3 + $0x10] sm:$0xff] %vm2979, %v8828
      %8861 = vst.msk [vmem:[#allocation3 + $0x18] sm:$0xff] %vm2979, %v8829
      %8862 = vst.msk [vmem:[#allocation3 + $0x20] sm:$0xff] %vm2979, %v8830
      %8863 = vst.msk [vmem:[#allocation3 + $0x28] sm:$0xff] %vm2979, %v8831
      %8864 = vst.msk [vmem:[#allocation3 + $0x30] sm:$0xff] %vm2979, %v8832
      %8865 = vst.msk [vmem:[#allocation3 + $0x38] sm:$0xff] %vm2979, %v8833
      %8866 = vst.msk [vmem:[#allocation3 + $0x40] sm:$0xff] %vm2979, %v8834
      %8867 = vst.msk [vmem:[#allocation3 + $0x48] sm:$0xff] %vm2979, %v8835
      %8868 = vst.msk [vmem:[#allocation3 + $0x50] sm:$0xff] %vm2979, %v8836
      %8869 = vst.msk [vmem:[#allocation3 + $0x58] sm:$0xff] %vm2979, %v8837
      %8870 = vst.msk [vmem:[#allocation3 + $0x60] sm:$0xff] %vm2979, %v8838
      %8871 = vst.msk [vmem:[#allocation3 + $0x68] sm:$0xff] %vm2979, %v8839
      %8872 = vst.msk [vmem:[#allocation3 + $0x70] sm:$0xff] %vm2979, %v8840
      %8873 = vst.msk [vmem:[#allocation3 + $0x78] sm:$0xff] %vm2979, %v8841
      %8874 = vst.msk [vmem:[#allocation3 + $0x80] sm:$0xff] %vm2979, %v8842
      %8875 = vst.msk [vmem:[#allocation3 + $0x88] sm:$0xff] %vm2979, %v8843
      %8876 = vst.msk [vmem:[#allocation3 + $0x90] sm:$0xff] %vm2979, %v8844
      %8877 = vst.msk [vmem:[#allocation3 + $0x98] sm:$0xff] %vm2979, %v8845
      %8878 = vst.msk [vmem:[#allocation3 + $0xa0] sm:$0xff] %vm2979, %v8846
      %8879 = vst.msk [vmem:[#allocation3 + $0xa8] sm:$0xff] %vm2979, %v8847
      %8880 = vst.msk [vmem:[#allocation3 + $0xb0] sm:$0xff] %vm2979, %v8848
      %8881 = vst.msk [vmem:[#allocation3 + $0xb8] sm:$0xff] %vm2979, %v8849
      %8882 = vst.msk [vmem:[#allocation3 + $0xc0] sm:$0xff] %vm2979, %v8850
      %8883 = vst.msk [vmem:[#allocation3 + $0xc8] sm:$0xff] %vm2979, %v8851
      %8884 = vst.msk [vmem:[#allocation3 + $0xd0] sm:$0xff] %vm2979, %v8852
      %8885 = vst.msk [vmem:[#allocation3 + $0xd8] sm:$0xff] %vm2979, %v8853
      %8886 = vst.msk [vmem:[#allocation3 + $0xe0] sm:$0xff] %vm2979, %v8854
      %8887 = vst.msk [vmem:[#allocation3 + $0xe8] sm:$0xff] %vm2979, %v8855
      %8888 = vst.msk [vmem:[#allocation3 + $0xf0] sm:$0xff] %vm2979, %v8856
      %8889 = vst.msk [vmem:[#allocation3 + $0xf8] sm:$0xff] %vm2979, %v8857
      %s8890 = scalar_lea.vmem [#allocation2], 160
      %v8891 = vld [vmem:[%s8890] sm:$0xff]
      %v8892 = vld [vmem:[%s8890 + $0x8] sm:$0xff]
      %v8893 = vld [vmem:[%s8890 + $0x10] sm:$0xff]
      %v8894 = vld [vmem:[%s8890 + $0x18] sm:$0xff]
      %v8895 = vld [vmem:[%s8890 + $0x20] sm:$0xff]
      %v8896 = vld [vmem:[%s8890 + $0x28] sm:$0xff]
      %v8897 = vld [vmem:[%s8890 + $0x30] sm:$0xff]
      %v8898 = vld [vmem:[%s8890 + $0x38] sm:$0xff]
      %v8899 = vld [vmem:[%s8890 + $0x40] sm:$0xff]
      %v8900 = vld [vmem:[%s8890 + $0x48] sm:$0xff]
      %v8901 = vld [vmem:[%s8890 + $0x50] sm:$0xff]
      %v8902 = vld [vmem:[%s8890 + $0x58] sm:$0xff]
      %v8903 = vld [vmem:[%s8890 + $0x60] sm:$0xff]
      %v8904 = vld [vmem:[%s8890 + $0x68] sm:$0xff]
      %v8905 = vld [vmem:[%s8890 + $0x70] sm:$0xff]
      %v8906 = vld [vmem:[%s8890 + $0x78] sm:$0xff]
      %v8907 = vld [vmem:[%s8890 + $0x80] sm:$0xff]
      %v8908 = vld [vmem:[%s8890 + $0x88] sm:$0xff]
      %v8909 = vld [vmem:[%s8890 + $0x90] sm:$0xff]
      %v8910 = vld [vmem:[%s8890 + $0x98] sm:$0xff]
      %v8911 = vld [vmem:[%s8890 + $0xa0] sm:$0xff]
      %v8912 = vld [vmem:[%s8890 + $0xa8] sm:$0xff]
      %v8913 = vld [vmem:[%s8890 + $0xb0] sm:$0xff]
      %v8914 = vld [vmem:[%s8890 + $0xb8] sm:$0xff]
      %v8915 = vld [vmem:[%s8890 + $0xc0] sm:$0xff]
      %v8916 = vld [vmem:[%s8890 + $0xc8] sm:$0xff]
      %v8917 = vld [vmem:[%s8890 + $0xd0] sm:$0xff]
      %v8918 = vld [vmem:[%s8890 + $0xd8] sm:$0xff]
      %v8919 = vld [vmem:[%s8890 + $0xe0] sm:$0xff]
      %v8920 = vld [vmem:[%s8890 + $0xe8] sm:$0xff]
      %v8921 = vld [vmem:[%s8890 + $0xf0] sm:$0xff]
      %v8922 = vld [vmem:[%s8890 + $0xf8] sm:$0xff]
      %v8923 = vld [vmem:[#allocation3] sm:$0xff]
      %v8924 = vld [vmem:[#allocation3 + $0x8] sm:$0xff]
      %v8925 = vld [vmem:[#allocation3 + $0x10] sm:$0xff]
      %v8926 = vld [vmem:[#allocation3 + $0x18] sm:$0xff]
      %v8927 = vld [vmem:[#allocation3 + $0x20] sm:$0xff]
      %v8928 = vld [vmem:[#allocation3 + $0x28] sm:$0xff]
      %v8929 = vld [vmem:[#allocation3 + $0x30] sm:$0xff]
      %v8930 = vld [vmem:[#allocation3 + $0x38] sm:$0xff]
      %v8931 = vld [vmem:[#allocation3 + $0x40] sm:$0xff]
      %v8932 = vld [vmem:[#allocation3 + $0x48] sm:$0xff]
      %v8933 = vld [vmem:[#allocation3 + $0x50] sm:$0xff]
      %v8934 = vld [vmem:[#allocation3 + $0x58] sm:$0xff]
      %v8935 = vld [vmem:[#allocation3 + $0x60] sm:$0xff]
      %v8936 = vld [vmem:[#allocation3 + $0x68] sm:$0xff]
      %v8937 = vld [vmem:[#allocation3 + $0x70] sm:$0xff]
      %v8938 = vld [vmem:[#allocation3 + $0x78] sm:$0xff]
      %v8939 = vld [vmem:[#allocation3 + $0x80] sm:$0xff]
      %v8940 = vld [vmem:[#allocation3 + $0x88] sm:$0xff]
      %v8941 = vld [vmem:[#allocation3 + $0x90] sm:$0xff]
      %v8942 = vld [vmem:[#allocation3 + $0x98] sm:$0xff]
      %v8943 = vld [vmem:[#allocation3 + $0xa0] sm:$0xff]
      %v8944 = vld [vmem:[#allocation3 + $0xa8] sm:$0xff]
      %v8945 = vld [vmem:[#allocation3 + $0xb0] sm:$0xff]
      %v8946 = vld [vmem:[#allocation3 + $0xb8] sm:$0xff]
      %v8947 = vld [vmem:[#allocation3 + $0xc0] sm:$0xff]
      %v8948 = vld [vmem:[#allocation3 + $0xc8] sm:$0xff]
      %v8949 = vld [vmem:[#allocation3 + $0xd0] sm:$0xff]
      %v8950 = vld [vmem:[#allocation3 + $0xd8] sm:$0xff]
      %v8951 = vld [vmem:[#allocation3 + $0xe0] sm:$0xff]
      %v8952 = vld [vmem:[#allocation3 + $0xe8] sm:$0xff]
      %v8953 = vld [vmem:[#allocation3 + $0xf0] sm:$0xff]
      %v8954 = vld [vmem:[#allocation3 + $0xf8] sm:$0xff]
      %s8955 = scalar_lea.vmem %s3, 880
      %v8956 = vld [vmem:[%s8955] sm:$0xf]
      %v8957 = vld [vmem:[%s8955 + $0x4] sm:$0xf]
      %v8958 = vld [vmem:[%s8955 + $0x8] sm:$0xf]
      %v8959 = vld [vmem:[%s8955 + $0xc] sm:$0xf]
      %v8960 = vld [vmem:[%s8955 + $0x10] sm:$0xf]
      %v8961 = vld [vmem:[%s8955 + $0x14] sm:$0xf]
      %v8962 = vld [vmem:[%s8955 + $0x18] sm:$0xf]
      %v8963 = vld [vmem:[%s8955 + $0x1c] sm:$0xf]
      %v8964 = vld [vmem:[%s8955 + $0x20] sm:$0xf]
      %v8965 = vld [vmem:[%s8955 + $0x24] sm:$0xf]
      %v8966 = vld [vmem:[%s8955 + $0x28] sm:$0xf]
      %v8967 = vld [vmem:[%s8955 + $0x2c] sm:$0xf]
      %v8968 = vld [vmem:[%s8955 + $0x30] sm:$0xf]
      %v8969 = vld [vmem:[%s8955 + $0x34] sm:$0xf]
      %v8970 = vld [vmem:[%s8955 + $0x38] sm:$0xf]
      %v8971 = vld [vmem:[%s8955 + $0x3c] sm:$0xf]
      %v8972 = vld [vmem:[%s8955 + $0x40] sm:$0xf]
      %v8973 = vld [vmem:[%s8955 + $0x44] sm:$0xf]
      %v8974 = vld [vmem:[%s8955 + $0x48] sm:$0xf]
      %v8975 = vld [vmem:[%s8955 + $0x4c] sm:$0xf]
      %v8976 = vld [vmem:[%s8955 + $0x50] sm:$0xf]
      %v8977 = vld [vmem:[%s8955 + $0x54] sm:$0xf]
      %v9010 = vunpack.c.l.b16 %v8891
      %v9011 = vunpack.c.h.b16 %v8891
      %v9012 = vunpack.c.l.b16 %v8892
      %v9013 = vunpack.c.h.b16 %v8892
      %v9014 = vunpack.c.l.b16 %v8893
      %v9015 = vunpack.c.h.b16 %v8893
      %v9016 = vunpack.c.l.b16 %v8894
      %v9017 = vunpack.c.h.b16 %v8894
      %v9018 = vunpack.c.l.b16 %v8895
      %v9019 = vunpack.c.h.b16 %v8895
      %v9020 = vunpack.c.l.b16 %v8896
      %v9021 = vunpack.c.h.b16 %v8896
      %v9022 = vunpack.c.l.b16 %v8897
      %v9023 = vunpack.c.h.b16 %v8897
      %v9024 = vunpack.c.l.b16 %v8898
      %v9025 = vunpack.c.h.b16 %v8898
      %v9026 = vunpack.c.l.b16 %v8899
      %v9027 = vunpack.c.h.b16 %v8899
      %v9028 = vunpack.c.l.b16 %v8900
      %v9029 = vunpack.c.h.b16 %v8900
      %v9030 = vunpack.c.l.b16 %v8901
      %v9031 = vunpack.c.h.b16 %v8901
      %v9032 = vunpack.c.l.b16 %v8902
      %v9033 = vunpack.c.h.b16 %v8902
      %v9034 = vunpack.c.l.b16 %v8903
      %v9035 = vunpack.c.h.b16 %v8903
      %v9036 = vunpack.c.l.b16 %v8904
      %v9037 = vunpack.c.h.b16 %v8904
      %v9038 = vunpack.c.l.b16 %v8905
      %v9039 = vunpack.c.h.b16 %v8905
      %v9040 = vunpack.c.l.b16 %v8906
      %v9041 = vunpack.c.h.b16 %v8906
      %v9042 = vunpack.c.l.b16 %v8907
      %v9043 = vunpack.c.h.b16 %v8907
      %v9044 = vunpack.c.l.b16 %v8908
      %v9045 = vunpack.c.h.b16 %v8908
      %v9046 = vunpack.c.l.b16 %v8909
      %v9047 = vunpack.c.h.b16 %v8909
      %v9048 = vunpack.c.l.b16 %v8910
      %v9049 = vunpack.c.h.b16 %v8910
      %v9050 = vunpack.c.l.b16 %v8911
      %v9051 = vunpack.c.h.b16 %v8911
      %v9052 = vunpack.c.l.b16 %v8912
      %v9053 = vunpack.c.h.b16 %v8912
      %v9054 = vunpack.c.l.b16 %v8913
      %v9055 = vunpack.c.h.b16 %v8913
      %v9056 = vunpack.c.l.b16 %v8914
      %v9057 = vunpack.c.h.b16 %v8914
      %v9058 = vunpack.c.l.b16 %v8915
      %v9059 = vunpack.c.h.b16 %v8915
      %v9060 = vunpack.c.l.b16 %v8916
      %v9061 = vunpack.c.h.b16 %v8916
      %v9062 = vunpack.c.l.b16 %v8917
      %v9063 = vunpack.c.h.b16 %v8917
      %v9064 = vunpack.c.l.b16 %v8918
      %v9065 = vunpack.c.h.b16 %v8918
      %v9066 = vunpack.c.l.b16 %v8919
      %v9067 = vunpack.c.h.b16 %v8919
      %v9068 = vunpack.c.l.b16 %v8920
      %v9069 = vunpack.c.h.b16 %v8920
      %v9070 = vunpack.c.l.b16 %v8921
      %v9071 = vunpack.c.h.b16 %v8921
      %v9072 = vunpack.c.l.b16 %v8922
      %v9073 = vunpack.c.h.b16 %v8922
      %v9074 = vpack.c.b16 %v9012, %v9010
      %v9075 = vpack.c.b16 %v9013, %v9011
      %v9076 = vpack.c.b16 %v9016, %v9014
      %v9077 = vpack.c.b16 %v9017, %v9015
      %v9078 = vpack.c.b16 %v9020, %v9018
      %v9079 = vpack.c.b16 %v9021, %v9019
      %v9080 = vpack.c.b16 %v9024, %v9022
      %v9081 = vpack.c.b16 %v9025, %v9023
      %v9082 = vpack.c.b16 %v9028, %v9026
      %v9083 = vpack.c.b16 %v9029, %v9027
      %v9084 = vpack.c.b16 %v9032, %v9030
      %v9085 = vpack.c.b16 %v9033, %v9031
      %v9086 = vpack.c.b16 %v9036, %v9034
      %v9087 = vpack.c.b16 %v9037, %v9035
      %v9088 = vpack.c.b16 %v9040, %v9038
      %v9089 = vpack.c.b16 %v9041, %v9039
      %v9090 = vpack.c.b16 %v9044, %v9042
      %v9091 = vpack.c.b16 %v9045, %v9043
      %v9092 = vpack.c.b16 %v9048, %v9046
      %v9093 = vpack.c.b16 %v9049, %v9047
      %v9094 = vpack.c.b16 %v9052, %v9050
      %v9095 = vpack.c.b16 %v9053, %v9051
      %v9096 = vpack.c.b16 %v9056, %v9054
      %v9097 = vpack.c.b16 %v9057, %v9055
      %v9098 = vpack.c.b16 %v9060, %v9058
      %v9099 = vpack.c.b16 %v9061, %v9059
      %v9100 = vpack.c.b16 %v9064, %v9062
      %v9101 = vpack.c.b16 %v9065, %v9063
      %v9102 = vpack.c.b16 %v9068, %v9066
      %v9103 = vpack.c.b16 %v9069, %v9067
      %v9104 = vpack.c.b16 %v9072, %v9070
      %v9105 = vpack.c.b16 %v9073, %v9071
      %v9144 = vunpack.c.l.b16 %v8956
      %v9145 = vunpack.c.l.b16 %v8957
      %v9146 = vunpack.c.l.b16 %v8958
      %v9147 = vunpack.c.l.b16 %v8959
      %v9148 = vunpack.c.l.b16 %v8960
      %v9149 = vunpack.c.l.b16 %v8961
      %v9150 = vunpack.c.l.b16 %v8962
      %v9151 = vunpack.c.l.b16 %v8963
      %v9152 = vunpack.c.l.b16 %v8964
      %v9153 = vunpack.c.l.b16 %v8965
      %v9154 = vunpack.c.l.b16 %v8966
      %v9155 = vunpack.c.l.b16 %v8967
      %v9156 = vunpack.c.l.b16 %v8968
      %v9157 = vunpack.c.l.b16 %v8969
      %v9158 = vunpack.c.l.b16 %v8970
      %v9159 = vunpack.c.l.b16 %v8971
      %v9160 = vunpack.c.l.b16 %v8972
      %v9161 = vunpack.c.l.b16 %v8973
      %v9162 = vunpack.c.l.b16 %v8974
      %v9163 = vunpack.c.l.b16 %v8975
      %v9164 = vunpack.c.l.b16 %v8976
      %v9165 = vunpack.c.l.b16 %v8977
      %v9166 = vpack.c.b16 %v9145, %v9144
      %v9167 = vpack.c.b16 %v9147, %v9146
      %v9168 = vpack.c.b16 %v9149, %v9148
      %v9169 = vpack.c.b16 %v9151, %v9150
      %v9170 = vpack.c.b16 %v9153, %v9152
      %v9171 = vpack.c.b16 %v9155, %v9154
      %v9172 = vpack.c.b16 %v9157, %v9156
      %v9173 = vpack.c.b16 %v9159, %v9158
      %v9174 = vpack.c.b16 %v9161, %v9160
      %v9175 = vpack.c.b16 %v9163, %v9162
      %v9176 = vpack.c.b16 %v9165, %v9164
      %v9189 = vsel %vm3308, %v9075, 0
      %v9192 = vsel %vm3308, %v9077, 0
      %v9195 = vsel %vm3308, %v9079, 0
      %v9198 = vsel %vm3308, %v9081, 0
      %v9201 = vsel %vm3308, %v9083, 0
      %v9204 = vsel %vm3308, %v9085, 0
      %v9207 = vsel %vm3308, %v9087, 0
      %v9210 = vsel %vm3308, %v9089, 0
      %v9213 = vsel %vm3308, %v9091, 0
      %v9216 = vsel %vm3308, %v9093, 0
      %v9219 = vsel %vm3308, %v9095, 0
      %v9222 = vsel %vm3308, %v9097, 0
      %v9225 = vsel %vm3308, %v9099, 0
      %v9228 = vsel %vm3308, %v9101, 0
      %v9231 = vsel %vm3308, %v9103, 0
      %v9234 = vsel %vm3308, %v9105, 0
      %9236 = vmatpush.bf16.msra.mxu0 %v9173
      %9237 = vmatpush.bf16.msra.mxu0 %v9172
      %9238 = vmatpush.bf16.msra.mxu0 %v9171
      %9239 = vmatpush.bf16.msra.mxu0 %v9170
      %9240 = vmatpush.bf16.msra.mxu0 %v9169
      %9241 = vmatpush.bf16.msra.mxu0 %v9168
      %9242 = vmatpush.bf16.msra.mxu0 %v9167
      %9243 = vmatpush.bf16.msra.mxu0 %v9166
      %9244 = vmatmul.bf16.gmra.mxu0 %v9074
      %v9245 = vpop.f32.mrf.mxu0
      %v9246 = vadd.f32 0.0, %v9245
      %v9247 = vpop.f32.mrf.mxu0
      %v9248 = vadd.f32 0.0, %v9247
      %9249 = vmatmul.bf16.gmra.mxu0 %v9076
      %v9250 = vpop.f32.mrf.mxu0
      %v9251 = vadd.f32 0.0, %v9250
      %v9252 = vpop.f32.mrf.mxu0
      %v9253 = vadd.f32 0.0, %v9252
      %9254 = vmatmul.bf16.gmra.mxu0 %v9078
      %v9255 = vpop.f32.mrf.mxu0
      %v9256 = vadd.f32 0.0, %v9255
      %v9257 = vpop.f32.mrf.mxu0
      %v9258 = vadd.f32 0.0, %v9257
      %9259 = vmatmul.bf16.gmra.mxu0 %v9080
      %v9260 = vpop.f32.mrf.mxu0
      %v9261 = vadd.f32 0.0, %v9260
      %v9262 = vpop.f32.mrf.mxu0
      %v9263 = vadd.f32 0.0, %v9262
      %9264 = vmatmul.bf16.gmra.mxu0 %v9082
      %v9265 = vpop.f32.mrf.mxu0
      %v9266 = vadd.f32 0.0, %v9265
      %v9267 = vpop.f32.mrf.mxu0
      %v9268 = vadd.f32 0.0, %v9267
      %9269 = vmatmul.bf16.gmra.mxu0 %v9084
      %v9270 = vpop.f32.mrf.mxu0
      %v9271 = vadd.f32 0.0, %v9270
      %v9272 = vpop.f32.mrf.mxu0
      %v9273 = vadd.f32 0.0, %v9272
      %9274 = vmatmul.bf16.gmra.mxu0 %v9086
      %v9275 = vpop.f32.mrf.mxu0
      %v9276 = vadd.f32 0.0, %v9275
      %v9277 = vpop.f32.mrf.mxu0
      %v9278 = vadd.f32 0.0, %v9277
      %9279 = vmatmul.bf16.gmra.mxu0 %v9088
      %v9280 = vpop.f32.mrf.mxu0
      %v9281 = vadd.f32 0.0, %v9280
      %v9282 = vpop.f32.mrf.mxu0
      %v9283 = vadd.f32 0.0, %v9282
      %9284 = vmatmul.bf16.gmra.mxu0 %v9090
      %v9285 = vpop.f32.mrf.mxu0
      %v9286 = vadd.f32 0.0, %v9285
      %v9287 = vpop.f32.mrf.mxu0
      %v9288 = vadd.f32 0.0, %v9287
      %9289 = vmatmul.bf16.gmra.mxu0 %v9092
      %v9290 = vpop.f32.mrf.mxu0
      %v9291 = vadd.f32 0.0, %v9290
      %v9292 = vpop.f32.mrf.mxu0
      %v9293 = vadd.f32 0.0, %v9292
      %9294 = vmatmul.bf16.gmra.mxu0 %v9094
      %v9295 = vpop.f32.mrf.mxu0
      %v9296 = vadd.f32 0.0, %v9295
      %v9297 = vpop.f32.mrf.mxu0
      %v9298 = vadd.f32 0.0, %v9297
      %9299 = vmatmul.bf16.gmra.mxu0 %v9096
      %v9300 = vpop.f32.mrf.mxu0
      %v9301 = vadd.f32 0.0, %v9300
      %v9302 = vpop.f32.mrf.mxu0
      %v9303 = vadd.f32 0.0, %v9302
      %9304 = vmatmul.bf16.gmra.mxu0 %v9098
      %v9305 = vpop.f32.mrf.mxu0
      %v9306 = vadd.f32 0.0, %v9305
      %v9307 = vpop.f32.mrf.mxu0
      %v9308 = vadd.f32 0.0, %v9307
      %9309 = vmatmul.bf16.gmra.mxu0 %v9100
      %v9310 = vpop.f32.mrf.mxu0
      %v9311 = vadd.f32 0.0, %v9310
      %v9312 = vpop.f32.mrf.mxu0
      %v9313 = vadd.f32 0.0, %v9312
      %9314 = vmatmul.bf16.gmra.mxu0 %v9102
      %v9315 = vpop.f32.mrf.mxu0
      %v9316 = vadd.f32 0.0, %v9315
      %v9317 = vpop.f32.mrf.mxu0
      %v9318 = vadd.f32 0.0, %v9317
      %9319 = vmatmul.bf16.gmra.mxu0 %v9104
      %v9320 = vpop.f32.mrf.mxu0
      %v9321 = vadd.f32 0.0, %v9320
      %v9322 = vpop.f32.mrf.mxu0
      %v9323 = vadd.f32 0.0, %v9322
      %9324 = vdwg.mxu0
      %9325 = vmatpush.bf16.msra.mxu0 0
      %9326 = vmatpush.bf16.msra.mxu0 0
      %9327 = vmatpush.bf16.msra.mxu0 0
      %9328 = vmatpush.bf16.msra.mxu0 0
      %9329 = vmatpush.bf16.msra.mxu0 0
      %9330 = vmatpush.bf16.msra.mxu0 %v9176
      %9331 = vmatpush.bf16.msra.mxu0 %v9175
      %9332 = vmatpush.bf16.msra.mxu0 %v9174
      %9333 = vmatmul.bf16.gmra.mxu0 %v9189
      %v9334 = vpop.f32.mrf.mxu0
      %v9335 = vadd.f32 %v9246, %v9334
      %v9336 = vpop.f32.mrf.mxu0
      %v9337 = vadd.f32 %v9248, %v9336
      %9338 = vmatmul.bf16.gmra.mxu0 %v9192
      %v9339 = vpop.f32.mrf.mxu0
      %v9340 = vadd.f32 %v9251, %v9339
      %v9341 = vpop.f32.mrf.mxu0
      %v9342 = vadd.f32 %v9253, %v9341
      %9343 = vmatmul.bf16.gmra.mxu0 %v9195
      %v9344 = vpop.f32.mrf.mxu0
      %v9345 = vadd.f32 %v9256, %v9344
      %v9346 = vpop.f32.mrf.mxu0
      %v9347 = vadd.f32 %v9258, %v9346
      %9348 = vmatmul.bf16.gmra.mxu0 %v9198
      %v9349 = vpop.f32.mrf.mxu0
      %v9350 = vadd.f32 %v9261, %v9349
      %v9351 = vpop.f32.mrf.mxu0
      %v9352 = vadd.f32 %v9263, %v9351
      %9353 = vmatmul.bf16.gmra.mxu0 %v9201
      %v9354 = vpop.f32.mrf.mxu0
      %v9355 = vadd.f32 %v9266, %v9354
      %v9356 = vpop.f32.mrf.mxu0
      %v9357 = vadd.f32 %v9268, %v9356
      %9358 = vmatmul.bf16.gmra.mxu0 %v9204
      %v9359 = vpop.f32.mrf.mxu0
      %v9360 = vadd.f32 %v9271, %v9359
      %v9361 = vpop.f32.mrf.mxu0
      %v9362 = vadd.f32 %v9273, %v9361
      %9363 = vmatmul.bf16.gmra.mxu0 %v9207
      %v9364 = vpop.f32.mrf.mxu0
      %v9365 = vadd.f32 %v9276, %v9364
      %v9366 = vpop.f32.mrf.mxu0
      %v9367 = vadd.f32 %v9278, %v9366
      %9368 = vmatmul.bf16.gmra.mxu0 %v9210
      %v9369 = vpop.f32.mrf.mxu0
      %v9370 = vadd.f32 %v9281, %v9369
      %v9371 = vpop.f32.mrf.mxu0
      %v9372 = vadd.f32 %v9283, %v9371
      %9373 = vmatmul.bf16.gmra.mxu0 %v9213
      %v9374 = vpop.f32.mrf.mxu0
      %v9375 = vadd.f32 %v9286, %v9374
      %v9376 = vpop.f32.mrf.mxu0
      %v9377 = vadd.f32 %v9288, %v9376
      %9378 = vmatmul.bf16.gmra.mxu0 %v9216
      %v9379 = vpop.f32.mrf.mxu0
      %v9380 = vadd.f32 %v9291, %v9379
      %v9381 = vpop.f32.mrf.mxu0
      %v9382 = vadd.f32 %v9293, %v9381
      %9383 = vmatmul.bf16.gmra.mxu0 %v9219
      %v9384 = vpop.f32.mrf.mxu0
      %v9385 = vadd.f32 %v9296, %v9384
      %v9386 = vpop.f32.mrf.mxu0
      %v9387 = vadd.f32 %v9298, %v9386
      %9388 = vmatmul.bf16.gmra.mxu0 %v9222
      %v9389 = vpop.f32.mrf.mxu0
      %v9390 = vadd.f32 %v9301, %v9389
      %v9391 = vpop.f32.mrf.mxu0
      %v9392 = vadd.f32 %v9303, %v9391
      %9393 = vmatmul.bf16.gmra.mxu0 %v9225
      %v9394 = vpop.f32.mrf.mxu0
      %v9395 = vadd.f32 %v9306, %v9394
      %v9396 = vpop.f32.mrf.mxu0
      %v9397 = vadd.f32 %v9308, %v9396
      %9398 = vmatmul.bf16.gmra.mxu0 %v9228
      %v9399 = vpop.f32.mrf.mxu0
      %v9400 = vadd.f32 %v9311, %v9399
      %v9401 = vpop.f32.mrf.mxu0
      %v9402 = vadd.f32 %v9313, %v9401
      %9403 = vmatmul.bf16.gmra.mxu0 %v9231
      %v9404 = vpop.f32.mrf.mxu0
      %v9405 = vadd.f32 %v9316, %v9404
      %v9406 = vpop.f32.mrf.mxu0
      %v9407 = vadd.f32 %v9318, %v9406
      %9408 = vmatmul.bf16.gmra.mxu0 %v9234
      %v9409 = vpop.f32.mrf.mxu0
      %v9410 = vadd.f32 %v9321, %v9409
      %v9411 = vpop.f32.mrf.mxu0
      %v9412 = vadd.f32 %v9323, %v9411
      %9413 = vdwg.mxu0
      %v9414 = vadd.f32 %v8923, %v9335
      %v9415 = vadd.f32 %v8924, %v9337
      %v9416 = vadd.f32 %v8925, %v9340
      %v9417 = vadd.f32 %v8926, %v9342
      %v9418 = vadd.f32 %v8927, %v9345
      %v9419 = vadd.f32 %v8928, %v9347
      %v9420 = vadd.f32 %v8929, %v9350
      %v9421 = vadd.f32 %v8930, %v9352
      %v9422 = vadd.f32 %v8931, %v9355
      %v9423 = vadd.f32 %v8932, %v9357
      %v9424 = vadd.f32 %v8933, %v9360
      %v9425 = vadd.f32 %v8934, %v9362
      %v9426 = vadd.f32 %v8935, %v9365
      %v9427 = vadd.f32 %v8936, %v9367
      %v9428 = vadd.f32 %v8937, %v9370
      %v9429 = vadd.f32 %v8938, %v9372
      %v9430 = vadd.f32 %v8939, %v9375
      %v9431 = vadd.f32 %v8940, %v9377
      %v9432 = vadd.f32 %v8941, %v9380
      %v9433 = vadd.f32 %v8942, %v9382
      %v9434 = vadd.f32 %v8943, %v9385
      %v9435 = vadd.f32 %v8944, %v9387
      %v9436 = vadd.f32 %v8945, %v9390
      %v9437 = vadd.f32 %v8946, %v9392
      %v9438 = vadd.f32 %v8947, %v9395
      %v9439 = vadd.f32 %v8948, %v9397
      %v9440 = vadd.f32 %v8949, %v9400
      %v9441 = vadd.f32 %v8950, %v9402
      %v9442 = vadd.f32 %v8951, %v9405
      %v9443 = vadd.f32 %v8952, %v9407
      %v9444 = vadd.f32 %v8953, %v9410
      %v9445 = vadd.f32 %v8954, %v9412
      %9446 = vst.msk [vmem:[#allocation3] sm:$0xff] %vm2979, %v9414
      %9447 = vst.msk [vmem:[#allocation3 + $0x8] sm:$0xff] %vm2979, %v9415
      %9448 = vst.msk [vmem:[#allocation3 + $0x10] sm:$0xff] %vm2979, %v9416
      %9449 = vst.msk [vmem:[#allocation3 + $0x18] sm:$0xff] %vm2979, %v9417
      %9450 = vst.msk [vmem:[#allocation3 + $0x20] sm:$0xff] %vm2979, %v9418
      %9451 = vst.msk [vmem:[#allocation3 + $0x28] sm:$0xff] %vm2979, %v9419
      %9452 = vst.msk [vmem:[#allocation3 + $0x30] sm:$0xff] %vm2979, %v9420
      %9453 = vst.msk [vmem:[#allocation3 + $0x38] sm:$0xff] %vm2979, %v9421
      %9454 = vst.msk [vmem:[#allocation3 + $0x40] sm:$0xff] %vm2979, %v9422
      %9455 = vst.msk [vmem:[#allocation3 + $0x48] sm:$0xff] %vm2979, %v9423
      %9456 = vst.msk [vmem:[#allocation3 + $0x50] sm:$0xff] %vm2979, %v9424
      %9457 = vst.msk [vmem:[#allocation3 + $0x58] sm:$0xff] %vm2979, %v9425
      %9458 = vst.msk [vmem:[#allocation3 + $0x60] sm:$0xff] %vm2979, %v9426
      %9459 = vst.msk [vmem:[#allocation3 + $0x68] sm:$0xff] %vm2979, %v9427
      %9460 = vst.msk [vmem:[#allocation3 + $0x70] sm:$0xff] %vm2979, %v9428
      %9461 = vst.msk [vmem:[#allocation3 + $0x78] sm:$0xff] %vm2979, %v9429
      %9462 = vst.msk [vmem:[#allocation3 + $0x80] sm:$0xff] %vm2979, %v9430
      %9463 = vst.msk [vmem:[#allocation3 + $0x88] sm:$0xff] %vm2979, %v9431
      %9464 = vst.msk [vmem:[#allocation3 + $0x90] sm:$0xff] %vm2979, %v9432
      %9465 = vst.msk [vmem:[#allocation3 + $0x98] sm:$0xff] %vm2979, %v9433
      %9466 = vst.msk [vmem:[#allocation3 + $0xa0] sm:$0xff] %vm2979, %v9434
      %9467 = vst.msk [vmem:[#allocation3 + $0xa8] sm:$0xff] %vm2979, %v9435
      %9468 = vst.msk [vmem:[#allocation3 + $0xb0] sm:$0xff] %vm2979, %v9436
      %9469 = vst.msk [vmem:[#allocation3 + $0xb8] sm:$0xff] %vm2979, %v9437
      %9470 = vst.msk [vmem:[#allocation3 + $0xc0] sm:$0xff] %vm2979, %v9438
      %9471 = vst.msk [vmem:[#allocation3 + $0xc8] sm:$0xff] %vm2979, %v9439
      %9472 = vst.msk [vmem:[#allocation3 + $0xd0] sm:$0xff] %vm2979, %v9440
      %9473 = vst.msk [vmem:[#allocation3 + $0xd8] sm:$0xff] %vm2979, %v9441
      %9474 = vst.msk [vmem:[#allocation3 + $0xe0] sm:$0xff] %vm2979, %v9442
      %9475 = vst.msk [vmem:[#allocation3 + $0xe8] sm:$0xff] %vm2979, %v9443
      %9476 = vst.msk [vmem:[#allocation3 + $0xf0] sm:$0xff] %vm2979, %v9444
      %9477 = vst.msk [vmem:[#allocation3 + $0xf8] sm:$0xff] %vm2979, %v9445
      %v9478 = vld [vmem:[#allocation3] sm:$0xff]
      %v9479 = vld [vmem:[#allocation3 + $0x8] sm:$0xff]
      %v9480 = vld [vmem:[#allocation3 + $0x10] sm:$0xff]
      %v9481 = vld [vmem:[#allocation3 + $0x18] sm:$0xff]
      %v9482 = vld [vmem:[#allocation3 + $0x20] sm:$0xff]
      %v9483 = vld [vmem:[#allocation3 + $0x28] sm:$0xff]
      %v9484 = vld [vmem:[#allocation3 + $0x30] sm:$0xff]
      %v9485 = vld [vmem:[#allocation3 + $0x38] sm:$0xff]
      %v9486 = vld [vmem:[#allocation3 + $0x40] sm:$0xff]
      %v9487 = vld [vmem:[#allocation3 + $0x48] sm:$0xff]
      %v9488 = vld [vmem:[#allocation3 + $0x50] sm:$0xff]
      %v9489 = vld [vmem:[#allocation3 + $0x58] sm:$0xff]
      %v9490 = vld [vmem:[#allocation3 + $0x60] sm:$0xff]
      %v9491 = vld [vmem:[#allocation3 + $0x68] sm:$0xff]
      %v9492 = vld [vmem:[#allocation3 + $0x70] sm:$0xff]
      %v9493 = vld [vmem:[#allocation3 + $0x78] sm:$0xff]
      %v9494 = vld [vmem:[#allocation3 + $0x80] sm:$0xff]
      %v9495 = vld [vmem:[#allocation3 + $0x88] sm:$0xff]
      %v9496 = vld [vmem:[#allocation3 + $0x90] sm:$0xff]
      %v9497 = vld [vmem:[#allocation3 + $0x98] sm:$0xff]
      %v9498 = vld [vmem:[#allocation3 + $0xa0] sm:$0xff]
      %v9499 = vld [vmem:[#allocation3 + $0xa8] sm:$0xff]
      %v9500 = vld [vmem:[#allocation3 + $0xb0] sm:$0xff]
      %v9501 = vld [vmem:[#allocation3 + $0xb8] sm:$0xff]
      %v9502 = vld [vmem:[#allocation3 + $0xc0] sm:$0xff]
      %v9503 = vld [vmem:[#allocation3 + $0xc8] sm:$0xff]
      %v9504 = vld [vmem:[#allocation3 + $0xd0] sm:$0xff]
      %v9505 = vld [vmem:[#allocation3 + $0xd8] sm:$0xff]
      %v9506 = vld [vmem:[#allocation3 + $0xe0] sm:$0xff]
      %v9507 = vld [vmem:[#allocation3 + $0xe8] sm:$0xff]
      %v9508 = vld [vmem:[#allocation3 + $0xf0] sm:$0xff]
      %v9509 = vld [vmem:[#allocation3 + $0xf8] sm:$0xff]
      %v9510 = vld [vmem:[%s4] sm:$0x1]
      %v9511 = vperm.slane %v9510, 0
      %v9512 = vadd.f32 %v9478, %v9511
      %v9513 = vadd.f32 %v9479, %v9511
      %v9514 = vadd.f32 %v9480, %v9511
      %v9515 = vadd.f32 %v9481, %v9511
      %v9516 = vadd.f32 %v9482, %v9511
      %v9517 = vadd.f32 %v9483, %v9511
      %v9518 = vadd.f32 %v9484, %v9511
      %v9519 = vadd.f32 %v9485, %v9511
      %v9520 = vadd.f32 %v9486, %v9511
      %v9521 = vadd.f32 %v9487, %v9511
      %v9522 = vadd.f32 %v9488, %v9511
      %v9523 = vadd.f32 %v9489, %v9511
      %v9524 = vadd.f32 %v9490, %v9511
      %v9525 = vadd.f32 %v9491, %v9511
      %v9526 = vadd.f32 %v9492, %v9511
      %v9527 = vadd.f32 %v9493, %v9511
      %v9528 = vadd.f32 %v9494, %v9511
      %v9529 = vadd.f32 %v9495, %v9511
      %v9530 = vadd.f32 %v9496, %v9511
      %v9531 = vadd.f32 %v9497, %v9511
      %v9532 = vadd.f32 %v9498, %v9511
      %v9533 = vadd.f32 %v9499, %v9511
      %v9534 = vadd.f32 %v9500, %v9511
      %v9535 = vadd.f32 %v9501, %v9511
      %v9536 = vadd.f32 %v9502, %v9511
      %v9537 = vadd.f32 %v9503, %v9511
      %v9538 = vadd.f32 %v9504, %v9511
      %v9539 = vadd.f32 %v9505, %v9511
      %v9540 = vadd.f32 %v9506, %v9511
      %v9541 = vadd.f32 %v9507, %v9511
      %v9542 = vadd.f32 %v9508, %v9511
      %v9543 = vadd.f32 %v9509, %v9511
      %v9544 = vsel %vm2979, %v9512, 0.0
      %v9545 = vsel %vm2979, %v9513, 0.0
      %v9546 = vadd.f32 %v9544, %v9545
      %v9547 = vsel %vm2979, %v9514, 0.0
      %v9548 = vadd.f32 %v9546, %v9547
      %v9549 = vsel %vm2979, %v9515, 0.0
      %v9550 = vadd.f32 %v9548, %v9549
      %v9551 = vsel %vm2979, %v9516, 0.0
      %v9552 = vadd.f32 %v9550, %v9551
      %v9553 = vsel %vm2979, %v9517, 0.0
      %v9554 = vadd.f32 %v9552, %v9553
      %v9555 = vsel %vm2979, %v9518, 0.0
      %v9556 = vadd.f32 %v9554, %v9555
      %v9557 = vsel %vm2979, %v9519, 0.0
      %v9558 = vadd.f32 %v9556, %v9557
      %v9559 = vsel %vm2979, %v9520, 0.0
      %v9560 = vadd.f32 %v9558, %v9559
      %v9561 = vsel %vm2979, %v9521, 0.0
      %v9562 = vadd.f32 %v9560, %v9561
      %v9563 = vsel %vm2979, %v9522, 0.0
      %v9564 = vadd.f32 %v9562, %v9563
      %v9565 = vsel %vm2979, %v9523, 0.0
      %v9566 = vadd.f32 %v9564, %v9565
      %v9567 = vsel %vm2979, %v9524, 0.0
      %v9568 = vadd.f32 %v9566, %v9567
      %v9569 = vsel %vm2979, %v9525, 0.0
      %v9570 = vadd.f32 %v9568, %v9569
      %v9571 = vsel %vm2979, %v9526, 0.0
      %v9572 = vadd.f32 %v9570, %v9571
      %v9573 = vsel %vm2979, %v9527, 0.0
      %v9574 = vadd.f32 %v9572, %v9573
      %v9575 = vsel %vm2979, %v9528, 0.0
      %v9576 = vadd.f32 %v9574, %v9575
      %v9577 = vsel %vm2979, %v9529, 0.0
      %v9578 = vadd.f32 %v9576, %v9577
      %v9579 = vsel %vm2979, %v9530, 0.0
      %v9580 = vadd.f32 %v9578, %v9579
      %v9581 = vsel %vm2979, %v9531, 0.0
      %v9582 = vadd.f32 %v9580, %v9581
      %v9583 = vsel %vm2979, %v9532, 0.0
      %v9584 = vadd.f32 %v9582, %v9583
      %v9585 = vsel %vm2979, %v9533, 0.0
      %v9586 = vadd.f32 %v9584, %v9585
      %v9587 = vsel %vm2979, %v9534, 0.0
      %v9588 = vadd.f32 %v9586, %v9587
      %v9589 = vsel %vm2979, %v9535, 0.0
      %v9590 = vadd.f32 %v9588, %v9589
      %v9591 = vsel %vm2979, %v9536, 0.0
      %v9592 = vadd.f32 %v9590, %v9591
      %v9593 = vsel %vm2979, %v9537, 0.0
      %v9594 = vadd.f32 %v9592, %v9593
      %v9595 = vsel %vm2979, %v9538, 0.0
      %v9596 = vadd.f32 %v9594, %v9595
      %v9597 = vsel %vm2979, %v9539, 0.0
      %v9598 = vadd.f32 %v9596, %v9597
      %v9599 = vsel %vm2979, %v9540, 0.0
      %v9600 = vadd.f32 %v9598, %v9599
      %v9601 = vsel %vm2979, %v9541, 0.0
      %v9602 = vadd.f32 %v9600, %v9601
      %v9603 = vsel %vm2979, %v9542, 0.0
      %v9604 = vadd.f32 %v9602, %v9603
      %v9605 = vsel %vm2979, %v9543, 0.0
      %v9606 = vadd.f32 %v9604, %v9605
      %v9607 = vrot.slane %v9606, 4
      %v9608 = vadd.f32 %v9606, %v9607
      %v9609 = vrot.slane %v9608, 2
      %v9610 = vadd.f32 %v9608, %v9609
      %v9611 = vrot.slane %v9610, 1
      %v9612 = vadd.f32 %v9610, %v9611
      %v9613 = vld [vmem:[%s5] sm:$0xff]
      %v9614 = vld [vmem:[%s5 + $0x8] sm:$0xff]
      %v9615 = vld [vmem:[%s5 + $0x10] sm:$0xff]
      %v9616 = vld [vmem:[%s5 + $0x18] sm:$0xff]
      %v9617 = vld [vmem:[%s5 + $0x20] sm:$0xff]
      %v9618 = vld [vmem:[%s5 + $0x28] sm:$0xff]
      %v9619 = vld [vmem:[%s5 + $0x30] sm:$0xff]
      %v9620 = vld [vmem:[%s5 + $0x38] sm:$0xff]
      %v9622 = vsel %vm2979, %v9612, 0
      %9624 = vmatpush.msra.mxu0 0.0
      %9625 = vmatpush.msra.mxu0 0.0
      %9626 = vmatpush.msra.mxu0 0.0
      %9627 = vmatpush.msra.mxu0 0.0
      %9628 = vmatpush.msra.mxu0 0.0
      %9629 = vmatpush.msra.mxu0 0.0
      %9630 = vmatpush.msra.mxu0 0.0
      %9631 = vmatpush.msra.mxu0 0.0
      %9632 = vmatpush.msra.mxu0 %v9620
      %9633 = vmatpush.msra.mxu0 %v9619
      %9634 = vmatpush.msra.mxu0 %v9618
      %9635 = vmatpush.msra.mxu0 %v9617
      %9636 = vmatpush.msra.mxu0 %v9616
      %9637 = vmatpush.msra.mxu0 %v9615
      %9638 = vmatpush.msra.mxu0 %v9614
      %9639 = vmatpush.msra.mxu0 %v9613
      %9640 = vmatmul.f32.gmra.mxu0 %v9622
      %v9641 = vpop.f32.mrf.mxu0
      %v9642 = vadd.f32 0.0, %v9641
      %9643 = vdwg.mxu0
      %v9644 = vperm.slane %v9642, 0
      %v9645 = vsub.f32 %v9512, %v9644
      %v9646 = vsub.f32 %v9513, %v9644
      %v9647 = vsub.f32 %v9514, %v9644
      %v9648 = vsub.f32 %v9515, %v9644
      %v9649 = vsub.f32 %v9516, %v9644
      %v9650 = vsub.f32 %v9517, %v9644
      %v9651 = vsub.f32 %v9518, %v9644
      %v9652 = vsub.f32 %v9519, %v9644
      %v9653 = vsub.f32 %v9520, %v9644
      %v9654 = vsub.f32 %v9521, %v9644
      %v9655 = vsub.f32 %v9522, %v9644
      %v9656 = vsub.f32 %v9523, %v9644
      %v9657 = vsub.f32 %v9524, %v9644
      %v9658 = vsub.f32 %v9525, %v9644
      %v9659 = vsub.f32 %v9526, %v9644
      %v9660 = vsub.f32 %v9527, %v9644
      %v9661 = vsub.f32 %v9528, %v9644
      %v9662 = vsub.f32 %v9529, %v9644
      %v9663 = vsub.f32 %v9530, %v9644
      %v9664 = vsub.f32 %v9531, %v9644
      %v9665 = vsub.f32 %v9532, %v9644
      %v9666 = vsub.f32 %v9533, %v9644
      %v9667 = vsub.f32 %v9534, %v9644
      %v9668 = vsub.f32 %v9535, %v9644
      %v9669 = vsub.f32 %v9536, %v9644
      %v9670 = vsub.f32 %v9537, %v9644
      %v9671 = vsub.f32 %v9538, %v9644
      %v9672 = vsub.f32 %v9539, %v9644
      %v9673 = vsub.f32 %v9540, %v9644
      %v9674 = vsub.f32 %v9541, %v9644
      %v9675 = vsub.f32 %v9542, %v9644
      %v9676 = vsub.f32 %v9543, %v9644
      %v9677 = vmul.f32 %v9645, %v9645
      %v9678 = vmul.f32 %v9646, %v9646
      %v9679 = vmul.f32 %v9647, %v9647
      %v9680 = vmul.f32 %v9648, %v9648
      %v9681 = vmul.f32 %v9649, %v9649
      %v9682 = vmul.f32 %v9650, %v9650
      %v9683 = vmul.f32 %v9651, %v9651
      %v9684 = vmul.f32 %v9652, %v9652
      %v9685 = vmul.f32 %v9653, %v9653
      %v9686 = vmul.f32 %v9654, %v9654
      %v9687 = vmul.f32 %v9655, %v9655
      %v9688 = vmul.f32 %v9656, %v9656
      %v9689 = vmul.f32 %v9657, %v9657
      %v9690 = vmul.f32 %v9658, %v9658
      %v9691 = vmul.f32 %v9659, %v9659
      %v9692 = vmul.f32 %v9660, %v9660
      %v9693 = vmul.f32 %v9661, %v9661
      %v9694 = vmul.f32 %v9662, %v9662
      %v9695 = vmul.f32 %v9663, %v9663
      %v9696 = vmul.f32 %v9664, %v9664
      %v9697 = vmul.f32 %v9665, %v9665
      %v9698 = vmul.f32 %v9666, %v9666
      %v9699 = vmul.f32 %v9667, %v9667
      %v9700 = vmul.f32 %v9668, %v9668
      %v9701 = vmul.f32 %v9669, %v9669
      %v9702 = vmul.f32 %v9670, %v9670
      %v9703 = vmul.f32 %v9671, %v9671
      %v9704 = vmul.f32 %v9672, %v9672
      %v9705 = vmul.f32 %v9673, %v9673
      %v9706 = vmul.f32 %v9674, %v9674
      %v9707 = vmul.f32 %v9675, %v9675
      %v9708 = vmul.f32 %v9676, %v9676
      %v9709 = vsel %vm2979, %v9677, 0.0
      %v9710 = vsel %vm2979, %v9678, 0.0
      %v9711 = vadd.f32 %v9709, %v9710
      %v9712 = vsel %vm2979, %v9679, 0.0
      %v9713 = vadd.f32 %v9711, %v9712
      %v9714 = vsel %vm2979, %v9680, 0.0
      %v9715 = vadd.f32 %v9713, %v9714
      %v9716 = vsel %vm2979, %v9681, 0.0
      %v9717 = vadd.f32 %v9715, %v9716
      %v9718 = vsel %vm2979, %v9682, 0.0
      %v9719 = vadd.f32 %v9717, %v9718
      %v9720 = vsel %vm2979, %v9683, 0.0
      %v9721 = vadd.f32 %v9719, %v9720
      %v9722 = vsel %vm2979, %v9684, 0.0
      %v9723 = vadd.f32 %v9721, %v9722
      %v9724 = vsel %vm2979, %v9685, 0.0
      %v9725 = vadd.f32 %v9723, %v9724
      %v9726 = vsel %vm2979, %v9686, 0.0
      %v9727 = vadd.f32 %v9725, %v9726
      %v9728 = vsel %vm2979, %v9687, 0.0
      %v9729 = vadd.f32 %v9727, %v9728
      %v9730 = vsel %vm2979, %v9688, 0.0
      %v9731 = vadd.f32 %v9729, %v9730
      %v9732 = vsel %vm2979, %v9689, 0.0
      %v9733 = vadd.f32 %v9731, %v9732
      %v9734 = vsel %vm2979, %v9690, 0.0
      %v9735 = vadd.f32 %v9733, %v9734
      %v9736 = vsel %vm2979, %v9691, 0.0
      %v9737 = vadd.f32 %v9735, %v9736
      %v9738 = vsel %vm2979, %v9692, 0.0
      %v9739 = vadd.f32 %v9737, %v9738
      %v9740 = vsel %vm2979, %v9693, 0.0
      %v9741 = vadd.f32 %v9739, %v9740
      %v9742 = vsel %vm2979, %v9694, 0.0
      %v9743 = vadd.f32 %v9741, %v9742
      %v9744 = vsel %vm2979, %v9695, 0.0
      %v9745 = vadd.f32 %v9743, %v9744
      %v9746 = vsel %vm2979, %v9696, 0.0
      %v9747 = vadd.f32 %v9745, %v9746
      %v9748 = vsel %vm2979, %v9697, 0.0
      %v9749 = vadd.f32 %v9747, %v9748
      %v9750 = vsel %vm2979, %v9698, 0.0
      %v9751 = vadd.f32 %v9749, %v9750
      %v9752 = vsel %vm2979, %v9699, 0.0
      %v9753 = vadd.f32 %v9751, %v9752
      %v9754 = vsel %vm2979, %v9700, 0.0
      %v9755 = vadd.f32 %v9753, %v9754
      %v9756 = vsel %vm2979, %v9701, 0.0
      %v9757 = vadd.f32 %v9755, %v9756
      %v9758 = vsel %vm2979, %v9702, 0.0
      %v9759 = vadd.f32 %v9757, %v9758
      %v9760 = vsel %vm2979, %v9703, 0.0
      %v9761 = vadd.f32 %v9759, %v9760
      %v9762 = vsel %vm2979, %v9704, 0.0
      %v9763 = vadd.f32 %v9761, %v9762
      %v9764 = vsel %vm2979, %v9705, 0.0
      %v9765 = vadd.f32 %v9763, %v9764
      %v9766 = vsel %vm2979, %v9706, 0.0
      %v9767 = vadd.f32 %v9765, %v9766
      %v9768 = vsel %vm2979, %v9707, 0.0
      %v9769 = vadd.f32 %v9767, %v9768
      %v9770 = vsel %vm2979, %v9708, 0.0
      %v9771 = vadd.f32 %v9769, %v9770
      %v9772 = vrot.slane %v9771, 4
      %v9773 = vadd.f32 %v9771, %v9772
      %v9774 = vrot.slane %v9773, 2
      %v9775 = vadd.f32 %v9773, %v9774
      %v9776 = vrot.slane %v9775, 1
      %v9777 = vadd.f32 %v9775, %v9776
      %v9779 = vsel %vm2979, %v9777, 0
      %9781 = vmatpush.msra.mxu0 0.0
      %9782 = vmatpush.msra.mxu0 0.0
      %9783 = vmatpush.msra.mxu0 0.0
      %9784 = vmatpush.msra.mxu0 0.0
      %9785 = vmatpush.msra.mxu0 0.0
      %9786 = vmatpush.msra.mxu0 0.0
      %9787 = vmatpush.msra.mxu0 0.0
      %9788 = vmatpush.msra.mxu0 0.0
      %9789 = vmatpush.msra.mxu0 %v9620
      %9790 = vmatpush.msra.mxu0 %v9619
      %9791 = vmatpush.msra.mxu0 %v9618
      %9792 = vmatpush.msra.mxu0 %v9617
      %9793 = vmatpush.msra.mxu0 %v9616
      %9794 = vmatpush.msra.mxu0 %v9615
      %9795 = vmatpush.msra.mxu0 %v9614
      %9796 = vmatpush.msra.mxu0 %v9613
      %9797 = vmatmul.f32.gmra.mxu0 %v9779
      %v9798 = vpop.f32.mrf.mxu0
      %v9799 = vadd.f32 1e-05, %v9798
      %9800 = vdwg.mxu0
      %v9801 = vrsqrt.pop %v9799
      %v9802 = vmul.f32 %v9801, %v9799
      %v9803 = vmul.f32 %v9802, %v9801
      %v9804 = vmul.f32 0.5, %v9803
      %v9805 = vsub.f32 1.5, %v9804
      %v9806 = vmul.f32 %v9801, %v9805
      %vm9807 = vweird.f32 %v9799
      %vm9808 = vweird.f32 %v9801
      %vm9809 = vmor %vm9807, %vm9808
      %v9810 = vsel %vm9809, %v9801, %v9806
      %v9811 = vld [vmem:[%s4 + $0x1] sm:$0x1]
      %v9812 = vmul.f32 %v9810, %v9811
      %v9813 = vperm.slane %v9812, 0
      %v9814 = vmul.f32 %v9645, %v9813
      %v9815 = vmul.f32 %v9646, %v9813
      %v9816 = vmul.f32 %v9647, %v9813
      %v9817 = vmul.f32 %v9648, %v9813
      %v9818 = vmul.f32 %v9649, %v9813
      %v9819 = vmul.f32 %v9650, %v9813
      %v9820 = vmul.f32 %v9651, %v9813
      %v9821 = vmul.f32 %v9652, %v9813
      %v9822 = vmul.f32 %v9653, %v9813
      %v9823 = vmul.f32 %v9654, %v9813
      %v9824 = vmul.f32 %v9655, %v9813
      %v9825 = vmul.f32 %v9656, %v9813
      %v9826 = vmul.f32 %v9657, %v9813
      %v9827 = vmul.f32 %v9658, %v9813
      %v9828 = vmul.f32 %v9659, %v9813
      %v9829 = vmul.f32 %v9660, %v9813
      %v9830 = vmul.f32 %v9661, %v9813
      %v9831 = vmul.f32 %v9662, %v9813
      %v9832 = vmul.f32 %v9663, %v9813
      %v9833 = vmul.f32 %v9664, %v9813
      %v9834 = vmul.f32 %v9665, %v9813
      %v9835 = vmul.f32 %v9666, %v9813
      %v9836 = vmul.f32 %v9667, %v9813
      %v9837 = vmul.f32 %v9668, %v9813
      %v9838 = vmul.f32 %v9669, %v9813
      %v9839 = vmul.f32 %v9670, %v9813
      %v9840 = vmul.f32 %v9671, %v9813
      %v9841 = vmul.f32 %v9672, %v9813
      %v9842 = vmul.f32 %v9673, %v9813
      %v9843 = vmul.f32 %v9674, %v9813
      %v9844 = vmul.f32 %v9675, %v9813
      %v9845 = vmul.f32 %v9676, %v9813
      %v9846 = vld [vmem:[%s4 + $0x2] sm:$0x1]
      %v9847 = vperm.slane %v9846, 0
      %v9848 = vadd.f32 %v9814, %v9847
      %v9849 = vadd.f32 %v9815, %v9847
      %v9850 = vadd.f32 %v9816, %v9847
      %v9851 = vadd.f32 %v9817, %v9847
      %v9852 = vadd.f32 %v9818, %v9847
      %v9853 = vadd.f32 %v9819, %v9847
      %v9854 = vadd.f32 %v9820, %v9847
      %v9855 = vadd.f32 %v9821, %v9847
      %v9856 = vadd.f32 %v9822, %v9847
      %v9857 = vadd.f32 %v9823, %v9847
      %v9858 = vadd.f32 %v9824, %v9847
      %v9859 = vadd.f32 %v9825, %v9847
      %v9860 = vadd.f32 %v9826, %v9847
      %v9861 = vadd.f32 %v9827, %v9847
      %v9862 = vadd.f32 %v9828, %v9847
      %v9863 = vadd.f32 %v9829, %v9847
      %v9864 = vadd.f32 %v9830, %v9847
      %v9865 = vadd.f32 %v9831, %v9847
      %v9866 = vadd.f32 %v9832, %v9847
      %v9867 = vadd.f32 %v9833, %v9847
      %v9868 = vadd.f32 %v9834, %v9847
      %v9869 = vadd.f32 %v9835, %v9847
      %v9870 = vadd.f32 %v9836, %v9847
      %v9871 = vadd.f32 %v9837, %v9847
      %v9872 = vadd.f32 %v9838, %v9847
      %v9873 = vadd.f32 %v9839, %v9847
      %v9874 = vadd.f32 %v9840, %v9847
      %v9875 = vadd.f32 %v9841, %v9847
      %v9876 = vadd.f32 %v9842, %v9847
      %v9877 = vadd.f32 %v9843, %v9847
      %v9878 = vadd.f32 %v9844, %v9847
      %v9879 = vadd.f32 %v9845, %v9847
      %vm9880 = vcmp.ge.f32.partialorder %v9848, 0.0
      %vm9881 = vcmp.ge.f32.partialorder %v9849, 0.0
      %vm9882 = vcmp.ge.f32.partialorder %v9850, 0.0
      %vm9883 = vcmp.ge.f32.partialorder %v9851, 0.0
      %vm9884 = vcmp.ge.f32.partialorder %v9852, 0.0
      %vm9885 = vcmp.ge.f32.partialorder %v9853, 0.0
      %vm9886 = vcmp.ge.f32.partialorder %v9854, 0.0
      %vm9887 = vcmp.ge.f32.partialorder %v9855, 0.0
      %vm9888 = vcmp.ge.f32.partialorder %v9856, 0.0
      %vm9889 = vcmp.ge.f32.partialorder %v9857, 0.0
      %vm9890 = vcmp.ge.f32.partialorder %v9858, 0.0
      %vm9891 = vcmp.ge.f32.partialorder %v9859, 0.0
      %vm9892 = vcmp.ge.f32.partialorder %v9860, 0.0
      %vm9893 = vcmp.ge.f32.partialorder %v9861, 0.0
      %vm9894 = vcmp.ge.f32.partialorder %v9862, 0.0
      %vm9895 = vcmp.ge.f32.partialorder %v9863, 0.0
      %vm9896 = vcmp.ge.f32.partialorder %v9864, 0.0
      %vm9897 = vcmp.ge.f32.partialorder %v9865, 0.0
      %vm9898 = vcmp.ge.f32.partialorder %v9866, 0.0
      %vm9899 = vcmp.ge.f32.partialorder %v9867, 0.0
      %vm9900 = vcmp.ge.f32.partialorder %v9868, 0.0
      %vm9901 = vcmp.ge.f32.partialorder %v9869, 0.0
      %vm9902 = vcmp.ge.f32.partialorder %v9870, 0.0
      %vm9903 = vcmp.ge.f32.partialorder %v9871, 0.0
      %vm9904 = vcmp.ge.f32.partialorder %v9872, 0.0
      %vm9905 = vcmp.ge.f32.partialorder %v9873, 0.0
      %vm9906 = vcmp.ge.f32.partialorder %v9874, 0.0
      %vm9907 = vcmp.ge.f32.partialorder %v9875, 0.0
      %vm9908 = vcmp.ge.f32.partialorder %v9876, 0.0
      %vm9909 = vcmp.ge.f32.partialorder %v9877, 0.0
      %vm9910 = vcmp.ge.f32.partialorder %v9878, 0.0
      %vm9911 = vcmp.ge.f32.partialorder %v9879, 0.0
      %v9912 = vmul.f32 %v9848, 0.2
      %v9913 = vmul.f32 %v9849, 0.2
      %v9914 = vmul.f32 %v9850, 0.2
      %v9915 = vmul.f32 %v9851, 0.2
      %v9916 = vmul.f32 %v9852, 0.2
      %v9917 = vmul.f32 %v9853, 0.2
      %v9918 = vmul.f32 %v9854, 0.2
      %v9919 = vmul.f32 %v9855, 0.2
      %v9920 = vmul.f32 %v9856, 0.2
      %v9921 = vmul.f32 %v9857, 0.2
      %v9922 = vmul.f32 %v9858, 0.2
      %v9923 = vmul.f32 %v9859, 0.2
      %v9924 = vmul.f32 %v9860, 0.2
      %v9925 = vmul.f32 %v9861, 0.2
      %v9926 = vmul.f32 %v9862, 0.2
      %v9927 = vmul.f32 %v9863, 0.2
      %v9928 = vmul.f32 %v9864, 0.2
      %v9929 = vmul.f32 %v9865, 0.2
      %v9930 = vmul.f32 %v9866, 0.2
      %v9931 = vmul.f32 %v9867, 0.2
      %v9932 = vmul.f32 %v9868, 0.2
      %v9933 = vmul.f32 %v9869, 0.2
      %v9934 = vmul.f32 %v9870, 0.2
      %v9935 = vmul.f32 %v9871, 0.2
      %v9936 = vmul.f32 %v9872, 0.2
      %v9937 = vmul.f32 %v9873, 0.2
      %v9938 = vmul.f32 %v9874, 0.2
      %v9939 = vmul.f32 %v9875, 0.2
      %v9940 = vmul.f32 %v9876, 0.2
      %v9941 = vmul.f32 %v9877, 0.2
      %v9942 = vmul.f32 %v9878, 0.2
      %v9943 = vmul.f32 %v9879, 0.2
      %v9944 = vsel %vm9880, %v9848, %v9912
      %v9945 = vsel %vm9881, %v9849, %v9913
      %v9946 = vsel %vm9882, %v9850, %v9914
      %v9947 = vsel %vm9883, %v9851, %v9915
      %v9948 = vsel %vm9884, %v9852, %v9916
      %v9949 = vsel %vm9885, %v9853, %v9917
      %v9950 = vsel %vm9886, %v9854, %v9918
      %v9951 = vsel %vm9887, %v9855, %v9919
      %v9952 = vsel %vm9888, %v9856, %v9920
      %v9953 = vsel %vm9889, %v9857, %v9921
      %v9954 = vsel %vm9890, %v9858, %v9922
      %v9955 = vsel %vm9891, %v9859, %v9923
      %v9956 = vsel %vm9892, %v9860, %v9924
      %v9957 = vsel %vm9893, %v9861, %v9925
      %v9958 = vsel %vm9894, %v9862, %v9926
      %v9959 = vsel %vm9895, %v9863, %v9927
      %v9960 = vsel %vm9896, %v9864, %v9928
      %v9961 = vsel %vm9897, %v9865, %v9929
      %v9962 = vsel %vm9898, %v9866, %v9930
      %v9963 = vsel %vm9899, %v9867, %v9931
      %v9964 = vsel %vm9900, %v9868, %v9932
      %v9965 = vsel %vm9901, %v9869, %v9933
      %v9966 = vsel %vm9902, %v9870, %v9934
      %v9967 = vsel %vm9903, %v9871, %v9935
      %v9968 = vsel %vm9904, %v9872, %v9936
      %v9969 = vsel %vm9905, %v9873, %v9937
      %v9970 = vsel %vm9906, %v9874, %v9938
      %v9971 = vsel %vm9907, %v9875, %v9939
      %v9972 = vsel %vm9908, %v9876, %v9940
      %v9973 = vsel %vm9909, %v9877, %v9941
      %v9974 = vsel %vm9910, %v9878, %v9942
      %v9975 = vsel %vm9911, %v9879, %v9943
      %v9976 = vld [vmem:[%s6] sm:$0xff]
      %v9977 = vld [vmem:[%s6 + $0x8] sm:$0xff]
      %v9978 = vld [vmem:[%s6 + $0x10] sm:$0xff]
      %v9979 = vld [vmem:[%s6 + $0x18] sm:$0xff]
      %v9980 = vld [vmem:[%s6 + $0x20] sm:$0xff]
      %v9981 = vld [vmem:[%s6 + $0x28] sm:$0xff]
      %v9982 = vld [vmem:[%s6 + $0x30] sm:$0xff]
      %v9983 = vld [vmem:[%s6 + $0x38] sm:$0xff]
      %v9985 = vsel %vm2979, %v9944, 0
      %v9988 = vsel %vm2979, %v9945, 0
      %v9991 = vsel %vm2979, %v9946, 0
      %v9994 = vsel %vm2979, %v9947, 0
      %v9997 = vsel %vm2979, %v9948, 0
      %v10000 = vsel %vm2979, %v9949, 0
      %v10003 = vsel %vm2979, %v9950, 0
      %v10006 = vsel %vm2979, %v9951, 0
      %v10009 = vsel %vm2979, %v9952, 0
      %v10012 = vsel %vm2979, %v9953, 0
      %v10015 = vsel %vm2979, %v9954, 0
      %v10018 = vsel %vm2979, %v9955, 0
      %v10021 = vsel %vm2979, %v9956, 0
      %v10024 = vsel %vm2979, %v9957, 0
      %v10027 = vsel %vm2979, %v9958, 0
      %v10030 = vsel %vm2979, %v9959, 0
      %v10033 = vsel %vm2979, %v9960, 0
      %v10036 = vsel %vm2979, %v9961, 0
      %v10039 = vsel %vm2979, %v9962, 0
      %v10042 = vsel %vm2979, %v9963, 0
      %v10045 = vsel %vm2979, %v9964, 0
      %v10048 = vsel %vm2979, %v9965, 0
      %v10051 = vsel %vm2979, %v9966, 0
      %v10054 = vsel %vm2979, %v9967, 0
      %v10057 = vsel %vm2979, %v9968, 0
      %v10060 = vsel %vm2979, %v9969, 0
      %v10063 = vsel %vm2979, %v9970, 0
      %v10066 = vsel %vm2979, %v9971, 0
      %v10069 = vsel %vm2979, %v9972, 0
      %v10072 = vsel %vm2979, %v9973, 0
      %v10075 = vsel %vm2979, %v9974, 0
      %v10078 = vsel %vm2979, %v9975, 0
      %10080 = vmatpush.msra.mxu0 0.0
      %10081 = vmatpush.msra.mxu0 0.0
      %10082 = vmatpush.msra.mxu0 0.0
      %10083 = vmatpush.msra.mxu0 0.0
      %10084 = vmatpush.msra.mxu0 0.0
      %10085 = vmatpush.msra.mxu0 0.0
      %10086 = vmatpush.msra.mxu0 0.0
      %10087 = vmatpush.msra.mxu0 0.0
      %10088 = vmatpush.msra.mxu0 %v9983
      %10089 = vmatpush.msra.mxu0 %v9982
      %10090 = vmatpush.msra.mxu0 %v9981
      %10091 = vmatpush.msra.mxu0 %v9980
      %10092 = vmatpush.msra.mxu0 %v9979
      %10093 = vmatpush.msra.mxu0 %v9978
      %10094 = vmatpush.msra.mxu0 %v9977
      %10095 = vmatpush.msra.mxu0 %v9976
      %10096 = vmatmul.f32.gmra.mxu0 %v9985
      %v10097 = vpop.f32.mrf.mxu0
      %v10098 = vadd.f32 0.0, %v10097
      %10099 = vmatmul.f32.gmra.mxu0 %v9988
      %v10100 = vpop.f32.mrf.mxu0
      %v10101 = vadd.f32 0.0, %v10100
      %10102 = vmatmul.f32.gmra.mxu0 %v9991
      %v10103 = vpop.f32.mrf.mxu0
      %v10104 = vadd.f32 0.0, %v10103
      %10105 = vmatmul.f32.gmra.mxu0 %v9994
      %v10106 = vpop.f32.mrf.mxu0
      %v10107 = vadd.f32 0.0, %v10106
      %10108 = vmatmul.f32.gmra.mxu0 %v9997
      %v10109 = vpop.f32.mrf.mxu0
      %v10110 = vadd.f32 0.0, %v10109
      %10111 = vmatmul.f32.gmra.mxu0 %v10000
      %v10112 = vpop.f32.mrf.mxu0
      %v10113 = vadd.f32 0.0, %v10112
      %10114 = vmatmul.f32.gmra.mxu0 %v10003
      %v10115 = vpop.f32.mrf.mxu0
      %v10116 = vadd.f32 0.0, %v10115
      %10117 = vmatmul.f32.gmra.mxu0 %v10006
      %v10118 = vpop.f32.mrf.mxu0
      %v10119 = vadd.f32 0.0, %v10118
      %10120 = vmatmul.f32.gmra.mxu0 %v10009
      %v10121 = vpop.f32.mrf.mxu0
      %v10122 = vadd.f32 0.0, %v10121
      %10123 = vmatmul.f32.gmra.mxu0 %v10012
      %v10124 = vpop.f32.mrf.mxu0
      %v10125 = vadd.f32 0.0, %v10124
      %10126 = vmatmul.f32.gmra.mxu0 %v10015
      %v10127 = vpop.f32.mrf.mxu0
      %v10128 = vadd.f32 0.0, %v10127
      %10129 = vmatmul.f32.gmra.mxu0 %v10018
      %v10130 = vpop.f32.mrf.mxu0
      %v10131 = vadd.f32 0.0, %v10130
      %10132 = vmatmul.f32.gmra.mxu0 %v10021
      %v10133 = vpop.f32.mrf.mxu0
      %v10134 = vadd.f32 0.0, %v10133
      %10135 = vmatmul.f32.gmra.mxu0 %v10024
      %v10136 = vpop.f32.mrf.mxu0
      %v10137 = vadd.f32 0.0, %v10136
      %10138 = vmatmul.f32.gmra.mxu0 %v10027
      %v10139 = vpop.f32.mrf.mxu0
      %v10140 = vadd.f32 0.0, %v10139
      %10141 = vmatmul.f32.gmra.mxu0 %v10030
      %v10142 = vpop.f32.mrf.mxu0
      %v10143 = vadd.f32 0.0, %v10142
      %10144 = vmatmul.f32.gmra.mxu0 %v10033
      %v10145 = vpop.f32.mrf.mxu0
      %v10146 = vadd.f32 0.0, %v10145
      %10147 = vmatmul.f32.gmra.mxu0 %v10036
      %v10148 = vpop.f32.mrf.mxu0
      %v10149 = vadd.f32 0.0, %v10148
      %10150 = vmatmul.f32.gmra.mxu0 %v10039
      %v10151 = vpop.f32.mrf.mxu0
      %v10152 = vadd.f32 0.0, %v10151
      %10153 = vmatmul.f32.gmra.mxu0 %v10042
      %v10154 = vpop.f32.mrf.mxu0
      %v10155 = vadd.f32 0.0, %v10154
      %10156 = vmatmul.f32.gmra.mxu0 %v10045
      %v10157 = vpop.f32.mrf.mxu0
      %v10158 = vadd.f32 0.0, %v10157
      %10159 = vmatmul.f32.gmra.mxu0 %v10048
      %v10160 = vpop.f32.mrf.mxu0
      %v10161 = vadd.f32 0.0, %v10160
      %10162 = vmatmul.f32.gmra.mxu0 %v10051
      %v10163 = vpop.f32.mrf.mxu0
      %v10164 = vadd.f32 0.0, %v10163
      %10165 = vmatmul.f32.gmra.mxu0 %v10054
      %v10166 = vpop.f32.mrf.mxu0
      %v10167 = vadd.f32 0.0, %v10166
      %10168 = vmatmul.f32.gmra.mxu0 %v10057
      %v10169 = vpop.f32.mrf.mxu0
      %v10170 = vadd.f32 0.0, %v10169
      %10171 = vmatmul.f32.gmra.mxu0 %v10060
      %v10172 = vpop.f32.mrf.mxu0
      %v10173 = vadd.f32 0.0, %v10172
      %10174 = vmatmul.f32.gmra.mxu0 %v10063
      %v10175 = vpop.f32.mrf.mxu0
      %v10176 = vadd.f32 0.0, %v10175
      %10177 = vmatmul.f32.gmra.mxu0 %v10066
      %v10178 = vpop.f32.mrf.mxu0
      %v10179 = vadd.f32 0.0, %v10178
      %10180 = vmatmul.f32.gmra.mxu0 %v10069
      %v10181 = vpop.f32.mrf.mxu0
      %v10182 = vadd.f32 0.0, %v10181
      %10183 = vmatmul.f32.gmra.mxu0 %v10072
      %v10184 = vpop.f32.mrf.mxu0
      %v10185 = vadd.f32 0.0, %v10184
      %10186 = vmatmul.f32.gmra.mxu0 %v10075
      %v10187 = vpop.f32.mrf.mxu0
      %v10188 = vadd.f32 0.0, %v10187
      %10189 = vmatmul.f32.gmra.mxu0 %v10078
      %v10190 = vpop.f32.mrf.mxu0
      %v10191 = vadd.f32 0.0, %v10190
      %10192 = vdwg.mxu0
      %vm10193 = vcmask 130048
      %10194 = vst.msk [vmem:[%s278] sm:$0xff] %vm10193, %v10098
      %10195 = vst.msk [vmem:[%s278 + $0x8] sm:$0xff] %vm10193, %v10101
      %10196 = vst.msk [vmem:[%s278 + $0x10] sm:$0xff] %vm10193, %v10104
      %10197 = vst.msk [vmem:[%s278 + $0x18] sm:$0xff] %vm10193, %v10107
      %10198 = vst.msk [vmem:[%s278 + $0x20] sm:$0xff] %vm10193, %v10110
      %10199 = vst.msk [vmem:[%s278 + $0x28] sm:$0xff] %vm10193, %v10113
      %10200 = vst.msk [vmem:[%s278 + $0x30] sm:$0xff] %vm10193, %v10116
      %10201 = vst.msk [vmem:[%s278 + $0x38] sm:$0xff] %vm10193, %v10119
      %10202 = vst.msk [vmem:[%s278 + $0x40] sm:$0xff] %vm10193, %v10122
      %10203 = vst.msk [vmem:[%s278 + $0x48] sm:$0xff] %vm10193, %v10125
      %10204 = vst.msk [vmem:[%s278 + $0x50] sm:$0xff] %vm10193, %v10128
      %10205 = vst.msk [vmem:[%s278 + $0x58] sm:$0xff] %vm10193, %v10131
      %10206 = vst.msk [vmem:[%s278 + $0x60] sm:$0xff] %vm10193, %v10134
      %10207 = vst.msk [vmem:[%s278 + $0x68] sm:$0xff] %vm10193, %v10137
      %10208 = vst.msk [vmem:[%s278 + $0x70] sm:$0xff] %vm10193, %v10140
      %10209 = vst.msk [vmem:[%s278 + $0x78] sm:$0xff] %vm10193, %v10143
      %10210 = vst.msk [vmem:[%s278 + $0x80] sm:$0xff] %vm10193, %v10146
      %10211 = vst.msk [vmem:[%s278 + $0x88] sm:$0xff] %vm10193, %v10149
      %10212 = vst.msk [vmem:[%s278 + $0x90] sm:$0xff] %vm10193, %v10152
      %10213 = vst.msk [vmem:[%s278 + $0x98] sm:$0xff] %vm10193, %v10155
      %10214 = vst.msk [vmem:[%s278 + $0xa0] sm:$0xff] %vm10193, %v10158
      %10215 = vst.msk [vmem:[%s278 + $0xa8] sm:$0xff] %vm10193, %v10161
      %10216 = vst.msk [vmem:[%s278 + $0xb0] sm:$0xff] %vm10193, %v10164
      %10217 = vst.msk [vmem:[%s278 + $0xb8] sm:$0xff] %vm10193, %v10167
      %10218 = vst.msk [vmem:[%s278 + $0xc0] sm:$0xff] %vm10193, %v10170
      %10219 = vst.msk [vmem:[%s278 + $0xc8] sm:$0xff] %vm10193, %v10173
      %10220 = vst.msk [vmem:[%s278 + $0xd0] sm:$0xff] %vm10193, %v10176
      %10221 = vst.msk [vmem:[%s278 + $0xd8] sm:$0xff] %vm10193, %v10179
      %10222 = vst.msk [vmem:[%s278 + $0xe0] sm:$0xff] %vm10193, %v10182
      %10223 = vst.msk [vmem:[%s278 + $0xe8] sm:$0xff] %vm10193, %v10185
      %10224 = vst.msk [vmem:[%s278 + $0xf0] sm:$0xff] %vm10193, %v10188
      %10225 = vst.msk [vmem:[%s278 + $0xf8] sm:$0xff] %vm10193, %v10191
      %p10226 = scmp.lt.s32.totalorder %s18, 1
      %s10227 = scalar_select %p10226, %s18, 1
      %s10228 = smul.addr %s10227, 32
      %s10229 = smul.addr %s10228, 8
      %s10230 = scalar_lea.vmem %s7, %s10229
      // Predicated region
      $region49: #{inception_forward.1} parent=47 // pred_check
        %p10231 = pneg %p188
      $region50: #{inception_forward.1} parent=47 // pred_check_branch
        %10233 = sbr.rel (%p10231) target = $region52
      $region51: #{inception_forward.1} parent=47 // pred_region
        _
      $region52: #{inception_forward.1} parent=47 // pred_fallthru
        _
    $region48: #{inception_forward.1} parent=5 // pred_fallthru
      _
    %p10234 = scmp.le.s32.totalorder 2, %s13
    // Predicated region
    $region53: #{inception_forward.1} parent=5 // pred_check
      %p10235 = pneg %p10234
    $region54: #{inception_forward.1} parent=5 // pred_check_branch
      %10237 = sbr.rel (%p10235) target = $region56
    $region55: #{inception_forward.1} parent=5 // pred_region
      %s10238 = ssub.s32 %s13, 2
      // Predicated region
      $region57: #{inception_forward.1} parent=55 // pred_check
        %p10239 = pneg %p194
      $region58: #{inception_forward.1} parent=55 // pred_check_branch
        %10241 = sbr.rel (%p10239) target = $region60
      $region59: #{inception_forward.1} parent=55 // pred_region
        %p10242 = scmp.lt.s32.totalorder %s19, 1
        %s10243 = scalar_select %p10242, %s19, 1
        %s10244 = smul.addr %s10243, 32
        %s10245 = smul.addr %s10244, 8
        %s10246 = scalar_lea.vmem %s7, %s10245
      $region60: #{inception_forward.1} parent=55 // pred_fallthru
        _
    $region56: #{inception_forward.1} parent=5 // pred_fallthru
      _
  $region6: #{inception_forward.1} parent=0 // loop_footer
    %s17 = sadd.s32 1, %s13
  $region7: #{inception_forward.1} parent=0 // loop_footer_branch
    %12 = sbr.rel target = $region3
  $region8: #{inception_forward.1} parent=0 // loop_exit
    _

</llo_original>
